<compile_context>
chip_gen: v7x
topology: tpu7x:2x2x1
jax: 0.10.0
libtpu: 0.0.40
codegen_flags: <defaults>
</compile_context>

<pallas_src>
import functools

import jax
import jax.numpy as jnp
from jax.experimental import pallas as pl
from jax.experimental.pallas import tpu as pltpu

K = 7      # kernel_size
PAD = 3    # padding
LANES = 128


def _conv7_dropout_kernel(x_ref, w_ref, b_ref, *rest,
                          H, W, cin, cout_pad, apply_mask):
    # x_ref : (1, H+2*PAD, W+2*PAD, cin)   padded input tile (bf16, one image)
    # w_ref : (K, K*cin, cout_pad)         conv weight, per-kh (K*cin, 128) mats
    # b_ref : (1, cout_pad)                bias (f32)
    # m_ref : (1, H*W, cout_pad)           pre-scaled dropout mask (train only)
    # o_ref : (1, H*W, cout_pad)           lane-dense output tile
    if apply_mask:
        m_ref, o_ref = rest
    else:
        (o_ref,) = rest

    acc = jnp.zeros((H * W, cout_pad), dtype=jnp.float32)
    for kh in range(K):
        # Fold the 7 kw taps into the contraction: (H, W, K*cin) patch built
        # from strided ref loads, one (H*W, K*cin) @ (K*cin, 128) matmul.
        patch = jnp.concatenate(
            [x_ref[0, kh:kh + H, kw:kw + W, :] for kw in range(K)], axis=-1)
        acc = acc + jnp.dot(patch.reshape(H * W, K * cin), w_ref[kh],
                            preferred_element_type=jnp.float32)

    acc = acc + b_ref[...]                       # (1, cout_pad) broadcasts

    if apply_mask:
        acc = acc * m_ref[0]                     # dropout: 0 or 1/(1-p)

    o_ref[0] = acc.astype(o_ref.dtype)


def down_sev_forward(x_nchw, w_oihw, bias, *, p=0.1, training=False,
                     rng_key=None):
    """Forward pass equivalent to DownSev.forward (NCHW in, NCHW out)."""
    N, Cin, H, W = x_nchw.shape
    Cout = w_oihw.shape[0]
    Cout_pad = max(LANES, ((Cout + LANES - 1) // LANES) * LANES)

    # Glue: layout conversion + halo padding + bf16 cast (plain JAX).
    # TODO(synk): if the surrounding model can run NHWC end-to-end, drop the
    # NCHW<->NHWC transposes (extra HBM passes around a memory-bound conv).
    x_nhwc = jnp.transpose(x_nchw, (0, 2, 3, 1)).astype(jnp.bfloat16)
    x_pad = jnp.pad(x_nhwc, ((0, 0), (PAD, PAD), (PAD, PAD), (0, 0)))

    # OIHW -> HWIO, pad O up to 128 lanes, flatten (kw, ci) for tap folding.
    w_hwio = jnp.transpose(w_oihw, (2, 3, 1, 0))                  # (K,K,Cin,Cout)
    w_hwio = jnp.pad(w_hwio, ((0, 0), (0, 0), (0, 0), (0, Cout_pad - Cout)))
    w_mat = w_hwio.reshape(K, K * Cin, Cout_pad).astype(jnp.bfloat16)
    b_pad = jnp.pad(bias.astype(jnp.float32),
                    (0, Cout_pad - Cout)).reshape(1, Cout_pad)

    apply_mask = bool(training) and p > 0.0
    inputs = [x_pad, w_mat, b_pad]
    in_specs = [
        pl.BlockSpec((1, H + 2 * PAD, W + 2 * PAD, Cin),
                     lambda n: (n, 0, 0, 0)),
        pl.BlockSpec((K, K * Cin, Cout_pad), lambda n: (0, 0, 0)),
        pl.BlockSpec((1, Cout_pad), lambda n: (0, 0)),
    ]
    if apply_mask:
        if rng_key is None:
            rng_key = jax.random.PRNGKey(0)
        if p < 1.0:
            keep = jax.random.bernoulli(rng_key, 1.0 - p, (N, H * W, Cout_pad))
            mask = keep.astype(jnp.float32) * (1.0 / (1.0 - p))
        else:
            mask = jnp.zeros((N, H * W, Cout_pad), jnp.float32)
        inputs.append(mask)
        in_specs.append(pl.BlockSpec((1, H * W, Cout_pad),
                                     lambda n: (n, 0, 0)))

    kernel = functools.partial(_conv7_dropout_kernel,
                               H=H, W=W, cin=Cin, cout_pad=Cout_pad,
                               apply_mask=apply_mask)

    out = pl.pallas_call(
        kernel,
        out_shape=jax.ShapeDtypeStruct((N, H * W, Cout_pad), x_nchw.dtype),
        grid=(N,),
        in_specs=in_specs,
        out_specs=pl.BlockSpec((1, H * W, Cout_pad), lambda n: (n, 0, 0)),
        compiler_params=pltpu.CompilerParams(
            dimension_semantics=("parallel",)),
    )(*inputs)

    out = out.reshape(N, H, W, Cout_pad)[..., :Cout]
    return jnp.transpose(out, (0, 3, 1, 2))                       # back to NCHW


def _reference_conv(x_nchw, w_oihw, bias):
    # Reference with the same bf16 operand rounding the kernel uses
    # (f32 accumulation), so the comparison isolates kernel correctness.
    xb = x_nchw.astype(jnp.bfloat16).astype(jnp.float32)
    wb = w_oihw.astype(jnp.bfloat16).astype(jnp.float32)
    out = jax.lax.conv_general_dilated(
        xb, wb, window_strides=(1, 1),
        padding=((PAD, PAD), (PAD, PAD)),
        dimension_numbers=("NCHW", "OIHW", "NCHW"))
    return out + bias[None, :, None, None]


if __name__ == "__main__":
    # Small shapes consistent with the module: batch=2, in_ch=4, out_ch=8, 16x16.
    N, Cin, Cout, H, W = 2, 4, 8, 16, 16
    p = 0.1

    key = jax.random.PRNGKey(0)
    kx, kw_, kb = jax.random.split(key, 3)
    x = jax.random.normal(kx, (N, Cin, H, W), dtype=jnp.float32)
    weight = jax.random.normal(kw_, (Cout, Cin, K, K), dtype=jnp.float32) * 0.05
    bias = jax.random.normal(kb, (Cout,), dtype=jnp.float32) * 0.05

    # Eval-mode forward (dropout is identity, like nn.Dropout.eval()).
    out = jax.block_until_ready(
        down_sev_forward(x, weight, bias, p=p, training=False))
    ref = _reference_conv(x, weight, bias)
    assert out.shape == (N, Cout, H, W)
    assert jnp.allclose(out, ref, atol=2e-2, rtol=2e-2), \
        "conv mismatch vs reference"

    # Train-mode forward (stochastic dropout mask, so only exercise the path).
    out_train = jax.block_until_ready(
        down_sev_forward(x, weight, bias, p=p, training=True,
                         rng_key=jax.random.PRNGKey(123)))
    assert out_train.shape == (N, Cout, H, W)

    print("KERNEL_OK")
</pallas_src>

<mosaic_0001>
module attributes {stable_mosaic.version = 11 : i64} {
  func.func @_conv7_dropout_kernel(%arg0: i32, %arg1: memref<1x22x22x4xbf16, #tpu.memory_space<vmem>>, %arg2: memref<7x28x128xbf16, #tpu.memory_space<vmem>>, %arg3: memref<1x128xf32, #tpu.memory_space<vmem>>, %arg4: memref<1x256x128xf32, #tpu.memory_space<vmem>>) attributes {dimension_semantics = [#tpu.dimension_semantics<parallel>], iteration_bounds = array<i64: 2>, scalar_prefetch = 0 : i64, scratch_operands = 0 : i64, tpu.core_type = #tpu.core_type<tc>, window_params = [{transform_indices = @transform_0, window_bounds = array<i64: 1, 22, 22, 4>}, {pipeline_mode = #tpu.pipeline_mode<synchronous>, transform_indices = @transform_1, window_bounds = array<i64: 7, 28, 128>}, {pipeline_mode = #tpu.pipeline_mode<synchronous>, transform_indices = @transform_2, window_bounds = array<i64: 1, 128>}, {transform_indices = @transform_3, window_bounds = array<i64: 1, 256, 128>}]} {
    %cst = arith.constant 0.000000e+00 : f32
    %0 = vector.broadcast %cst : f32 to vector<256x128xf32>
    %c0 = arith.constant 0 : index
    %c0_0 = arith.constant 0 : index
    %c0_1 = arith.constant 0 : index
    %c0_2 = arith.constant 0 : index
    %1 = vector.load %arg1[%c0, %c0_0, %c0_1, %c0_2] : memref<1x22x22x4xbf16, #tpu.memory_space<vmem>>, vector<1x16x16x4xbf16>
    %2 = vector.shape_cast %1 : vector<1x16x16x4xbf16> to vector<16x16x4xbf16>
    %c0_3 = arith.constant 0 : index
    %c0_4 = arith.constant 0 : index
    %c1 = arith.constant 1 : index
    %c0_5 = arith.constant 0 : index
    %3 = vector.load %arg1[%c0_3, %c0_4, %c1, %c0_5] : memref<1x22x22x4xbf16, #tpu.memory_space<vmem>>, vector<1x16x16x4xbf16>
    %4 = vector.shape_cast %3 : vector<1x16x16x4xbf16> to vector<16x16x4xbf16>
    %c0_6 = arith.constant 0 : index
    %c0_7 = arith.constant 0 : index
    %c2 = arith.constant 2 : index
    %c0_8 = arith.constant 0 : index
    %5 = vector.load %arg1[%c0_6, %c0_7, %c2, %c0_8] : memref<1x22x22x4xbf16, #tpu.memory_space<vmem>>, vector<1x16x16x4xbf16>
    %6 = vector.shape_cast %5 : vector<1x16x16x4xbf16> to vector<16x16x4xbf16>
    %c0_9 = arith.constant 0 : index
    %c0_10 = arith.constant 0 : index
    %c3 = arith.constant 3 : index
    %c0_11 = arith.constant 0 : index
    %7 = vector.load %arg1[%c0_9, %c0_10, %c3, %c0_11] : memref<1x22x22x4xbf16, #tpu.memory_space<vmem>>, vector<1x16x16x4xbf16>
    %8 = vector.shape_cast %7 : vector<1x16x16x4xbf16> to vector<16x16x4xbf16>
    %c0_12 = arith.constant 0 : index
    %c0_13 = arith.constant 0 : index
    %c4 = arith.constant 4 : index
    %c0_14 = arith.constant 0 : index
    %9 = vector.load %arg1[%c0_12, %c0_13, %c4, %c0_14] : memref<1x22x22x4xbf16, #tpu.memory_space<vmem>>, vector<1x16x16x4xbf16>
    %10 = vector.shape_cast %9 : vector<1x16x16x4xbf16> to vector<16x16x4xbf16>
    %c0_15 = arith.constant 0 : index
    %c0_16 = arith.constant 0 : index
    %c5 = arith.constant 5 : index
    %c0_17 = arith.constant 0 : index
    %11 = vector.load %arg1[%c0_15, %c0_16, %c5, %c0_17] : memref<1x22x22x4xbf16, #tpu.memory_space<vmem>>, vector<1x16x16x4xbf16>
    %12 = vector.shape_cast %11 : vector<1x16x16x4xbf16> to vector<16x16x4xbf16>
    %c0_18 = arith.constant 0 : index
    %c0_19 = arith.constant 0 : index
    %c6 = arith.constant 6 : index
    %c0_20 = arith.constant 0 : index
    %13 = vector.load %arg1[%c0_18, %c0_19, %c6, %c0_20] : memref<1x22x22x4xbf16, #tpu.memory_space<vmem>>, vector<1x16x16x4xbf16>
    %14 = vector.shape_cast %13 : vector<1x16x16x4xbf16> to vector<16x16x4xbf16>
    %15 = tpu.concatenate %2, %4, %6, %8, %10, %12, %14 in 2 : vector<16x16x4xbf16>, vector<16x16x4xbf16>, vector<16x16x4xbf16>, vector<16x16x4xbf16>, vector<16x16x4xbf16>, vector<16x16x4xbf16>, vector<16x16x4xbf16> -> vector<16x16x28xbf16>
    %16 = vector.shape_cast %15 : vector<16x16x28xbf16> to vector<256x28xbf16>
    %c0_21 = arith.constant 0 : index
    %c0_22 = arith.constant 0 : index
    %c0_23 = arith.constant 0 : index
    %17 = vector.load %arg2[%c0_21, %c0_22, %c0_23] : memref<7x28x128xbf16, #tpu.memory_space<vmem>>, vector<1x28x128xbf16>
    %18 = vector.shape_cast %17 : vector<1x28x128xbf16> to vector<28x128xbf16>
    %cst_24 = arith.constant dense<0.000000e+00> : vector<256x128xf32>
    %19 = tpu.matmul %16, %18, %cst_24 {dimension_numbers = #tpu.dot_dimension_numbers<[1], [0], [0], [1], [0, 0, 1, 1], [], []>} : vector<256x28xbf16>, vector<28x128xbf16>, vector<256x128xf32> -> vector<256x128xf32>
    %20 = arith.addf %0, %19 : vector<256x128xf32>
    %c0_25 = arith.constant 0 : index
    %c1_26 = arith.constant 1 : index
    %c0_27 = arith.constant 0 : index
    %c0_28 = arith.constant 0 : index
    %21 = vector.load %arg1[%c0_25, %c1_26, %c0_27, %c0_28] : memref<1x22x22x4xbf16, #tpu.memory_space<vmem>>, vector<1x16x16x4xbf16>
    %22 = vector.shape_cast %21 : vector<1x16x16x4xbf16> to vector<16x16x4xbf16>
    %c0_29 = arith.constant 0 : index
    %c1_30 = arith.constant 1 : index
    %c1_31 = arith.constant 1 : index
    %c0_32 = arith.constant 0 : index
    %23 = vector.load %arg1[%c0_29, %c1_30, %c1_31, %c0_32] : memref<1x22x22x4xbf16, #tpu.memory_space<vmem>>, vector<1x16x16x4xbf16>
    %24 = vector.shape_cast %23 : vector<1x16x16x4xbf16> to vector<16x16x4xbf16>
    %c0_33 = arith.constant 0 : index
    %c1_34 = arith.constant 1 : index
    %c2_35 = arith.constant 2 : index
    %c0_36 = arith.constant 0 : index
    %25 = vector.load %arg1[%c0_33, %c1_34, %c2_35, %c0_36] : memref<1x22x22x4xbf16, #tpu.memory_space<vmem>>, vector<1x16x16x4xbf16>
    %26 = vector.shape_cast %25 : vector<1x16x16x4xbf16> to vector<16x16x4xbf16>
    %c0_37 = arith.constant 0 : index
    %c1_38 = arith.constant 1 : index
    %c3_39 = arith.constant 3 : index
    %c0_40 = arith.constant 0 : index
    %27 = vector.load %arg1[%c0_37, %c1_38, %c3_39, %c0_40] : memref<1x22x22x4xbf16, #tpu.memory_space<vmem>>, vector<1x16x16x4xbf16>
    %28 = vector.shape_cast %27 : vector<1x16x16x4xbf16> to vector<16x16x4xbf16>
    %c0_41 = arith.constant 0 : index
    %c1_42 = arith.constant 1 : index
    %c4_43 = arith.constant 4 : index
    %c0_44 = arith.constant 0 : index
    %29 = vector.load %arg1[%c0_41, %c1_42, %c4_43, %c0_44] : memref<1x22x22x4xbf16, #tpu.memory_space<vmem>>, vector<1x16x16x4xbf16>
    %30 = vector.shape_cast %29 : vector<1x16x16x4xbf16> to vector<16x16x4xbf16>
    %c0_45 = arith.constant 0 : index
    %c1_46 = arith.constant 1 : index
    %c5_47 = arith.constant 5 : index
    %c0_48 = arith.constant 0 : index
    %31 = vector.load %arg1[%c0_45, %c1_46, %c5_47, %c0_48] : memref<1x22x22x4xbf16, #tpu.memory_space<vmem>>, vector<1x16x16x4xbf16>
    %32 = vector.shape_cast %31 : vector<1x16x16x4xbf16> to vector<16x16x4xbf16>
    %c0_49 = arith.constant 0 : index
    %c1_50 = arith.constant 1 : index
    %c6_51 = arith.constant 6 : index
    %c0_52 = arith.constant 0 : index
    %33 = vector.load %arg1[%c0_49, %c1_50, %c6_51, %c0_52] : memref<1x22x22x4xbf16, #tpu.memory_space<vmem>>, vector<1x16x16x4xbf16>
    %34 = vector.shape_cast %33 : vector<1x16x16x4xbf16> to vector<16x16x4xbf16>
    %35 = tpu.concatenate %22, %24, %26, %28, %30, %32, %34 in 2 : vector<16x16x4xbf16>, vector<16x16x4xbf16>, vector<16x16x4xbf16>, vector<16x16x4xbf16>, vector<16x16x4xbf16>, vector<16x16x4xbf16>, vector<16x16x4xbf16> -> vector<16x16x28xbf16>
    %36 = vector.shape_cast %35 : vector<16x16x28xbf16> to vector<256x28xbf16>
    %c1_53 = arith.constant 1 : index
    %c0_54 = arith.constant 0 : index
    %c0_55 = arith.constant 0 : index
    %37 = vector.load %arg2[%c1_53, %c0_54, %c0_55] : memref<7x28x128xbf16, #tpu.memory_space<vmem>>, vector<1x28x128xbf16>
    %38 = vector.shape_cast %37 : vector<1x28x128xbf16> to vector<28x128xbf16>
    %cst_56 = arith.constant dense<0.000000e+00> : vector<256x128xf32>
    %39 = tpu.matmul %36, %38, %cst_56 {dimension_numbers = #tpu.dot_dimension_numbers<[1], [0], [0], [1], [0, 0, 1, 1], [], []>} : vector<256x28xbf16>, vector<28x128xbf16>, vector<256x128xf32> -> vector<256x128xf32>
    %40 = arith.addf %20, %39 : vector<256x128xf32>
    %c0_57 = arith.constant 0 : index
    %c2_58 = arith.constant 2 : index
    %c0_59 = arith.constant 0 : index
    %c0_60 = arith.constant 0 : index
    %41 = vector.load %arg1[%c0_57, %c2_58, %c0_59, %c0_60] : memref<1x22x22x4xbf16, #tpu.memory_space<vmem>>, vector<1x16x16x4xbf16>
    %42 = vector.shape_cast %41 : vector<1x16x16x4xbf16> to vector<16x16x4xbf16>
    %c0_61 = arith.constant 0 : index
    %c2_62 = arith.constant 2 : index
    %c1_63 = arith.constant 1 : index
    %c0_64 = arith.constant 0 : index
    %43 = vector.load %arg1[%c0_61, %c2_62, %c1_63, %c0_64] : memref<1x22x22x4xbf16, #tpu.memory_space<vmem>>, vector<1x16x16x4xbf16>
    %44 = vector.shape_cast %43 : vector<1x16x16x4xbf16> to vector<16x16x4xbf16>
    %c0_65 = arith.constant 0 : index
    %c2_66 = arith.constant 2 : index
    %c2_67 = arith.constant 2 : index
    %c0_68 = arith.constant 0 : index
    %45 = vector.load %arg1[%c0_65, %c2_66, %c2_67, %c0_68] : memref<1x22x22x4xbf16, #tpu.memory_space<vmem>>, vector<1x16x16x4xbf16>
    %46 = vector.shape_cast %45 : vector<1x16x16x4xbf16> to vector<16x16x4xbf16>
    %c0_69 = arith.constant 0 : index
    %c2_70 = arith.constant 2 : index
    %c3_71 = arith.constant 3 : index
    %c0_72 = arith.constant 0 : index
    %47 = vector.load %arg1[%c0_69, %c2_70, %c3_71, %c0_72] : memref<1x22x22x4xbf16, #tpu.memory_space<vmem>>, vector<1x16x16x4xbf16>
    %48 = vector.shape_cast %47 : vector<1x16x16x4xbf16> to vector<16x16x4xbf16>
    %c0_73 = arith.constant 0 : index
    %c2_74 = arith.constant 2 : index
    %c4_75 = arith.constant 4 : index
    %c0_76 = arith.constant 0 : index
    %49 = vector.load %arg1[%c0_73, %c2_74, %c4_75, %c0_76] : memref<1x22x22x4xbf16, #tpu.memory_space<vmem>>, vector<1x16x16x4xbf16>
    %50 = vector.shape_cast %49 : vector<1x16x16x4xbf16> to vector<16x16x4xbf16>
    %c0_77 = arith.constant 0 : index
    %c2_78 = arith.constant 2 : index
    %c5_79 = arith.constant 5 : index
    %c0_80 = arith.constant 0 : index
    %51 = vector.load %arg1[%c0_77, %c2_78, %c5_79, %c0_80] : memref<1x22x22x4xbf16, #tpu.memory_space<vmem>>, vector<1x16x16x4xbf16>
    %52 = vector.shape_cast %51 : vector<1x16x16x4xbf16> to vector<16x16x4xbf16>
    %c0_81 = arith.constant 0 : index
    %c2_82 = arith.constant 2 : index
    %c6_83 = arith.constant 6 : index
    %c0_84 = arith.constant 0 : index
    %53 = vector.load %arg1[%c0_81, %c2_82, %c6_83, %c0_84] : memref<1x22x22x4xbf16, #tpu.memory_space<vmem>>, vector<1x16x16x4xbf16>
    %54 = vector.shape_cast %53 : vector<1x16x16x4xbf16> to vector<16x16x4xbf16>
    %55 = tpu.concatenate %42, %44, %46, %48, %50, %52, %54 in 2 : vector<16x16x4xbf16>, vector<16x16x4xbf16>, vector<16x16x4xbf16>, vector<16x16x4xbf16>, vector<16x16x4xbf16>, vector<16x16x4xbf16>, vector<16x16x4xbf16> -> vector<16x16x28xbf16>
    %56 = vector.shape_cast %55 : vector<16x16x28xbf16> to vector<256x28xbf16>
    %c2_85 = arith.constant 2 : index
    %c0_86 = arith.constant 0 : index
    %c0_87 = arith.constant 0 : index
    %57 = vector.load %arg2[%c2_85, %c0_86, %c0_87] : memref<7x28x128xbf16, #tpu.memory_space<vmem>>, vector<1x28x128xbf16>
    %58 = vector.shape_cast %57 : vector<1x28x128xbf16> to vector<28x128xbf16>
    %cst_88 = arith.constant dense<0.000000e+00> : vector<256x128xf32>
    %59 = tpu.matmul %56, %58, %cst_88 {dimension_numbers = #tpu.dot_dimension_numbers<[1], [0], [0], [1], [0, 0, 1, 1], [], []>} : vector<256x28xbf16>, vector<28x128xbf16>, vector<256x128xf32> -> vector<256x128xf32>
    %60 = arith.addf %40, %59 : vector<256x128xf32>
    %c0_89 = arith.constant 0 : index
    %c3_90 = arith.constant 3 : index
    %c0_91 = arith.constant 0 : index
    %c0_92 = arith.constant 0 : index
    %61 = vector.load %arg1[%c0_89, %c3_90, %c0_91, %c0_92] : memref<1x22x22x4xbf16, #tpu.memory_space<vmem>>, vector<1x16x16x4xbf16>
    %62 = vector.shape_cast %61 : vector<1x16x16x4xbf16> to vector<16x16x4xbf16>
    %c0_93 = arith.constant 0 : index
    %c3_94 = arith.constant 3 : index
    %c1_95 = arith.constant 1 : index
    %c0_96 = arith.constant 0 : index
    %63 = vector.load %arg1[%c0_93, %c3_94, %c1_95, %c0_96] : memref<1x22x22x4xbf16, #tpu.memory_space<vmem>>, vector<1x16x16x4xbf16>
    %64 = vector.shape_cast %63 : vector<1x16x16x4xbf16> to vector<16x16x4xbf16>
    %c0_97 = arith.constant 0 : index
    %c3_98 = arith.constant 3 : index
    %c2_99 = arith.constant 2 : index
    %c0_100 = arith.constant 0 : index
    %65 = vector.load %arg1[%c0_97, %c3_98, %c2_99, %c0_100] : memref<1x22x22x4xbf16, #tpu.memory_space<vmem>>, vector<1x16x16x4xbf16>
    %66 = vector.shape_cast %65 : vector<1x16x16x4xbf16> to vector<16x16x4xbf16>
    %c0_101 = arith.constant 0 : index
    %c3_102 = arith.constant 3 : index
    %c3_103 = arith.constant 3 : index
    %c0_104 = arith.constant 0 : index
    %67 = vector.load %arg1[%c0_101, %c3_102, %c3_103, %c0_104] : memref<1x22x22x4xbf16, #tpu.memory_space<vmem>>, vector<1x16x16x4xbf16>
    %68 = vector.shape_cast %67 : vector<1x16x16x4xbf16> to vector<16x16x4xbf16>
    %c0_105 = arith.constant 0 : index
    %c3_106 = arith.constant 3 : index
    %c4_107 = arith.constant 4 : index
    %c0_108 = arith.constant 0 : index
    %69 = vector.load %arg1[%c0_105, %c3_106, %c4_107, %c0_108] : memref<1x22x22x4xbf16, #tpu.memory_space<vmem>>, vector<1x16x16x4xbf16>
    %70 = vector.shape_cast %69 : vector<1x16x16x4xbf16> to vector<16x16x4xbf16>
    %c0_109 = arith.constant 0 : index
    %c3_110 = arith.constant 3 : index
    %c5_111 = arith.constant 5 : index
    %c0_112 = arith.constant 0 : index
    %71 = vector.load %arg1[%c0_109, %c3_110, %c5_111, %c0_112] : memref<1x22x22x4xbf16, #tpu.memory_space<vmem>>, vector<1x16x16x4xbf16>
    %72 = vector.shape_cast %71 : vector<1x16x16x4xbf16> to vector<16x16x4xbf16>
    %c0_113 = arith.constant 0 : index
    %c3_114 = arith.constant 3 : index
    %c6_115 = arith.constant 6 : index
    %c0_116 = arith.constant 0 : index
    %73 = vector.load %arg1[%c0_113, %c3_114, %c6_115, %c0_116] : memref<1x22x22x4xbf16, #tpu.memory_space<vmem>>, vector<1x16x16x4xbf16>
    %74 = vector.shape_cast %73 : vector<1x16x16x4xbf16> to vector<16x16x4xbf16>
    %75 = tpu.concatenate %62, %64, %66, %68, %70, %72, %74 in 2 : vector<16x16x4xbf16>, vector<16x16x4xbf16>, vector<16x16x4xbf16>, vector<16x16x4xbf16>, vector<16x16x4xbf16>, vector<16x16x4xbf16>, vector<16x16x4xbf16> -> vector<16x16x28xbf16>
    %76 = vector.shape_cast %75 : vector<16x16x28xbf16> to vector<256x28xbf16>
    %c3_117 = arith.constant 3 : index
    %c0_118 = arith.constant 0 : index
    %c0_119 = arith.constant 0 : index
    %77 = vector.load %arg2[%c3_117, %c0_118, %c0_119] : memref<7x28x128xbf16, #tpu.memory_space<vmem>>, vector<1x28x128xbf16>
    %78 = vector.shape_cast %77 : vector<1x28x128xbf16> to vector<28x128xbf16>
    %cst_120 = arith.constant dense<0.000000e+00> : vector<256x128xf32>
    %79 = tpu.matmul %76, %78, %cst_120 {dimension_numbers = #tpu.dot_dimension_numbers<[1], [0], [0], [1], [0, 0, 1, 1], [], []>} : vector<256x28xbf16>, vector<28x128xbf16>, vector<256x128xf32> -> vector<256x128xf32>
    %80 = arith.addf %60, %79 : vector<256x128xf32>
    %c0_121 = arith.constant 0 : index
    %c4_122 = arith.constant 4 : index
    %c0_123 = arith.constant 0 : index
    %c0_124 = arith.constant 0 : index
    %81 = vector.load %arg1[%c0_121, %c4_122, %c0_123, %c0_124] : memref<1x22x22x4xbf16, #tpu.memory_space<vmem>>, vector<1x16x16x4xbf16>
    %82 = vector.shape_cast %81 : vector<1x16x16x4xbf16> to vector<16x16x4xbf16>
    %c0_125 = arith.constant 0 : index
    %c4_126 = arith.constant 4 : index
    %c1_127 = arith.constant 1 : index
    %c0_128 = arith.constant 0 : index
    %83 = vector.load %arg1[%c0_125, %c4_126, %c1_127, %c0_128] : memref<1x22x22x4xbf16, #tpu.memory_space<vmem>>, vector<1x16x16x4xbf16>
    %84 = vector.shape_cast %83 : vector<1x16x16x4xbf16> to vector<16x16x4xbf16>
    %c0_129 = arith.constant 0 : index
    %c4_130 = arith.constant 4 : index
    %c2_131 = arith.constant 2 : index
    %c0_132 = arith.constant 0 : index
    %85 = vector.load %arg1[%c0_129, %c4_130, %c2_131, %c0_132] : memref<1x22x22x4xbf16, #tpu.memory_space<vmem>>, vector<1x16x16x4xbf16>
    %86 = vector.shape_cast %85 : vector<1x16x16x4xbf16> to vector<16x16x4xbf16>
    %c0_133 = arith.constant 0 : index
    %c4_134 = arith.constant 4 : index
    %c3_135 = arith.constant 3 : index
    %c0_136 = arith.constant 0 : index
    %87 = vector.load %arg1[%c0_133, %c4_134, %c3_135, %c0_136] : memref<1x22x22x4xbf16, #tpu.memory_space<vmem>>, vector<1x16x16x4xbf16>
    %88 = vector.shape_cast %87 : vector<1x16x16x4xbf16> to vector<16x16x4xbf16>
    %c0_137 = arith.constant 0 : index
    %c4_138 = arith.constant 4 : index
    %c4_139 = arith.constant 4 : index
    %c0_140 = arith.constant 0 : index
    %89 = vector.load %arg1[%c0_137, %c4_138, %c4_139, %c0_140] : memref<1x22x22x4xbf16, #tpu.memory_space<vmem>>, vector<1x16x16x4xbf16>
    %90 = vector.shape_cast %89 : vector<1x16x16x4xbf16> to vector<16x16x4xbf16>
    %c0_141 = arith.constant 0 : index
    %c4_142 = arith.constant 4 : index
    %c5_143 = arith.constant 5 : index
    %c0_144 = arith.constant 0 : index
    %91 = vector.load %arg1[%c0_141, %c4_142, %c5_143, %c0_144] : memref<1x22x22x4xbf16, #tpu.memory_space<vmem>>, vector<1x16x16x4xbf16>
    %92 = vector.shape_cast %91 : vector<1x16x16x4xbf16> to vector<16x16x4xbf16>
    %c0_145 = arith.constant 0 : index
    %c4_146 = arith.constant 4 : index
    %c6_147 = arith.constant 6 : index
    %c0_148 = arith.constant 0 : index
    %93 = vector.load %arg1[%c0_145, %c4_146, %c6_147, %c0_148] : memref<1x22x22x4xbf16, #tpu.memory_space<vmem>>, vector<1x16x16x4xbf16>
    %94 = vector.shape_cast %93 : vector<1x16x16x4xbf16> to vector<16x16x4xbf16>
    %95 = tpu.concatenate %82, %84, %86, %88, %90, %92, %94 in 2 : vector<16x16x4xbf16>, vector<16x16x4xbf16>, vector<16x16x4xbf16>, vector<16x16x4xbf16>, vector<16x16x4xbf16>, vector<16x16x4xbf16>, vector<16x16x4xbf16> -> vector<16x16x28xbf16>
    %96 = vector.shape_cast %95 : vector<16x16x28xbf16> to vector<256x28xbf16>
    %c4_149 = arith.constant 4 : index
    %c0_150 = arith.constant 0 : index
    %c0_151 = arith.constant 0 : index
    %97 = vector.load %arg2[%c4_149, %c0_150, %c0_151] : memref<7x28x128xbf16, #tpu.memory_space<vmem>>, vector<1x28x128xbf16>
    %98 = vector.shape_cast %97 : vector<1x28x128xbf16> to vector<28x128xbf16>
    %cst_152 = arith.constant dense<0.000000e+00> : vector<256x128xf32>
    %99 = tpu.matmul %96, %98, %cst_152 {dimension_numbers = #tpu.dot_dimension_numbers<[1], [0], [0], [1], [0, 0, 1, 1], [], []>} : vector<256x28xbf16>, vector<28x128xbf16>, vector<256x128xf32> -> vector<256x128xf32>
    %100 = arith.addf %80, %99 : vector<256x128xf32>
    %c0_153 = arith.constant 0 : index
    %c5_154 = arith.constant 5 : index
    %c0_155 = arith.constant 0 : index
    %c0_156 = arith.constant 0 : index
    %101 = vector.load %arg1[%c0_153, %c5_154, %c0_155, %c0_156] : memref<1x22x22x4xbf16, #tpu.memory_space<vmem>>, vector<1x16x16x4xbf16>
    %102 = vector.shape_cast %101 : vector<1x16x16x4xbf16> to vector<16x16x4xbf16>
    %c0_157 = arith.constant 0 : index
    %c5_158 = arith.constant 5 : index
    %c1_159 = arith.constant 1 : index
    %c0_160 = arith.constant 0 : index
    %103 = vector.load %arg1[%c0_157, %c5_158, %c1_159, %c0_160] : memref<1x22x22x4xbf16, #tpu.memory_space<vmem>>, vector<1x16x16x4xbf16>
    %104 = vector.shape_cast %103 : vector<1x16x16x4xbf16> to vector<16x16x4xbf16>
    %c0_161 = arith.constant 0 : index
    %c5_162 = arith.constant 5 : index
    %c2_163 = arith.constant 2 : index
    %c0_164 = arith.constant 0 : index
    %105 = vector.load %arg1[%c0_161, %c5_162, %c2_163, %c0_164] : memref<1x22x22x4xbf16, #tpu.memory_space<vmem>>, vector<1x16x16x4xbf16>
    %106 = vector.shape_cast %105 : vector<1x16x16x4xbf16> to vector<16x16x4xbf16>
    %c0_165 = arith.constant 0 : index
    %c5_166 = arith.constant 5 : index
    %c3_167 = arith.constant 3 : index
    %c0_168 = arith.constant 0 : index
    %107 = vector.load %arg1[%c0_165, %c5_166, %c3_167, %c0_168] : memref<1x22x22x4xbf16, #tpu.memory_space<vmem>>, vector<1x16x16x4xbf16>
    %108 = vector.shape_cast %107 : vector<1x16x16x4xbf16> to vector<16x16x4xbf16>
    %c0_169 = arith.constant 0 : index
    %c5_170 = arith.constant 5 : index
    %c4_171 = arith.constant 4 : index
    %c0_172 = arith.constant 0 : index
    %109 = vector.load %arg1[%c0_169, %c5_170, %c4_171, %c0_172] : memref<1x22x22x4xbf16, #tpu.memory_space<vmem>>, vector<1x16x16x4xbf16>
    %110 = vector.shape_cast %109 : vector<1x16x16x4xbf16> to vector<16x16x4xbf16>
    %c0_173 = arith.constant 0 : index
    %c5_174 = arith.constant 5 : index
    %c5_175 = arith.constant 5 : index
    %c0_176 = arith.constant 0 : index
    %111 = vector.load %arg1[%c0_173, %c5_174, %c5_175, %c0_176] : memref<1x22x22x4xbf16, #tpu.memory_space<vmem>>, vector<1x16x16x4xbf16>
    %112 = vector.shape_cast %111 : vector<1x16x16x4xbf16> to vector<16x16x4xbf16>
    %c0_177 = arith.constant 0 : index
    %c5_178 = arith.constant 5 : index
    %c6_179 = arith.constant 6 : index
    %c0_180 = arith.constant 0 : index
    %113 = vector.load %arg1[%c0_177, %c5_178, %c6_179, %c0_180] : memref<1x22x22x4xbf16, #tpu.memory_space<vmem>>, vector<1x16x16x4xbf16>
    %114 = vector.shape_cast %113 : vector<1x16x16x4xbf16> to vector<16x16x4xbf16>
    %115 = tpu.concatenate %102, %104, %106, %108, %110, %112, %114 in 2 : vector<16x16x4xbf16>, vector<16x16x4xbf16>, vector<16x16x4xbf16>, vector<16x16x4xbf16>, vector<16x16x4xbf16>, vector<16x16x4xbf16>, vector<16x16x4xbf16> -> vector<16x16x28xbf16>
    %116 = vector.shape_cast %115 : vector<16x16x28xbf16> to vector<256x28xbf16>
    %c5_181 = arith.constant 5 : index
    %c0_182 = arith.constant 0 : index
    %c0_183 = arith.constant 0 : index
    %117 = vector.load %arg2[%c5_181, %c0_182, %c0_183] : memref<7x28x128xbf16, #tpu.memory_space<vmem>>, vector<1x28x128xbf16>
    %118 = vector.shape_cast %117 : vector<1x28x128xbf16> to vector<28x128xbf16>
    %cst_184 = arith.constant dense<0.000000e+00> : vector<256x128xf32>
    %119 = tpu.matmul %116, %118, %cst_184 {dimension_numbers = #tpu.dot_dimension_numbers<[1], [0], [0], [1], [0, 0, 1, 1], [], []>} : vector<256x28xbf16>, vector<28x128xbf16>, vector<256x128xf32> -> vector<256x128xf32>
    %120 = arith.addf %100, %119 : vector<256x128xf32>
    %c0_185 = arith.constant 0 : index
    %c6_186 = arith.constant 6 : index
    %c0_187 = arith.constant 0 : index
    %c0_188 = arith.constant 0 : index
    %121 = vector.load %arg1[%c0_185, %c6_186, %c0_187, %c0_188] : memref<1x22x22x4xbf16, #tpu.memory_space<vmem>>, vector<1x16x16x4xbf16>
    %122 = vector.shape_cast %121 : vector<1x16x16x4xbf16> to vector<16x16x4xbf16>
    %c0_189 = arith.constant 0 : index
    %c6_190 = arith.constant 6 : index
    %c1_191 = arith.constant 1 : index
    %c0_192 = arith.constant 0 : index
    %123 = vector.load %arg1[%c0_189, %c6_190, %c1_191, %c0_192] : memref<1x22x22x4xbf16, #tpu.memory_space<vmem>>, vector<1x16x16x4xbf16>
    %124 = vector.shape_cast %123 : vector<1x16x16x4xbf16> to vector<16x16x4xbf16>
    %c0_193 = arith.constant 0 : index
    %c6_194 = arith.constant 6 : index
    %c2_195 = arith.constant 2 : index
    %c0_196 = arith.constant 0 : index
    %125 = vector.load %arg1[%c0_193, %c6_194, %c2_195, %c0_196] : memref<1x22x22x4xbf16, #tpu.memory_space<vmem>>, vector<1x16x16x4xbf16>
    %126 = vector.shape_cast %125 : vector<1x16x16x4xbf16> to vector<16x16x4xbf16>
    %c0_197 = arith.constant 0 : index
    %c6_198 = arith.constant 6 : index
    %c3_199 = arith.constant 3 : index
    %c0_200 = arith.constant 0 : index
    %127 = vector.load %arg1[%c0_197, %c6_198, %c3_199, %c0_200] : memref<1x22x22x4xbf16, #tpu.memory_space<vmem>>, vector<1x16x16x4xbf16>
    %128 = vector.shape_cast %127 : vector<1x16x16x4xbf16> to vector<16x16x4xbf16>
    %c0_201 = arith.constant 0 : index
    %c6_202 = arith.constant 6 : index
    %c4_203 = arith.constant 4 : index
    %c0_204 = arith.constant 0 : index
    %129 = vector.load %arg1[%c0_201, %c6_202, %c4_203, %c0_204] : memref<1x22x22x4xbf16, #tpu.memory_space<vmem>>, vector<1x16x16x4xbf16>
    %130 = vector.shape_cast %129 : vector<1x16x16x4xbf16> to vector<16x16x4xbf16>
    %c0_205 = arith.constant 0 : index
    %c6_206 = arith.constant 6 : index
    %c5_207 = arith.constant 5 : index
    %c0_208 = arith.constant 0 : index
    %131 = vector.load %arg1[%c0_205, %c6_206, %c5_207, %c0_208] : memref<1x22x22x4xbf16, #tpu.memory_space<vmem>>, vector<1x16x16x4xbf16>
    %132 = vector.shape_cast %131 : vector<1x16x16x4xbf16> to vector<16x16x4xbf16>
    %c0_209 = arith.constant 0 : index
    %c6_210 = arith.constant 6 : index
    %c6_211 = arith.constant 6 : index
    %c0_212 = arith.constant 0 : index
    %133 = vector.load %arg1[%c0_209, %c6_210, %c6_211, %c0_212] : memref<1x22x22x4xbf16, #tpu.memory_space<vmem>>, vector<1x16x16x4xbf16>
    %134 = vector.shape_cast %133 : vector<1x16x16x4xbf16> to vector<16x16x4xbf16>
    %135 = tpu.concatenate %122, %124, %126, %128, %130, %132, %134 in 2 : vector<16x16x4xbf16>, vector<16x16x4xbf16>, vector<16x16x4xbf16>, vector<16x16x4xbf16>, vector<16x16x4xbf16>, vector<16x16x4xbf16>, vector<16x16x4xbf16> -> vector<16x16x28xbf16>
    %136 = vector.shape_cast %135 : vector<16x16x28xbf16> to vector<256x28xbf16>
    %c6_213 = arith.constant 6 : index
    %c0_214 = arith.constant 0 : index
    %c0_215 = arith.constant 0 : index
    %137 = vector.load %arg2[%c6_213, %c0_214, %c0_215] : memref<7x28x128xbf16, #tpu.memory_space<vmem>>, vector<1x28x128xbf16>
    %138 = vector.shape_cast %137 : vector<1x28x128xbf16> to vector<28x128xbf16>
    %cst_216 = arith.constant dense<0.000000e+00> : vector<256x128xf32>
    %139 = tpu.matmul %136, %138, %cst_216 {dimension_numbers = #tpu.dot_dimension_numbers<[1], [0], [0], [1], [0, 0, 1, 1], [], []>} : vector<256x28xbf16>, vector<28x128xbf16>, vector<256x128xf32> -> vector<256x128xf32>
    %140 = arith.addf %120, %139 : vector<256x128xf32>
    %c0_217 = arith.constant 0 : index
    %c0_218 = arith.constant 0 : index
    %141 = vector.load %arg3[%c0_217, %c0_218] : memref<1x128xf32, #tpu.memory_space<vmem>>, vector<1x128xf32>
    %142 = vector.broadcast %141 : vector<1x128xf32> to vector<256x128xf32>
    %143 = arith.addf %140, %142 : vector<256x128xf32>
    %c0_219 = arith.constant 0 : index
    %c0_220 = arith.constant 0 : index
    %c0_221 = arith.constant 0 : index
    %144 = vector.load %arg4[%c0_219, %c0_220, %c0_221] : memref<1x256x128xf32, #tpu.memory_space<vmem>>, vector<1x256x128xf32>
    %145 = vector.shape_cast %144 : vector<1x256x128xf32> to vector<256x128xf32>
    %146 = vector.shape_cast %143 : vector<256x128xf32> to vector<1x256x128xf32>
    tpu.vector_store %arg4[%c0_219, %c0_220, %c0_221], %146 {strides = array<i32>} : memref<1x256x128xf32, #tpu.memory_space<vmem>>, vector<1x256x128xf32>,
    return
  }
  func.func @transform_0(%arg0: i32) -> (i32, i32, i32, i32) {
    %c0_i32 = arith.constant 0 : i32
    %c0_i32_0 = arith.constant 0 : i32
    %c0_i32_1 = arith.constant 0 : i32
    %c0_i32_2 = arith.constant 0 : i32
    return %arg0, %c0_i32, %c0_i32_0, %c0_i32_1 : i32, i32, i32, i32
  }
  func.func @transform_1(%arg0: i32) -> (i32, i32, i32) {
    %c0_i32 = arith.constant 0 : i32
    %c0_i32_0 = arith.constant 0 : i32
    %c0_i32_1 = arith.constant 0 : i32
    %c0_i32_2 = arith.constant 0 : i32
    return %c0_i32, %c0_i32_0, %c0_i32_1 : i32, i32, i32
  }
  func.func @transform_2(%arg0: i32) -> (i32, i32) {
    %c0_i32 = arith.constant 0 : i32
    %c0_i32_0 = arith.constant 0 : i32
    %c0_i32_1 = arith.constant 0 : i32
    return %c0_i32, %c0_i32_0 : i32, i32
  }
  func.func @transform_3(%arg0: i32) -> (i32, i32, i32) {
    %c0_i32 = arith.constant 0 : i32
    %c0_i32_0 = arith.constant 0 : i32
    %c0_i32_1 = arith.constant 0 : i32
    return %arg0, %c0_i32, %c0_i32_0 : i32, i32, i32
  }
}

</mosaic_0001>

<llo_original>
// kernel: tpu_custom_call.1
$region0: #{tpu_custom_call.1}
  #allocation0 [shape = 'u32[]', space=smem, size = 0x4, offset = 0x4, fixed_abs, tag = 'smem constant byte address 0x4 - core index']
  #allocation1 [shape = 'u32[144,128]{1,0:T(1,128)}', space=vmem, size = 0x12000, scoped, tag = 'internal scratch']
  %s0 = inlined_call_operand.vmem [shape: bf16[2,22,22,4], index: 0, kind: input, shape index: {}]
  %s1 = inlined_call_operand.vmem [shape: bf16[7,28,128], index: 1, kind: input, shape index: {}]
  %s2 = inlined_call_operand.vmem [shape: f32[1,128], index: 2, kind: input, shape index: {}]
  %s3 = inlined_call_operand.hbm [shape: f32[2,256,128], index: 3, kind: output, shape index: {}]
  %s4 = sld [smem:[#allocation0]]
  $region45: #{tpu_custom_call.1} parent=0
    _
  %s6 = ssub.s32 1, %s4
  %s7 = scalar_select 0, %s6, %s4
  $region1: #{tpu_custom_call.1} parent=0
    #allocation2 [shape = 'u8[262144]{0}', space=vmem, size = 0x40000, scoped, tag = 'output window, operand 0']
    #allocation3 [shape = 's32[2]{0}', space=sflag, size = 0x8, scoped, tag = 'scoped memory for tpu_custom_call.1']
    %8 = vsyncpa [#allocation3], 0
    %s9 = scalar_lea.sflag [#allocation3], 1
    %10 = vsyncpa %s9, 0
    loop: start=0, step=1, limit=4
    $region2: #{tpu_custom_call.1} parent=1 // loop_pre_header
      _
    $region3: #{tpu_custom_call.1} parent=1 // loop_header
      %s12 = sphi 0, %s16
      %p13 = scmp.ge.s32.totalorder %s12, 4
      %s22 = sphi 0, %s24
      %s25 = sphi 0, %s22
      %s26 = sphi 0, %s25
      %s42 = sphi 0, %s26
      %s46 = sphi 0, %s46
      %s48 = sphi 0, %s46
      %s49 = sphi 0, %s48
      %s63 = sphi 0, %s49
      %s67 = sphi 0, %s67
      %s69 = sphi 0, %s67
      %s70 = sphi 0, %s69
      %s84 = sphi 0, %s70
      %s90 = sphi 0, %s92
      %s93 = sphi 0, %s90
      %s94 = sphi 0, %s93
      %s110 = sphi 0, %s94
    $region4: #{tpu_custom_call.1} parent=1 // loop_header_branch
      %15 = sbr.rel (%p13) target = $region8
    $region5: #{tpu_custom_call.1} parent=1 // loop_body
      %s17 = ssub.s32 %s12, 1
      %s18 = ssub.s32 %s12, 2
      %s19 = sadd.s32 %s12, 1
      %s20 = ssub.s32 %s12, %s19
      %p21 = scmp.eq.s32.totalorder %s20, 0
      %s23 = sadd.s32 %s22, 1
      %s24 = scalar_select %p21, %s22, %s23
      %p27 = pneg %p21
      %p28 = scmp.eq.s32.totalorder %s12, 1
      %p29 = por %p27, %p28
      %p30 = scmp.ne.s32.totalorder %s22, %s25
      %p31 = scmp.eq.s32.totalorder %s12, 0
      %p32 = por %p30, %p31
      %p33 = scmp.ne.s32.totalorder %s22, %s25
      %p34 = scmp.eq.s32.totalorder %s17, 1
      %p35 = por %p33, %p34
      %p36 = scmp.ne.s32.totalorder %s25, %s26
      %p37 = scmp.eq.s32.totalorder %s17, 0
      %p38 = por %p36, %p37
      %p39 = scmp.ne.s32.totalorder %s25, %s26
      %p40 = scmp.eq.s32.totalorder %s18, 1
      %p41 = por %p39, %p40
      %p43 = scmp.ne.s32.totalorder %s26, %s42
      %p44 = scmp.eq.s32.totalorder %s18, 0
      %p45 = por %p43, %p44
      %s47 = sadd.s32 %s46, 1
      %p50 = scmp.eq.s32.totalorder %s12, 1
      %p51 = scmp.ne.s32.totalorder %s46, %s48
      %p52 = scmp.eq.s32.totalorder %s12, 0
      %p53 = por %p51, %p52
      %p54 = scmp.ne.s32.totalorder %s46, %s48
      %p55 = scmp.eq.s32.totalorder %s17, 1
      %p56 = por %p54, %p55
      %p57 = scmp.ne.s32.totalorder %s48, %s49
      %p58 = scmp.eq.s32.totalorder %s17, 0
      %p59 = por %p57, %p58
      %p60 = scmp.ne.s32.totalorder %s48, %s49
      %p61 = scmp.eq.s32.totalorder %s18, 1
      %p62 = por %p60, %p61
      %p64 = scmp.ne.s32.totalorder %s49, %s63
      %p65 = scmp.eq.s32.totalorder %s18, 0
      %p66 = por %p64, %p65
      %s68 = sadd.s32 %s67, 1
      %p71 = scmp.eq.s32.totalorder %s12, 1
      %p72 = scmp.ne.s32.totalorder %s67, %s69
      %p73 = scmp.eq.s32.totalorder %s12, 0
      %p74 = por %p72, %p73
      %p75 = scmp.ne.s32.totalorder %s67, %s69
      %p76 = scmp.eq.s32.totalorder %s17, 1
      %p77 = por %p75, %p76
      %p78 = scmp.ne.s32.totalorder %s69, %s70
      %p79 = scmp.eq.s32.totalorder %s17, 0
      %p80 = por %p78, %p79
      %p81 = scmp.ne.s32.totalorder %s69, %s70
      %p82 = scmp.eq.s32.totalorder %s18, 1
      %p83 = por %p81, %p82
      %p85 = scmp.ne.s32.totalorder %s70, %s84
      %p86 = scmp.eq.s32.totalorder %s18, 0
      %p87 = por %p85, %p86
      %s88 = ssub.s32 %s12, %s19
      %p89 = scmp.eq.s32.totalorder %s88, 0
      %s91 = sadd.s32 %s90, 1
      %s92 = scalar_select %p89, %s90, %s91
      %p95 = pneg %p89
      %p96 = scmp.eq.s32.totalorder %s12, 1
      %p97 = por %p95, %p96
      %p98 = scmp.ne.s32.totalorder %s90, %s93
      %p99 = scmp.eq.s32.totalorder %s12, 0
      %p100 = por %p98, %p99
      %p101 = scmp.ne.s32.totalorder %s90, %s93
      %p102 = scmp.eq.s32.totalorder %s17, 1
      %p103 = por %p101, %p102
      %p104 = scmp.ne.s32.totalorder %s93, %s94
      %p105 = scmp.eq.s32.totalorder %s17, 0
      %p106 = por %p104, %p105
      %p107 = scmp.ne.s32.totalorder %s93, %s94
      %p108 = scmp.eq.s32.totalorder %s18, 1
      %p109 = por %p107, %p108
      %p111 = scmp.ne.s32.totalorder %s94, %s110
      %p112 = scmp.eq.s32.totalorder %s18, 0
      %p113 = por %p111, %p112
      %p114 = scmp.le.s32.totalorder 1, %s12
      %p115 = scmp.lt.s32.totalorder %s12, 3
      %p116 = pnand %p114, %p115
      %p117 = pneg %p116
      // Predicated region
      $region9: #{tpu_custom_call.1} parent=5 // pred_check
        _
      $region10: #{tpu_custom_call.1} parent=5 // pred_check_branch
        %119 = sbr.rel (%p116) target = $region12
      $region11: #{tpu_custom_call.1} parent=5 // pred_region
        %s120 = ssub.s32 %s12, 1
        // Predicated region
        $region13: #{tpu_custom_call.1} parent=11 // pred_check
          %p121 = pneg %p59
        $region14: #{tpu_custom_call.1} parent=11 // pred_check_branch
          %123 = sbr.rel (%p121) target = $region16
        $region15: #{tpu_custom_call.1} parent=11 // pred_region
          _
        $region16: #{tpu_custom_call.1} parent=11 // pred_fallthru
          _
        // Predicated region
        $region17: #{tpu_custom_call.1} parent=11 // pred_check
          %p124 = pneg %p80
        $region18: #{tpu_custom_call.1} parent=11 // pred_check_branch
          %126 = sbr.rel (%p124) target = $region20
        $region19: #{tpu_custom_call.1} parent=11 // pred_region
          _
        $region20: #{tpu_custom_call.1} parent=11 // pred_fallthru
          _
      $region12: #{tpu_custom_call.1} parent=5 // pred_fallthru
        _
      %p127 = scmp.lt.s32.totalorder %s12, 2
      // Predicated region
      $region21: #{tpu_custom_call.1} parent=5 // pred_check
        %p128 = pneg %p127
      $region22: #{tpu_custom_call.1} parent=5 // pred_check_branch
        %130 = sbr.rel (%p128) target = $region24
      $region23: #{tpu_custom_call.1} parent=5 // pred_region
        // Predicated region
        $region25: #{tpu_custom_call.1} parent=23 // pred_check
          %p131 = pneg %p32
        $region26: #{tpu_custom_call.1} parent=23 // pred_check_branch
          %133 = sbr.rel (%p131) target = $region28
        $region27: #{tpu_custom_call.1} parent=23 // pred_region
          %p134 = scmp.lt.s32.totalorder %s12, 1
          %s135 = scalar_select %p134, %s12, 1
          %s136 = smul.addr %s135, 66
          %s137 = smul.addr %s136, 4
          %s138 = scalar_lea.vmem %s0, %s137
        $region28: #{tpu_custom_call.1} parent=23 // pred_fallthru
          _
      $region24: #{tpu_custom_call.1} parent=5 // pred_fallthru
        _
      %p139 = scmp.le.s32.totalorder 1, %s12
      %p140 = scmp.lt.s32.totalorder %s12, 3
      %p141 = pnand %p139, %p140
      %p142 = pneg %p141
      // Predicated region
      $region29: #{tpu_custom_call.1} parent=5 // pred_check
        _
      $region30: #{tpu_custom_call.1} parent=5 // pred_check_branch
        %144 = sbr.rel (%p141) target = $region32
      $region31: #{tpu_custom_call.1} parent=5 // pred_region
        %s145 = ssub.s32 %s12, 1
        %p146 = scmp.lt.s32.totalorder %s17, 1
        %s147 = scalar_select %p146, %s17, 1
        %s148 = smul.addr %s147, 66
        %s149 = smul.addr %s148, 4
        %s150 = scalar_lea.vmem %s0, %s149
        %p151 = pneg %p38
        %p152 = pneg %p35
        %p153 = pneg %p59
        %p154 = pneg %p56
        %p155 = pneg %p80
        %p156 = pneg %p77
        %p157 = pneg %p106
        %p158 = pneg %p103
        %s159 = sand.u32 %s93, 1
        %s160 = scalar_lea.sflag [#allocation3], %s159
        %s161 = sand.u32 %s93, 1
        %s162 = smul.addr %s161, 256
        %s163 = scalar_lea.vmem [#allocation2], %s162
        %p164 = scmp.lt.s32.totalorder %s17, 1
        %s165 = scalar_select %p164, %s17, 1
        %s166 = smul.addr %s165, 66
        %s167 = smul.addr %s166, 4
        %s168 = scalar_lea.vmem %s0, %s167
        %v170 = vld [vmem:[%s168] sm:$0xf]
        %v171 = vld [vmem:[%s168 + $0x4] sm:$0xf]
        %v172 = vld [vmem:[%s168 + $0xc] sm:$0xf]
        %v173 = vld [vmem:[%s168 + $0x10] sm:$0xf]
        %v174 = vld [vmem:[%s168 + $0x18] sm:$0xf]
        %v175 = vld [vmem:[%s168 + $0x1c] sm:$0xf]
        %v176 = vld [vmem:[%s168 + $0x24] sm:$0xf]
        %v177 = vld [vmem:[%s168 + $0x28] sm:$0xf]
        %v178 = vld [vmem:[%s168 + $0x30] sm:$0xf]
        %v179 = vld [vmem:[%s168 + $0x34] sm:$0xf]
        %v180 = vld [vmem:[%s168 + $0x3c] sm:$0xf]
        %v181 = vld [vmem:[%s168 + $0x40] sm:$0xf]
        %v182 = vld [vmem:[%s168 + $0x48] sm:$0xf]
        %v183 = vld [vmem:[%s168 + $0x4c] sm:$0xf]
        %v184 = vld [vmem:[%s168 + $0x54] sm:$0xf]
        %v185 = vld [vmem:[%s168 + $0x58] sm:$0xf]
        %v186 = vld [vmem:[%s168 + $0x60] sm:$0xf]
        %v187 = vld [vmem:[%s168 + $0x64] sm:$0xf]
        %v188 = vld [vmem:[%s168 + $0x6c] sm:$0xf]
        %v189 = vld [vmem:[%s168 + $0x70] sm:$0xf]
        %v190 = vld [vmem:[%s168 + $0x78] sm:$0xf]
        %v191 = vld [vmem:[%s168 + $0x7c] sm:$0xf]
        %v192 = vld [vmem:[%s168 + $0x84] sm:$0xf]
        %v193 = vld [vmem:[%s168 + $0x88] sm:$0xf]
        %v194 = vld [vmem:[%s168 + $0x90] sm:$0xf]
        %v195 = vld [vmem:[%s168 + $0x94] sm:$0xf]
        %v196 = vld [vmem:[%s168 + $0x9c] sm:$0xf]
        %v197 = vld [vmem:[%s168 + $0xa0] sm:$0xf]
        %v198 = vld [vmem:[%s168 + $0xa8] sm:$0xf]
        %v199 = vld [vmem:[%s168 + $0xac] sm:$0xf]
        %v200 = vld [vmem:[%s168 + $0xb4] sm:$0xf]
        %v201 = vld [vmem:[%s168 + $0xb8] sm:$0xf]
        %v202 = vld [vmem:[%s168 + $0x8] sm:$0x1]
        %v203 = vld [vmem:[%s168 + $0x14] sm:$0x1]
        %v204 = vld [vmem:[%s168 + $0x20] sm:$0x1]
        %v205 = vld [vmem:[%s168 + $0x2c] sm:$0x1]
        %v206 = vld [vmem:[%s168 + $0x38] sm:$0x1]
        %v207 = vld [vmem:[%s168 + $0x44] sm:$0x1]
        %v208 = vld [vmem:[%s168 + $0x50] sm:$0x1]
        %v209 = vld [vmem:[%s168 + $0x5c] sm:$0x1]
        %v210 = vld [vmem:[%s168 + $0x68] sm:$0x1]
        %v211 = vld [vmem:[%s168 + $0x74] sm:$0x1]
        %v212 = vld [vmem:[%s168 + $0x80] sm:$0x1]
        %v213 = vld [vmem:[%s168 + $0x8c] sm:$0x1]
        %v214 = vld [vmem:[%s168 + $0x98] sm:$0x1]
        %v215 = vld [vmem:[%s168 + $0xa4] sm:$0x1]
        %v216 = vld [vmem:[%s168 + $0xb0] sm:$0x1]
        %v217 = vld [vmem:[%s168 + $0xbc] sm:$0x1]
        %v218 = vld [vmem:[%s168] sm:$0xe]
        %v219 = vld [vmem:[%s168 + $0xc] sm:$0xe]
        %v220 = vld [vmem:[%s168 + $0x18] sm:$0xe]
        %v221 = vld [vmem:[%s168 + $0x24] sm:$0xe]
        %v222 = vld [vmem:[%s168 + $0x30] sm:$0xe]
        %v223 = vld [vmem:[%s168 + $0x3c] sm:$0xe]
        %v224 = vld [vmem:[%s168 + $0x48] sm:$0xe]
        %v225 = vld [vmem:[%s168 + $0x54] sm:$0xe]
        %v226 = vld [vmem:[%s168 + $0x60] sm:$0xe]
        %v227 = vld [vmem:[%s168 + $0x6c] sm:$0xe]
        %v228 = vld [vmem:[%s168 + $0x78] sm:$0xe]
        %v229 = vld [vmem:[%s168 + $0x84] sm:$0xe]
        %v230 = vld [vmem:[%s168 + $0x90] sm:$0xe]
        %v231 = vld [vmem:[%s168 + $0x9c] sm:$0xe]
        %v232 = vld [vmem:[%s168 + $0xa8] sm:$0xe]
        %v233 = vld [vmem:[%s168 + $0xb4] sm:$0xe]
        %v234 = vld [vmem:[%s168 + $0x8] sm:$0x3]
        %v235 = vld [vmem:[%s168 + $0x14] sm:$0x3]
        %v236 = vld [vmem:[%s168 + $0x20] sm:$0x3]
        %v237 = vld [vmem:[%s168 + $0x2c] sm:$0x3]
        %v238 = vld [vmem:[%s168 + $0x38] sm:$0x3]
        %v239 = vld [vmem:[%s168 + $0x44] sm:$0x3]
        %v240 = vld [vmem:[%s168 + $0x50] sm:$0x3]
        %v241 = vld [vmem:[%s168 + $0x5c] sm:$0x3]
        %v242 = vld [vmem:[%s168 + $0x68] sm:$0x3]
        %v243 = vld [vmem:[%s168 + $0x74] sm:$0x3]
        %v244 = vld [vmem:[%s168 + $0x80] sm:$0x3]
        %v245 = vld [vmem:[%s168 + $0x8c] sm:$0x3]
        %v246 = vld [vmem:[%s168 + $0x98] sm:$0x3]
        %v247 = vld [vmem:[%s168 + $0xa4] sm:$0x3]
        %v248 = vld [vmem:[%s168 + $0xb0] sm:$0x3]
        %v249 = vld [vmem:[%s168 + $0xbc] sm:$0x3]
        %v250 = vld [vmem:[%s168] sm:$0xc]
        %v251 = vld [vmem:[%s168 + $0xc] sm:$0xc]
        %v252 = vld [vmem:[%s168 + $0x18] sm:$0xc]
        %v253 = vld [vmem:[%s168 + $0x24] sm:$0xc]
        %v254 = vld [vmem:[%s168 + $0x30] sm:$0xc]
        %v255 = vld [vmem:[%s168 + $0x3c] sm:$0xc]
        %v256 = vld [vmem:[%s168 + $0x48] sm:$0xc]
        %v257 = vld [vmem:[%s168 + $0x54] sm:$0xc]
        %v258 = vld [vmem:[%s168 + $0x60] sm:$0xc]
        %v259 = vld [vmem:[%s168 + $0x6c] sm:$0xc]
        %v260 = vld [vmem:[%s168 + $0x78] sm:$0xc]
        %v261 = vld [vmem:[%s168 + $0x84] sm:$0xc]
        %v262 = vld [vmem:[%s168 + $0x90] sm:$0xc]
        %v263 = vld [vmem:[%s168 + $0x9c] sm:$0xc]
        %v264 = vld [vmem:[%s168 + $0xa8] sm:$0xc]
        %v265 = vld [vmem:[%s168 + $0xb4] sm:$0xc]
        %v266 = vld [vmem:[%s168 + $0x8] sm:$0x7]
        %v267 = vld [vmem:[%s168 + $0x14] sm:$0x7]
        %v268 = vld [vmem:[%s168 + $0x20] sm:$0x7]
        %v269 = vld [vmem:[%s168 + $0x2c] sm:$0x7]
        %v270 = vld [vmem:[%s168 + $0x38] sm:$0x7]
        %v271 = vld [vmem:[%s168 + $0x44] sm:$0x7]
        %v272 = vld [vmem:[%s168 + $0x50] sm:$0x7]
        %v273 = vld [vmem:[%s168 + $0x5c] sm:$0x7]
        %v274 = vld [vmem:[%s168 + $0x68] sm:$0x7]
        %v275 = vld [vmem:[%s168 + $0x74] sm:$0x7]
        %v276 = vld [vmem:[%s168 + $0x80] sm:$0x7]
        %v277 = vld [vmem:[%s168 + $0x8c] sm:$0x7]
        %v278 = vld [vmem:[%s168 + $0x98] sm:$0x7]
        %v279 = vld [vmem:[%s168 + $0xa4] sm:$0x7]
        %v280 = vld [vmem:[%s168 + $0xb0] sm:$0x7]
        %v281 = vld [vmem:[%s168 + $0xbc] sm:$0x7]
        %v282 = vld [vmem:[%s168] sm:$0x8]
        %v283 = vld [vmem:[%s168 + $0xc] sm:$0x8]
        %v284 = vld [vmem:[%s168 + $0x18] sm:$0x8]
        %v285 = vld [vmem:[%s168 + $0x24] sm:$0x8]
        %v286 = vld [vmem:[%s168 + $0x30] sm:$0x8]
        %v287 = vld [vmem:[%s168 + $0x3c] sm:$0x8]
        %v288 = vld [vmem:[%s168 + $0x48] sm:$0x8]
        %v289 = vld [vmem:[%s168 + $0x54] sm:$0x8]
        %v290 = vld [vmem:[%s168 + $0x60] sm:$0x8]
        %v291 = vld [vmem:[%s168 + $0x6c] sm:$0x8]
        %v292 = vld [vmem:[%s168 + $0x78] sm:$0x8]
        %v293 = vld [vmem:[%s168 + $0x84] sm:$0x8]
        %v294 = vld [vmem:[%s168 + $0x90] sm:$0x8]
        %v295 = vld [vmem:[%s168 + $0x9c] sm:$0x8]
        %v296 = vld [vmem:[%s168 + $0xa8] sm:$0x8]
        %v297 = vld [vmem:[%s168 + $0xb4] sm:$0x8]
        %v330 = vunpack.c.l.b16 %v170
        %v331 = vunpack.c.l.b16 %v171
        %v332 = vunpack.c.l.b16 %v172
        %v333 = vunpack.c.l.b16 %v173
        %v334 = vunpack.c.l.b16 %v174
        %v335 = vunpack.c.l.b16 %v175
        %v336 = vunpack.c.l.b16 %v176
        %v337 = vunpack.c.l.b16 %v177
        %v338 = vunpack.c.l.b16 %v178
        %v339 = vunpack.c.l.b16 %v179
        %v340 = vunpack.c.l.b16 %v180
        %v341 = vunpack.c.l.b16 %v181
        %v342 = vunpack.c.l.b16 %v182
        %v343 = vunpack.c.l.b16 %v183
        %v344 = vunpack.c.l.b16 %v184
        %v345 = vunpack.c.l.b16 %v185
        %v346 = vunpack.c.l.b16 %v186
        %v347 = vunpack.c.l.b16 %v187
        %v348 = vunpack.c.l.b16 %v188
        %v349 = vunpack.c.l.b16 %v189
        %v350 = vunpack.c.l.b16 %v190
        %v351 = vunpack.c.l.b16 %v191
        %v352 = vunpack.c.l.b16 %v192
        %v353 = vunpack.c.l.b16 %v193
        %v354 = vunpack.c.l.b16 %v194
        %v355 = vunpack.c.l.b16 %v195
        %v356 = vunpack.c.l.b16 %v196
        %v357 = vunpack.c.l.b16 %v197
        %v358 = vunpack.c.l.b16 %v198
        %v359 = vunpack.c.l.b16 %v199
        %v360 = vunpack.c.l.b16 %v200
        %v361 = vunpack.c.l.b16 %v201
        %v362 = vpack.c.b16 %v331, %v330
        %v363 = vpack.c.b16 %v333, %v332
        %v364 = vpack.c.b16 %v335, %v334
        %v365 = vpack.c.b16 %v337, %v336
        %v366 = vpack.c.b16 %v339, %v338
        %v367 = vpack.c.b16 %v341, %v340
        %v368 = vpack.c.b16 %v343, %v342
        %v369 = vpack.c.b16 %v345, %v344
        %v370 = vpack.c.b16 %v347, %v346
        %v371 = vpack.c.b16 %v349, %v348
        %v372 = vpack.c.b16 %v351, %v350
        %v373 = vpack.c.b16 %v353, %v352
        %v374 = vpack.c.b16 %v355, %v354
        %v375 = vpack.c.b16 %v357, %v356
        %v376 = vpack.c.b16 %v359, %v358
        %v377 = vpack.c.b16 %v361, %v360
        %v394 = vunpack.c.l.b16 %v202
        %v395 = vunpack.c.l.b16 %v203
        %v396 = vunpack.c.l.b16 %v204
        %v397 = vunpack.c.l.b16 %v205
        %v398 = vunpack.c.l.b16 %v206
        %v399 = vunpack.c.l.b16 %v207
        %v400 = vunpack.c.l.b16 %v208
        %v401 = vunpack.c.l.b16 %v209
        %v402 = vunpack.c.l.b16 %v210
        %v403 = vunpack.c.l.b16 %v211
        %v404 = vunpack.c.l.b16 %v212
        %v405 = vunpack.c.l.b16 %v213
        %v406 = vunpack.c.l.b16 %v214
        %v407 = vunpack.c.l.b16 %v215
        %v408 = vunpack.c.l.b16 %v216
        %v409 = vunpack.c.l.b16 %v217
        %v410 = vpack.c.b16 %v394, %v394
        %v411 = vpack.c.b16 %v395, %v395
        %v412 = vpack.c.b16 %v396, %v396
        %v413 = vpack.c.b16 %v397, %v397
        %v414 = vpack.c.b16 %v398, %v398
        %v415 = vpack.c.b16 %v399, %v399
        %v416 = vpack.c.b16 %v400, %v400
        %v417 = vpack.c.b16 %v401, %v401
        %v418 = vpack.c.b16 %v402, %v402
        %v419 = vpack.c.b16 %v403, %v403
        %v420 = vpack.c.b16 %v404, %v404
        %v421 = vpack.c.b16 %v405, %v405
        %v422 = vpack.c.b16 %v406, %v406
        %v423 = vpack.c.b16 %v407, %v407
        %v424 = vpack.c.b16 %v408, %v408
        %v425 = vpack.c.b16 %v409, %v409
        %vm426 = vsmask.f32 7424
        %v428 = vshrl.u32 %v362, 16
        %v430 = vshll.u32 %v362, 16
        %v432 = vrot.slane %v430, 1
        %v433 = vor.u32 %v428, %v432
        %v435 = vshll.u32 %v410, 16
        %v437 = vrot.slane %v435, 1
        %v438 = vsel %vm426, %v433, %v437
        %v440 = vshrl.u32 %v363, 16
        %v442 = vshll.u32 %v363, 16
        %v444 = vrot.slane %v442, 1
        %v445 = vor.u32 %v440, %v444
        %v447 = vshll.u32 %v411, 16
        %v449 = vrot.slane %v447, 1
        %v450 = vsel %vm426, %v445, %v449
        %v452 = vshrl.u32 %v364, 16
        %v454 = vshll.u32 %v364, 16
        %v456 = vrot.slane %v454, 1
        %v457 = vor.u32 %v452, %v456
        %v459 = vshll.u32 %v412, 16
        %v461 = vrot.slane %v459, 1
        %v462 = vsel %vm426, %v457, %v461
        %v464 = vshrl.u32 %v365, 16
        %v466 = vshll.u32 %v365, 16
        %v468 = vrot.slane %v466, 1
        %v469 = vor.u32 %v464, %v468
        %v471 = vshll.u32 %v413, 16
        %v473 = vrot.slane %v471, 1
        %v474 = vsel %vm426, %v469, %v473
        %v476 = vshrl.u32 %v366, 16
        %v478 = vshll.u32 %v366, 16
        %v480 = vrot.slane %v478, 1
        %v481 = vor.u32 %v476, %v480
        %v483 = vshll.u32 %v414, 16
        %v485 = vrot.slane %v483, 1
        %v486 = vsel %vm426, %v481, %v485
        %v488 = vshrl.u32 %v367, 16
        %v490 = vshll.u32 %v367, 16
        %v492 = vrot.slane %v490, 1
        %v493 = vor.u32 %v488, %v492
        %v495 = vshll.u32 %v415, 16
        %v497 = vrot.slane %v495, 1
        %v498 = vsel %vm426, %v493, %v497
        %v500 = vshrl.u32 %v368, 16
        %v502 = vshll.u32 %v368, 16
        %v504 = vrot.slane %v502, 1
        %v505 = vor.u32 %v500, %v504
        %v507 = vshll.u32 %v416, 16
        %v509 = vrot.slane %v507, 1
        %v510 = vsel %vm426, %v505, %v509
        %v512 = vshrl.u32 %v369, 16
        %v514 = vshll.u32 %v369, 16
        %v516 = vrot.slane %v514, 1
        %v517 = vor.u32 %v512, %v516
        %v519 = vshll.u32 %v417, 16
        %v521 = vrot.slane %v519, 1
        %v522 = vsel %vm426, %v517, %v521
        %v524 = vshrl.u32 %v370, 16
        %v526 = vshll.u32 %v370, 16
        %v528 = vrot.slane %v526, 1
        %v529 = vor.u32 %v524, %v528
        %v531 = vshll.u32 %v418, 16
        %v533 = vrot.slane %v531, 1
        %v534 = vsel %vm426, %v529, %v533
        %v536 = vshrl.u32 %v371, 16
        %v538 = vshll.u32 %v371, 16
        %v540 = vrot.slane %v538, 1
        %v541 = vor.u32 %v536, %v540
        %v543 = vshll.u32 %v419, 16
        %v545 = vrot.slane %v543, 1
        %v546 = vsel %vm426, %v541, %v545
        %v548 = vshrl.u32 %v372, 16
        %v550 = vshll.u32 %v372, 16
        %v552 = vrot.slane %v550, 1
        %v553 = vor.u32 %v548, %v552
        %v555 = vshll.u32 %v420, 16
        %v557 = vrot.slane %v555, 1
        %v558 = vsel %vm426, %v553, %v557
        %v560 = vshrl.u32 %v373, 16
        %v562 = vshll.u32 %v373, 16
        %v564 = vrot.slane %v562, 1
        %v565 = vor.u32 %v560, %v564
        %v567 = vshll.u32 %v421, 16
        %v569 = vrot.slane %v567, 1
        %v570 = vsel %vm426, %v565, %v569
        %v572 = vshrl.u32 %v374, 16
        %v574 = vshll.u32 %v374, 16
        %v576 = vrot.slane %v574, 1
        %v577 = vor.u32 %v572, %v576
        %v579 = vshll.u32 %v422, 16
        %v581 = vrot.slane %v579, 1
        %v582 = vsel %vm426, %v577, %v581
        %v584 = vshrl.u32 %v375, 16
        %v586 = vshll.u32 %v375, 16
        %v588 = vrot.slane %v586, 1
        %v589 = vor.u32 %v584, %v588
        %v591 = vshll.u32 %v423, 16
        %v593 = vrot.slane %v591, 1
        %v594 = vsel %vm426, %v589, %v593
        %v596 = vshrl.u32 %v376, 16
        %v598 = vshll.u32 %v376, 16
        %v600 = vrot.slane %v598, 1
        %v601 = vor.u32 %v596, %v600
        %v603 = vshll.u32 %v424, 16
        %v605 = vrot.slane %v603, 1
        %v606 = vsel %vm426, %v601, %v605
        %v608 = vshrl.u32 %v377, 16
        %v610 = vshll.u32 %v377, 16
        %v612 = vrot.slane %v610, 1
        %v613 = vor.u32 %v608, %v612
        %v615 = vshll.u32 %v425, 16
        %v617 = vrot.slane %v615, 1
        %v618 = vsel %vm426, %v613, %v617
        %619 = vrot.lane.b32.xlu0 %v438, 4
        %v620 = vpop.permute.xlu0 %619
        %621 = vrot.lane.b32.xlu0 %v450, 4
        %v622 = vpop.permute.xlu0 %621
        %623 = vrot.lane.b32.xlu0 %v462, 4
        %v624 = vpop.permute.xlu0 %623
        %625 = vrot.lane.b32.xlu0 %v474, 4
        %v626 = vpop.permute.xlu0 %625
        %627 = vrot.lane.b32.xlu0 %v486, 4
        %v628 = vpop.permute.xlu0 %627
        %629 = vrot.lane.b32.xlu0 %v498, 4
        %v630 = vpop.permute.xlu0 %629
        %631 = vrot.lane.b32.xlu0 %v510, 4
        %v632 = vpop.permute.xlu0 %631
        %633 = vrot.lane.b32.xlu0 %v522, 4
        %v634 = vpop.permute.xlu0 %633
        %635 = vrot.lane.b32.xlu0 %v534, 4
        %v636 = vpop.permute.xlu0 %635
        %637 = vrot.lane.b32.xlu0 %v546, 4
        %v638 = vpop.permute.xlu0 %637
        %639 = vrot.lane.b32.xlu0 %v558, 4
        %v640 = vpop.permute.xlu0 %639
        %641 = vrot.lane.b32.xlu0 %v570, 4
        %v642 = vpop.permute.xlu0 %641
        %643 = vrot.lane.b32.xlu0 %v582, 4
        %v644 = vpop.permute.xlu0 %643
        %645 = vrot.lane.b32.xlu0 %v594, 4
        %v646 = vpop.permute.xlu0 %645
        %647 = vrot.lane.b32.xlu0 %v606, 4
        %v648 = vpop.permute.xlu0 %647
        %649 = vrot.lane.b32.xlu0 %v618, 4
        %v650 = vpop.permute.xlu0 %649
        %v667 = vunpack.c.l.b16 %v218
        %v668 = vunpack.c.l.b16 %v219
        %v669 = vunpack.c.l.b16 %v220
        %v670 = vunpack.c.l.b16 %v221
        %v671 = vunpack.c.l.b16 %v222
        %v672 = vunpack.c.l.b16 %v223
        %v673 = vunpack.c.l.b16 %v224
        %v674 = vunpack.c.l.b16 %v225
        %v675 = vunpack.c.l.b16 %v226
        %v676 = vunpack.c.l.b16 %v227
        %v677 = vunpack.c.l.b16 %v228
        %v678 = vunpack.c.l.b16 %v229
        %v679 = vunpack.c.l.b16 %v230
        %v680 = vunpack.c.l.b16 %v231
        %v681 = vunpack.c.l.b16 %v232
        %v682 = vunpack.c.l.b16 %v233
        %v683 = vpack.c.b16 %v331, %v667
        %v684 = vpack.c.b16 %v333, %v668
        %v685 = vpack.c.b16 %v335, %v669
        %v686 = vpack.c.b16 %v337, %v670
        %v687 = vpack.c.b16 %v339, %v671
        %v688 = vpack.c.b16 %v341, %v672
        %v689 = vpack.c.b16 %v343, %v673
        %v690 = vpack.c.b16 %v345, %v674
        %v691 = vpack.c.b16 %v347, %v675
        %v692 = vpack.c.b16 %v349, %v676
        %v693 = vpack.c.b16 %v351, %v677
        %v694 = vpack.c.b16 %v353, %v678
        %v695 = vpack.c.b16 %v355, %v679
        %v696 = vpack.c.b16 %v357, %v680
        %v697 = vpack.c.b16 %v359, %v681
        %v698 = vpack.c.b16 %v361, %v682
        %vm699 = vcmask 1046528
        %v700 = vrot.slane %v683, 1
        %v701 = vrot.slane %v410, 1
        %v702 = vsel %vm699, %v700, %v701
        %v703 = vrot.slane %v684, 1
        %v704 = vrot.slane %v411, 1
        %v705 = vsel %vm699, %v703, %v704
        %v706 = vrot.slane %v685, 1
        %v707 = vrot.slane %v412, 1
        %v708 = vsel %vm699, %v706, %v707
        %v709 = vrot.slane %v686, 1
        %v710 = vrot.slane %v413, 1
        %v711 = vsel %vm699, %v709, %v710
        %v712 = vrot.slane %v687, 1
        %v713 = vrot.slane %v414, 1
        %v714 = vsel %vm699, %v712, %v713
        %v715 = vrot.slane %v688, 1
        %v716 = vrot.slane %v415, 1
        %v717 = vsel %vm699, %v715, %v716
        %v718 = vrot.slane %v689, 1
        %v719 = vrot.slane %v416, 1
        %v720 = vsel %vm699, %v718, %v719
        %v721 = vrot.slane %v690, 1
        %v722 = vrot.slane %v417, 1
        %v723 = vsel %vm699, %v721, %v722
        %v724 = vrot.slane %v691, 1
        %v725 = vrot.slane %v418, 1
        %v726 = vsel %vm699, %v724, %v725
        %v727 = vrot.slane %v692, 1
        %v728 = vrot.slane %v419, 1
        %v729 = vsel %vm699, %v727, %v728
        %v730 = vrot.slane %v693, 1
        %v731 = vrot.slane %v420, 1
        %v732 = vsel %vm699, %v730, %v731
        %v733 = vrot.slane %v694, 1
        %v734 = vrot.slane %v421, 1
        %v735 = vsel %vm699, %v733, %v734
        %v736 = vrot.slane %v695, 1
        %v737 = vrot.slane %v422, 1
        %v738 = vsel %vm699, %v736, %v737
        %v739 = vrot.slane %v696, 1
        %v740 = vrot.slane %v423, 1
        %v741 = vsel %vm699, %v739, %v740
        %v742 = vrot.slane %v697, 1
        %v743 = vrot.slane %v424, 1
        %v744 = vsel %vm699, %v742, %v743
        %v745 = vrot.slane %v698, 1
        %v746 = vrot.slane %v425, 1
        %v747 = vsel %vm699, %v745, %v746
        %748 = vrot.lane.b32.xlu0 %v702, 8
        %v749 = vpop.permute.xlu0 %748
        %750 = vrot.lane.b32.xlu0 %v705, 8
        %v751 = vpop.permute.xlu0 %750
        %752 = vrot.lane.b32.xlu0 %v708, 8
        %v753 = vpop.permute.xlu0 %752
        %754 = vrot.lane.b32.xlu0 %v711, 8
        %v755 = vpop.permute.xlu0 %754
        %756 = vrot.lane.b32.xlu0 %v714, 8
        %v757 = vpop.permute.xlu0 %756
        %758 = vrot.lane.b32.xlu0 %v717, 8
        %v759 = vpop.permute.xlu0 %758
        %760 = vrot.lane.b32.xlu0 %v720, 8
        %v761 = vpop.permute.xlu0 %760
        %762 = vrot.lane.b32.xlu0 %v723, 8
        %v763 = vpop.permute.xlu0 %762
        %764 = vrot.lane.b32.xlu0 %v726, 8
        %v765 = vpop.permute.xlu0 %764
        %766 = vrot.lane.b32.xlu0 %v729, 8
        %v767 = vpop.permute.xlu0 %766
        %768 = vrot.lane.b32.xlu0 %v732, 8
        %v769 = vpop.permute.xlu0 %768
        %770 = vrot.lane.b32.xlu0 %v735, 8
        %v771 = vpop.permute.xlu0 %770
        %772 = vrot.lane.b32.xlu0 %v738, 8
        %v773 = vpop.permute.xlu0 %772
        %774 = vrot.lane.b32.xlu0 %v741, 8
        %v775 = vpop.permute.xlu0 %774
        %776 = vrot.lane.b32.xlu0 %v744, 8
        %v777 = vpop.permute.xlu0 %776
        %778 = vrot.lane.b32.xlu0 %v747, 8
        %v779 = vpop.permute.xlu0 %778
        %v796 = vunpack.c.l.b16 %v234
        %v797 = vunpack.c.l.b16 %v235
        %v798 = vunpack.c.l.b16 %v236
        %v799 = vunpack.c.l.b16 %v237
        %v800 = vunpack.c.l.b16 %v238
        %v801 = vunpack.c.l.b16 %v239
        %v802 = vunpack.c.l.b16 %v240
        %v803 = vunpack.c.l.b16 %v241
        %v804 = vunpack.c.l.b16 %v242
        %v805 = vunpack.c.l.b16 %v243
        %v806 = vunpack.c.l.b16 %v244
        %v807 = vunpack.c.l.b16 %v245
        %v808 = vunpack.c.l.b16 %v246
        %v809 = vunpack.c.l.b16 %v247
        %v810 = vunpack.c.l.b16 %v248
        %v811 = vunpack.c.l.b16 %v249
        %v812 = vpack.c.b16 %v796, %v796
        %v813 = vpack.c.b16 %v797, %v797
        %v814 = vpack.c.b16 %v798, %v798
        %v815 = vpack.c.b16 %v799, %v799
        %v816 = vpack.c.b16 %v800, %v800
        %v817 = vpack.c.b16 %v801, %v801
        %v818 = vpack.c.b16 %v802, %v802
        %v819 = vpack.c.b16 %v803, %v803
        %v820 = vpack.c.b16 %v804, %v804
        %v821 = vpack.c.b16 %v805, %v805
        %v822 = vpack.c.b16 %v806, %v806
        %v823 = vpack.c.b16 %v807, %v807
        %v824 = vpack.c.b16 %v808, %v808
        %v825 = vpack.c.b16 %v809, %v809
        %v826 = vpack.c.b16 %v810, %v810
        %v827 = vpack.c.b16 %v811, %v811
        %vm828 = vsmask.f32 6400
        %v830 = vshrl.u32 %v683, 16
        %v832 = vrot.slane %v830, 1
        %v833 = vshll.u32 %v683, 16
        %v835 = vrot.slane %v833, 2
        %v836 = vor.u32 %v832, %v835
        %v838 = vshrl.u32 %v812, 16
        %v840 = vrot.slane %v838, 1
        %v841 = vshll.u32 %v812, 16
        %v843 = vrot.slane %v841, 2
        %v844 = vor.u32 %v840, %v843
        %v845 = vsel %vm828, %v836, %v844
        %v847 = vshrl.u32 %v684, 16
        %v849 = vrot.slane %v847, 1
        %v850 = vshll.u32 %v684, 16
        %v852 = vrot.slane %v850, 2
        %v853 = vor.u32 %v849, %v852
        %v855 = vshrl.u32 %v813, 16
        %v857 = vrot.slane %v855, 1
        %v858 = vshll.u32 %v813, 16
        %v860 = vrot.slane %v858, 2
        %v861 = vor.u32 %v857, %v860
        %v862 = vsel %vm828, %v853, %v861
        %v864 = vshrl.u32 %v685, 16
        %v866 = vrot.slane %v864, 1
        %v867 = vshll.u32 %v685, 16
        %v869 = vrot.slane %v867, 2
        %v870 = vor.u32 %v866, %v869
        %v872 = vshrl.u32 %v814, 16
        %v874 = vrot.slane %v872, 1
        %v875 = vshll.u32 %v814, 16
        %v877 = vrot.slane %v875, 2
        %v878 = vor.u32 %v874, %v877
        %v879 = vsel %vm828, %v870, %v878
        %v881 = vshrl.u32 %v686, 16
        %v883 = vrot.slane %v881, 1
        %v884 = vshll.u32 %v686, 16
        %v886 = vrot.slane %v884, 2
        %v887 = vor.u32 %v883, %v886
        %v889 = vshrl.u32 %v815, 16
        %v891 = vrot.slane %v889, 1
        %v892 = vshll.u32 %v815, 16
        %v894 = vrot.slane %v892, 2
        %v895 = vor.u32 %v891, %v894
        %v896 = vsel %vm828, %v887, %v895
        %v898 = vshrl.u32 %v687, 16
        %v900 = vrot.slane %v898, 1
        %v901 = vshll.u32 %v687, 16
        %v903 = vrot.slane %v901, 2
        %v904 = vor.u32 %v900, %v903
        %v906 = vshrl.u32 %v816, 16
        %v908 = vrot.slane %v906, 1
        %v909 = vshll.u32 %v816, 16
        %v911 = vrot.slane %v909, 2
        %v912 = vor.u32 %v908, %v911
        %v913 = vsel %vm828, %v904, %v912
        %v915 = vshrl.u32 %v688, 16
        %v917 = vrot.slane %v915, 1
        %v918 = vshll.u32 %v688, 16
        %v920 = vrot.slane %v918, 2
        %v921 = vor.u32 %v917, %v920
        %v923 = vshrl.u32 %v817, 16
        %v925 = vrot.slane %v923, 1
        %v926 = vshll.u32 %v817, 16
        %v928 = vrot.slane %v926, 2
        %v929 = vor.u32 %v925, %v928
        %v930 = vsel %vm828, %v921, %v929
        %v932 = vshrl.u32 %v689, 16
        %v934 = vrot.slane %v932, 1
        %v935 = vshll.u32 %v689, 16
        %v937 = vrot.slane %v935, 2
        %v938 = vor.u32 %v934, %v937
        %v940 = vshrl.u32 %v818, 16
        %v942 = vrot.slane %v940, 1
        %v943 = vshll.u32 %v818, 16
        %v945 = vrot.slane %v943, 2
        %v946 = vor.u32 %v942, %v945
        %v947 = vsel %vm828, %v938, %v946
        %v949 = vshrl.u32 %v690, 16
        %v951 = vrot.slane %v949, 1
        %v952 = vshll.u32 %v690, 16
        %v954 = vrot.slane %v952, 2
        %v955 = vor.u32 %v951, %v954
        %v957 = vshrl.u32 %v819, 16
        %v959 = vrot.slane %v957, 1
        %v960 = vshll.u32 %v819, 16
        %v962 = vrot.slane %v960, 2
        %v963 = vor.u32 %v959, %v962
        %v964 = vsel %vm828, %v955, %v963
        %v966 = vshrl.u32 %v691, 16
        %v968 = vrot.slane %v966, 1
        %v969 = vshll.u32 %v691, 16
        %v971 = vrot.slane %v969, 2
        %v972 = vor.u32 %v968, %v971
        %v974 = vshrl.u32 %v820, 16
        %v976 = vrot.slane %v974, 1
        %v977 = vshll.u32 %v820, 16
        %v979 = vrot.slane %v977, 2
        %v980 = vor.u32 %v976, %v979
        %v981 = vsel %vm828, %v972, %v980
        %v983 = vshrl.u32 %v692, 16
        %v985 = vrot.slane %v983, 1
        %v986 = vshll.u32 %v692, 16
        %v988 = vrot.slane %v986, 2
        %v989 = vor.u32 %v985, %v988
        %v991 = vshrl.u32 %v821, 16
        %v993 = vrot.slane %v991, 1
        %v994 = vshll.u32 %v821, 16
        %v996 = vrot.slane %v994, 2
        %v997 = vor.u32 %v993, %v996
        %v998 = vsel %vm828, %v989, %v997
        %v1000 = vshrl.u32 %v693, 16
        %v1002 = vrot.slane %v1000, 1
        %v1003 = vshll.u32 %v693, 16
        %v1005 = vrot.slane %v1003, 2
        %v1006 = vor.u32 %v1002, %v1005
        %v1008 = vshrl.u32 %v822, 16
        %v1010 = vrot.slane %v1008, 1
        %v1011 = vshll.u32 %v822, 16
        %v1013 = vrot.slane %v1011, 2
        %v1014 = vor.u32 %v1010, %v1013
        %v1015 = vsel %vm828, %v1006, %v1014
        %v1017 = vshrl.u32 %v694, 16
        %v1019 = vrot.slane %v1017, 1
        %v1020 = vshll.u32 %v694, 16
        %v1022 = vrot.slane %v1020, 2
        %v1023 = vor.u32 %v1019, %v1022
        %v1025 = vshrl.u32 %v823, 16
        %v1027 = vrot.slane %v1025, 1
        %v1028 = vshll.u32 %v823, 16
        %v1030 = vrot.slane %v1028, 2
        %v1031 = vor.u32 %v1027, %v1030
        %v1032 = vsel %vm828, %v1023, %v1031
        %v1034 = vshrl.u32 %v695, 16
        %v1036 = vrot.slane %v1034, 1
        %v1037 = vshll.u32 %v695, 16
        %v1039 = vrot.slane %v1037, 2
        %v1040 = vor.u32 %v1036, %v1039
        %v1042 = vshrl.u32 %v824, 16
        %v1044 = vrot.slane %v1042, 1
        %v1045 = vshll.u32 %v824, 16
        %v1047 = vrot.slane %v1045, 2
        %v1048 = vor.u32 %v1044, %v1047
        %v1049 = vsel %vm828, %v1040, %v1048
        %v1051 = vshrl.u32 %v696, 16
        %v1053 = vrot.slane %v1051, 1
        %v1054 = vshll.u32 %v696, 16
        %v1056 = vrot.slane %v1054, 2
        %v1057 = vor.u32 %v1053, %v1056
        %v1059 = vshrl.u32 %v825, 16
        %v1061 = vrot.slane %v1059, 1
        %v1062 = vshll.u32 %v825, 16
        %v1064 = vrot.slane %v1062, 2
        %v1065 = vor.u32 %v1061, %v1064
        %v1066 = vsel %vm828, %v1057, %v1065
        %v1068 = vshrl.u32 %v697, 16
        %v1070 = vrot.slane %v1068, 1
        %v1071 = vshll.u32 %v697, 16
        %v1073 = vrot.slane %v1071, 2
        %v1074 = vor.u32 %v1070, %v1073
        %v1076 = vshrl.u32 %v826, 16
        %v1078 = vrot.slane %v1076, 1
        %v1079 = vshll.u32 %v826, 16
        %v1081 = vrot.slane %v1079, 2
        %v1082 = vor.u32 %v1078, %v1081
        %v1083 = vsel %vm828, %v1074, %v1082
        %v1085 = vshrl.u32 %v698, 16
        %v1087 = vrot.slane %v1085, 1
        %v1088 = vshll.u32 %v698, 16
        %v1090 = vrot.slane %v1088, 2
        %v1091 = vor.u32 %v1087, %v1090
        %v1093 = vshrl.u32 %v827, 16
        %v1095 = vrot.slane %v1093, 1
        %v1096 = vshll.u32 %v827, 16
        %v1098 = vrot.slane %v1096, 2
        %v1099 = vor.u32 %v1095, %v1098
        %v1100 = vsel %vm828, %v1091, %v1099
        %1101 = vrot.lane.b32.xlu0 %v845, 12
        %v1102 = vpop.permute.xlu0 %1101
        %1103 = vrot.lane.b32.xlu0 %v862, 12
        %v1104 = vpop.permute.xlu0 %1103
        %1105 = vrot.lane.b32.xlu0 %v879, 12
        %v1106 = vpop.permute.xlu0 %1105
        %1107 = vrot.lane.b32.xlu0 %v896, 12
        %v1108 = vpop.permute.xlu0 %1107
        %1109 = vrot.lane.b32.xlu0 %v913, 12
        %v1110 = vpop.permute.xlu0 %1109
        %1111 = vrot.lane.b32.xlu0 %v930, 12
        %v1112 = vpop.permute.xlu0 %1111
        %1113 = vrot.lane.b32.xlu0 %v947, 12
        %v1114 = vpop.permute.xlu0 %1113
        %1115 = vrot.lane.b32.xlu0 %v964, 12
        %v1116 = vpop.permute.xlu0 %1115
        %1117 = vrot.lane.b32.xlu0 %v981, 12
        %v1118 = vpop.permute.xlu0 %1117
        %1119 = vrot.lane.b32.xlu0 %v998, 12
        %v1120 = vpop.permute.xlu0 %1119
        %1121 = vrot.lane.b32.xlu0 %v1015, 12
        %v1122 = vpop.permute.xlu0 %1121
        %1123 = vrot.lane.b32.xlu0 %v1032, 12
        %v1124 = vpop.permute.xlu0 %1123
        %1125 = vrot.lane.b32.xlu0 %v1049, 12
        %v1126 = vpop.permute.xlu0 %1125
        %1127 = vrot.lane.b32.xlu0 %v1066, 12
        %v1128 = vpop.permute.xlu0 %1127
        %1129 = vrot.lane.b32.xlu0 %v1083, 12
        %v1130 = vpop.permute.xlu0 %1129
        %1131 = vrot.lane.b32.xlu0 %v1100, 12
        %v1132 = vpop.permute.xlu0 %1131
        %v1149 = vunpack.c.l.b16 %v250
        %v1150 = vunpack.c.l.b16 %v251
        %v1151 = vunpack.c.l.b16 %v252
        %v1152 = vunpack.c.l.b16 %v253
        %v1153 = vunpack.c.l.b16 %v254
        %v1154 = vunpack.c.l.b16 %v255
        %v1155 = vunpack.c.l.b16 %v256
        %v1156 = vunpack.c.l.b16 %v257
        %v1157 = vunpack.c.l.b16 %v258
        %v1158 = vunpack.c.l.b16 %v259
        %v1159 = vunpack.c.l.b16 %v260
        %v1160 = vunpack.c.l.b16 %v261
        %v1161 = vunpack.c.l.b16 %v262
        %v1162 = vunpack.c.l.b16 %v263
        %v1163 = vunpack.c.l.b16 %v264
        %v1164 = vunpack.c.l.b16 %v265
        %v1165 = vpack.c.b16 %v331, %v1149
        %v1166 = vpack.c.b16 %v333, %v1150
        %v1167 = vpack.c.b16 %v335, %v1151
        %v1168 = vpack.c.b16 %v337, %v1152
        %v1169 = vpack.c.b16 %v339, %v1153
        %v1170 = vpack.c.b16 %v341, %v1154
        %v1171 = vpack.c.b16 %v343, %v1155
        %v1172 = vpack.c.b16 %v345, %v1156
        %v1173 = vpack.c.b16 %v347, %v1157
        %v1174 = vpack.c.b16 %v349, %v1158
        %v1175 = vpack.c.b16 %v351, %v1159
        %v1176 = vpack.c.b16 %v353, %v1160
        %v1177 = vpack.c.b16 %v355, %v1161
        %v1178 = vpack.c.b16 %v357, %v1162
        %v1179 = vpack.c.b16 %v359, %v1163
        %v1180 = vpack.c.b16 %v361, %v1164
        %vm1181 = vcmask 1045504
        %v1182 = vrot.slane %v1165, 2
        %v1183 = vrot.slane %v812, 2
        %v1184 = vsel %vm1181, %v1182, %v1183
        %v1185 = vrot.slane %v1166, 2
        %v1186 = vrot.slane %v813, 2
        %v1187 = vsel %vm1181, %v1185, %v1186
        %v1188 = vrot.slane %v1167, 2
        %v1189 = vrot.slane %v814, 2
        %v1190 = vsel %vm1181, %v1188, %v1189
        %v1191 = vrot.slane %v1168, 2
        %v1192 = vrot.slane %v815, 2
        %v1193 = vsel %vm1181, %v1191, %v1192
        %v1194 = vrot.slane %v1169, 2
        %v1195 = vrot.slane %v816, 2
        %v1196 = vsel %vm1181, %v1194, %v1195
        %v1197 = vrot.slane %v1170, 2
        %v1198 = vrot.slane %v817, 2
        %v1199 = vsel %vm1181, %v1197, %v1198
        %v1200 = vrot.slane %v1171, 2
        %v1201 = vrot.slane %v818, 2
        %v1202 = vsel %vm1181, %v1200, %v1201
        %v1203 = vrot.slane %v1172, 2
        %v1204 = vrot.slane %v819, 2
        %v1205 = vsel %vm1181, %v1203, %v1204
        %v1206 = vrot.slane %v1173, 2
        %v1207 = vrot.slane %v820, 2
        %v1208 = vsel %vm1181, %v1206, %v1207
        %v1209 = vrot.slane %v1174, 2
        %v1210 = vrot.slane %v821, 2
        %v1211 = vsel %vm1181, %v1209, %v1210
        %v1212 = vrot.slane %v1175, 2
        %v1213 = vrot.slane %v822, 2
        %v1214 = vsel %vm1181, %v1212, %v1213
        %v1215 = vrot.slane %v1176, 2
        %v1216 = vrot.slane %v823, 2
        %v1217 = vsel %vm1181, %v1215, %v1216
        %v1218 = vrot.slane %v1177, 2
        %v1219 = vrot.slane %v824, 2
        %v1220 = vsel %vm1181, %v1218, %v1219
        %v1221 = vrot.slane %v1178, 2
        %v1222 = vrot.slane %v825, 2
        %v1223 = vsel %vm1181, %v1221, %v1222
        %v1224 = vrot.slane %v1179, 2
        %v1225 = vrot.slane %v826, 2
        %v1226 = vsel %vm1181, %v1224, %v1225
        %v1227 = vrot.slane %v1180, 2
        %v1228 = vrot.slane %v827, 2
        %v1229 = vsel %vm1181, %v1227, %v1228
        %1230 = vrot.lane.b32.xlu0 %v1184, 16
        %v1231 = vpop.permute.xlu0 %1230
        %1232 = vrot.lane.b32.xlu0 %v1187, 16
        %v1233 = vpop.permute.xlu0 %1232
        %1234 = vrot.lane.b32.xlu0 %v1190, 16
        %v1235 = vpop.permute.xlu0 %1234
        %1236 = vrot.lane.b32.xlu0 %v1193, 16
        %v1237 = vpop.permute.xlu0 %1236
        %1238 = vrot.lane.b32.xlu0 %v1196, 16
        %v1239 = vpop.permute.xlu0 %1238
        %1240 = vrot.lane.b32.xlu0 %v1199, 16
        %v1241 = vpop.permute.xlu0 %1240
        %1242 = vrot.lane.b32.xlu0 %v1202, 16
        %v1243 = vpop.permute.xlu0 %1242
        %1244 = vrot.lane.b32.xlu0 %v1205, 16
        %v1245 = vpop.permute.xlu0 %1244
        %1246 = vrot.lane.b32.xlu0 %v1208, 16
        %v1247 = vpop.permute.xlu0 %1246
        %1248 = vrot.lane.b32.xlu0 %v1211, 16
        %v1249 = vpop.permute.xlu0 %1248
        %1250 = vrot.lane.b32.xlu0 %v1214, 16
        %v1251 = vpop.permute.xlu0 %1250
        %1252 = vrot.lane.b32.xlu0 %v1217, 16
        %v1253 = vpop.permute.xlu0 %1252
        %1254 = vrot.lane.b32.xlu0 %v1220, 16
        %v1255 = vpop.permute.xlu0 %1254
        %1256 = vrot.lane.b32.xlu0 %v1223, 16
        %v1257 = vpop.permute.xlu0 %1256
        %1258 = vrot.lane.b32.xlu0 %v1226, 16
        %v1259 = vpop.permute.xlu0 %1258
        %1260 = vrot.lane.b32.xlu0 %v1229, 16
        %v1261 = vpop.permute.xlu0 %1260
        %v1278 = vunpack.c.l.b16 %v266
        %v1279 = vunpack.c.l.b16 %v267
        %v1280 = vunpack.c.l.b16 %v268
        %v1281 = vunpack.c.l.b16 %v269
        %v1282 = vunpack.c.l.b16 %v270
        %v1283 = vunpack.c.l.b16 %v271
        %v1284 = vunpack.c.l.b16 %v272
        %v1285 = vunpack.c.l.b16 %v273
        %v1286 = vunpack.c.l.b16 %v274
        %v1287 = vunpack.c.l.b16 %v275
        %v1288 = vunpack.c.l.b16 %v276
        %v1289 = vunpack.c.l.b16 %v277
        %v1290 = vunpack.c.l.b16 %v278
        %v1291 = vunpack.c.l.b16 %v279
        %v1292 = vunpack.c.l.b16 %v280
        %v1293 = vunpack.c.l.b16 %v281
        %v1294 = vpack.c.b16 %v1278, %v1278
        %v1295 = vpack.c.b16 %v1279, %v1279
        %v1296 = vpack.c.b16 %v1280, %v1280
        %v1297 = vpack.c.b16 %v1281, %v1281
        %v1298 = vpack.c.b16 %v1282, %v1282
        %v1299 = vpack.c.b16 %v1283, %v1283
        %v1300 = vpack.c.b16 %v1284, %v1284
        %v1301 = vpack.c.b16 %v1285, %v1285
        %v1302 = vpack.c.b16 %v1286, %v1286
        %v1303 = vpack.c.b16 %v1287, %v1287
        %v1304 = vpack.c.b16 %v1288, %v1288
        %v1305 = vpack.c.b16 %v1289, %v1289
        %v1306 = vpack.c.b16 %v1290, %v1290
        %v1307 = vpack.c.b16 %v1291, %v1291
        %v1308 = vpack.c.b16 %v1292, %v1292
        %v1309 = vpack.c.b16 %v1293, %v1293
        %vm1310 = vsmask.f32 5376
        %v1312 = vshrl.u32 %v1165, 16
        %v1314 = vrot.slane %v1312, 2
        %v1315 = vshll.u32 %v1165, 16
        %v1317 = vrot.slane %v1315, 3
        %v1318 = vor.u32 %v1314, %v1317
        %v1320 = vshrl.u32 %v1294, 16
        %v1322 = vrot.slane %v1320, 2
        %v1323 = vshll.u32 %v1294, 16
        %v1325 = vrot.slane %v1323, 3
        %v1326 = vor.u32 %v1322, %v1325
        %v1327 = vsel %vm1310, %v1318, %v1326
        %v1329 = vshrl.u32 %v1166, 16
        %v1331 = vrot.slane %v1329, 2
        %v1332 = vshll.u32 %v1166, 16
        %v1334 = vrot.slane %v1332, 3
        %v1335 = vor.u32 %v1331, %v1334
        %v1337 = vshrl.u32 %v1295, 16
        %v1339 = vrot.slane %v1337, 2
        %v1340 = vshll.u32 %v1295, 16
        %v1342 = vrot.slane %v1340, 3
        %v1343 = vor.u32 %v1339, %v1342
        %v1344 = vsel %vm1310, %v1335, %v1343
        %v1346 = vshrl.u32 %v1167, 16
        %v1348 = vrot.slane %v1346, 2
        %v1349 = vshll.u32 %v1167, 16
        %v1351 = vrot.slane %v1349, 3
        %v1352 = vor.u32 %v1348, %v1351
        %v1354 = vshrl.u32 %v1296, 16
        %v1356 = vrot.slane %v1354, 2
        %v1357 = vshll.u32 %v1296, 16
        %v1359 = vrot.slane %v1357, 3
        %v1360 = vor.u32 %v1356, %v1359
        %v1361 = vsel %vm1310, %v1352, %v1360
        %v1363 = vshrl.u32 %v1168, 16
        %v1365 = vrot.slane %v1363, 2
        %v1366 = vshll.u32 %v1168, 16
        %v1368 = vrot.slane %v1366, 3
        %v1369 = vor.u32 %v1365, %v1368
        %v1371 = vshrl.u32 %v1297, 16
        %v1373 = vrot.slane %v1371, 2
        %v1374 = vshll.u32 %v1297, 16
        %v1376 = vrot.slane %v1374, 3
        %v1377 = vor.u32 %v1373, %v1376
        %v1378 = vsel %vm1310, %v1369, %v1377
        %v1380 = vshrl.u32 %v1169, 16
        %v1382 = vrot.slane %v1380, 2
        %v1383 = vshll.u32 %v1169, 16
        %v1385 = vrot.slane %v1383, 3
        %v1386 = vor.u32 %v1382, %v1385
        %v1388 = vshrl.u32 %v1298, 16
        %v1390 = vrot.slane %v1388, 2
        %v1391 = vshll.u32 %v1298, 16
        %v1393 = vrot.slane %v1391, 3
        %v1394 = vor.u32 %v1390, %v1393
        %v1395 = vsel %vm1310, %v1386, %v1394
        %v1397 = vshrl.u32 %v1170, 16
        %v1399 = vrot.slane %v1397, 2
        %v1400 = vshll.u32 %v1170, 16
        %v1402 = vrot.slane %v1400, 3
        %v1403 = vor.u32 %v1399, %v1402
        %v1405 = vshrl.u32 %v1299, 16
        %v1407 = vrot.slane %v1405, 2
        %v1408 = vshll.u32 %v1299, 16
        %v1410 = vrot.slane %v1408, 3
        %v1411 = vor.u32 %v1407, %v1410
        %v1412 = vsel %vm1310, %v1403, %v1411
        %v1414 = vshrl.u32 %v1171, 16
        %v1416 = vrot.slane %v1414, 2
        %v1417 = vshll.u32 %v1171, 16
        %v1419 = vrot.slane %v1417, 3
        %v1420 = vor.u32 %v1416, %v1419
        %v1422 = vshrl.u32 %v1300, 16
        %v1424 = vrot.slane %v1422, 2
        %v1425 = vshll.u32 %v1300, 16
        %v1427 = vrot.slane %v1425, 3
        %v1428 = vor.u32 %v1424, %v1427
        %v1429 = vsel %vm1310, %v1420, %v1428
        %v1431 = vshrl.u32 %v1172, 16
        %v1433 = vrot.slane %v1431, 2
        %v1434 = vshll.u32 %v1172, 16
        %v1436 = vrot.slane %v1434, 3
        %v1437 = vor.u32 %v1433, %v1436
        %v1439 = vshrl.u32 %v1301, 16
        %v1441 = vrot.slane %v1439, 2
        %v1442 = vshll.u32 %v1301, 16
        %v1444 = vrot.slane %v1442, 3
        %v1445 = vor.u32 %v1441, %v1444
        %v1446 = vsel %vm1310, %v1437, %v1445
        %v1448 = vshrl.u32 %v1173, 16
        %v1450 = vrot.slane %v1448, 2
        %v1451 = vshll.u32 %v1173, 16
        %v1453 = vrot.slane %v1451, 3
        %v1454 = vor.u32 %v1450, %v1453
        %v1456 = vshrl.u32 %v1302, 16
        %v1458 = vrot.slane %v1456, 2
        %v1459 = vshll.u32 %v1302, 16
        %v1461 = vrot.slane %v1459, 3
        %v1462 = vor.u32 %v1458, %v1461
        %v1463 = vsel %vm1310, %v1454, %v1462
        %v1465 = vshrl.u32 %v1174, 16
        %v1467 = vrot.slane %v1465, 2
        %v1468 = vshll.u32 %v1174, 16
        %v1470 = vrot.slane %v1468, 3
        %v1471 = vor.u32 %v1467, %v1470
        %v1473 = vshrl.u32 %v1303, 16
        %v1475 = vrot.slane %v1473, 2
        %v1476 = vshll.u32 %v1303, 16
        %v1478 = vrot.slane %v1476, 3
        %v1479 = vor.u32 %v1475, %v1478
        %v1480 = vsel %vm1310, %v1471, %v1479
        %v1482 = vshrl.u32 %v1175, 16
        %v1484 = vrot.slane %v1482, 2
        %v1485 = vshll.u32 %v1175, 16
        %v1487 = vrot.slane %v1485, 3
        %v1488 = vor.u32 %v1484, %v1487
        %v1490 = vshrl.u32 %v1304, 16
        %v1492 = vrot.slane %v1490, 2
        %v1493 = vshll.u32 %v1304, 16
        %v1495 = vrot.slane %v1493, 3
        %v1496 = vor.u32 %v1492, %v1495
        %v1497 = vsel %vm1310, %v1488, %v1496
        %v1499 = vshrl.u32 %v1176, 16
        %v1501 = vrot.slane %v1499, 2
        %v1502 = vshll.u32 %v1176, 16
        %v1504 = vrot.slane %v1502, 3
        %v1505 = vor.u32 %v1501, %v1504
        %v1507 = vshrl.u32 %v1305, 16
        %v1509 = vrot.slane %v1507, 2
        %v1510 = vshll.u32 %v1305, 16
        %v1512 = vrot.slane %v1510, 3
        %v1513 = vor.u32 %v1509, %v1512
        %v1514 = vsel %vm1310, %v1505, %v1513
        %v1516 = vshrl.u32 %v1177, 16
        %v1518 = vrot.slane %v1516, 2
        %v1519 = vshll.u32 %v1177, 16
        %v1521 = vrot.slane %v1519, 3
        %v1522 = vor.u32 %v1518, %v1521
        %v1524 = vshrl.u32 %v1306, 16
        %v1526 = vrot.slane %v1524, 2
        %v1527 = vshll.u32 %v1306, 16
        %v1529 = vrot.slane %v1527, 3
        %v1530 = vor.u32 %v1526, %v1529
        %v1531 = vsel %vm1310, %v1522, %v1530
        %v1533 = vshrl.u32 %v1178, 16
        %v1535 = vrot.slane %v1533, 2
        %v1536 = vshll.u32 %v1178, 16
        %v1538 = vrot.slane %v1536, 3
        %v1539 = vor.u32 %v1535, %v1538
        %v1541 = vshrl.u32 %v1307, 16
        %v1543 = vrot.slane %v1541, 2
        %v1544 = vshll.u32 %v1307, 16
        %v1546 = vrot.slane %v1544, 3
        %v1547 = vor.u32 %v1543, %v1546
        %v1548 = vsel %vm1310, %v1539, %v1547
        %v1550 = vshrl.u32 %v1179, 16
        %v1552 = vrot.slane %v1550, 2
        %v1553 = vshll.u32 %v1179, 16
        %v1555 = vrot.slane %v1553, 3
        %v1556 = vor.u32 %v1552, %v1555
        %v1558 = vshrl.u32 %v1308, 16
        %v1560 = vrot.slane %v1558, 2
        %v1561 = vshll.u32 %v1308, 16
        %v1563 = vrot.slane %v1561, 3
        %v1564 = vor.u32 %v1560, %v1563
        %v1565 = vsel %vm1310, %v1556, %v1564
        %v1567 = vshrl.u32 %v1180, 16
        %v1569 = vrot.slane %v1567, 2
        %v1570 = vshll.u32 %v1180, 16
        %v1572 = vrot.slane %v1570, 3
        %v1573 = vor.u32 %v1569, %v1572
        %v1575 = vshrl.u32 %v1309, 16
        %v1577 = vrot.slane %v1575, 2
        %v1578 = vshll.u32 %v1309, 16
        %v1580 = vrot.slane %v1578, 3
        %v1581 = vor.u32 %v1577, %v1580
        %v1582 = vsel %vm1310, %v1573, %v1581
        %1583 = vrot.lane.b32.xlu0 %v1327, 20
        %v1584 = vpop.permute.xlu0 %1583
        %1585 = vrot.lane.b32.xlu0 %v1344, 20
        %v1586 = vpop.permute.xlu0 %1585
        %1587 = vrot.lane.b32.xlu0 %v1361, 20
        %v1588 = vpop.permute.xlu0 %1587
        %1589 = vrot.lane.b32.xlu0 %v1378, 20
        %v1590 = vpop.permute.xlu0 %1589
        %1591 = vrot.lane.b32.xlu0 %v1395, 20
        %v1592 = vpop.permute.xlu0 %1591
        %1593 = vrot.lane.b32.xlu0 %v1412, 20
        %v1594 = vpop.permute.xlu0 %1593
        %1595 = vrot.lane.b32.xlu0 %v1429, 20
        %v1596 = vpop.permute.xlu0 %1595
        %1597 = vrot.lane.b32.xlu0 %v1446, 20
        %v1598 = vpop.permute.xlu0 %1597
        %1599 = vrot.lane.b32.xlu0 %v1463, 20
        %v1600 = vpop.permute.xlu0 %1599
        %1601 = vrot.lane.b32.xlu0 %v1480, 20
        %v1602 = vpop.permute.xlu0 %1601
        %1603 = vrot.lane.b32.xlu0 %v1497, 20
        %v1604 = vpop.permute.xlu0 %1603
        %1605 = vrot.lane.b32.xlu0 %v1514, 20
        %v1606 = vpop.permute.xlu0 %1605
        %1607 = vrot.lane.b32.xlu0 %v1531, 20
        %v1608 = vpop.permute.xlu0 %1607
        %1609 = vrot.lane.b32.xlu0 %v1548, 20
        %v1610 = vpop.permute.xlu0 %1609
        %1611 = vrot.lane.b32.xlu0 %v1565, 20
        %v1612 = vpop.permute.xlu0 %1611
        %1613 = vrot.lane.b32.xlu0 %v1582, 20
        %v1614 = vpop.permute.xlu0 %1613
        %v1631 = vunpack.c.l.b16 %v282
        %v1632 = vunpack.c.l.b16 %v283
        %v1633 = vunpack.c.l.b16 %v284
        %v1634 = vunpack.c.l.b16 %v285
        %v1635 = vunpack.c.l.b16 %v286
        %v1636 = vunpack.c.l.b16 %v287
        %v1637 = vunpack.c.l.b16 %v288
        %v1638 = vunpack.c.l.b16 %v289
        %v1639 = vunpack.c.l.b16 %v290
        %v1640 = vunpack.c.l.b16 %v291
        %v1641 = vunpack.c.l.b16 %v292
        %v1642 = vunpack.c.l.b16 %v293
        %v1643 = vunpack.c.l.b16 %v294
        %v1644 = vunpack.c.l.b16 %v295
        %v1645 = vunpack.c.l.b16 %v296
        %v1646 = vunpack.c.l.b16 %v297
        %v1647 = vpack.c.b16 %v331, %v1631
        %v1648 = vpack.c.b16 %v333, %v1632
        %v1649 = vpack.c.b16 %v335, %v1633
        %v1650 = vpack.c.b16 %v337, %v1634
        %v1651 = vpack.c.b16 %v339, %v1635
        %v1652 = vpack.c.b16 %v341, %v1636
        %v1653 = vpack.c.b16 %v343, %v1637
        %v1654 = vpack.c.b16 %v345, %v1638
        %v1655 = vpack.c.b16 %v347, %v1639
        %v1656 = vpack.c.b16 %v349, %v1640
        %v1657 = vpack.c.b16 %v351, %v1641
        %v1658 = vpack.c.b16 %v353, %v1642
        %v1659 = vpack.c.b16 %v355, %v1643
        %v1660 = vpack.c.b16 %v357, %v1644
        %v1661 = vpack.c.b16 %v359, %v1645
        %v1662 = vpack.c.b16 %v361, %v1646
        %vm1663 = vcmask 1044480
        %v1664 = vrot.slane %v1647, 3
        %v1665 = vrot.slane %v1294, 3
        %v1666 = vsel %vm1663, %v1664, %v1665
        %v1667 = vrot.slane %v1648, 3
        %v1668 = vrot.slane %v1295, 3
        %v1669 = vsel %vm1663, %v1667, %v1668
        %v1670 = vrot.slane %v1649, 3
        %v1671 = vrot.slane %v1296, 3
        %v1672 = vsel %vm1663, %v1670, %v1671
        %v1673 = vrot.slane %v1650, 3
        %v1674 = vrot.slane %v1297, 3
        %v1675 = vsel %vm1663, %v1673, %v1674
        %v1676 = vrot.slane %v1651, 3
        %v1677 = vrot.slane %v1298, 3
        %v1678 = vsel %vm1663, %v1676, %v1677
        %v1679 = vrot.slane %v1652, 3
        %v1680 = vrot.slane %v1299, 3
        %v1681 = vsel %vm1663, %v1679, %v1680
        %v1682 = vrot.slane %v1653, 3
        %v1683 = vrot.slane %v1300, 3
        %v1684 = vsel %vm1663, %v1682, %v1683
        %v1685 = vrot.slane %v1654, 3
        %v1686 = vrot.slane %v1301, 3
        %v1687 = vsel %vm1663, %v1685, %v1686
        %v1688 = vrot.slane %v1655, 3
        %v1689 = vrot.slane %v1302, 3
        %v1690 = vsel %vm1663, %v1688, %v1689
        %v1691 = vrot.slane %v1656, 3
        %v1692 = vrot.slane %v1303, 3
        %v1693 = vsel %vm1663, %v1691, %v1692
        %v1694 = vrot.slane %v1657, 3
        %v1695 = vrot.slane %v1304, 3
        %v1696 = vsel %vm1663, %v1694, %v1695
        %v1697 = vrot.slane %v1658, 3
        %v1698 = vrot.slane %v1305, 3
        %v1699 = vsel %vm1663, %v1697, %v1698
        %v1700 = vrot.slane %v1659, 3
        %v1701 = vrot.slane %v1306, 3
        %v1702 = vsel %vm1663, %v1700, %v1701
        %v1703 = vrot.slane %v1660, 3
        %v1704 = vrot.slane %v1307, 3
        %v1705 = vsel %vm1663, %v1703, %v1704
        %v1706 = vrot.slane %v1661, 3
        %v1707 = vrot.slane %v1308, 3
        %v1708 = vsel %vm1663, %v1706, %v1707
        %v1709 = vrot.slane %v1662, 3
        %v1710 = vrot.slane %v1309, 3
        %v1711 = vsel %vm1663, %v1709, %v1710
        %1712 = vrot.lane.b32.xlu0 %v1666, 24
        %v1713 = vpop.permute.xlu0 %1712
        %1714 = vrot.lane.b32.xlu0 %v1669, 24
        %v1715 = vpop.permute.xlu0 %1714
        %1716 = vrot.lane.b32.xlu0 %v1672, 24
        %v1717 = vpop.permute.xlu0 %1716
        %1718 = vrot.lane.b32.xlu0 %v1675, 24
        %v1719 = vpop.permute.xlu0 %1718
        %1720 = vrot.lane.b32.xlu0 %v1678, 24
        %v1721 = vpop.permute.xlu0 %1720
        %1722 = vrot.lane.b32.xlu0 %v1681, 24
        %v1723 = vpop.permute.xlu0 %1722
        %1724 = vrot.lane.b32.xlu0 %v1684, 24
        %v1725 = vpop.permute.xlu0 %1724
        %1726 = vrot.lane.b32.xlu0 %v1687, 24
        %v1727 = vpop.permute.xlu0 %1726
        %1728 = vrot.lane.b32.xlu0 %v1690, 24
        %v1729 = vpop.permute.xlu0 %1728
        %1730 = vrot.lane.b32.xlu0 %v1693, 24
        %v1731 = vpop.permute.xlu0 %1730
        %1732 = vrot.lane.b32.xlu0 %v1696, 24
        %v1733 = vpop.permute.xlu0 %1732
        %1734 = vrot.lane.b32.xlu0 %v1699, 24
        %v1735 = vpop.permute.xlu0 %1734
        %1736 = vrot.lane.b32.xlu0 %v1702, 24
        %v1737 = vpop.permute.xlu0 %1736
        %1738 = vrot.lane.b32.xlu0 %v1705, 24
        %v1739 = vpop.permute.xlu0 %1738
        %1740 = vrot.lane.b32.xlu0 %v1708, 24
        %v1741 = vpop.permute.xlu0 %1740
        %1742 = vrot.lane.b32.xlu0 %v1711, 24
        %v1743 = vpop.permute.xlu0 %1742
        %vm1744 = vcmask 31744
        %v1746 = vsel %vm1744, %v362, %v620
        %v1748 = vsel %vm1744, %v363, %v622
        %v1750 = vsel %vm1744, %v364, %v624
        %v1752 = vsel %vm1744, %v365, %v626
        %v1754 = vsel %vm1744, %v366, %v628
        %v1756 = vsel %vm1744, %v367, %v630
        %v1758 = vsel %vm1744, %v368, %v632
        %v1760 = vsel %vm1744, %v369, %v634
        %v1762 = vsel %vm1744, %v370, %v636
        %v1764 = vsel %vm1744, %v371, %v638
        %v1766 = vsel %vm1744, %v372, %v640
        %v1768 = vsel %vm1744, %v373, %v642
        %v1770 = vsel %vm1744, %v374, %v644
        %v1772 = vsel %vm1744, %v375, %v646
        %v1774 = vsel %vm1744, %v376, %v648
        %v1776 = vsel %vm1744, %v377, %v650
        %vm1777 = vcmask 64512
        %v1779 = vsel %vm1777, %v1746, %v749
        %v1781 = vsel %vm1777, %v1748, %v751
        %v1783 = vsel %vm1777, %v1750, %v753
        %v1785 = vsel %vm1777, %v1752, %v755
        %v1787 = vsel %vm1777, %v1754, %v757
        %v1789 = vsel %vm1777, %v1756, %v759
        %v1791 = vsel %vm1777, %v1758, %v761
        %v1793 = vsel %vm1777, %v1760, %v763
        %v1795 = vsel %vm1777, %v1762, %v765
        %v1797 = vsel %vm1777, %v1764, %v767
        %v1799 = vsel %vm1777, %v1766, %v769
        %v1801 = vsel %vm1777, %v1768, %v771
        %v1803 = vsel %vm1777, %v1770, %v773
        %v1805 = vsel %vm1777, %v1772, %v775
        %v1807 = vsel %vm1777, %v1774, %v777
        %v1809 = vsel %vm1777, %v1776, %v779
        %vm1810 = vcmask 97280
        %v1812 = vsel %vm1810, %v1779, %v1102
        %v1814 = vsel %vm1810, %v1781, %v1104
        %v1816 = vsel %vm1810, %v1783, %v1106
        %v1818 = vsel %vm1810, %v1785, %v1108
        %v1820 = vsel %vm1810, %v1787, %v1110
        %v1822 = vsel %vm1810, %v1789, %v1112
        %v1824 = vsel %vm1810, %v1791, %v1114
        %v1826 = vsel %vm1810, %v1793, %v1116
        %v1828 = vsel %vm1810, %v1795, %v1118
        %v1830 = vsel %vm1810, %v1797, %v1120
        %v1832 = vsel %vm1810, %v1799, %v1122
        %v1834 = vsel %vm1810, %v1801, %v1124
        %v1836 = vsel %vm1810, %v1803, %v1126
        %v1838 = vsel %vm1810, %v1805, %v1128
        %v1840 = vsel %vm1810, %v1807, %v1130
        %v1842 = vsel %vm1810, %v1809, %v1132
        %vm1843 = vcmask 130048
        %v1845 = vsel %vm1843, %v1812, %v1231
        %v1847 = vsel %vm1843, %v1814, %v1233
        %v1849 = vsel %vm1843, %v1816, %v1235
        %v1851 = vsel %vm1843, %v1818, %v1237
        %v1853 = vsel %vm1843, %v1820, %v1239
        %v1855 = vsel %vm1843, %v1822, %v1241
        %v1857 = vsel %vm1843, %v1824, %v1243
        %v1859 = vsel %vm1843, %v1826, %v1245
        %v1861 = vsel %vm1843, %v1828, %v1247
        %v1863 = vsel %vm1843, %v1830, %v1249
        %v1865 = vsel %vm1843, %v1832, %v1251
        %v1867 = vsel %vm1843, %v1834, %v1253
        %v1869 = vsel %vm1843, %v1836, %v1255
        %v1871 = vsel %vm1843, %v1838, %v1257
        %v1873 = vsel %vm1843, %v1840, %v1259
        %v1875 = vsel %vm1843, %v1842, %v1261
        %vm1876 = vcmask 162816
        %v1878 = vsel %vm1876, %v1845, %v1584
        %v1880 = vsel %vm1876, %v1847, %v1586
        %v1882 = vsel %vm1876, %v1849, %v1588
        %v1884 = vsel %vm1876, %v1851, %v1590
        %v1886 = vsel %vm1876, %v1853, %v1592
        %v1888 = vsel %vm1876, %v1855, %v1594
        %v1890 = vsel %vm1876, %v1857, %v1596
        %v1892 = vsel %vm1876, %v1859, %v1598
        %v1894 = vsel %vm1876, %v1861, %v1600
        %v1896 = vsel %vm1876, %v1863, %v1602
        %v1898 = vsel %vm1876, %v1865, %v1604
        %v1900 = vsel %vm1876, %v1867, %v1606
        %v1902 = vsel %vm1876, %v1869, %v1608
        %v1904 = vsel %vm1876, %v1871, %v1610
        %v1906 = vsel %vm1876, %v1873, %v1612
        %v1908 = vsel %vm1876, %v1875, %v1614
        %vm1909 = vcmask 195584
        %v1911 = vsel %vm1909, %v1878, %v1713
        %v1913 = vsel %vm1909, %v1880, %v1715
        %v1915 = vsel %vm1909, %v1882, %v1717
        %v1917 = vsel %vm1909, %v1884, %v1719
        %v1919 = vsel %vm1909, %v1886, %v1721
        %v1921 = vsel %vm1909, %v1888, %v1723
        %v1923 = vsel %vm1909, %v1890, %v1725
        %v1925 = vsel %vm1909, %v1892, %v1727
        %v1927 = vsel %vm1909, %v1894, %v1729
        %v1929 = vsel %vm1909, %v1896, %v1731
        %v1931 = vsel %vm1909, %v1898, %v1733
        %v1933 = vsel %vm1909, %v1900, %v1735
        %v1935 = vsel %vm1909, %v1902, %v1737
        %v1937 = vsel %vm1909, %v1904, %v1739
        %v1939 = vsel %vm1909, %v1906, %v1741
        %v1941 = vsel %vm1909, %v1908, %v1743
        %v1942 = vld [vmem:[%s1] sm:$0xf]
        %v1943 = vld [vmem:[%s1 + $0x4] sm:$0xf]
        %v1944 = vld [vmem:[%s1 + $0x8] sm:$0xf]
        %v1945 = vld [vmem:[%s1 + $0xc] sm:$0x3]
        %s1946 = scalar_lea.vmem %s168, 12
        %v1947 = vld [vmem:[%s1946] sm:$0xf]
        %v1948 = vld [vmem:[%s1946 + $0x4] sm:$0xf]
        %v1949 = vld [vmem:[%s1946 + $0xc] sm:$0xf]
        %v1950 = vld [vmem:[%s1946 + $0x10] sm:$0xf]
        %v1951 = vld [vmem:[%s1946 + $0x18] sm:$0xf]
        %v1952 = vld [vmem:[%s1946 + $0x1c] sm:$0xf]
        %v1953 = vld [vmem:[%s1946 + $0x24] sm:$0xf]
        %v1954 = vld [vmem:[%s1946 + $0x28] sm:$0xf]
        %v1955 = vld [vmem:[%s1946 + $0x30] sm:$0xf]
        %v1956 = vld [vmem:[%s1946 + $0x34] sm:$0xf]
        %v1957 = vld [vmem:[%s1946 + $0x3c] sm:$0xf]
        %v1958 = vld [vmem:[%s1946 + $0x40] sm:$0xf]
        %v1959 = vld [vmem:[%s1946 + $0x48] sm:$0xf]
        %v1960 = vld [vmem:[%s1946 + $0x4c] sm:$0xf]
        %v1961 = vld [vmem:[%s1946 + $0x54] sm:$0xf]
        %v1962 = vld [vmem:[%s1946 + $0x58] sm:$0xf]
        %v1963 = vld [vmem:[%s1946 + $0x60] sm:$0xf]
        %v1964 = vld [vmem:[%s1946 + $0x64] sm:$0xf]
        %v1965 = vld [vmem:[%s1946 + $0x6c] sm:$0xf]
        %v1966 = vld [vmem:[%s1946 + $0x70] sm:$0xf]
        %v1967 = vld [vmem:[%s1946 + $0x78] sm:$0xf]
        %v1968 = vld [vmem:[%s1946 + $0x7c] sm:$0xf]
        %v1969 = vld [vmem:[%s1946 + $0x84] sm:$0xf]
        %v1970 = vld [vmem:[%s1946 + $0x88] sm:$0xf]
        %v1971 = vld [vmem:[%s1946 + $0x90] sm:$0xf]
        %v1972 = vld [vmem:[%s1946 + $0x94] sm:$0xf]
        %v1973 = vld [vmem:[%s1946 + $0x9c] sm:$0xf]
        %v1974 = vld [vmem:[%s1946 + $0xa0] sm:$0xf]
        %v1975 = vld [vmem:[%s1946 + $0xa8] sm:$0xf]
        %v1976 = vld [vmem:[%s1946 + $0xac] sm:$0xf]
        %v1977 = vld [vmem:[%s1946 + $0xb4] sm:$0xf]
        %v1978 = vld [vmem:[%s1946 + $0xb8] sm:$0xf]
        %v1979 = vld [vmem:[%s1946 + $0x8] sm:$0x1]
        %v1980 = vld [vmem:[%s1946 + $0x14] sm:$0x1]
        %v1981 = vld [vmem:[%s1946 + $0x20] sm:$0x1]
        %v1982 = vld [vmem:[%s1946 + $0x2c] sm:$0x1]
        %v1983 = vld [vmem:[%s1946 + $0x38] sm:$0x1]
        %v1984 = vld [vmem:[%s1946 + $0x44] sm:$0x1]
        %v1985 = vld [vmem:[%s1946 + $0x50] sm:$0x1]
        %v1986 = vld [vmem:[%s1946 + $0x5c] sm:$0x1]
        %v1987 = vld [vmem:[%s1946 + $0x68] sm:$0x1]
        %v1988 = vld [vmem:[%s1946 + $0x74] sm:$0x1]
        %v1989 = vld [vmem:[%s1946 + $0x80] sm:$0x1]
        %v1990 = vld [vmem:[%s1946 + $0x8c] sm:$0x1]
        %v1991 = vld [vmem:[%s1946 + $0x98] sm:$0x1]
        %v1992 = vld [vmem:[%s1946 + $0xa4] sm:$0x1]
        %v1993 = vld [vmem:[%s1946 + $0xb0] sm:$0x1]
        %v1994 = vld [vmem:[%s1946 + $0xbc] sm:$0x1]
        %v1995 = vld [vmem:[%s1946] sm:$0xe]
        %v1996 = vld [vmem:[%s1946 + $0xc] sm:$0xe]
        %v1997 = vld [vmem:[%s1946 + $0x18] sm:$0xe]
        %v1998 = vld [vmem:[%s1946 + $0x24] sm:$0xe]
        %v1999 = vld [vmem:[%s1946 + $0x30] sm:$0xe]
        %v2000 = vld [vmem:[%s1946 + $0x3c] sm:$0xe]
        %v2001 = vld [vmem:[%s1946 + $0x48] sm:$0xe]
        %v2002 = vld [vmem:[%s1946 + $0x54] sm:$0xe]
        %v2003 = vld [vmem:[%s1946 + $0x60] sm:$0xe]
        %v2004 = vld [vmem:[%s1946 + $0x6c] sm:$0xe]
        %v2005 = vld [vmem:[%s1946 + $0x78] sm:$0xe]
        %v2006 = vld [vmem:[%s1946 + $0x84] sm:$0xe]
        %v2007 = vld [vmem:[%s1946 + $0x90] sm:$0xe]
        %v2008 = vld [vmem:[%s1946 + $0x9c] sm:$0xe]
        %v2009 = vld [vmem:[%s1946 + $0xa8] sm:$0xe]
        %v2010 = vld [vmem:[%s1946 + $0xb4] sm:$0xe]
        %v2011 = vld [vmem:[%s1946 + $0x8] sm:$0x3]
        %v2012 = vld [vmem:[%s1946 + $0x14] sm:$0x3]
        %v2013 = vld [vmem:[%s1946 + $0x20] sm:$0x3]
        %v2014 = vld [vmem:[%s1946 + $0x2c] sm:$0x3]
        %v2015 = vld [vmem:[%s1946 + $0x38] sm:$0x3]
        %v2016 = vld [vmem:[%s1946 + $0x44] sm:$0x3]
        %v2017 = vld [vmem:[%s1946 + $0x50] sm:$0x3]
        %v2018 = vld [vmem:[%s1946 + $0x5c] sm:$0x3]
        %v2019 = vld [vmem:[%s1946 + $0x68] sm:$0x3]
        %v2020 = vld [vmem:[%s1946 + $0x74] sm:$0x3]
        %v2021 = vld [vmem:[%s1946 + $0x80] sm:$0x3]
        %v2022 = vld [vmem:[%s1946 + $0x8c] sm:$0x3]
        %v2023 = vld [vmem:[%s1946 + $0x98] sm:$0x3]
        %v2024 = vld [vmem:[%s1946 + $0xa4] sm:$0x3]
        %v2025 = vld [vmem:[%s1946 + $0xb0] sm:$0x3]
        %v2026 = vld [vmem:[%s1946 + $0xbc] sm:$0x3]
        %v2027 = vld [vmem:[%s1946] sm:$0xc]
        %v2028 = vld [vmem:[%s1946 + $0xc] sm:$0xc]
        %v2029 = vld [vmem:[%s1946 + $0x18] sm:$0xc]
        %v2030 = vld [vmem:[%s1946 + $0x24] sm:$0xc]
        %v2031 = vld [vmem:[%s1946 + $0x30] sm:$0xc]
        %v2032 = vld [vmem:[%s1946 + $0x3c] sm:$0xc]
        %v2033 = vld [vmem:[%s1946 + $0x48] sm:$0xc]
        %v2034 = vld [vmem:[%s1946 + $0x54] sm:$0xc]
        %v2035 = vld [vmem:[%s1946 + $0x60] sm:$0xc]
        %v2036 = vld [vmem:[%s1946 + $0x6c] sm:$0xc]
        %v2037 = vld [vmem:[%s1946 + $0x78] sm:$0xc]
        %v2038 = vld [vmem:[%s1946 + $0x84] sm:$0xc]
        %v2039 = vld [vmem:[%s1946 + $0x90] sm:$0xc]
        %v2040 = vld [vmem:[%s1946 + $0x9c] sm:$0xc]
        %v2041 = vld [vmem:[%s1946 + $0xa8] sm:$0xc]
        %v2042 = vld [vmem:[%s1946 + $0xb4] sm:$0xc]
        %v2043 = vld [vmem:[%s1946 + $0x8] sm:$0x7]
        %v2044 = vld [vmem:[%s1946 + $0x14] sm:$0x7]
        %v2045 = vld [vmem:[%s1946 + $0x20] sm:$0x7]
        %v2046 = vld [vmem:[%s1946 + $0x2c] sm:$0x7]
        %v2047 = vld [vmem:[%s1946 + $0x38] sm:$0x7]
        %v2048 = vld [vmem:[%s1946 + $0x44] sm:$0x7]
        %v2049 = vld [vmem:[%s1946 + $0x50] sm:$0x7]
        %v2050 = vld [vmem:[%s1946 + $0x5c] sm:$0x7]
        %v2051 = vld [vmem:[%s1946 + $0x68] sm:$0x7]
        %v2052 = vld [vmem:[%s1946 + $0x74] sm:$0x7]
        %v2053 = vld [vmem:[%s1946 + $0x80] sm:$0x7]
        %v2054 = vld [vmem:[%s1946 + $0x8c] sm:$0x7]
        %v2055 = vld [vmem:[%s1946 + $0x98] sm:$0x7]
        %v2056 = vld [vmem:[%s1946 + $0xa4] sm:$0x7]
        %v2057 = vld [vmem:[%s1946 + $0xb0] sm:$0x7]
        %v2058 = vld [vmem:[%s1946 + $0xbc] sm:$0x7]
        %v2059 = vld [vmem:[%s1946] sm:$0x8]
        %v2060 = vld [vmem:[%s1946 + $0xc] sm:$0x8]
        %v2061 = vld [vmem:[%s1946 + $0x18] sm:$0x8]
        %v2062 = vld [vmem:[%s1946 + $0x24] sm:$0x8]
        %v2063 = vld [vmem:[%s1946 + $0x30] sm:$0x8]
        %v2064 = vld [vmem:[%s1946 + $0x3c] sm:$0x8]
        %v2065 = vld [vmem:[%s1946 + $0x48] sm:$0x8]
        %v2066 = vld [vmem:[%s1946 + $0x54] sm:$0x8]
        %v2067 = vld [vmem:[%s1946 + $0x60] sm:$0x8]
        %v2068 = vld [vmem:[%s1946 + $0x6c] sm:$0x8]
        %v2069 = vld [vmem:[%s1946 + $0x78] sm:$0x8]
        %v2070 = vld [vmem:[%s1946 + $0x84] sm:$0x8]
        %v2071 = vld [vmem:[%s1946 + $0x90] sm:$0x8]
        %v2072 = vld [vmem:[%s1946 + $0x9c] sm:$0x8]
        %v2073 = vld [vmem:[%s1946 + $0xa8] sm:$0x8]
        %v2074 = vld [vmem:[%s1946 + $0xb4] sm:$0x8]
        %v2107 = vunpack.c.l.b16 %v1947
        %v2108 = vunpack.c.l.b16 %v1948
        %v2109 = vunpack.c.l.b16 %v1949
        %v2110 = vunpack.c.l.b16 %v1950
        %v2111 = vunpack.c.l.b16 %v1951
        %v2112 = vunpack.c.l.b16 %v1952
        %v2113 = vunpack.c.l.b16 %v1953
        %v2114 = vunpack.c.l.b16 %v1954
        %v2115 = vunpack.c.l.b16 %v1955
        %v2116 = vunpack.c.l.b16 %v1956
        %v2117 = vunpack.c.l.b16 %v1957
        %v2118 = vunpack.c.l.b16 %v1958
        %v2119 = vunpack.c.l.b16 %v1959
        %v2120 = vunpack.c.l.b16 %v1960
        %v2121 = vunpack.c.l.b16 %v1961
        %v2122 = vunpack.c.l.b16 %v1962
        %v2123 = vunpack.c.l.b16 %v1963
        %v2124 = vunpack.c.l.b16 %v1964
        %v2125 = vunpack.c.l.b16 %v1965
        %v2126 = vunpack.c.l.b16 %v1966
        %v2127 = vunpack.c.l.b16 %v1967
        %v2128 = vunpack.c.l.b16 %v1968
        %v2129 = vunpack.c.l.b16 %v1969
        %v2130 = vunpack.c.l.b16 %v1970
        %v2131 = vunpack.c.l.b16 %v1971
        %v2132 = vunpack.c.l.b16 %v1972
        %v2133 = vunpack.c.l.b16 %v1973
        %v2134 = vunpack.c.l.b16 %v1974
        %v2135 = vunpack.c.l.b16 %v1975
        %v2136 = vunpack.c.l.b16 %v1976
        %v2137 = vunpack.c.l.b16 %v1977
        %v2138 = vunpack.c.l.b16 %v1978
        %v2139 = vpack.c.b16 %v2108, %v2107
        %v2140 = vpack.c.b16 %v2110, %v2109
        %v2141 = vpack.c.b16 %v2112, %v2111
        %v2142 = vpack.c.b16 %v2114, %v2113
        %v2143 = vpack.c.b16 %v2116, %v2115
        %v2144 = vpack.c.b16 %v2118, %v2117
        %v2145 = vpack.c.b16 %v2120, %v2119
        %v2146 = vpack.c.b16 %v2122, %v2121
        %v2147 = vpack.c.b16 %v2124, %v2123
        %v2148 = vpack.c.b16 %v2126, %v2125
        %v2149 = vpack.c.b16 %v2128, %v2127
        %v2150 = vpack.c.b16 %v2130, %v2129
        %v2151 = vpack.c.b16 %v2132, %v2131
        %v2152 = vpack.c.b16 %v2134, %v2133
        %v2153 = vpack.c.b16 %v2136, %v2135
        %v2154 = vpack.c.b16 %v2138, %v2137
        %v2171 = vunpack.c.l.b16 %v1979
        %v2172 = vunpack.c.l.b16 %v1980
        %v2173 = vunpack.c.l.b16 %v1981
        %v2174 = vunpack.c.l.b16 %v1982
        %v2175 = vunpack.c.l.b16 %v1983
        %v2176 = vunpack.c.l.b16 %v1984
        %v2177 = vunpack.c.l.b16 %v1985
        %v2178 = vunpack.c.l.b16 %v1986
        %v2179 = vunpack.c.l.b16 %v1987
        %v2180 = vunpack.c.l.b16 %v1988
        %v2181 = vunpack.c.l.b16 %v1989
        %v2182 = vunpack.c.l.b16 %v1990
        %v2183 = vunpack.c.l.b16 %v1991
        %v2184 = vunpack.c.l.b16 %v1992
        %v2185 = vunpack.c.l.b16 %v1993
        %v2186 = vunpack.c.l.b16 %v1994
        %v2187 = vpack.c.b16 %v2171, %v2171
        %v2188 = vpack.c.b16 %v2172, %v2172
        %v2189 = vpack.c.b16 %v2173, %v2173
        %v2190 = vpack.c.b16 %v2174, %v2174
        %v2191 = vpack.c.b16 %v2175, %v2175
        %v2192 = vpack.c.b16 %v2176, %v2176
        %v2193 = vpack.c.b16 %v2177, %v2177
        %v2194 = vpack.c.b16 %v2178, %v2178
        %v2195 = vpack.c.b16 %v2179, %v2179
        %v2196 = vpack.c.b16 %v2180, %v2180
        %v2197 = vpack.c.b16 %v2181, %v2181
        %v2198 = vpack.c.b16 %v2182, %v2182
        %v2199 = vpack.c.b16 %v2183, %v2183
        %v2200 = vpack.c.b16 %v2184, %v2184
        %v2201 = vpack.c.b16 %v2185, %v2185
        %v2202 = vpack.c.b16 %v2186, %v2186
        %v2204 = vshrl.u32 %v2139, 16
        %v2206 = vshll.u32 %v2139, 16
        %v2208 = vrot.slane %v2206, 1
        %v2209 = vor.u32 %v2204, %v2208
        %v2211 = vshll.u32 %v2187, 16
        %v2213 = vrot.slane %v2211, 1
        %v2214 = vsel %vm426, %v2209, %v2213
        %v2216 = vshrl.u32 %v2140, 16
        %v2218 = vshll.u32 %v2140, 16
        %v2220 = vrot.slane %v2218, 1
        %v2221 = vor.u32 %v2216, %v2220
        %v2223 = vshll.u32 %v2188, 16
        %v2225 = vrot.slane %v2223, 1
        %v2226 = vsel %vm426, %v2221, %v2225
        %v2228 = vshrl.u32 %v2141, 16
        %v2230 = vshll.u32 %v2141, 16
        %v2232 = vrot.slane %v2230, 1
        %v2233 = vor.u32 %v2228, %v2232
        %v2235 = vshll.u32 %v2189, 16
        %v2237 = vrot.slane %v2235, 1
        %v2238 = vsel %vm426, %v2233, %v2237
        %v2240 = vshrl.u32 %v2142, 16
        %v2242 = vshll.u32 %v2142, 16
        %v2244 = vrot.slane %v2242, 1
        %v2245 = vor.u32 %v2240, %v2244
        %v2247 = vshll.u32 %v2190, 16
        %v2249 = vrot.slane %v2247, 1
        %v2250 = vsel %vm426, %v2245, %v2249
        %v2252 = vshrl.u32 %v2143, 16
        %v2254 = vshll.u32 %v2143, 16
        %v2256 = vrot.slane %v2254, 1
        %v2257 = vor.u32 %v2252, %v2256
        %v2259 = vshll.u32 %v2191, 16
        %v2261 = vrot.slane %v2259, 1
        %v2262 = vsel %vm426, %v2257, %v2261
        %v2264 = vshrl.u32 %v2144, 16
        %v2266 = vshll.u32 %v2144, 16
        %v2268 = vrot.slane %v2266, 1
        %v2269 = vor.u32 %v2264, %v2268
        %v2271 = vshll.u32 %v2192, 16
        %v2273 = vrot.slane %v2271, 1
        %v2274 = vsel %vm426, %v2269, %v2273
        %v2276 = vshrl.u32 %v2145, 16
        %v2278 = vshll.u32 %v2145, 16
        %v2280 = vrot.slane %v2278, 1
        %v2281 = vor.u32 %v2276, %v2280
        %v2283 = vshll.u32 %v2193, 16
        %v2285 = vrot.slane %v2283, 1
        %v2286 = vsel %vm426, %v2281, %v2285
        %v2288 = vshrl.u32 %v2146, 16
        %v2290 = vshll.u32 %v2146, 16
        %v2292 = vrot.slane %v2290, 1
        %v2293 = vor.u32 %v2288, %v2292
        %v2295 = vshll.u32 %v2194, 16
        %v2297 = vrot.slane %v2295, 1
        %v2298 = vsel %vm426, %v2293, %v2297
        %v2300 = vshrl.u32 %v2147, 16
        %v2302 = vshll.u32 %v2147, 16
        %v2304 = vrot.slane %v2302, 1
        %v2305 = vor.u32 %v2300, %v2304
        %v2307 = vshll.u32 %v2195, 16
        %v2309 = vrot.slane %v2307, 1
        %v2310 = vsel %vm426, %v2305, %v2309
        %v2312 = vshrl.u32 %v2148, 16
        %v2314 = vshll.u32 %v2148, 16
        %v2316 = vrot.slane %v2314, 1
        %v2317 = vor.u32 %v2312, %v2316
        %v2319 = vshll.u32 %v2196, 16
        %v2321 = vrot.slane %v2319, 1
        %v2322 = vsel %vm426, %v2317, %v2321
        %v2324 = vshrl.u32 %v2149, 16
        %v2326 = vshll.u32 %v2149, 16
        %v2328 = vrot.slane %v2326, 1
        %v2329 = vor.u32 %v2324, %v2328
        %v2331 = vshll.u32 %v2197, 16
        %v2333 = vrot.slane %v2331, 1
        %v2334 = vsel %vm426, %v2329, %v2333
        %v2336 = vshrl.u32 %v2150, 16
        %v2338 = vshll.u32 %v2150, 16
        %v2340 = vrot.slane %v2338, 1
        %v2341 = vor.u32 %v2336, %v2340
        %v2343 = vshll.u32 %v2198, 16
        %v2345 = vrot.slane %v2343, 1
        %v2346 = vsel %vm426, %v2341, %v2345
        %v2348 = vshrl.u32 %v2151, 16
        %v2350 = vshll.u32 %v2151, 16
        %v2352 = vrot.slane %v2350, 1
        %v2353 = vor.u32 %v2348, %v2352
        %v2355 = vshll.u32 %v2199, 16
        %v2357 = vrot.slane %v2355, 1
        %v2358 = vsel %vm426, %v2353, %v2357
        %v2360 = vshrl.u32 %v2152, 16
        %v2362 = vshll.u32 %v2152, 16
        %v2364 = vrot.slane %v2362, 1
        %v2365 = vor.u32 %v2360, %v2364
        %v2367 = vshll.u32 %v2200, 16
        %v2369 = vrot.slane %v2367, 1
        %v2370 = vsel %vm426, %v2365, %v2369
        %v2372 = vshrl.u32 %v2153, 16
        %v2374 = vshll.u32 %v2153, 16
        %v2376 = vrot.slane %v2374, 1
        %v2377 = vor.u32 %v2372, %v2376
        %v2379 = vshll.u32 %v2201, 16
        %v2381 = vrot.slane %v2379, 1
        %v2382 = vsel %vm426, %v2377, %v2381
        %v2384 = vshrl.u32 %v2154, 16
        %v2386 = vshll.u32 %v2154, 16
        %v2388 = vrot.slane %v2386, 1
        %v2389 = vor.u32 %v2384, %v2388
        %v2391 = vshll.u32 %v2202, 16
        %v2393 = vrot.slane %v2391, 1
        %v2394 = vsel %vm426, %v2389, %v2393
        %2395 = vrot.lane.b32.xlu0 %v2214, 4
        %v2396 = vpop.permute.xlu0 %2395
        %2397 = vrot.lane.b32.xlu0 %v2226, 4
        %v2398 = vpop.permute.xlu0 %2397
        %2399 = vrot.lane.b32.xlu0 %v2238, 4
        %v2400 = vpop.permute.xlu0 %2399
        %2401 = vrot.lane.b32.xlu0 %v2250, 4
        %v2402 = vpop.permute.xlu0 %2401
        %2403 = vrot.lane.b32.xlu0 %v2262, 4
        %v2404 = vpop.permute.xlu0 %2403
        %2405 = vrot.lane.b32.xlu0 %v2274, 4
        %v2406 = vpop.permute.xlu0 %2405
        %2407 = vrot.lane.b32.xlu0 %v2286, 4
        %v2408 = vpop.permute.xlu0 %2407
        %2409 = vrot.lane.b32.xlu0 %v2298, 4
        %v2410 = vpop.permute.xlu0 %2409
        %2411 = vrot.lane.b32.xlu0 %v2310, 4
        %v2412 = vpop.permute.xlu0 %2411
        %2413 = vrot.lane.b32.xlu0 %v2322, 4
        %v2414 = vpop.permute.xlu0 %2413
        %2415 = vrot.lane.b32.xlu0 %v2334, 4
        %v2416 = vpop.permute.xlu0 %2415
        %2417 = vrot.lane.b32.xlu0 %v2346, 4
        %v2418 = vpop.permute.xlu0 %2417
        %2419 = vrot.lane.b32.xlu0 %v2358, 4
        %v2420 = vpop.permute.xlu0 %2419
        %2421 = vrot.lane.b32.xlu0 %v2370, 4
        %v2422 = vpop.permute.xlu0 %2421
        %2423 = vrot.lane.b32.xlu0 %v2382, 4
        %v2424 = vpop.permute.xlu0 %2423
        %2425 = vrot.lane.b32.xlu0 %v2394, 4
        %v2426 = vpop.permute.xlu0 %2425
        %v2443 = vunpack.c.l.b16 %v1995
        %v2444 = vunpack.c.l.b16 %v1996
        %v2445 = vunpack.c.l.b16 %v1997
        %v2446 = vunpack.c.l.b16 %v1998
        %v2447 = vunpack.c.l.b16 %v1999
        %v2448 = vunpack.c.l.b16 %v2000
        %v2449 = vunpack.c.l.b16 %v2001
        %v2450 = vunpack.c.l.b16 %v2002
        %v2451 = vunpack.c.l.b16 %v2003
        %v2452 = vunpack.c.l.b16 %v2004
        %v2453 = vunpack.c.l.b16 %v2005
        %v2454 = vunpack.c.l.b16 %v2006
        %v2455 = vunpack.c.l.b16 %v2007
        %v2456 = vunpack.c.l.b16 %v2008
        %v2457 = vunpack.c.l.b16 %v2009
        %v2458 = vunpack.c.l.b16 %v2010
        %v2459 = vpack.c.b16 %v2108, %v2443
        %v2460 = vpack.c.b16 %v2110, %v2444
        %v2461 = vpack.c.b16 %v2112, %v2445
        %v2462 = vpack.c.b16 %v2114, %v2446
        %v2463 = vpack.c.b16 %v2116, %v2447
        %v2464 = vpack.c.b16 %v2118, %v2448
        %v2465 = vpack.c.b16 %v2120, %v2449
        %v2466 = vpack.c.b16 %v2122, %v2450
        %v2467 = vpack.c.b16 %v2124, %v2451
        %v2468 = vpack.c.b16 %v2126, %v2452
        %v2469 = vpack.c.b16 %v2128, %v2453
        %v2470 = vpack.c.b16 %v2130, %v2454
        %v2471 = vpack.c.b16 %v2132, %v2455
        %v2472 = vpack.c.b16 %v2134, %v2456
        %v2473 = vpack.c.b16 %v2136, %v2457
        %v2474 = vpack.c.b16 %v2138, %v2458
        %v2475 = vrot.slane %v2459, 1
        %v2476 = vrot.slane %v2187, 1
        %v2477 = vsel %vm699, %v2475, %v2476
        %v2478 = vrot.slane %v2460, 1
        %v2479 = vrot.slane %v2188, 1
        %v2480 = vsel %vm699, %v2478, %v2479
        %v2481 = vrot.slane %v2461, 1
        %v2482 = vrot.slane %v2189, 1
        %v2483 = vsel %vm699, %v2481, %v2482
        %v2484 = vrot.slane %v2462, 1
        %v2485 = vrot.slane %v2190, 1
        %v2486 = vsel %vm699, %v2484, %v2485
        %v2487 = vrot.slane %v2463, 1
        %v2488 = vrot.slane %v2191, 1
        %v2489 = vsel %vm699, %v2487, %v2488
        %v2490 = vrot.slane %v2464, 1
        %v2491 = vrot.slane %v2192, 1
        %v2492 = vsel %vm699, %v2490, %v2491
        %v2493 = vrot.slane %v2465, 1
        %v2494 = vrot.slane %v2193, 1
        %v2495 = vsel %vm699, %v2493, %v2494
        %v2496 = vrot.slane %v2466, 1
        %v2497 = vrot.slane %v2194, 1
        %v2498 = vsel %vm699, %v2496, %v2497
        %v2499 = vrot.slane %v2467, 1
        %v2500 = vrot.slane %v2195, 1
        %v2501 = vsel %vm699, %v2499, %v2500
        %v2502 = vrot.slane %v2468, 1
        %v2503 = vrot.slane %v2196, 1
        %v2504 = vsel %vm699, %v2502, %v2503
        %v2505 = vrot.slane %v2469, 1
        %v2506 = vrot.slane %v2197, 1
        %v2507 = vsel %vm699, %v2505, %v2506
        %v2508 = vrot.slane %v2470, 1
        %v2509 = vrot.slane %v2198, 1
        %v2510 = vsel %vm699, %v2508, %v2509
        %v2511 = vrot.slane %v2471, 1
        %v2512 = vrot.slane %v2199, 1
        %v2513 = vsel %vm699, %v2511, %v2512
        %v2514 = vrot.slane %v2472, 1
        %v2515 = vrot.slane %v2200, 1
        %v2516 = vsel %vm699, %v2514, %v2515
        %v2517 = vrot.slane %v2473, 1
        %v2518 = vrot.slane %v2201, 1
        %v2519 = vsel %vm699, %v2517, %v2518
        %v2520 = vrot.slane %v2474, 1
        %v2521 = vrot.slane %v2202, 1
        %v2522 = vsel %vm699, %v2520, %v2521
        %2523 = vrot.lane.b32.xlu0 %v2477, 8
        %v2524 = vpop.permute.xlu0 %2523
        %2525 = vrot.lane.b32.xlu0 %v2480, 8
        %v2526 = vpop.permute.xlu0 %2525
        %2527 = vrot.lane.b32.xlu0 %v2483, 8
        %v2528 = vpop.permute.xlu0 %2527
        %2529 = vrot.lane.b32.xlu0 %v2486, 8
        %v2530 = vpop.permute.xlu0 %2529
        %2531 = vrot.lane.b32.xlu0 %v2489, 8
        %v2532 = vpop.permute.xlu0 %2531
        %2533 = vrot.lane.b32.xlu0 %v2492, 8
        %v2534 = vpop.permute.xlu0 %2533
        %2535 = vrot.lane.b32.xlu0 %v2495, 8
        %v2536 = vpop.permute.xlu0 %2535
        %2537 = vrot.lane.b32.xlu0 %v2498, 8
        %v2538 = vpop.permute.xlu0 %2537
        %2539 = vrot.lane.b32.xlu0 %v2501, 8
        %v2540 = vpop.permute.xlu0 %2539
        %2541 = vrot.lane.b32.xlu0 %v2504, 8
        %v2542 = vpop.permute.xlu0 %2541
        %2543 = vrot.lane.b32.xlu0 %v2507, 8
        %v2544 = vpop.permute.xlu0 %2543
        %2545 = vrot.lane.b32.xlu0 %v2510, 8
        %v2546 = vpop.permute.xlu0 %2545
        %2547 = vrot.lane.b32.xlu0 %v2513, 8
        %v2548 = vpop.permute.xlu0 %2547
        %2549 = vrot.lane.b32.xlu0 %v2516, 8
        %v2550 = vpop.permute.xlu0 %2549
        %2551 = vrot.lane.b32.xlu0 %v2519, 8
        %v2552 = vpop.permute.xlu0 %2551
        %2553 = vrot.lane.b32.xlu0 %v2522, 8
        %v2554 = vpop.permute.xlu0 %2553
        %v2571 = vunpack.c.l.b16 %v2011
        %v2572 = vunpack.c.l.b16 %v2012
        %v2573 = vunpack.c.l.b16 %v2013
        %v2574 = vunpack.c.l.b16 %v2014
        %v2575 = vunpack.c.l.b16 %v2015
        %v2576 = vunpack.c.l.b16 %v2016
        %v2577 = vunpack.c.l.b16 %v2017
        %v2578 = vunpack.c.l.b16 %v2018
        %v2579 = vunpack.c.l.b16 %v2019
        %v2580 = vunpack.c.l.b16 %v2020
        %v2581 = vunpack.c.l.b16 %v2021
        %v2582 = vunpack.c.l.b16 %v2022
        %v2583 = vunpack.c.l.b16 %v2023
        %v2584 = vunpack.c.l.b16 %v2024
        %v2585 = vunpack.c.l.b16 %v2025
        %v2586 = vunpack.c.l.b16 %v2026
        %v2587 = vpack.c.b16 %v2571, %v2571
        %v2588 = vpack.c.b16 %v2572, %v2572
        %v2589 = vpack.c.b16 %v2573, %v2573
        %v2590 = vpack.c.b16 %v2574, %v2574
        %v2591 = vpack.c.b16 %v2575, %v2575
        %v2592 = vpack.c.b16 %v2576, %v2576
        %v2593 = vpack.c.b16 %v2577, %v2577
        %v2594 = vpack.c.b16 %v2578, %v2578
        %v2595 = vpack.c.b16 %v2579, %v2579
        %v2596 = vpack.c.b16 %v2580, %v2580
        %v2597 = vpack.c.b16 %v2581, %v2581
        %v2598 = vpack.c.b16 %v2582, %v2582
        %v2599 = vpack.c.b16 %v2583, %v2583
        %v2600 = vpack.c.b16 %v2584, %v2584
        %v2601 = vpack.c.b16 %v2585, %v2585
        %v2602 = vpack.c.b16 %v2586, %v2586
        %v2604 = vshrl.u32 %v2459, 16
        %v2606 = vrot.slane %v2604, 1
        %v2607 = vshll.u32 %v2459, 16
        %v2609 = vrot.slane %v2607, 2
        %v2610 = vor.u32 %v2606, %v2609
        %v2612 = vshrl.u32 %v2587, 16
        %v2614 = vrot.slane %v2612, 1
        %v2615 = vshll.u32 %v2587, 16
        %v2617 = vrot.slane %v2615, 2
        %v2618 = vor.u32 %v2614, %v2617
        %v2619 = vsel %vm828, %v2610, %v2618
        %v2621 = vshrl.u32 %v2460, 16
        %v2623 = vrot.slane %v2621, 1
        %v2624 = vshll.u32 %v2460, 16
        %v2626 = vrot.slane %v2624, 2
        %v2627 = vor.u32 %v2623, %v2626
        %v2629 = vshrl.u32 %v2588, 16
        %v2631 = vrot.slane %v2629, 1
        %v2632 = vshll.u32 %v2588, 16
        %v2634 = vrot.slane %v2632, 2
        %v2635 = vor.u32 %v2631, %v2634
        %v2636 = vsel %vm828, %v2627, %v2635
        %v2638 = vshrl.u32 %v2461, 16
        %v2640 = vrot.slane %v2638, 1
        %v2641 = vshll.u32 %v2461, 16
        %v2643 = vrot.slane %v2641, 2
        %v2644 = vor.u32 %v2640, %v2643
        %v2646 = vshrl.u32 %v2589, 16
        %v2648 = vrot.slane %v2646, 1
        %v2649 = vshll.u32 %v2589, 16
        %v2651 = vrot.slane %v2649, 2
        %v2652 = vor.u32 %v2648, %v2651
        %v2653 = vsel %vm828, %v2644, %v2652
        %v2655 = vshrl.u32 %v2462, 16
        %v2657 = vrot.slane %v2655, 1
        %v2658 = vshll.u32 %v2462, 16
        %v2660 = vrot.slane %v2658, 2
        %v2661 = vor.u32 %v2657, %v2660
        %v2663 = vshrl.u32 %v2590, 16
        %v2665 = vrot.slane %v2663, 1
        %v2666 = vshll.u32 %v2590, 16
        %v2668 = vrot.slane %v2666, 2
        %v2669 = vor.u32 %v2665, %v2668
        %v2670 = vsel %vm828, %v2661, %v2669
        %v2672 = vshrl.u32 %v2463, 16
        %v2674 = vrot.slane %v2672, 1
        %v2675 = vshll.u32 %v2463, 16
        %v2677 = vrot.slane %v2675, 2
        %v2678 = vor.u32 %v2674, %v2677
        %v2680 = vshrl.u32 %v2591, 16
        %v2682 = vrot.slane %v2680, 1
        %v2683 = vshll.u32 %v2591, 16
        %v2685 = vrot.slane %v2683, 2
        %v2686 = vor.u32 %v2682, %v2685
        %v2687 = vsel %vm828, %v2678, %v2686
        %v2689 = vshrl.u32 %v2464, 16
        %v2691 = vrot.slane %v2689, 1
        %v2692 = vshll.u32 %v2464, 16
        %v2694 = vrot.slane %v2692, 2
        %v2695 = vor.u32 %v2691, %v2694
        %v2697 = vshrl.u32 %v2592, 16
        %v2699 = vrot.slane %v2697, 1
        %v2700 = vshll.u32 %v2592, 16
        %v2702 = vrot.slane %v2700, 2
        %v2703 = vor.u32 %v2699, %v2702
        %v2704 = vsel %vm828, %v2695, %v2703
        %v2706 = vshrl.u32 %v2465, 16
        %v2708 = vrot.slane %v2706, 1
        %v2709 = vshll.u32 %v2465, 16
        %v2711 = vrot.slane %v2709, 2
        %v2712 = vor.u32 %v2708, %v2711
        %v2714 = vshrl.u32 %v2593, 16
        %v2716 = vrot.slane %v2714, 1
        %v2717 = vshll.u32 %v2593, 16
        %v2719 = vrot.slane %v2717, 2
        %v2720 = vor.u32 %v2716, %v2719
        %v2721 = vsel %vm828, %v2712, %v2720
        %v2723 = vshrl.u32 %v2466, 16
        %v2725 = vrot.slane %v2723, 1
        %v2726 = vshll.u32 %v2466, 16
        %v2728 = vrot.slane %v2726, 2
        %v2729 = vor.u32 %v2725, %v2728
        %v2731 = vshrl.u32 %v2594, 16
        %v2733 = vrot.slane %v2731, 1
        %v2734 = vshll.u32 %v2594, 16
        %v2736 = vrot.slane %v2734, 2
        %v2737 = vor.u32 %v2733, %v2736
        %v2738 = vsel %vm828, %v2729, %v2737
        %v2740 = vshrl.u32 %v2467, 16
        %v2742 = vrot.slane %v2740, 1
        %v2743 = vshll.u32 %v2467, 16
        %v2745 = vrot.slane %v2743, 2
        %v2746 = vor.u32 %v2742, %v2745
        %v2748 = vshrl.u32 %v2595, 16
        %v2750 = vrot.slane %v2748, 1
        %v2751 = vshll.u32 %v2595, 16
        %v2753 = vrot.slane %v2751, 2
        %v2754 = vor.u32 %v2750, %v2753
        %v2755 = vsel %vm828, %v2746, %v2754
        %v2757 = vshrl.u32 %v2468, 16
        %v2759 = vrot.slane %v2757, 1
        %v2760 = vshll.u32 %v2468, 16
        %v2762 = vrot.slane %v2760, 2
        %v2763 = vor.u32 %v2759, %v2762
        %v2765 = vshrl.u32 %v2596, 16
        %v2767 = vrot.slane %v2765, 1
        %v2768 = vshll.u32 %v2596, 16
        %v2770 = vrot.slane %v2768, 2
        %v2771 = vor.u32 %v2767, %v2770
        %v2772 = vsel %vm828, %v2763, %v2771
        %v2774 = vshrl.u32 %v2469, 16
        %v2776 = vrot.slane %v2774, 1
        %v2777 = vshll.u32 %v2469, 16
        %v2779 = vrot.slane %v2777, 2
        %v2780 = vor.u32 %v2776, %v2779
        %v2782 = vshrl.u32 %v2597, 16
        %v2784 = vrot.slane %v2782, 1
        %v2785 = vshll.u32 %v2597, 16
        %v2787 = vrot.slane %v2785, 2
        %v2788 = vor.u32 %v2784, %v2787
        %v2789 = vsel %vm828, %v2780, %v2788
        %v2791 = vshrl.u32 %v2470, 16
        %v2793 = vrot.slane %v2791, 1
        %v2794 = vshll.u32 %v2470, 16
        %v2796 = vrot.slane %v2794, 2
        %v2797 = vor.u32 %v2793, %v2796
        %v2799 = vshrl.u32 %v2598, 16
        %v2801 = vrot.slane %v2799, 1
        %v2802 = vshll.u32 %v2598, 16
        %v2804 = vrot.slane %v2802, 2
        %v2805 = vor.u32 %v2801, %v2804
        %v2806 = vsel %vm828, %v2797, %v2805
        %v2808 = vshrl.u32 %v2471, 16
        %v2810 = vrot.slane %v2808, 1
        %v2811 = vshll.u32 %v2471, 16
        %v2813 = vrot.slane %v2811, 2
        %v2814 = vor.u32 %v2810, %v2813
        %v2816 = vshrl.u32 %v2599, 16
        %v2818 = vrot.slane %v2816, 1
        %v2819 = vshll.u32 %v2599, 16
        %v2821 = vrot.slane %v2819, 2
        %v2822 = vor.u32 %v2818, %v2821
        %v2823 = vsel %vm828, %v2814, %v2822
        %v2825 = vshrl.u32 %v2472, 16
        %v2827 = vrot.slane %v2825, 1
        %v2828 = vshll.u32 %v2472, 16
        %v2830 = vrot.slane %v2828, 2
        %v2831 = vor.u32 %v2827, %v2830
        %v2833 = vshrl.u32 %v2600, 16
        %v2835 = vrot.slane %v2833, 1
        %v2836 = vshll.u32 %v2600, 16
        %v2838 = vrot.slane %v2836, 2
        %v2839 = vor.u32 %v2835, %v2838
        %v2840 = vsel %vm828, %v2831, %v2839
        %v2842 = vshrl.u32 %v2473, 16
        %v2844 = vrot.slane %v2842, 1
        %v2845 = vshll.u32 %v2473, 16
        %v2847 = vrot.slane %v2845, 2
        %v2848 = vor.u32 %v2844, %v2847
        %v2850 = vshrl.u32 %v2601, 16
        %v2852 = vrot.slane %v2850, 1
        %v2853 = vshll.u32 %v2601, 16
        %v2855 = vrot.slane %v2853, 2
        %v2856 = vor.u32 %v2852, %v2855
        %v2857 = vsel %vm828, %v2848, %v2856
        %v2859 = vshrl.u32 %v2474, 16
        %v2861 = vrot.slane %v2859, 1
        %v2862 = vshll.u32 %v2474, 16
        %v2864 = vrot.slane %v2862, 2
        %v2865 = vor.u32 %v2861, %v2864
        %v2867 = vshrl.u32 %v2602, 16
        %v2869 = vrot.slane %v2867, 1
        %v2870 = vshll.u32 %v2602, 16
        %v2872 = vrot.slane %v2870, 2
        %v2873 = vor.u32 %v2869, %v2872
        %v2874 = vsel %vm828, %v2865, %v2873
        %2875 = vrot.lane.b32.xlu0 %v2619, 12
        %v2876 = vpop.permute.xlu0 %2875
        %2877 = vrot.lane.b32.xlu0 %v2636, 12
        %v2878 = vpop.permute.xlu0 %2877
        %2879 = vrot.lane.b32.xlu0 %v2653, 12
        %v2880 = vpop.permute.xlu0 %2879
        %2881 = vrot.lane.b32.xlu0 %v2670, 12
        %v2882 = vpop.permute.xlu0 %2881
        %2883 = vrot.lane.b32.xlu0 %v2687, 12
        %v2884 = vpop.permute.xlu0 %2883
        %2885 = vrot.lane.b32.xlu0 %v2704, 12
        %v2886 = vpop.permute.xlu0 %2885
        %2887 = vrot.lane.b32.xlu0 %v2721, 12
        %v2888 = vpop.permute.xlu0 %2887
        %2889 = vrot.lane.b32.xlu0 %v2738, 12
        %v2890 = vpop.permute.xlu0 %2889
        %2891 = vrot.lane.b32.xlu0 %v2755, 12
        %v2892 = vpop.permute.xlu0 %2891
        %2893 = vrot.lane.b32.xlu0 %v2772, 12
        %v2894 = vpop.permute.xlu0 %2893
        %2895 = vrot.lane.b32.xlu0 %v2789, 12
        %v2896 = vpop.permute.xlu0 %2895
        %2897 = vrot.lane.b32.xlu0 %v2806, 12
        %v2898 = vpop.permute.xlu0 %2897
        %2899 = vrot.lane.b32.xlu0 %v2823, 12
        %v2900 = vpop.permute.xlu0 %2899
        %2901 = vrot.lane.b32.xlu0 %v2840, 12
        %v2902 = vpop.permute.xlu0 %2901
        %2903 = vrot.lane.b32.xlu0 %v2857, 12
        %v2904 = vpop.permute.xlu0 %2903
        %2905 = vrot.lane.b32.xlu0 %v2874, 12
        %v2906 = vpop.permute.xlu0 %2905
        %v2923 = vunpack.c.l.b16 %v2027
        %v2924 = vunpack.c.l.b16 %v2028
        %v2925 = vunpack.c.l.b16 %v2029
        %v2926 = vunpack.c.l.b16 %v2030
        %v2927 = vunpack.c.l.b16 %v2031
        %v2928 = vunpack.c.l.b16 %v2032
        %v2929 = vunpack.c.l.b16 %v2033
        %v2930 = vunpack.c.l.b16 %v2034
        %v2931 = vunpack.c.l.b16 %v2035
        %v2932 = vunpack.c.l.b16 %v2036
        %v2933 = vunpack.c.l.b16 %v2037
        %v2934 = vunpack.c.l.b16 %v2038
        %v2935 = vunpack.c.l.b16 %v2039
        %v2936 = vunpack.c.l.b16 %v2040
        %v2937 = vunpack.c.l.b16 %v2041
        %v2938 = vunpack.c.l.b16 %v2042
        %v2939 = vpack.c.b16 %v2108, %v2923
        %v2940 = vpack.c.b16 %v2110, %v2924
        %v2941 = vpack.c.b16 %v2112, %v2925
        %v2942 = vpack.c.b16 %v2114, %v2926
        %v2943 = vpack.c.b16 %v2116, %v2927
        %v2944 = vpack.c.b16 %v2118, %v2928
        %v2945 = vpack.c.b16 %v2120, %v2929
        %v2946 = vpack.c.b16 %v2122, %v2930
        %v2947 = vpack.c.b16 %v2124, %v2931
        %v2948 = vpack.c.b16 %v2126, %v2932
        %v2949 = vpack.c.b16 %v2128, %v2933
        %v2950 = vpack.c.b16 %v2130, %v2934
        %v2951 = vpack.c.b16 %v2132, %v2935
        %v2952 = vpack.c.b16 %v2134, %v2936
        %v2953 = vpack.c.b16 %v2136, %v2937
        %v2954 = vpack.c.b16 %v2138, %v2938
        %v2955 = vrot.slane %v2939, 2
        %v2956 = vrot.slane %v2587, 2
        %v2957 = vsel %vm1181, %v2955, %v2956
        %v2958 = vrot.slane %v2940, 2
        %v2959 = vrot.slane %v2588, 2
        %v2960 = vsel %vm1181, %v2958, %v2959
        %v2961 = vrot.slane %v2941, 2
        %v2962 = vrot.slane %v2589, 2
        %v2963 = vsel %vm1181, %v2961, %v2962
        %v2964 = vrot.slane %v2942, 2
        %v2965 = vrot.slane %v2590, 2
        %v2966 = vsel %vm1181, %v2964, %v2965
        %v2967 = vrot.slane %v2943, 2
        %v2968 = vrot.slane %v2591, 2
        %v2969 = vsel %vm1181, %v2967, %v2968
        %v2970 = vrot.slane %v2944, 2
        %v2971 = vrot.slane %v2592, 2
        %v2972 = vsel %vm1181, %v2970, %v2971
        %v2973 = vrot.slane %v2945, 2
        %v2974 = vrot.slane %v2593, 2
        %v2975 = vsel %vm1181, %v2973, %v2974
        %v2976 = vrot.slane %v2946, 2
        %v2977 = vrot.slane %v2594, 2
        %v2978 = vsel %vm1181, %v2976, %v2977
        %v2979 = vrot.slane %v2947, 2
        %v2980 = vrot.slane %v2595, 2
        %v2981 = vsel %vm1181, %v2979, %v2980
        %v2982 = vrot.slane %v2948, 2
        %v2983 = vrot.slane %v2596, 2
        %v2984 = vsel %vm1181, %v2982, %v2983
        %v2985 = vrot.slane %v2949, 2
        %v2986 = vrot.slane %v2597, 2
        %v2987 = vsel %vm1181, %v2985, %v2986
        %v2988 = vrot.slane %v2950, 2
        %v2989 = vrot.slane %v2598, 2
        %v2990 = vsel %vm1181, %v2988, %v2989
        %v2991 = vrot.slane %v2951, 2
        %v2992 = vrot.slane %v2599, 2
        %v2993 = vsel %vm1181, %v2991, %v2992
        %v2994 = vrot.slane %v2952, 2
        %v2995 = vrot.slane %v2600, 2
        %v2996 = vsel %vm1181, %v2994, %v2995
        %v2997 = vrot.slane %v2953, 2
        %v2998 = vrot.slane %v2601, 2
        %v2999 = vsel %vm1181, %v2997, %v2998
        %v3000 = vrot.slane %v2954, 2
        %v3001 = vrot.slane %v2602, 2
        %v3002 = vsel %vm1181, %v3000, %v3001
        %3003 = vrot.lane.b32.xlu0 %v2957, 16
        %v3004 = vpop.permute.xlu0 %3003
        %3005 = vrot.lane.b32.xlu0 %v2960, 16
        %v3006 = vpop.permute.xlu0 %3005
        %3007 = vrot.lane.b32.xlu0 %v2963, 16
        %v3008 = vpop.permute.xlu0 %3007
        %3009 = vrot.lane.b32.xlu0 %v2966, 16
        %v3010 = vpop.permute.xlu0 %3009
        %3011 = vrot.lane.b32.xlu0 %v2969, 16
        %v3012 = vpop.permute.xlu0 %3011
        %3013 = vrot.lane.b32.xlu0 %v2972, 16
        %v3014 = vpop.permute.xlu0 %3013
        %3015 = vrot.lane.b32.xlu0 %v2975, 16
        %v3016 = vpop.permute.xlu0 %3015
        %3017 = vrot.lane.b32.xlu0 %v2978, 16
        %v3018 = vpop.permute.xlu0 %3017
        %3019 = vrot.lane.b32.xlu0 %v2981, 16
        %v3020 = vpop.permute.xlu0 %3019
        %3021 = vrot.lane.b32.xlu0 %v2984, 16
        %v3022 = vpop.permute.xlu0 %3021
        %3023 = vrot.lane.b32.xlu0 %v2987, 16
        %v3024 = vpop.permute.xlu0 %3023
        %3025 = vrot.lane.b32.xlu0 %v2990, 16
        %v3026 = vpop.permute.xlu0 %3025
        %3027 = vrot.lane.b32.xlu0 %v2993, 16
        %v3028 = vpop.permute.xlu0 %3027
        %3029 = vrot.lane.b32.xlu0 %v2996, 16
        %v3030 = vpop.permute.xlu0 %3029
        %3031 = vrot.lane.b32.xlu0 %v2999, 16
        %v3032 = vpop.permute.xlu0 %3031
        %3033 = vrot.lane.b32.xlu0 %v3002, 16
        %v3034 = vpop.permute.xlu0 %3033
        %v3051 = vunpack.c.l.b16 %v2043
        %v3052 = vunpack.c.l.b16 %v2044
        %v3053 = vunpack.c.l.b16 %v2045
        %v3054 = vunpack.c.l.b16 %v2046
        %v3055 = vunpack.c.l.b16 %v2047
        %v3056 = vunpack.c.l.b16 %v2048
        %v3057 = vunpack.c.l.b16 %v2049
        %v3058 = vunpack.c.l.b16 %v2050
        %v3059 = vunpack.c.l.b16 %v2051
        %v3060 = vunpack.c.l.b16 %v2052
        %v3061 = vunpack.c.l.b16 %v2053
        %v3062 = vunpack.c.l.b16 %v2054
        %v3063 = vunpack.c.l.b16 %v2055
        %v3064 = vunpack.c.l.b16 %v2056
        %v3065 = vunpack.c.l.b16 %v2057
        %v3066 = vunpack.c.l.b16 %v2058
        %v3067 = vpack.c.b16 %v3051, %v3051
        %v3068 = vpack.c.b16 %v3052, %v3052
        %v3069 = vpack.c.b16 %v3053, %v3053
        %v3070 = vpack.c.b16 %v3054, %v3054
        %v3071 = vpack.c.b16 %v3055, %v3055
        %v3072 = vpack.c.b16 %v3056, %v3056
        %v3073 = vpack.c.b16 %v3057, %v3057
        %v3074 = vpack.c.b16 %v3058, %v3058
        %v3075 = vpack.c.b16 %v3059, %v3059
        %v3076 = vpack.c.b16 %v3060, %v3060
        %v3077 = vpack.c.b16 %v3061, %v3061
        %v3078 = vpack.c.b16 %v3062, %v3062
        %v3079 = vpack.c.b16 %v3063, %v3063
        %v3080 = vpack.c.b16 %v3064, %v3064
        %v3081 = vpack.c.b16 %v3065, %v3065
        %v3082 = vpack.c.b16 %v3066, %v3066
        %v3084 = vshrl.u32 %v2939, 16
        %v3086 = vrot.slane %v3084, 2
        %v3087 = vshll.u32 %v2939, 16
        %v3089 = vrot.slane %v3087, 3
        %v3090 = vor.u32 %v3086, %v3089
        %v3092 = vshrl.u32 %v3067, 16
        %v3094 = vrot.slane %v3092, 2
        %v3095 = vshll.u32 %v3067, 16
        %v3097 = vrot.slane %v3095, 3
        %v3098 = vor.u32 %v3094, %v3097
        %v3099 = vsel %vm1310, %v3090, %v3098
        %v3101 = vshrl.u32 %v2940, 16
        %v3103 = vrot.slane %v3101, 2
        %v3104 = vshll.u32 %v2940, 16
        %v3106 = vrot.slane %v3104, 3
        %v3107 = vor.u32 %v3103, %v3106
        %v3109 = vshrl.u32 %v3068, 16
        %v3111 = vrot.slane %v3109, 2
        %v3112 = vshll.u32 %v3068, 16
        %v3114 = vrot.slane %v3112, 3
        %v3115 = vor.u32 %v3111, %v3114
        %v3116 = vsel %vm1310, %v3107, %v3115
        %v3118 = vshrl.u32 %v2941, 16
        %v3120 = vrot.slane %v3118, 2
        %v3121 = vshll.u32 %v2941, 16
        %v3123 = vrot.slane %v3121, 3
        %v3124 = vor.u32 %v3120, %v3123
        %v3126 = vshrl.u32 %v3069, 16
        %v3128 = vrot.slane %v3126, 2
        %v3129 = vshll.u32 %v3069, 16
        %v3131 = vrot.slane %v3129, 3
        %v3132 = vor.u32 %v3128, %v3131
        %v3133 = vsel %vm1310, %v3124, %v3132
        %v3135 = vshrl.u32 %v2942, 16
        %v3137 = vrot.slane %v3135, 2
        %v3138 = vshll.u32 %v2942, 16
        %v3140 = vrot.slane %v3138, 3
        %v3141 = vor.u32 %v3137, %v3140
        %v3143 = vshrl.u32 %v3070, 16
        %v3145 = vrot.slane %v3143, 2
        %v3146 = vshll.u32 %v3070, 16
        %v3148 = vrot.slane %v3146, 3
        %v3149 = vor.u32 %v3145, %v3148
        %v3150 = vsel %vm1310, %v3141, %v3149
        %v3152 = vshrl.u32 %v2943, 16
        %v3154 = vrot.slane %v3152, 2
        %v3155 = vshll.u32 %v2943, 16
        %v3157 = vrot.slane %v3155, 3
        %v3158 = vor.u32 %v3154, %v3157
        %v3160 = vshrl.u32 %v3071, 16
        %v3162 = vrot.slane %v3160, 2
        %v3163 = vshll.u32 %v3071, 16
        %v3165 = vrot.slane %v3163, 3
        %v3166 = vor.u32 %v3162, %v3165
        %v3167 = vsel %vm1310, %v3158, %v3166
        %v3169 = vshrl.u32 %v2944, 16
        %v3171 = vrot.slane %v3169, 2
        %v3172 = vshll.u32 %v2944, 16
        %v3174 = vrot.slane %v3172, 3
        %v3175 = vor.u32 %v3171, %v3174
        %v3177 = vshrl.u32 %v3072, 16
        %v3179 = vrot.slane %v3177, 2
        %v3180 = vshll.u32 %v3072, 16
        %v3182 = vrot.slane %v3180, 3
        %v3183 = vor.u32 %v3179, %v3182
        %v3184 = vsel %vm1310, %v3175, %v3183
        %v3186 = vshrl.u32 %v2945, 16
        %v3188 = vrot.slane %v3186, 2
        %v3189 = vshll.u32 %v2945, 16
        %v3191 = vrot.slane %v3189, 3
        %v3192 = vor.u32 %v3188, %v3191
        %v3194 = vshrl.u32 %v3073, 16
        %v3196 = vrot.slane %v3194, 2
        %v3197 = vshll.u32 %v3073, 16
        %v3199 = vrot.slane %v3197, 3
        %v3200 = vor.u32 %v3196, %v3199
        %v3201 = vsel %vm1310, %v3192, %v3200
        %v3203 = vshrl.u32 %v2946, 16
        %v3205 = vrot.slane %v3203, 2
        %v3206 = vshll.u32 %v2946, 16
        %v3208 = vrot.slane %v3206, 3
        %v3209 = vor.u32 %v3205, %v3208
        %v3211 = vshrl.u32 %v3074, 16
        %v3213 = vrot.slane %v3211, 2
        %v3214 = vshll.u32 %v3074, 16
        %v3216 = vrot.slane %v3214, 3
        %v3217 = vor.u32 %v3213, %v3216
        %v3218 = vsel %vm1310, %v3209, %v3217
        %v3220 = vshrl.u32 %v2947, 16
        %v3222 = vrot.slane %v3220, 2
        %v3223 = vshll.u32 %v2947, 16
        %v3225 = vrot.slane %v3223, 3
        %v3226 = vor.u32 %v3222, %v3225
        %v3228 = vshrl.u32 %v3075, 16
        %v3230 = vrot.slane %v3228, 2
        %v3231 = vshll.u32 %v3075, 16
        %v3233 = vrot.slane %v3231, 3
        %v3234 = vor.u32 %v3230, %v3233
        %v3235 = vsel %vm1310, %v3226, %v3234
        %v3237 = vshrl.u32 %v2948, 16
        %v3239 = vrot.slane %v3237, 2
        %v3240 = vshll.u32 %v2948, 16
        %v3242 = vrot.slane %v3240, 3
        %v3243 = vor.u32 %v3239, %v3242
        %v3245 = vshrl.u32 %v3076, 16
        %v3247 = vrot.slane %v3245, 2
        %v3248 = vshll.u32 %v3076, 16
        %v3250 = vrot.slane %v3248, 3
        %v3251 = vor.u32 %v3247, %v3250
        %v3252 = vsel %vm1310, %v3243, %v3251
        %v3254 = vshrl.u32 %v2949, 16
        %v3256 = vrot.slane %v3254, 2
        %v3257 = vshll.u32 %v2949, 16
        %v3259 = vrot.slane %v3257, 3
        %v3260 = vor.u32 %v3256, %v3259
        %v3262 = vshrl.u32 %v3077, 16
        %v3264 = vrot.slane %v3262, 2
        %v3265 = vshll.u32 %v3077, 16
        %v3267 = vrot.slane %v3265, 3
        %v3268 = vor.u32 %v3264, %v3267
        %v3269 = vsel %vm1310, %v3260, %v3268
        %v3271 = vshrl.u32 %v2950, 16
        %v3273 = vrot.slane %v3271, 2
        %v3274 = vshll.u32 %v2950, 16
        %v3276 = vrot.slane %v3274, 3
        %v3277 = vor.u32 %v3273, %v3276
        %v3279 = vshrl.u32 %v3078, 16
        %v3281 = vrot.slane %v3279, 2
        %v3282 = vshll.u32 %v3078, 16
        %v3284 = vrot.slane %v3282, 3
        %v3285 = vor.u32 %v3281, %v3284
        %v3286 = vsel %vm1310, %v3277, %v3285
        %v3288 = vshrl.u32 %v2951, 16
        %v3290 = vrot.slane %v3288, 2
        %v3291 = vshll.u32 %v2951, 16
        %v3293 = vrot.slane %v3291, 3
        %v3294 = vor.u32 %v3290, %v3293
        %v3296 = vshrl.u32 %v3079, 16
        %v3298 = vrot.slane %v3296, 2
        %v3299 = vshll.u32 %v3079, 16
        %v3301 = vrot.slane %v3299, 3
        %v3302 = vor.u32 %v3298, %v3301
        %v3303 = vsel %vm1310, %v3294, %v3302
        %v3305 = vshrl.u32 %v2952, 16
        %v3307 = vrot.slane %v3305, 2
        %v3308 = vshll.u32 %v2952, 16
        %v3310 = vrot.slane %v3308, 3
        %v3311 = vor.u32 %v3307, %v3310
        %v3313 = vshrl.u32 %v3080, 16
        %v3315 = vrot.slane %v3313, 2
        %v3316 = vshll.u32 %v3080, 16
        %v3318 = vrot.slane %v3316, 3
        %v3319 = vor.u32 %v3315, %v3318
        %v3320 = vsel %vm1310, %v3311, %v3319
        %v3322 = vshrl.u32 %v2953, 16
        %v3324 = vrot.slane %v3322, 2
        %v3325 = vshll.u32 %v2953, 16
        %v3327 = vrot.slane %v3325, 3
        %v3328 = vor.u32 %v3324, %v3327
        %v3330 = vshrl.u32 %v3081, 16
        %v3332 = vrot.slane %v3330, 2
        %v3333 = vshll.u32 %v3081, 16
        %v3335 = vrot.slane %v3333, 3
        %v3336 = vor.u32 %v3332, %v3335
        %v3337 = vsel %vm1310, %v3328, %v3336
        %v3339 = vshrl.u32 %v2954, 16
        %v3341 = vrot.slane %v3339, 2
        %v3342 = vshll.u32 %v2954, 16
        %v3344 = vrot.slane %v3342, 3
        %v3345 = vor.u32 %v3341, %v3344
        %v3347 = vshrl.u32 %v3082, 16
        %v3349 = vrot.slane %v3347, 2
        %v3350 = vshll.u32 %v3082, 16
        %v3352 = vrot.slane %v3350, 3
        %v3353 = vor.u32 %v3349, %v3352
        %v3354 = vsel %vm1310, %v3345, %v3353
        %3355 = vrot.lane.b32.xlu0 %v3099, 20
        %v3356 = vpop.permute.xlu0 %3355
        %3357 = vrot.lane.b32.xlu0 %v3116, 20
        %v3358 = vpop.permute.xlu0 %3357
        %3359 = vrot.lane.b32.xlu0 %v3133, 20
        %v3360 = vpop.permute.xlu0 %3359
        %3361 = vrot.lane.b32.xlu0 %v3150, 20
        %v3362 = vpop.permute.xlu0 %3361
        %3363 = vrot.lane.b32.xlu0 %v3167, 20
        %v3364 = vpop.permute.xlu0 %3363
        %3365 = vrot.lane.b32.xlu0 %v3184, 20
        %v3366 = vpop.permute.xlu0 %3365
        %3367 = vrot.lane.b32.xlu0 %v3201, 20
        %v3368 = vpop.permute.xlu0 %3367
        %3369 = vrot.lane.b32.xlu0 %v3218, 20
        %v3370 = vpop.permute.xlu0 %3369
        %3371 = vrot.lane.b32.xlu0 %v3235, 20
        %v3372 = vpop.permute.xlu0 %3371
        %3373 = vrot.lane.b32.xlu0 %v3252, 20
        %v3374 = vpop.permute.xlu0 %3373
        %3375 = vrot.lane.b32.xlu0 %v3269, 20
        %v3376 = vpop.permute.xlu0 %3375
        %3377 = vrot.lane.b32.xlu0 %v3286, 20
        %v3378 = vpop.permute.xlu0 %3377
        %3379 = vrot.lane.b32.xlu0 %v3303, 20
        %v3380 = vpop.permute.xlu0 %3379
        %3381 = vrot.lane.b32.xlu0 %v3320, 20
        %v3382 = vpop.permute.xlu0 %3381
        %3383 = vrot.lane.b32.xlu0 %v3337, 20
        %v3384 = vpop.permute.xlu0 %3383
        %3385 = vrot.lane.b32.xlu0 %v3354, 20
        %v3386 = vpop.permute.xlu0 %3385
        %v3403 = vunpack.c.l.b16 %v2059
        %v3404 = vunpack.c.l.b16 %v2060
        %v3405 = vunpack.c.l.b16 %v2061
        %v3406 = vunpack.c.l.b16 %v2062
        %v3407 = vunpack.c.l.b16 %v2063
        %v3408 = vunpack.c.l.b16 %v2064
        %v3409 = vunpack.c.l.b16 %v2065
        %v3410 = vunpack.c.l.b16 %v2066
        %v3411 = vunpack.c.l.b16 %v2067
        %v3412 = vunpack.c.l.b16 %v2068
        %v3413 = vunpack.c.l.b16 %v2069
        %v3414 = vunpack.c.l.b16 %v2070
        %v3415 = vunpack.c.l.b16 %v2071
        %v3416 = vunpack.c.l.b16 %v2072
        %v3417 = vunpack.c.l.b16 %v2073
        %v3418 = vunpack.c.l.b16 %v2074
        %v3419 = vpack.c.b16 %v2108, %v3403
        %v3420 = vpack.c.b16 %v2110, %v3404
        %v3421 = vpack.c.b16 %v2112, %v3405
        %v3422 = vpack.c.b16 %v2114, %v3406
        %v3423 = vpack.c.b16 %v2116, %v3407
        %v3424 = vpack.c.b16 %v2118, %v3408
        %v3425 = vpack.c.b16 %v2120, %v3409
        %v3426 = vpack.c.b16 %v2122, %v3410
        %v3427 = vpack.c.b16 %v2124, %v3411
        %v3428 = vpack.c.b16 %v2126, %v3412
        %v3429 = vpack.c.b16 %v2128, %v3413
        %v3430 = vpack.c.b16 %v2130, %v3414
        %v3431 = vpack.c.b16 %v2132, %v3415
        %v3432 = vpack.c.b16 %v2134, %v3416
        %v3433 = vpack.c.b16 %v2136, %v3417
        %v3434 = vpack.c.b16 %v2138, %v3418
        %v3435 = vrot.slane %v3419, 3
        %v3436 = vrot.slane %v3067, 3
        %v3437 = vsel %vm1663, %v3435, %v3436
        %v3438 = vrot.slane %v3420, 3
        %v3439 = vrot.slane %v3068, 3
        %v3440 = vsel %vm1663, %v3438, %v3439
        %v3441 = vrot.slane %v3421, 3
        %v3442 = vrot.slane %v3069, 3
        %v3443 = vsel %vm1663, %v3441, %v3442
        %v3444 = vrot.slane %v3422, 3
        %v3445 = vrot.slane %v3070, 3
        %v3446 = vsel %vm1663, %v3444, %v3445
        %v3447 = vrot.slane %v3423, 3
        %v3448 = vrot.slane %v3071, 3
        %v3449 = vsel %vm1663, %v3447, %v3448
        %v3450 = vrot.slane %v3424, 3
        %v3451 = vrot.slane %v3072, 3
        %v3452 = vsel %vm1663, %v3450, %v3451
        %v3453 = vrot.slane %v3425, 3
        %v3454 = vrot.slane %v3073, 3
        %v3455 = vsel %vm1663, %v3453, %v3454
        %v3456 = vrot.slane %v3426, 3
        %v3457 = vrot.slane %v3074, 3
        %v3458 = vsel %vm1663, %v3456, %v3457
        %v3459 = vrot.slane %v3427, 3
        %v3460 = vrot.slane %v3075, 3
        %v3461 = vsel %vm1663, %v3459, %v3460
        %v3462 = vrot.slane %v3428, 3
        %v3463 = vrot.slane %v3076, 3
        %v3464 = vsel %vm1663, %v3462, %v3463
        %v3465 = vrot.slane %v3429, 3
        %v3466 = vrot.slane %v3077, 3
        %v3467 = vsel %vm1663, %v3465, %v3466
        %v3468 = vrot.slane %v3430, 3
        %v3469 = vrot.slane %v3078, 3
        %v3470 = vsel %vm1663, %v3468, %v3469
        %v3471 = vrot.slane %v3431, 3
        %v3472 = vrot.slane %v3079, 3
        %v3473 = vsel %vm1663, %v3471, %v3472
        %v3474 = vrot.slane %v3432, 3
        %v3475 = vrot.slane %v3080, 3
        %v3476 = vsel %vm1663, %v3474, %v3475
        %v3477 = vrot.slane %v3433, 3
        %v3478 = vrot.slane %v3081, 3
        %v3479 = vsel %vm1663, %v3477, %v3478
        %v3480 = vrot.slane %v3434, 3
        %v3481 = vrot.slane %v3082, 3
        %v3482 = vsel %vm1663, %v3480, %v3481
        %3483 = vrot.lane.b32.xlu0 %v3437, 24
        %v3484 = vpop.permute.xlu0 %3483
        %3485 = vrot.lane.b32.xlu0 %v3440, 24
        %v3486 = vpop.permute.xlu0 %3485
        %3487 = vrot.lane.b32.xlu0 %v3443, 24
        %v3488 = vpop.permute.xlu0 %3487
        %3489 = vrot.lane.b32.xlu0 %v3446, 24
        %v3490 = vpop.permute.xlu0 %3489
        %3491 = vrot.lane.b32.xlu0 %v3449, 24
        %v3492 = vpop.permute.xlu0 %3491
        %3493 = vrot.lane.b32.xlu0 %v3452, 24
        %v3494 = vpop.permute.xlu0 %3493
        %3495 = vrot.lane.b32.xlu0 %v3455, 24
        %v3496 = vpop.permute.xlu0 %3495
        %3497 = vrot.lane.b32.xlu0 %v3458, 24
        %v3498 = vpop.permute.xlu0 %3497
        %3499 = vrot.lane.b32.xlu0 %v3461, 24
        %v3500 = vpop.permute.xlu0 %3499
        %3501 = vrot.lane.b32.xlu0 %v3464, 24
        %v3502 = vpop.permute.xlu0 %3501
        %3503 = vrot.lane.b32.xlu0 %v3467, 24
        %v3504 = vpop.permute.xlu0 %3503
        %3505 = vrot.lane.b32.xlu0 %v3470, 24
        %v3506 = vpop.permute.xlu0 %3505
        %3507 = vrot.lane.b32.xlu0 %v3473, 24
        %v3508 = vpop.permute.xlu0 %3507
        %3509 = vrot.lane.b32.xlu0 %v3476, 24
        %v3510 = vpop.permute.xlu0 %3509
        %3511 = vrot.lane.b32.xlu0 %v3479, 24
        %v3512 = vpop.permute.xlu0 %3511
        %3513 = vrot.lane.b32.xlu0 %v3482, 24
        %v3514 = vpop.permute.xlu0 %3513
        %v3516 = vsel %vm1744, %v2139, %v2396
        %v3518 = vsel %vm1744, %v2140, %v2398
        %v3520 = vsel %vm1744, %v2141, %v2400
        %v3522 = vsel %vm1744, %v2142, %v2402
        %v3524 = vsel %vm1744, %v2143, %v2404
        %v3526 = vsel %vm1744, %v2144, %v2406
        %v3528 = vsel %vm1744, %v2145, %v2408
        %v3530 = vsel %vm1744, %v2146, %v2410
        %v3532 = vsel %vm1744, %v2147, %v2412
        %v3534 = vsel %vm1744, %v2148, %v2414
        %v3536 = vsel %vm1744, %v2149, %v2416
        %v3538 = vsel %vm1744, %v2150, %v2418
        %v3540 = vsel %vm1744, %v2151, %v2420
        %v3542 = vsel %vm1744, %v2152, %v2422
        %v3544 = vsel %vm1744, %v2153, %v2424
        %v3546 = vsel %vm1744, %v2154, %v2426
        %v3548 = vsel %vm1777, %v3516, %v2524
        %v3550 = vsel %vm1777, %v3518, %v2526
        %v3552 = vsel %vm1777, %v3520, %v2528
        %v3554 = vsel %vm1777, %v3522, %v2530
        %v3556 = vsel %vm1777, %v3524, %v2532
        %v3558 = vsel %vm1777, %v3526, %v2534
        %v3560 = vsel %vm1777, %v3528, %v2536
        %v3562 = vsel %vm1777, %v3530, %v2538
        %v3564 = vsel %vm1777, %v3532, %v2540
        %v3566 = vsel %vm1777, %v3534, %v2542
        %v3568 = vsel %vm1777, %v3536, %v2544
        %v3570 = vsel %vm1777, %v3538, %v2546
        %v3572 = vsel %vm1777, %v3540, %v2548
        %v3574 = vsel %vm1777, %v3542, %v2550
        %v3576 = vsel %vm1777, %v3544, %v2552
        %v3578 = vsel %vm1777, %v3546, %v2554
        %v3580 = vsel %vm1810, %v3548, %v2876
        %v3582 = vsel %vm1810, %v3550, %v2878
        %v3584 = vsel %vm1810, %v3552, %v2880
        %v3586 = vsel %vm1810, %v3554, %v2882
        %v3588 = vsel %vm1810, %v3556, %v2884
        %v3590 = vsel %vm1810, %v3558, %v2886
        %v3592 = vsel %vm1810, %v3560, %v2888
        %v3594 = vsel %vm1810, %v3562, %v2890
        %v3596 = vsel %vm1810, %v3564, %v2892
        %v3598 = vsel %vm1810, %v3566, %v2894
        %v3600 = vsel %vm1810, %v3568, %v2896
        %v3602 = vsel %vm1810, %v3570, %v2898
        %v3604 = vsel %vm1810, %v3572, %v2900
        %v3606 = vsel %vm1810, %v3574, %v2902
        %v3608 = vsel %vm1810, %v3576, %v2904
        %v3610 = vsel %vm1810, %v3578, %v2906
        %v3612 = vsel %vm1843, %v3580, %v3004
        %v3614 = vsel %vm1843, %v3582, %v3006
        %v3616 = vsel %vm1843, %v3584, %v3008
        %v3618 = vsel %vm1843, %v3586, %v3010
        %v3620 = vsel %vm1843, %v3588, %v3012
        %v3622 = vsel %vm1843, %v3590, %v3014
        %v3624 = vsel %vm1843, %v3592, %v3016
        %v3626 = vsel %vm1843, %v3594, %v3018
        %v3628 = vsel %vm1843, %v3596, %v3020
        %v3630 = vsel %vm1843, %v3598, %v3022
        %v3632 = vsel %vm1843, %v3600, %v3024
        %v3634 = vsel %vm1843, %v3602, %v3026
        %v3636 = vsel %vm1843, %v3604, %v3028
        %v3638 = vsel %vm1843, %v3606, %v3030
        %v3640 = vsel %vm1843, %v3608, %v3032
        %v3642 = vsel %vm1843, %v3610, %v3034
        %v3644 = vsel %vm1876, %v3612, %v3356
        %v3646 = vsel %vm1876, %v3614, %v3358
        %v3648 = vsel %vm1876, %v3616, %v3360
        %v3650 = vsel %vm1876, %v3618, %v3362
        %v3652 = vsel %vm1876, %v3620, %v3364
        %v3654 = vsel %vm1876, %v3622, %v3366
        %v3656 = vsel %vm1876, %v3624, %v3368
        %v3658 = vsel %vm1876, %v3626, %v3370
        %v3660 = vsel %vm1876, %v3628, %v3372
        %v3662 = vsel %vm1876, %v3630, %v3374
        %v3664 = vsel %vm1876, %v3632, %v3376
        %v3666 = vsel %vm1876, %v3634, %v3378
        %v3668 = vsel %vm1876, %v3636, %v3380
        %v3670 = vsel %vm1876, %v3638, %v3382
        %v3672 = vsel %vm1876, %v3640, %v3384
        %v3674 = vsel %vm1876, %v3642, %v3386
        %v3676 = vsel %vm1909, %v3644, %v3484
        %v3678 = vsel %vm1909, %v3646, %v3486
        %v3680 = vsel %vm1909, %v3648, %v3488
        %v3682 = vsel %vm1909, %v3650, %v3490
        %v3684 = vsel %vm1909, %v3652, %v3492
        %v3686 = vsel %vm1909, %v3654, %v3494
        %v3688 = vsel %vm1909, %v3656, %v3496
        %v3690 = vsel %vm1909, %v3658, %v3498
        %v3692 = vsel %vm1909, %v3660, %v3500
        %v3694 = vsel %vm1909, %v3662, %v3502
        %v3696 = vsel %vm1909, %v3664, %v3504
        %v3698 = vsel %vm1909, %v3666, %v3506
        %v3700 = vsel %vm1909, %v3668, %v3508
        %v3702 = vsel %vm1909, %v3670, %v3510
        %v3704 = vsel %vm1909, %v3672, %v3512
        %v3706 = vsel %vm1909, %v3674, %v3514
        %s3707 = scalar_lea.vmem %s1, 16
        %v3708 = vld [vmem:[%s3707] sm:$0xf]
        %v3709 = vld [vmem:[%s3707 + $0x4] sm:$0xf]
        %v3710 = vld [vmem:[%s3707 + $0x8] sm:$0xf]
        %v3711 = vld [vmem:[%s3707 + $0xc] sm:$0x3]
        %v3716 = vunpack.c.l.b16 %v3708
        %v3717 = vunpack.c.l.b16 %v3709
        %v3718 = vunpack.c.l.b16 %v3710
        %v3719 = vunpack.c.l.b16 %v3711
        %v3720 = vpack.c.b16 %v3717, %v3716
        %v3721 = vpack.c.b16 %v3719, %v3718
        %vm3723 = vcmask 228352
        %v3724 = vsel %vm3723, %v3676, 0
        %v3726 = vsel %vm3723, %v3678, 0
        %v3728 = vsel %vm3723, %v3680, 0
        %v3730 = vsel %vm3723, %v3682, 0
        %v3732 = vsel %vm3723, %v3684, 0
        %v3734 = vsel %vm3723, %v3686, 0
        %v3736 = vsel %vm3723, %v3688, 0
        %v3738 = vsel %vm3723, %v3690, 0
        %v3740 = vsel %vm3723, %v3692, 0
        %v3742 = vsel %vm3723, %v3694, 0
        %v3744 = vsel %vm3723, %v3696, 0
        %v3746 = vsel %vm3723, %v3698, 0
        %v3748 = vsel %vm3723, %v3700, 0
        %v3750 = vsel %vm3723, %v3702, 0
        %v3752 = vsel %vm3723, %v3704, 0
        %v3754 = vsel %vm3723, %v3706, 0
        %vm3756 = vcmask 1045504
        %v3758 = vsel %vm3756, %v3721, 0
        %3760 = vmatprep.subr.bf16.mxu0 0
        %3761 = vmatpush1.bf16.msra.mxu0 %v3720
        %3762 = vmatprep.subr.bf16.mxu0 0
        %3763 = vmatpush1.bf16.msra.mxu0 %v3758
        %3764 = vmatprep.subr.bf16.mxu0 0
        %3765 = vmatpush1.bf16.msra.mxu0 0
        %3766 = vmatprep.subr.bf16.mxu0 0
        %3767 = vmatpush1.bf16.msra.mxu0 0
        %3768 = vmatprep.subr.bf16.mxu0 0
        %3769 = vmatpush1.bf16.msra.mxu0 0
        %3770 = vmatprep.subr.bf16.mxu0 0
        %3771 = vmatpush1.bf16.msra.mxu0 0
        %3772 = vmatprep.subr.bf16.mxu0 0
        %3773 = vmatpush1.bf16.msra.mxu0 0
        %3774 = vmatprep.subr.bf16.mxu0 0
        %3775 = vmatpush1.bf16.msra.mxu0 0
        %3776 = vmatprep.subr.bf16.mxu0 0
        %3777 = vmatpush1.bf16.msra.mxu0 0
        %3778 = vmatprep.subr.bf16.mxu0 0
        %3779 = vmatpush1.bf16.msra.mxu0 0
        %3780 = vmatprep.subr.bf16.mxu0 0
        %3781 = vmatpush1.bf16.msra.mxu0 0
        %3782 = vmatprep.subr.bf16.mxu0 0
        %3783 = vmatpush1.bf16.msra.mxu0 0
        %3784 = vmatprep.subr.bf16.mxu0 0
        %3785 = vmatpush1.bf16.msra.mxu0 0
        %3786 = vmatprep.subr.bf16.mxu0 0
        %3787 = vmatpush1.bf16.msra.mxu0 0
        %3788 = vmatprep.subr.bf16.mxu0 0
        %3789 = vmatpush1.bf16.msra.mxu0 0
        %3790 = vmatprep.subr.bf16.mxu0 0
        %3791 = vmatpush1.bf16.msra.mxu0 0
        %3792 = vmatprep.mubr.bf16.mxu0 0
        %3793 = vmatmul.mubr.bf16.gmra.mrb[0].mxu0 %v3724
        %v3794 = vpop.f32.mrb[0].mxu0
        %v3795 = vadd.f32 0.0, %v3794
        %v3796 = vpop.f32.mrb[0].mxu0
        %v3797 = vpop.f32.mrb[0].mxu0
        %v3798 = vadd.f32 0.0, %v3797
        %v3799 = vpop.f32.mrb[0].mxu0
        %3800 = vmatprep.mubr.bf16.mxu0 0
        %3801 = vmatmul.mubr.bf16.gmra.mrb[0].mxu0 %v3726
        %v3802 = vpop.f32.mrb[0].mxu0
        %v3803 = vadd.f32 0.0, %v3802
        %v3804 = vpop.f32.mrb[0].mxu0
        %v3805 = vpop.f32.mrb[0].mxu0
        %v3806 = vadd.f32 0.0, %v3805
        %v3807 = vpop.f32.mrb[0].mxu0
        %3808 = vmatprep.mubr.bf16.mxu0 0
        %3809 = vmatmul.mubr.bf16.gmra.mrb[0].mxu0 %v3728
        %v3810 = vpop.f32.mrb[0].mxu0
        %v3811 = vadd.f32 0.0, %v3810
        %v3812 = vpop.f32.mrb[0].mxu0
        %v3813 = vpop.f32.mrb[0].mxu0
        %v3814 = vadd.f32 0.0, %v3813
        %v3815 = vpop.f32.mrb[0].mxu0
        %3816 = vmatprep.mubr.bf16.mxu0 0
        %3817 = vmatmul.mubr.bf16.gmra.mrb[0].mxu0 %v3730
        %v3818 = vpop.f32.mrb[0].mxu0
        %v3819 = vadd.f32 0.0, %v3818
        %v3820 = vpop.f32.mrb[0].mxu0
        %v3821 = vpop.f32.mrb[0].mxu0
        %v3822 = vadd.f32 0.0, %v3821
        %v3823 = vpop.f32.mrb[0].mxu0
        %3824 = vmatprep.mubr.bf16.mxu0 0
        %3825 = vmatmul.mubr.bf16.gmra.mrb[0].mxu0 %v3732
        %v3826 = vpop.f32.mrb[0].mxu0
        %v3827 = vadd.f32 0.0, %v3826
        %v3828 = vpop.f32.mrb[0].mxu0
        %v3829 = vpop.f32.mrb[0].mxu0
        %v3830 = vadd.f32 0.0, %v3829
        %v3831 = vpop.f32.mrb[0].mxu0
        %3832 = vmatprep.mubr.bf16.mxu0 0
        %3833 = vmatmul.mubr.bf16.gmra.mrb[0].mxu0 %v3734
        %v3834 = vpop.f32.mrb[0].mxu0
        %v3835 = vadd.f32 0.0, %v3834
        %v3836 = vpop.f32.mrb[0].mxu0
        %v3837 = vpop.f32.mrb[0].mxu0
        %v3838 = vadd.f32 0.0, %v3837
        %v3839 = vpop.f32.mrb[0].mxu0
        %3840 = vmatprep.mubr.bf16.mxu0 0
        %3841 = vmatmul.mubr.bf16.gmra.mrb[0].mxu0 %v3736
        %v3842 = vpop.f32.mrb[0].mxu0
        %v3843 = vadd.f32 0.0, %v3842
        %v3844 = vpop.f32.mrb[0].mxu0
        %v3845 = vpop.f32.mrb[0].mxu0
        %v3846 = vadd.f32 0.0, %v3845
        %v3847 = vpop.f32.mrb[0].mxu0
        %3848 = vmatprep.mubr.bf16.mxu0 0
        %3849 = vmatmul.mubr.bf16.gmra.mrb[0].mxu0 %v3738
        %v3850 = vpop.f32.mrb[0].mxu0
        %v3851 = vadd.f32 0.0, %v3850
        %v3852 = vpop.f32.mrb[0].mxu0
        %v3853 = vpop.f32.mrb[0].mxu0
        %v3854 = vadd.f32 0.0, %v3853
        %v3855 = vpop.f32.mrb[0].mxu0
        %3856 = vmatprep.mubr.bf16.mxu0 0
        %3857 = vmatmul.mubr.bf16.gmra.mrb[0].mxu0 %v3740
        %v3858 = vpop.f32.mrb[0].mxu0
        %v3859 = vadd.f32 0.0, %v3858
        %v3860 = vpop.f32.mrb[0].mxu0
        %v3861 = vpop.f32.mrb[0].mxu0
        %v3862 = vadd.f32 0.0, %v3861
        %v3863 = vpop.f32.mrb[0].mxu0
        %3864 = vmatprep.mubr.bf16.mxu0 0
        %3865 = vmatmul.mubr.bf16.gmra.mrb[0].mxu0 %v3742
        %v3866 = vpop.f32.mrb[0].mxu0
        %v3867 = vadd.f32 0.0, %v3866
        %v3868 = vpop.f32.mrb[0].mxu0
        %v3869 = vpop.f32.mrb[0].mxu0
        %v3870 = vadd.f32 0.0, %v3869
        %v3871 = vpop.f32.mrb[0].mxu0
        %3872 = vmatprep.mubr.bf16.mxu0 0
        %3873 = vmatmul.mubr.bf16.gmra.mrb[0].mxu0 %v3744
        %v3874 = vpop.f32.mrb[0].mxu0
        %v3875 = vadd.f32 0.0, %v3874
        %v3876 = vpop.f32.mrb[0].mxu0
        %v3877 = vpop.f32.mrb[0].mxu0
        %v3878 = vadd.f32 0.0, %v3877
        %v3879 = vpop.f32.mrb[0].mxu0
        %3880 = vmatprep.mubr.bf16.mxu0 0
        %3881 = vmatmul.mubr.bf16.gmra.mrb[0].mxu0 %v3746
        %v3882 = vpop.f32.mrb[0].mxu0
        %v3883 = vadd.f32 0.0, %v3882
        %v3884 = vpop.f32.mrb[0].mxu0
        %v3885 = vpop.f32.mrb[0].mxu0
        %v3886 = vadd.f32 0.0, %v3885
        %v3887 = vpop.f32.mrb[0].mxu0
        %3888 = vmatprep.mubr.bf16.mxu0 0
        %3889 = vmatmul.mubr.bf16.gmra.mrb[0].mxu0 %v3748
        %v3890 = vpop.f32.mrb[0].mxu0
        %v3891 = vadd.f32 0.0, %v3890
        %v3892 = vpop.f32.mrb[0].mxu0
        %v3893 = vpop.f32.mrb[0].mxu0
        %v3894 = vadd.f32 0.0, %v3893
        %v3895 = vpop.f32.mrb[0].mxu0
        %3896 = vmatprep.mubr.bf16.mxu0 0
        %3897 = vmatmul.mubr.bf16.gmra.mrb[0].mxu0 %v3750
        %v3898 = vpop.f32.mrb[0].mxu0
        %v3899 = vadd.f32 0.0, %v3898
        %v3900 = vpop.f32.mrb[0].mxu0
        %v3901 = vpop.f32.mrb[0].mxu0
        %v3902 = vadd.f32 0.0, %v3901
        %v3903 = vpop.f32.mrb[0].mxu0
        %3904 = vmatprep.mubr.bf16.mxu0 0
        %3905 = vmatmul.mubr.bf16.gmra.mrb[0].mxu0 %v3752
        %v3906 = vpop.f32.mrb[0].mxu0
        %v3907 = vadd.f32 0.0, %v3906
        %v3908 = vpop.f32.mrb[0].mxu0
        %v3909 = vpop.f32.mrb[0].mxu0
        %v3910 = vadd.f32 0.0, %v3909
        %v3911 = vpop.f32.mrb[0].mxu0
        %3912 = vmatprep.mubr.bf16.mxu0 0
        %3913 = vmatmul.mubr.bf16.gmra.mrb[0].mxu0 %v3754
        %v3914 = vpop.f32.mrb[0].mxu0
        %v3915 = vadd.f32 0.0, %v3914
        %v3916 = vpop.f32.mrb[0].mxu0
        %v3917 = vpop.f32.mrb[0].mxu0
        %v3918 = vadd.f32 0.0, %v3917
        %v3919 = vpop.f32.mrb[0].mxu0
        %3920 = vdwg.mxu0
        %v3925 = vunpack.c.l.b16 %v1942
        %v3926 = vunpack.c.l.b16 %v1943
        %v3927 = vunpack.c.l.b16 %v1944
        %v3928 = vunpack.c.l.b16 %v1945
        %v3929 = vpack.c.b16 %v3926, %v3925
        %v3930 = vpack.c.b16 %v3928, %v3927
        %v3932 = vsel %vm3723, %v1911, 0
        %v3934 = vsel %vm3723, %v1913, 0
        %v3936 = vsel %vm3723, %v1915, 0
        %v3938 = vsel %vm3723, %v1917, 0
        %v3940 = vsel %vm3723, %v1919, 0
        %v3942 = vsel %vm3723, %v1921, 0
        %v3944 = vsel %vm3723, %v1923, 0
        %v3946 = vsel %vm3723, %v1925, 0
        %v3948 = vsel %vm3723, %v1927, 0
        %v3950 = vsel %vm3723, %v1929, 0
        %v3952 = vsel %vm3723, %v1931, 0
        %v3954 = vsel %vm3723, %v1933, 0
        %v3956 = vsel %vm3723, %v1935, 0
        %v3958 = vsel %vm3723, %v1937, 0
        %v3960 = vsel %vm3723, %v1939, 0
        %v3962 = vsel %vm3723, %v1941, 0
        %v3965 = vsel %vm3756, %v3930, 0
        %3967 = vmatprep.subr.bf16.mxu0 0
        %3968 = vmatpush1.bf16.msra.mxu0 %v3929
        %3969 = vmatprep.subr.bf16.mxu0 0
        %3970 = vmatpush1.bf16.msra.mxu0 %v3965
        %3971 = vmatprep.subr.bf16.mxu0 0
        %3972 = vmatpush1.bf16.msra.mxu0 0
        %3973 = vmatprep.subr.bf16.mxu0 0
        %3974 = vmatpush1.bf16.msra.mxu0 0
        %3975 = vmatprep.subr.bf16.mxu0 0
        %3976 = vmatpush1.bf16.msra.mxu0 0
        %3977 = vmatprep.subr.bf16.mxu0 0
        %3978 = vmatpush1.bf16.msra.mxu0 0
        %3979 = vmatprep.subr.bf16.mxu0 0
        %3980 = vmatpush1.bf16.msra.mxu0 0
        %3981 = vmatprep.subr.bf16.mxu0 0
        %3982 = vmatpush1.bf16.msra.mxu0 0
        %3983 = vmatprep.subr.bf16.mxu0 0
        %3984 = vmatpush1.bf16.msra.mxu0 0
        %3985 = vmatprep.subr.bf16.mxu0 0
        %3986 = vmatpush1.bf16.msra.mxu0 0
        %3987 = vmatprep.subr.bf16.mxu0 0
        %3988 = vmatpush1.bf16.msra.mxu0 0
        %3989 = vmatprep.subr.bf16.mxu0 0
        %3990 = vmatpush1.bf16.msra.mxu0 0
        %3991 = vmatprep.subr.bf16.mxu0 0
        %3992 = vmatpush1.bf16.msra.mxu0 0
        %3993 = vmatprep.subr.bf16.mxu0 0
        %3994 = vmatpush1.bf16.msra.mxu0 0
        %3995 = vmatprep.subr.bf16.mxu0 0
        %3996 = vmatpush1.bf16.msra.mxu0 0
        %3997 = vmatprep.subr.bf16.mxu0 0
        %3998 = vmatpush1.bf16.msra.mxu0 0
        %3999 = vmatprep.mubr.bf16.mxu0 0
        %4000 = vmatmul.mubr.bf16.gmra.mrb[0].mxu0 %v3932
        %v4001 = vpop.f32.mrb[0].mxu0
        %v4002 = vadd.f32 %v3795, %v4001
        %v4003 = vpop.f32.mrb[0].mxu0
        %v4004 = vpop.f32.mrb[0].mxu0
        %v4005 = vadd.f32 %v3798, %v4004
        %v4006 = vpop.f32.mrb[0].mxu0
        %4007 = vmatprep.mubr.bf16.mxu0 0
        %4008 = vmatmul.mubr.bf16.gmra.mrb[0].mxu0 %v3934
        %v4009 = vpop.f32.mrb[0].mxu0
        %v4010 = vadd.f32 %v3803, %v4009
        %v4011 = vpop.f32.mrb[0].mxu0
        %v4012 = vpop.f32.mrb[0].mxu0
        %v4013 = vadd.f32 %v3806, %v4012
        %v4014 = vpop.f32.mrb[0].mxu0
        %4015 = vmatprep.mubr.bf16.mxu0 0
        %4016 = vmatmul.mubr.bf16.gmra.mrb[0].mxu0 %v3936
        %v4017 = vpop.f32.mrb[0].mxu0
        %v4018 = vadd.f32 %v3811, %v4017
        %v4019 = vpop.f32.mrb[0].mxu0
        %v4020 = vpop.f32.mrb[0].mxu0
        %v4021 = vadd.f32 %v3814, %v4020
        %v4022 = vpop.f32.mrb[0].mxu0
        %4023 = vmatprep.mubr.bf16.mxu0 0
        %4024 = vmatmul.mubr.bf16.gmra.mrb[0].mxu0 %v3938
        %v4025 = vpop.f32.mrb[0].mxu0
        %v4026 = vadd.f32 %v3819, %v4025
        %v4027 = vpop.f32.mrb[0].mxu0
        %v4028 = vpop.f32.mrb[0].mxu0
        %v4029 = vadd.f32 %v3822, %v4028
        %v4030 = vpop.f32.mrb[0].mxu0
        %4031 = vmatprep.mubr.bf16.mxu0 0
        %4032 = vmatmul.mubr.bf16.gmra.mrb[0].mxu0 %v3940
        %v4033 = vpop.f32.mrb[0].mxu0
        %v4034 = vadd.f32 %v3827, %v4033
        %v4035 = vpop.f32.mrb[0].mxu0
        %v4036 = vpop.f32.mrb[0].mxu0
        %v4037 = vadd.f32 %v3830, %v4036
        %v4038 = vpop.f32.mrb[0].mxu0
        %4039 = vmatprep.mubr.bf16.mxu0 0
        %4040 = vmatmul.mubr.bf16.gmra.mrb[0].mxu0 %v3942
        %v4041 = vpop.f32.mrb[0].mxu0
        %v4042 = vadd.f32 %v3835, %v4041
        %v4043 = vpop.f32.mrb[0].mxu0
        %v4044 = vpop.f32.mrb[0].mxu0
        %v4045 = vadd.f32 %v3838, %v4044
        %v4046 = vpop.f32.mrb[0].mxu0
        %4047 = vmatprep.mubr.bf16.mxu0 0
        %4048 = vmatmul.mubr.bf16.gmra.mrb[0].mxu0 %v3944
        %v4049 = vpop.f32.mrb[0].mxu0
        %v4050 = vadd.f32 %v3843, %v4049
        %v4051 = vpop.f32.mrb[0].mxu0
        %v4052 = vpop.f32.mrb[0].mxu0
        %v4053 = vadd.f32 %v3846, %v4052
        %v4054 = vpop.f32.mrb[0].mxu0
        %4055 = vmatprep.mubr.bf16.mxu0 0
        %4056 = vmatmul.mubr.bf16.gmra.mrb[0].mxu0 %v3946
        %v4057 = vpop.f32.mrb[0].mxu0
        %v4058 = vadd.f32 %v3851, %v4057
        %v4059 = vpop.f32.mrb[0].mxu0
        %v4060 = vpop.f32.mrb[0].mxu0
        %v4061 = vadd.f32 %v3854, %v4060
        %v4062 = vpop.f32.mrb[0].mxu0
        %4063 = vmatprep.mubr.bf16.mxu0 0
        %4064 = vmatmul.mubr.bf16.gmra.mrb[0].mxu0 %v3948
        %v4065 = vpop.f32.mrb[0].mxu0
        %v4066 = vadd.f32 %v3859, %v4065
        %v4067 = vpop.f32.mrb[0].mxu0
        %v4068 = vpop.f32.mrb[0].mxu0
        %v4069 = vadd.f32 %v3862, %v4068
        %v4070 = vpop.f32.mrb[0].mxu0
        %4071 = vmatprep.mubr.bf16.mxu0 0
        %4072 = vmatmul.mubr.bf16.gmra.mrb[0].mxu0 %v3950
        %v4073 = vpop.f32.mrb[0].mxu0
        %v4074 = vadd.f32 %v3867, %v4073
        %v4075 = vpop.f32.mrb[0].mxu0
        %v4076 = vpop.f32.mrb[0].mxu0
        %v4077 = vadd.f32 %v3870, %v4076
        %v4078 = vpop.f32.mrb[0].mxu0
        %4079 = vmatprep.mubr.bf16.mxu0 0
        %4080 = vmatmul.mubr.bf16.gmra.mrb[0].mxu0 %v3952
        %v4081 = vpop.f32.mrb[0].mxu0
        %v4082 = vadd.f32 %v3875, %v4081
        %v4083 = vpop.f32.mrb[0].mxu0
        %v4084 = vpop.f32.mrb[0].mxu0
        %v4085 = vadd.f32 %v3878, %v4084
        %v4086 = vpop.f32.mrb[0].mxu0
        %4087 = vmatprep.mubr.bf16.mxu0 0
        %4088 = vmatmul.mubr.bf16.gmra.mrb[0].mxu0 %v3954
        %v4089 = vpop.f32.mrb[0].mxu0
        %v4090 = vadd.f32 %v3883, %v4089
        %v4091 = vpop.f32.mrb[0].mxu0
        %v4092 = vpop.f32.mrb[0].mxu0
        %v4093 = vadd.f32 %v3886, %v4092
        %v4094 = vpop.f32.mrb[0].mxu0
        %4095 = vmatprep.mubr.bf16.mxu0 0
        %4096 = vmatmul.mubr.bf16.gmra.mrb[0].mxu0 %v3956
        %v4097 = vpop.f32.mrb[0].mxu0
        %v4098 = vadd.f32 %v3891, %v4097
        %v4099 = vpop.f32.mrb[0].mxu0
        %v4100 = vpop.f32.mrb[0].mxu0
        %v4101 = vadd.f32 %v3894, %v4100
        %v4102 = vpop.f32.mrb[0].mxu0
        %4103 = vmatprep.mubr.bf16.mxu0 0
        %4104 = vmatmul.mubr.bf16.gmra.mrb[0].mxu0 %v3958
        %v4105 = vpop.f32.mrb[0].mxu0
        %v4106 = vadd.f32 %v3899, %v4105
        %v4107 = vpop.f32.mrb[0].mxu0
        %v4108 = vpop.f32.mrb[0].mxu0
        %v4109 = vadd.f32 %v3902, %v4108
        %v4110 = vpop.f32.mrb[0].mxu0
        %4111 = vmatprep.mubr.bf16.mxu0 0
        %4112 = vmatmul.mubr.bf16.gmra.mrb[0].mxu0 %v3960
        %v4113 = vpop.f32.mrb[0].mxu0
        %v4114 = vadd.f32 %v3907, %v4113
        %v4115 = vpop.f32.mrb[0].mxu0
        %v4116 = vpop.f32.mrb[0].mxu0
        %v4117 = vadd.f32 %v3910, %v4116
        %v4118 = vpop.f32.mrb[0].mxu0
        %4119 = vmatprep.mubr.bf16.mxu0 0
        %4120 = vmatmul.mubr.bf16.gmra.mrb[0].mxu0 %v3962
        %v4121 = vpop.f32.mrb[0].mxu0
        %v4122 = vadd.f32 %v3915, %v4121
        %v4123 = vpop.f32.mrb[0].mxu0
        %v4124 = vpop.f32.mrb[0].mxu0
        %v4125 = vadd.f32 %v3918, %v4124
        %v4126 = vpop.f32.mrb[0].mxu0
        %4127 = vdwg.mxu0
        %s4128 = scalar_lea.vmem %s168, 24
        %v4129 = vld [vmem:[%s4128] sm:$0xf]
        %v4130 = vld [vmem:[%s4128 + $0x4] sm:$0xf]
        %v4131 = vld [vmem:[%s4128 + $0xc] sm:$0xf]
        %v4132 = vld [vmem:[%s4128 + $0x10] sm:$0xf]
        %v4133 = vld [vmem:[%s4128 + $0x18] sm:$0xf]
        %v4134 = vld [vmem:[%s4128 + $0x1c] sm:$0xf]
        %v4135 = vld [vmem:[%s4128 + $0x24] sm:$0xf]
        %v4136 = vld [vmem:[%s4128 + $0x28] sm:$0xf]
        %v4137 = vld [vmem:[%s4128 + $0x30] sm:$0xf]
        %v4138 = vld [vmem:[%s4128 + $0x34] sm:$0xf]
        %v4139 = vld [vmem:[%s4128 + $0x3c] sm:$0xf]
        %v4140 = vld [vmem:[%s4128 + $0x40] sm:$0xf]
        %v4141 = vld [vmem:[%s4128 + $0x48] sm:$0xf]
        %v4142 = vld [vmem:[%s4128 + $0x4c] sm:$0xf]
        %v4143 = vld [vmem:[%s4128 + $0x54] sm:$0xf]
        %v4144 = vld [vmem:[%s4128 + $0x58] sm:$0xf]
        %v4145 = vld [vmem:[%s4128 + $0x60] sm:$0xf]
        %v4146 = vld [vmem:[%s4128 + $0x64] sm:$0xf]
        %v4147 = vld [vmem:[%s4128 + $0x6c] sm:$0xf]
        %v4148 = vld [vmem:[%s4128 + $0x70] sm:$0xf]
        %v4149 = vld [vmem:[%s4128 + $0x78] sm:$0xf]
        %v4150 = vld [vmem:[%s4128 + $0x7c] sm:$0xf]
        %v4151 = vld [vmem:[%s4128 + $0x84] sm:$0xf]
        %v4152 = vld [vmem:[%s4128 + $0x88] sm:$0xf]
        %v4153 = vld [vmem:[%s4128 + $0x90] sm:$0xf]
        %v4154 = vld [vmem:[%s4128 + $0x94] sm:$0xf]
        %v4155 = vld [vmem:[%s4128 + $0x9c] sm:$0xf]
        %v4156 = vld [vmem:[%s4128 + $0xa0] sm:$0xf]
        %v4157 = vld [vmem:[%s4128 + $0xa8] sm:$0xf]
        %v4158 = vld [vmem:[%s4128 + $0xac] sm:$0xf]
        %v4159 = vld [vmem:[%s4128 + $0xb4] sm:$0xf]
        %v4160 = vld [vmem:[%s4128 + $0xb8] sm:$0xf]
        %v4161 = vld [vmem:[%s4128 + $0x8] sm:$0x1]
        %v4162 = vld [vmem:[%s4128 + $0x14] sm:$0x1]
        %v4163 = vld [vmem:[%s4128 + $0x20] sm:$0x1]
        %v4164 = vld [vmem:[%s4128 + $0x2c] sm:$0x1]
        %v4165 = vld [vmem:[%s4128 + $0x38] sm:$0x1]
        %v4166 = vld [vmem:[%s4128 + $0x44] sm:$0x1]
        %v4167 = vld [vmem:[%s4128 + $0x50] sm:$0x1]
        %v4168 = vld [vmem:[%s4128 + $0x5c] sm:$0x1]
        %v4169 = vld [vmem:[%s4128 + $0x68] sm:$0x1]
        %v4170 = vld [vmem:[%s4128 + $0x74] sm:$0x1]
        %v4171 = vld [vmem:[%s4128 + $0x80] sm:$0x1]
        %v4172 = vld [vmem:[%s4128 + $0x8c] sm:$0x1]
        %v4173 = vld [vmem:[%s4128 + $0x98] sm:$0x1]
        %v4174 = vld [vmem:[%s4128 + $0xa4] sm:$0x1]
        %v4175 = vld [vmem:[%s4128 + $0xb0] sm:$0x1]
        %v4176 = vld [vmem:[%s4128 + $0xbc] sm:$0x1]
        %v4177 = vld [vmem:[%s4128] sm:$0xe]
        %v4178 = vld [vmem:[%s4128 + $0xc] sm:$0xe]
        %v4179 = vld [vmem:[%s4128 + $0x18] sm:$0xe]
        %v4180 = vld [vmem:[%s4128 + $0x24] sm:$0xe]
        %v4181 = vld [vmem:[%s4128 + $0x30] sm:$0xe]
        %v4182 = vld [vmem:[%s4128 + $0x3c] sm:$0xe]
        %v4183 = vld [vmem:[%s4128 + $0x48] sm:$0xe]
        %v4184 = vld [vmem:[%s4128 + $0x54] sm:$0xe]
        %v4185 = vld [vmem:[%s4128 + $0x60] sm:$0xe]
        %v4186 = vld [vmem:[%s4128 + $0x6c] sm:$0xe]
        %v4187 = vld [vmem:[%s4128 + $0x78] sm:$0xe]
        %v4188 = vld [vmem:[%s4128 + $0x84] sm:$0xe]
        %v4189 = vld [vmem:[%s4128 + $0x90] sm:$0xe]
        %v4190 = vld [vmem:[%s4128 + $0x9c] sm:$0xe]
        %v4191 = vld [vmem:[%s4128 + $0xa8] sm:$0xe]
        %v4192 = vld [vmem:[%s4128 + $0xb4] sm:$0xe]
        %v4193 = vld [vmem:[%s4128 + $0x8] sm:$0x3]
        %v4194 = vld [vmem:[%s4128 + $0x14] sm:$0x3]
        %v4195 = vld [vmem:[%s4128 + $0x20] sm:$0x3]
        %v4196 = vld [vmem:[%s4128 + $0x2c] sm:$0x3]
        %v4197 = vld [vmem:[%s4128 + $0x38] sm:$0x3]
        %v4198 = vld [vmem:[%s4128 + $0x44] sm:$0x3]
        %v4199 = vld [vmem:[%s4128 + $0x50] sm:$0x3]
        %v4200 = vld [vmem:[%s4128 + $0x5c] sm:$0x3]
        %v4201 = vld [vmem:[%s4128 + $0x68] sm:$0x3]
        %v4202 = vld [vmem:[%s4128 + $0x74] sm:$0x3]
        %v4203 = vld [vmem:[%s4128 + $0x80] sm:$0x3]
        %v4204 = vld [vmem:[%s4128 + $0x8c] sm:$0x3]
        %v4205 = vld [vmem:[%s4128 + $0x98] sm:$0x3]
        %v4206 = vld [vmem:[%s4128 + $0xa4] sm:$0x3]
        %v4207 = vld [vmem:[%s4128 + $0xb0] sm:$0x3]
        %v4208 = vld [vmem:[%s4128 + $0xbc] sm:$0x3]
        %v4209 = vld [vmem:[%s4128] sm:$0xc]
        %v4210 = vld [vmem:[%s4128 + $0xc] sm:$0xc]
        %v4211 = vld [vmem:[%s4128 + $0x18] sm:$0xc]
        %v4212 = vld [vmem:[%s4128 + $0x24] sm:$0xc]
        %v4213 = vld [vmem:[%s4128 + $0x30] sm:$0xc]
        %v4214 = vld [vmem:[%s4128 + $0x3c] sm:$0xc]
        %v4215 = vld [vmem:[%s4128 + $0x48] sm:$0xc]
        %v4216 = vld [vmem:[%s4128 + $0x54] sm:$0xc]
        %v4217 = vld [vmem:[%s4128 + $0x60] sm:$0xc]
        %v4218 = vld [vmem:[%s4128 + $0x6c] sm:$0xc]
        %v4219 = vld [vmem:[%s4128 + $0x78] sm:$0xc]
        %v4220 = vld [vmem:[%s4128 + $0x84] sm:$0xc]
        %v4221 = vld [vmem:[%s4128 + $0x90] sm:$0xc]
        %v4222 = vld [vmem:[%s4128 + $0x9c] sm:$0xc]
        %v4223 = vld [vmem:[%s4128 + $0xa8] sm:$0xc]
        %v4224 = vld [vmem:[%s4128 + $0xb4] sm:$0xc]
        %v4225 = vld [vmem:[%s4128 + $0x8] sm:$0x7]
        %v4226 = vld [vmem:[%s4128 + $0x14] sm:$0x7]
        %v4227 = vld [vmem:[%s4128 + $0x20] sm:$0x7]
        %v4228 = vld [vmem:[%s4128 + $0x2c] sm:$0x7]
        %v4229 = vld [vmem:[%s4128 + $0x38] sm:$0x7]
        %v4230 = vld [vmem:[%s4128 + $0x44] sm:$0x7]
        %v4231 = vld [vmem:[%s4128 + $0x50] sm:$0x7]
        %v4232 = vld [vmem:[%s4128 + $0x5c] sm:$0x7]
        %v4233 = vld [vmem:[%s4128 + $0x68] sm:$0x7]
        %v4234 = vld [vmem:[%s4128 + $0x74] sm:$0x7]
        %v4235 = vld [vmem:[%s4128 + $0x80] sm:$0x7]
        %v4236 = vld [vmem:[%s4128 + $0x8c] sm:$0x7]
        %v4237 = vld [vmem:[%s4128 + $0x98] sm:$0x7]
        %v4238 = vld [vmem:[%s4128 + $0xa4] sm:$0x7]
        %v4239 = vld [vmem:[%s4128 + $0xb0] sm:$0x7]
        %v4240 = vld [vmem:[%s4128 + $0xbc] sm:$0x7]
        %v4241 = vld [vmem:[%s4128] sm:$0x8]
        %v4242 = vld [vmem:[%s4128 + $0xc] sm:$0x8]
        %v4243 = vld [vmem:[%s4128 + $0x18] sm:$0x8]
        %v4244 = vld [vmem:[%s4128 + $0x24] sm:$0x8]
        %v4245 = vld [vmem:[%s4128 + $0x30] sm:$0x8]
        %v4246 = vld [vmem:[%s4128 + $0x3c] sm:$0x8]
        %v4247 = vld [vmem:[%s4128 + $0x48] sm:$0x8]
        %v4248 = vld [vmem:[%s4128 + $0x54] sm:$0x8]
        %v4249 = vld [vmem:[%s4128 + $0x60] sm:$0x8]
        %v4250 = vld [vmem:[%s4128 + $0x6c] sm:$0x8]
        %v4251 = vld [vmem:[%s4128 + $0x78] sm:$0x8]
        %v4252 = vld [vmem:[%s4128 + $0x84] sm:$0x8]
        %v4253 = vld [vmem:[%s4128 + $0x90] sm:$0x8]
        %v4254 = vld [vmem:[%s4128 + $0x9c] sm:$0x8]
        %v4255 = vld [vmem:[%s4128 + $0xa8] sm:$0x8]
        %v4256 = vld [vmem:[%s4128 + $0xb4] sm:$0x8]
        %v4289 = vunpack.c.l.b16 %v4129
        %v4290 = vunpack.c.l.b16 %v4130
        %v4291 = vunpack.c.l.b16 %v4131
        %v4292 = vunpack.c.l.b16 %v4132
        %v4293 = vunpack.c.l.b16 %v4133
        %v4294 = vunpack.c.l.b16 %v4134
        %v4295 = vunpack.c.l.b16 %v4135
        %v4296 = vunpack.c.l.b16 %v4136
        %v4297 = vunpack.c.l.b16 %v4137
        %v4298 = vunpack.c.l.b16 %v4138
        %v4299 = vunpack.c.l.b16 %v4139
        %v4300 = vunpack.c.l.b16 %v4140
        %v4301 = vunpack.c.l.b16 %v4141
        %v4302 = vunpack.c.l.b16 %v4142
        %v4303 = vunpack.c.l.b16 %v4143
        %v4304 = vunpack.c.l.b16 %v4144
        %v4305 = vunpack.c.l.b16 %v4145
        %v4306 = vunpack.c.l.b16 %v4146
        %v4307 = vunpack.c.l.b16 %v4147
        %v4308 = vunpack.c.l.b16 %v4148
        %v4309 = vunpack.c.l.b16 %v4149
        %v4310 = vunpack.c.l.b16 %v4150
        %v4311 = vunpack.c.l.b16 %v4151
        %v4312 = vunpack.c.l.b16 %v4152
        %v4313 = vunpack.c.l.b16 %v4153
        %v4314 = vunpack.c.l.b16 %v4154
        %v4315 = vunpack.c.l.b16 %v4155
        %v4316 = vunpack.c.l.b16 %v4156
        %v4317 = vunpack.c.l.b16 %v4157
        %v4318 = vunpack.c.l.b16 %v4158
        %v4319 = vunpack.c.l.b16 %v4159
        %v4320 = vunpack.c.l.b16 %v4160
        %v4321 = vpack.c.b16 %v4290, %v4289
        %v4322 = vpack.c.b16 %v4292, %v4291
        %v4323 = vpack.c.b16 %v4294, %v4293
        %v4324 = vpack.c.b16 %v4296, %v4295
        %v4325 = vpack.c.b16 %v4298, %v4297
        %v4326 = vpack.c.b16 %v4300, %v4299
        %v4327 = vpack.c.b16 %v4302, %v4301
        %v4328 = vpack.c.b16 %v4304, %v4303
        %v4329 = vpack.c.b16 %v4306, %v4305
        %v4330 = vpack.c.b16 %v4308, %v4307
        %v4331 = vpack.c.b16 %v4310, %v4309
        %v4332 = vpack.c.b16 %v4312, %v4311
        %v4333 = vpack.c.b16 %v4314, %v4313
        %v4334 = vpack.c.b16 %v4316, %v4315
        %v4335 = vpack.c.b16 %v4318, %v4317
        %v4336 = vpack.c.b16 %v4320, %v4319
        %v4353 = vunpack.c.l.b16 %v4161
        %v4354 = vunpack.c.l.b16 %v4162
        %v4355 = vunpack.c.l.b16 %v4163
        %v4356 = vunpack.c.l.b16 %v4164
        %v4357 = vunpack.c.l.b16 %v4165
        %v4358 = vunpack.c.l.b16 %v4166
        %v4359 = vunpack.c.l.b16 %v4167
        %v4360 = vunpack.c.l.b16 %v4168
        %v4361 = vunpack.c.l.b16 %v4169
        %v4362 = vunpack.c.l.b16 %v4170
        %v4363 = vunpack.c.l.b16 %v4171
        %v4364 = vunpack.c.l.b16 %v4172
        %v4365 = vunpack.c.l.b16 %v4173
        %v4366 = vunpack.c.l.b16 %v4174
        %v4367 = vunpack.c.l.b16 %v4175
        %v4368 = vunpack.c.l.b16 %v4176
        %v4369 = vpack.c.b16 %v4353, %v4353
        %v4370 = vpack.c.b16 %v4354, %v4354
        %v4371 = vpack.c.b16 %v4355, %v4355
        %v4372 = vpack.c.b16 %v4356, %v4356
        %v4373 = vpack.c.b16 %v4357, %v4357
        %v4374 = vpack.c.b16 %v4358, %v4358
        %v4375 = vpack.c.b16 %v4359, %v4359
        %v4376 = vpack.c.b16 %v4360, %v4360
        %v4377 = vpack.c.b16 %v4361, %v4361
        %v4378 = vpack.c.b16 %v4362, %v4362
        %v4379 = vpack.c.b16 %v4363, %v4363
        %v4380 = vpack.c.b16 %v4364, %v4364
        %v4381 = vpack.c.b16 %v4365, %v4365
        %v4382 = vpack.c.b16 %v4366, %v4366
        %v4383 = vpack.c.b16 %v4367, %v4367
        %v4384 = vpack.c.b16 %v4368, %v4368
        %v4386 = vshrl.u32 %v4321, 16
        %v4388 = vshll.u32 %v4321, 16
        %v4390 = vrot.slane %v4388, 1
        %v4391 = vor.u32 %v4386, %v4390
        %v4393 = vshll.u32 %v4369, 16
        %v4395 = vrot.slane %v4393, 1
        %v4396 = vsel %vm426, %v4391, %v4395
        %v4398 = vshrl.u32 %v4322, 16
        %v4400 = vshll.u32 %v4322, 16
        %v4402 = vrot.slane %v4400, 1
        %v4403 = vor.u32 %v4398, %v4402
        %v4405 = vshll.u32 %v4370, 16
        %v4407 = vrot.slane %v4405, 1
        %v4408 = vsel %vm426, %v4403, %v4407
        %v4410 = vshrl.u32 %v4323, 16
        %v4412 = vshll.u32 %v4323, 16
        %v4414 = vrot.slane %v4412, 1
        %v4415 = vor.u32 %v4410, %v4414
        %v4417 = vshll.u32 %v4371, 16
        %v4419 = vrot.slane %v4417, 1
        %v4420 = vsel %vm426, %v4415, %v4419
        %v4422 = vshrl.u32 %v4324, 16
        %v4424 = vshll.u32 %v4324, 16
        %v4426 = vrot.slane %v4424, 1
        %v4427 = vor.u32 %v4422, %v4426
        %v4429 = vshll.u32 %v4372, 16
        %v4431 = vrot.slane %v4429, 1
        %v4432 = vsel %vm426, %v4427, %v4431
        %v4434 = vshrl.u32 %v4325, 16
        %v4436 = vshll.u32 %v4325, 16
        %v4438 = vrot.slane %v4436, 1
        %v4439 = vor.u32 %v4434, %v4438
        %v4441 = vshll.u32 %v4373, 16
        %v4443 = vrot.slane %v4441, 1
        %v4444 = vsel %vm426, %v4439, %v4443
        %v4446 = vshrl.u32 %v4326, 16
        %v4448 = vshll.u32 %v4326, 16
        %v4450 = vrot.slane %v4448, 1
        %v4451 = vor.u32 %v4446, %v4450
        %v4453 = vshll.u32 %v4374, 16
        %v4455 = vrot.slane %v4453, 1
        %v4456 = vsel %vm426, %v4451, %v4455
        %v4458 = vshrl.u32 %v4327, 16
        %v4460 = vshll.u32 %v4327, 16
        %v4462 = vrot.slane %v4460, 1
        %v4463 = vor.u32 %v4458, %v4462
        %v4465 = vshll.u32 %v4375, 16
        %v4467 = vrot.slane %v4465, 1
        %v4468 = vsel %vm426, %v4463, %v4467
        %v4470 = vshrl.u32 %v4328, 16
        %v4472 = vshll.u32 %v4328, 16
        %v4474 = vrot.slane %v4472, 1
        %v4475 = vor.u32 %v4470, %v4474
        %v4477 = vshll.u32 %v4376, 16
        %v4479 = vrot.slane %v4477, 1
        %v4480 = vsel %vm426, %v4475, %v4479
        %v4482 = vshrl.u32 %v4329, 16
        %v4484 = vshll.u32 %v4329, 16
        %v4486 = vrot.slane %v4484, 1
        %v4487 = vor.u32 %v4482, %v4486
        %v4489 = vshll.u32 %v4377, 16
        %v4491 = vrot.slane %v4489, 1
        %v4492 = vsel %vm426, %v4487, %v4491
        %v4494 = vshrl.u32 %v4330, 16
        %v4496 = vshll.u32 %v4330, 16
        %v4498 = vrot.slane %v4496, 1
        %v4499 = vor.u32 %v4494, %v4498
        %v4501 = vshll.u32 %v4378, 16
        %v4503 = vrot.slane %v4501, 1
        %v4504 = vsel %vm426, %v4499, %v4503
        %v4506 = vshrl.u32 %v4331, 16
        %v4508 = vshll.u32 %v4331, 16
        %v4510 = vrot.slane %v4508, 1
        %v4511 = vor.u32 %v4506, %v4510
        %v4513 = vshll.u32 %v4379, 16
        %v4515 = vrot.slane %v4513, 1
        %v4516 = vsel %vm426, %v4511, %v4515
        %v4518 = vshrl.u32 %v4332, 16
        %v4520 = vshll.u32 %v4332, 16
        %v4522 = vrot.slane %v4520, 1
        %v4523 = vor.u32 %v4518, %v4522
        %v4525 = vshll.u32 %v4380, 16
        %v4527 = vrot.slane %v4525, 1
        %v4528 = vsel %vm426, %v4523, %v4527
        %v4530 = vshrl.u32 %v4333, 16
        %v4532 = vshll.u32 %v4333, 16
        %v4534 = vrot.slane %v4532, 1
        %v4535 = vor.u32 %v4530, %v4534
        %v4537 = vshll.u32 %v4381, 16
        %v4539 = vrot.slane %v4537, 1
        %v4540 = vsel %vm426, %v4535, %v4539
        %v4542 = vshrl.u32 %v4334, 16
        %v4544 = vshll.u32 %v4334, 16
        %v4546 = vrot.slane %v4544, 1
        %v4547 = vor.u32 %v4542, %v4546
        %v4549 = vshll.u32 %v4382, 16
        %v4551 = vrot.slane %v4549, 1
        %v4552 = vsel %vm426, %v4547, %v4551
        %v4554 = vshrl.u32 %v4335, 16
        %v4556 = vshll.u32 %v4335, 16
        %v4558 = vrot.slane %v4556, 1
        %v4559 = vor.u32 %v4554, %v4558
        %v4561 = vshll.u32 %v4383, 16
        %v4563 = vrot.slane %v4561, 1
        %v4564 = vsel %vm426, %v4559, %v4563
        %v4566 = vshrl.u32 %v4336, 16
        %v4568 = vshll.u32 %v4336, 16
        %v4570 = vrot.slane %v4568, 1
        %v4571 = vor.u32 %v4566, %v4570
        %v4573 = vshll.u32 %v4384, 16
        %v4575 = vrot.slane %v4573, 1
        %v4576 = vsel %vm426, %v4571, %v4575
        %4577 = vrot.lane.b32.xlu0 %v4396, 4
        %v4578 = vpop.permute.xlu0 %4577
        %4579 = vrot.lane.b32.xlu0 %v4408, 4
        %v4580 = vpop.permute.xlu0 %4579
        %4581 = vrot.lane.b32.xlu0 %v4420, 4
        %v4582 = vpop.permute.xlu0 %4581
        %4583 = vrot.lane.b32.xlu0 %v4432, 4
        %v4584 = vpop.permute.xlu0 %4583
        %4585 = vrot.lane.b32.xlu0 %v4444, 4
        %v4586 = vpop.permute.xlu0 %4585
        %4587 = vrot.lane.b32.xlu0 %v4456, 4
        %v4588 = vpop.permute.xlu0 %4587
        %4589 = vrot.lane.b32.xlu0 %v4468, 4
        %v4590 = vpop.permute.xlu0 %4589
        %4591 = vrot.lane.b32.xlu0 %v4480, 4
        %v4592 = vpop.permute.xlu0 %4591
        %4593 = vrot.lane.b32.xlu0 %v4492, 4
        %v4594 = vpop.permute.xlu0 %4593
        %4595 = vrot.lane.b32.xlu0 %v4504, 4
        %v4596 = vpop.permute.xlu0 %4595
        %4597 = vrot.lane.b32.xlu0 %v4516, 4
        %v4598 = vpop.permute.xlu0 %4597
        %4599 = vrot.lane.b32.xlu0 %v4528, 4
        %v4600 = vpop.permute.xlu0 %4599
        %4601 = vrot.lane.b32.xlu0 %v4540, 4
        %v4602 = vpop.permute.xlu0 %4601
        %4603 = vrot.lane.b32.xlu0 %v4552, 4
        %v4604 = vpop.permute.xlu0 %4603
        %4605 = vrot.lane.b32.xlu0 %v4564, 4
        %v4606 = vpop.permute.xlu0 %4605
        %4607 = vrot.lane.b32.xlu0 %v4576, 4
        %v4608 = vpop.permute.xlu0 %4607
        %v4625 = vunpack.c.l.b16 %v4177
        %v4626 = vunpack.c.l.b16 %v4178
        %v4627 = vunpack.c.l.b16 %v4179
        %v4628 = vunpack.c.l.b16 %v4180
        %v4629 = vunpack.c.l.b16 %v4181
        %v4630 = vunpack.c.l.b16 %v4182
        %v4631 = vunpack.c.l.b16 %v4183
        %v4632 = vunpack.c.l.b16 %v4184
        %v4633 = vunpack.c.l.b16 %v4185
        %v4634 = vunpack.c.l.b16 %v4186
        %v4635 = vunpack.c.l.b16 %v4187
        %v4636 = vunpack.c.l.b16 %v4188
        %v4637 = vunpack.c.l.b16 %v4189
        %v4638 = vunpack.c.l.b16 %v4190
        %v4639 = vunpack.c.l.b16 %v4191
        %v4640 = vunpack.c.l.b16 %v4192
        %v4641 = vpack.c.b16 %v4290, %v4625
        %v4642 = vpack.c.b16 %v4292, %v4626
        %v4643 = vpack.c.b16 %v4294, %v4627
        %v4644 = vpack.c.b16 %v4296, %v4628
        %v4645 = vpack.c.b16 %v4298, %v4629
        %v4646 = vpack.c.b16 %v4300, %v4630
        %v4647 = vpack.c.b16 %v4302, %v4631
        %v4648 = vpack.c.b16 %v4304, %v4632
        %v4649 = vpack.c.b16 %v4306, %v4633
        %v4650 = vpack.c.b16 %v4308, %v4634
        %v4651 = vpack.c.b16 %v4310, %v4635
        %v4652 = vpack.c.b16 %v4312, %v4636
        %v4653 = vpack.c.b16 %v4314, %v4637
        %v4654 = vpack.c.b16 %v4316, %v4638
        %v4655 = vpack.c.b16 %v4318, %v4639
        %v4656 = vpack.c.b16 %v4320, %v4640
        %v4657 = vrot.slane %v4641, 1
        %v4658 = vrot.slane %v4369, 1
        %v4659 = vsel %vm699, %v4657, %v4658
        %v4660 = vrot.slane %v4642, 1
        %v4661 = vrot.slane %v4370, 1
        %v4662 = vsel %vm699, %v4660, %v4661
        %v4663 = vrot.slane %v4643, 1
        %v4664 = vrot.slane %v4371, 1
        %v4665 = vsel %vm699, %v4663, %v4664
        %v4666 = vrot.slane %v4644, 1
        %v4667 = vrot.slane %v4372, 1
        %v4668 = vsel %vm699, %v4666, %v4667
        %v4669 = vrot.slane %v4645, 1
        %v4670 = vrot.slane %v4373, 1
        %v4671 = vsel %vm699, %v4669, %v4670
        %v4672 = vrot.slane %v4646, 1
        %v4673 = vrot.slane %v4374, 1
        %v4674 = vsel %vm699, %v4672, %v4673
        %v4675 = vrot.slane %v4647, 1
        %v4676 = vrot.slane %v4375, 1
        %v4677 = vsel %vm699, %v4675, %v4676
        %v4678 = vrot.slane %v4648, 1
        %v4679 = vrot.slane %v4376, 1
        %v4680 = vsel %vm699, %v4678, %v4679
        %v4681 = vrot.slane %v4649, 1
        %v4682 = vrot.slane %v4377, 1
        %v4683 = vsel %vm699, %v4681, %v4682
        %v4684 = vrot.slane %v4650, 1
        %v4685 = vrot.slane %v4378, 1
        %v4686 = vsel %vm699, %v4684, %v4685
        %v4687 = vrot.slane %v4651, 1
        %v4688 = vrot.slane %v4379, 1
        %v4689 = vsel %vm699, %v4687, %v4688
        %v4690 = vrot.slane %v4652, 1
        %v4691 = vrot.slane %v4380, 1
        %v4692 = vsel %vm699, %v4690, %v4691
        %v4693 = vrot.slane %v4653, 1
        %v4694 = vrot.slane %v4381, 1
        %v4695 = vsel %vm699, %v4693, %v4694
        %v4696 = vrot.slane %v4654, 1
        %v4697 = vrot.slane %v4382, 1
        %v4698 = vsel %vm699, %v4696, %v4697
        %v4699 = vrot.slane %v4655, 1
        %v4700 = vrot.slane %v4383, 1
        %v4701 = vsel %vm699, %v4699, %v4700
        %v4702 = vrot.slane %v4656, 1
        %v4703 = vrot.slane %v4384, 1
        %v4704 = vsel %vm699, %v4702, %v4703
        %4705 = vrot.lane.b32.xlu0 %v4659, 8
        %v4706 = vpop.permute.xlu0 %4705
        %4707 = vrot.lane.b32.xlu0 %v4662, 8
        %v4708 = vpop.permute.xlu0 %4707
        %4709 = vrot.lane.b32.xlu0 %v4665, 8
        %v4710 = vpop.permute.xlu0 %4709
        %4711 = vrot.lane.b32.xlu0 %v4668, 8
        %v4712 = vpop.permute.xlu0 %4711
        %4713 = vrot.lane.b32.xlu0 %v4671, 8
        %v4714 = vpop.permute.xlu0 %4713
        %4715 = vrot.lane.b32.xlu0 %v4674, 8
        %v4716 = vpop.permute.xlu0 %4715
        %4717 = vrot.lane.b32.xlu0 %v4677, 8
        %v4718 = vpop.permute.xlu0 %4717
        %4719 = vrot.lane.b32.xlu0 %v4680, 8
        %v4720 = vpop.permute.xlu0 %4719
        %4721 = vrot.lane.b32.xlu0 %v4683, 8
        %v4722 = vpop.permute.xlu0 %4721
        %4723 = vrot.lane.b32.xlu0 %v4686, 8
        %v4724 = vpop.permute.xlu0 %4723
        %4725 = vrot.lane.b32.xlu0 %v4689, 8
        %v4726 = vpop.permute.xlu0 %4725
        %4727 = vrot.lane.b32.xlu0 %v4692, 8
        %v4728 = vpop.permute.xlu0 %4727
        %4729 = vrot.lane.b32.xlu0 %v4695, 8
        %v4730 = vpop.permute.xlu0 %4729
        %4731 = vrot.lane.b32.xlu0 %v4698, 8
        %v4732 = vpop.permute.xlu0 %4731
        %4733 = vrot.lane.b32.xlu0 %v4701, 8
        %v4734 = vpop.permute.xlu0 %4733
        %4735 = vrot.lane.b32.xlu0 %v4704, 8
        %v4736 = vpop.permute.xlu0 %4735
        %v4753 = vunpack.c.l.b16 %v4193
        %v4754 = vunpack.c.l.b16 %v4194
        %v4755 = vunpack.c.l.b16 %v4195
        %v4756 = vunpack.c.l.b16 %v4196
        %v4757 = vunpack.c.l.b16 %v4197
        %v4758 = vunpack.c.l.b16 %v4198
        %v4759 = vunpack.c.l.b16 %v4199
        %v4760 = vunpack.c.l.b16 %v4200
        %v4761 = vunpack.c.l.b16 %v4201
        %v4762 = vunpack.c.l.b16 %v4202
        %v4763 = vunpack.c.l.b16 %v4203
        %v4764 = vunpack.c.l.b16 %v4204
        %v4765 = vunpack.c.l.b16 %v4205
        %v4766 = vunpack.c.l.b16 %v4206
        %v4767 = vunpack.c.l.b16 %v4207
        %v4768 = vunpack.c.l.b16 %v4208
        %v4769 = vpack.c.b16 %v4753, %v4753
        %v4770 = vpack.c.b16 %v4754, %v4754
        %v4771 = vpack.c.b16 %v4755, %v4755
        %v4772 = vpack.c.b16 %v4756, %v4756
        %v4773 = vpack.c.b16 %v4757, %v4757
        %v4774 = vpack.c.b16 %v4758, %v4758
        %v4775 = vpack.c.b16 %v4759, %v4759
        %v4776 = vpack.c.b16 %v4760, %v4760
        %v4777 = vpack.c.b16 %v4761, %v4761
        %v4778 = vpack.c.b16 %v4762, %v4762
        %v4779 = vpack.c.b16 %v4763, %v4763
        %v4780 = vpack.c.b16 %v4764, %v4764
        %v4781 = vpack.c.b16 %v4765, %v4765
        %v4782 = vpack.c.b16 %v4766, %v4766
        %v4783 = vpack.c.b16 %v4767, %v4767
        %v4784 = vpack.c.b16 %v4768, %v4768
        %v4786 = vshrl.u32 %v4641, 16
        %v4788 = vrot.slane %v4786, 1
        %v4789 = vshll.u32 %v4641, 16
        %v4791 = vrot.slane %v4789, 2
        %v4792 = vor.u32 %v4788, %v4791
        %v4794 = vshrl.u32 %v4769, 16
        %v4796 = vrot.slane %v4794, 1
        %v4797 = vshll.u32 %v4769, 16
        %v4799 = vrot.slane %v4797, 2
        %v4800 = vor.u32 %v4796, %v4799
        %v4801 = vsel %vm828, %v4792, %v4800
        %v4803 = vshrl.u32 %v4642, 16
        %v4805 = vrot.slane %v4803, 1
        %v4806 = vshll.u32 %v4642, 16
        %v4808 = vrot.slane %v4806, 2
        %v4809 = vor.u32 %v4805, %v4808
        %v4811 = vshrl.u32 %v4770, 16
        %v4813 = vrot.slane %v4811, 1
        %v4814 = vshll.u32 %v4770, 16
        %v4816 = vrot.slane %v4814, 2
        %v4817 = vor.u32 %v4813, %v4816
        %v4818 = vsel %vm828, %v4809, %v4817
        %v4820 = vshrl.u32 %v4643, 16
        %v4822 = vrot.slane %v4820, 1
        %v4823 = vshll.u32 %v4643, 16
        %v4825 = vrot.slane %v4823, 2
        %v4826 = vor.u32 %v4822, %v4825
        %v4828 = vshrl.u32 %v4771, 16
        %v4830 = vrot.slane %v4828, 1
        %v4831 = vshll.u32 %v4771, 16
        %v4833 = vrot.slane %v4831, 2
        %v4834 = vor.u32 %v4830, %v4833
        %v4835 = vsel %vm828, %v4826, %v4834
        %v4837 = vshrl.u32 %v4644, 16
        %v4839 = vrot.slane %v4837, 1
        %v4840 = vshll.u32 %v4644, 16
        %v4842 = vrot.slane %v4840, 2
        %v4843 = vor.u32 %v4839, %v4842
        %v4845 = vshrl.u32 %v4772, 16
        %v4847 = vrot.slane %v4845, 1
        %v4848 = vshll.u32 %v4772, 16
        %v4850 = vrot.slane %v4848, 2
        %v4851 = vor.u32 %v4847, %v4850
        %v4852 = vsel %vm828, %v4843, %v4851
        %v4854 = vshrl.u32 %v4645, 16
        %v4856 = vrot.slane %v4854, 1
        %v4857 = vshll.u32 %v4645, 16
        %v4859 = vrot.slane %v4857, 2
        %v4860 = vor.u32 %v4856, %v4859
        %v4862 = vshrl.u32 %v4773, 16
        %v4864 = vrot.slane %v4862, 1
        %v4865 = vshll.u32 %v4773, 16
        %v4867 = vrot.slane %v4865, 2
        %v4868 = vor.u32 %v4864, %v4867
        %v4869 = vsel %vm828, %v4860, %v4868
        %v4871 = vshrl.u32 %v4646, 16
        %v4873 = vrot.slane %v4871, 1
        %v4874 = vshll.u32 %v4646, 16
        %v4876 = vrot.slane %v4874, 2
        %v4877 = vor.u32 %v4873, %v4876
        %v4879 = vshrl.u32 %v4774, 16
        %v4881 = vrot.slane %v4879, 1
        %v4882 = vshll.u32 %v4774, 16
        %v4884 = vrot.slane %v4882, 2
        %v4885 = vor.u32 %v4881, %v4884
        %v4886 = vsel %vm828, %v4877, %v4885
        %v4888 = vshrl.u32 %v4647, 16
        %v4890 = vrot.slane %v4888, 1
        %v4891 = vshll.u32 %v4647, 16
        %v4893 = vrot.slane %v4891, 2
        %v4894 = vor.u32 %v4890, %v4893
        %v4896 = vshrl.u32 %v4775, 16
        %v4898 = vrot.slane %v4896, 1
        %v4899 = vshll.u32 %v4775, 16
        %v4901 = vrot.slane %v4899, 2
        %v4902 = vor.u32 %v4898, %v4901
        %v4903 = vsel %vm828, %v4894, %v4902
        %v4905 = vshrl.u32 %v4648, 16
        %v4907 = vrot.slane %v4905, 1
        %v4908 = vshll.u32 %v4648, 16
        %v4910 = vrot.slane %v4908, 2
        %v4911 = vor.u32 %v4907, %v4910
        %v4913 = vshrl.u32 %v4776, 16
        %v4915 = vrot.slane %v4913, 1
        %v4916 = vshll.u32 %v4776, 16
        %v4918 = vrot.slane %v4916, 2
        %v4919 = vor.u32 %v4915, %v4918
        %v4920 = vsel %vm828, %v4911, %v4919
        %v4922 = vshrl.u32 %v4649, 16
        %v4924 = vrot.slane %v4922, 1
        %v4925 = vshll.u32 %v4649, 16
        %v4927 = vrot.slane %v4925, 2
        %v4928 = vor.u32 %v4924, %v4927
        %v4930 = vshrl.u32 %v4777, 16
        %v4932 = vrot.slane %v4930, 1
        %v4933 = vshll.u32 %v4777, 16
        %v4935 = vrot.slane %v4933, 2
        %v4936 = vor.u32 %v4932, %v4935
        %v4937 = vsel %vm828, %v4928, %v4936
        %v4939 = vshrl.u32 %v4650, 16
        %v4941 = vrot.slane %v4939, 1
        %v4942 = vshll.u32 %v4650, 16
        %v4944 = vrot.slane %v4942, 2
        %v4945 = vor.u32 %v4941, %v4944
        %v4947 = vshrl.u32 %v4778, 16
        %v4949 = vrot.slane %v4947, 1
        %v4950 = vshll.u32 %v4778, 16
        %v4952 = vrot.slane %v4950, 2
        %v4953 = vor.u32 %v4949, %v4952
        %v4954 = vsel %vm828, %v4945, %v4953
        %v4956 = vshrl.u32 %v4651, 16
        %v4958 = vrot.slane %v4956, 1
        %v4959 = vshll.u32 %v4651, 16
        %v4961 = vrot.slane %v4959, 2
        %v4962 = vor.u32 %v4958, %v4961
        %v4964 = vshrl.u32 %v4779, 16
        %v4966 = vrot.slane %v4964, 1
        %v4967 = vshll.u32 %v4779, 16
        %v4969 = vrot.slane %v4967, 2
        %v4970 = vor.u32 %v4966, %v4969
        %v4971 = vsel %vm828, %v4962, %v4970
        %v4973 = vshrl.u32 %v4652, 16
        %v4975 = vrot.slane %v4973, 1
        %v4976 = vshll.u32 %v4652, 16
        %v4978 = vrot.slane %v4976, 2
        %v4979 = vor.u32 %v4975, %v4978
        %v4981 = vshrl.u32 %v4780, 16
        %v4983 = vrot.slane %v4981, 1
        %v4984 = vshll.u32 %v4780, 16
        %v4986 = vrot.slane %v4984, 2
        %v4987 = vor.u32 %v4983, %v4986
        %v4988 = vsel %vm828, %v4979, %v4987
        %v4990 = vshrl.u32 %v4653, 16
        %v4992 = vrot.slane %v4990, 1
        %v4993 = vshll.u32 %v4653, 16
        %v4995 = vrot.slane %v4993, 2
        %v4996 = vor.u32 %v4992, %v4995
        %v4998 = vshrl.u32 %v4781, 16
        %v5000 = vrot.slane %v4998, 1
        %v5001 = vshll.u32 %v4781, 16
        %v5003 = vrot.slane %v5001, 2
        %v5004 = vor.u32 %v5000, %v5003
        %v5005 = vsel %vm828, %v4996, %v5004
        %v5007 = vshrl.u32 %v4654, 16
        %v5009 = vrot.slane %v5007, 1
        %v5010 = vshll.u32 %v4654, 16
        %v5012 = vrot.slane %v5010, 2
        %v5013 = vor.u32 %v5009, %v5012
        %v5015 = vshrl.u32 %v4782, 16
        %v5017 = vrot.slane %v5015, 1
        %v5018 = vshll.u32 %v4782, 16
        %v5020 = vrot.slane %v5018, 2
        %v5021 = vor.u32 %v5017, %v5020
        %v5022 = vsel %vm828, %v5013, %v5021
        %v5024 = vshrl.u32 %v4655, 16
        %v5026 = vrot.slane %v5024, 1
        %v5027 = vshll.u32 %v4655, 16
        %v5029 = vrot.slane %v5027, 2
        %v5030 = vor.u32 %v5026, %v5029
        %v5032 = vshrl.u32 %v4783, 16
        %v5034 = vrot.slane %v5032, 1
        %v5035 = vshll.u32 %v4783, 16
        %v5037 = vrot.slane %v5035, 2
        %v5038 = vor.u32 %v5034, %v5037
        %v5039 = vsel %vm828, %v5030, %v5038
        %v5041 = vshrl.u32 %v4656, 16
        %v5043 = vrot.slane %v5041, 1
        %v5044 = vshll.u32 %v4656, 16
        %v5046 = vrot.slane %v5044, 2
        %v5047 = vor.u32 %v5043, %v5046
        %v5049 = vshrl.u32 %v4784, 16
        %v5051 = vrot.slane %v5049, 1
        %v5052 = vshll.u32 %v4784, 16
        %v5054 = vrot.slane %v5052, 2
        %v5055 = vor.u32 %v5051, %v5054
        %v5056 = vsel %vm828, %v5047, %v5055
        %5057 = vrot.lane.b32.xlu0 %v4801, 12
        %v5058 = vpop.permute.xlu0 %5057
        %5059 = vrot.lane.b32.xlu0 %v4818, 12
        %v5060 = vpop.permute.xlu0 %5059
        %5061 = vrot.lane.b32.xlu0 %v4835, 12
        %v5062 = vpop.permute.xlu0 %5061
        %5063 = vrot.lane.b32.xlu0 %v4852, 12
        %v5064 = vpop.permute.xlu0 %5063
        %5065 = vrot.lane.b32.xlu0 %v4869, 12
        %v5066 = vpop.permute.xlu0 %5065
        %5067 = vrot.lane.b32.xlu0 %v4886, 12
        %v5068 = vpop.permute.xlu0 %5067
        %5069 = vrot.lane.b32.xlu0 %v4903, 12
        %v5070 = vpop.permute.xlu0 %5069
        %5071 = vrot.lane.b32.xlu0 %v4920, 12
        %v5072 = vpop.permute.xlu0 %5071
        %5073 = vrot.lane.b32.xlu0 %v4937, 12
        %v5074 = vpop.permute.xlu0 %5073
        %5075 = vrot.lane.b32.xlu0 %v4954, 12
        %v5076 = vpop.permute.xlu0 %5075
        %5077 = vrot.lane.b32.xlu0 %v4971, 12
        %v5078 = vpop.permute.xlu0 %5077
        %5079 = vrot.lane.b32.xlu0 %v4988, 12
        %v5080 = vpop.permute.xlu0 %5079
        %5081 = vrot.lane.b32.xlu0 %v5005, 12
        %v5082 = vpop.permute.xlu0 %5081
        %5083 = vrot.lane.b32.xlu0 %v5022, 12
        %v5084 = vpop.permute.xlu0 %5083
        %5085 = vrot.lane.b32.xlu0 %v5039, 12
        %v5086 = vpop.permute.xlu0 %5085
        %5087 = vrot.lane.b32.xlu0 %v5056, 12
        %v5088 = vpop.permute.xlu0 %5087
        %v5105 = vunpack.c.l.b16 %v4209
        %v5106 = vunpack.c.l.b16 %v4210
        %v5107 = vunpack.c.l.b16 %v4211
        %v5108 = vunpack.c.l.b16 %v4212
        %v5109 = vunpack.c.l.b16 %v4213
        %v5110 = vunpack.c.l.b16 %v4214
        %v5111 = vunpack.c.l.b16 %v4215
        %v5112 = vunpack.c.l.b16 %v4216
        %v5113 = vunpack.c.l.b16 %v4217
        %v5114 = vunpack.c.l.b16 %v4218
        %v5115 = vunpack.c.l.b16 %v4219
        %v5116 = vunpack.c.l.b16 %v4220
        %v5117 = vunpack.c.l.b16 %v4221
        %v5118 = vunpack.c.l.b16 %v4222
        %v5119 = vunpack.c.l.b16 %v4223
        %v5120 = vunpack.c.l.b16 %v4224
        %v5121 = vpack.c.b16 %v4290, %v5105
        %v5122 = vpack.c.b16 %v4292, %v5106
        %v5123 = vpack.c.b16 %v4294, %v5107
        %v5124 = vpack.c.b16 %v4296, %v5108
        %v5125 = vpack.c.b16 %v4298, %v5109
        %v5126 = vpack.c.b16 %v4300, %v5110
        %v5127 = vpack.c.b16 %v4302, %v5111
        %v5128 = vpack.c.b16 %v4304, %v5112
        %v5129 = vpack.c.b16 %v4306, %v5113
        %v5130 = vpack.c.b16 %v4308, %v5114
        %v5131 = vpack.c.b16 %v4310, %v5115
        %v5132 = vpack.c.b16 %v4312, %v5116
        %v5133 = vpack.c.b16 %v4314, %v5117
        %v5134 = vpack.c.b16 %v4316, %v5118
        %v5135 = vpack.c.b16 %v4318, %v5119
        %v5136 = vpack.c.b16 %v4320, %v5120
        %v5137 = vrot.slane %v5121, 2
        %v5138 = vrot.slane %v4769, 2
        %v5139 = vsel %vm1181, %v5137, %v5138
        %v5140 = vrot.slane %v5122, 2
        %v5141 = vrot.slane %v4770, 2
        %v5142 = vsel %vm1181, %v5140, %v5141
        %v5143 = vrot.slane %v5123, 2
        %v5144 = vrot.slane %v4771, 2
        %v5145 = vsel %vm1181, %v5143, %v5144
        %v5146 = vrot.slane %v5124, 2
        %v5147 = vrot.slane %v4772, 2
        %v5148 = vsel %vm1181, %v5146, %v5147
        %v5149 = vrot.slane %v5125, 2
        %v5150 = vrot.slane %v4773, 2
        %v5151 = vsel %vm1181, %v5149, %v5150
        %v5152 = vrot.slane %v5126, 2
        %v5153 = vrot.slane %v4774, 2
        %v5154 = vsel %vm1181, %v5152, %v5153
        %v5155 = vrot.slane %v5127, 2
        %v5156 = vrot.slane %v4775, 2
        %v5157 = vsel %vm1181, %v5155, %v5156
        %v5158 = vrot.slane %v5128, 2
        %v5159 = vrot.slane %v4776, 2
        %v5160 = vsel %vm1181, %v5158, %v5159
        %v5161 = vrot.slane %v5129, 2
        %v5162 = vrot.slane %v4777, 2
        %v5163 = vsel %vm1181, %v5161, %v5162
        %v5164 = vrot.slane %v5130, 2
        %v5165 = vrot.slane %v4778, 2
        %v5166 = vsel %vm1181, %v5164, %v5165
        %v5167 = vrot.slane %v5131, 2
        %v5168 = vrot.slane %v4779, 2
        %v5169 = vsel %vm1181, %v5167, %v5168
        %v5170 = vrot.slane %v5132, 2
        %v5171 = vrot.slane %v4780, 2
        %v5172 = vsel %vm1181, %v5170, %v5171
        %v5173 = vrot.slane %v5133, 2
        %v5174 = vrot.slane %v4781, 2
        %v5175 = vsel %vm1181, %v5173, %v5174
        %v5176 = vrot.slane %v5134, 2
        %v5177 = vrot.slane %v4782, 2
        %v5178 = vsel %vm1181, %v5176, %v5177
        %v5179 = vrot.slane %v5135, 2
        %v5180 = vrot.slane %v4783, 2
        %v5181 = vsel %vm1181, %v5179, %v5180
        %v5182 = vrot.slane %v5136, 2
        %v5183 = vrot.slane %v4784, 2
        %v5184 = vsel %vm1181, %v5182, %v5183
        %5185 = vrot.lane.b32.xlu0 %v5139, 16
        %v5186 = vpop.permute.xlu0 %5185
        %5187 = vrot.lane.b32.xlu0 %v5142, 16
        %v5188 = vpop.permute.xlu0 %5187
        %5189 = vrot.lane.b32.xlu0 %v5145, 16
        %v5190 = vpop.permute.xlu0 %5189
        %5191 = vrot.lane.b32.xlu0 %v5148, 16
        %v5192 = vpop.permute.xlu0 %5191
        %5193 = vrot.lane.b32.xlu0 %v5151, 16
        %v5194 = vpop.permute.xlu0 %5193
        %5195 = vrot.lane.b32.xlu0 %v5154, 16
        %v5196 = vpop.permute.xlu0 %5195
        %5197 = vrot.lane.b32.xlu0 %v5157, 16
        %v5198 = vpop.permute.xlu0 %5197
        %5199 = vrot.lane.b32.xlu0 %v5160, 16
        %v5200 = vpop.permute.xlu0 %5199
        %5201 = vrot.lane.b32.xlu0 %v5163, 16
        %v5202 = vpop.permute.xlu0 %5201
        %5203 = vrot.lane.b32.xlu0 %v5166, 16
        %v5204 = vpop.permute.xlu0 %5203
        %5205 = vrot.lane.b32.xlu0 %v5169, 16
        %v5206 = vpop.permute.xlu0 %5205
        %5207 = vrot.lane.b32.xlu0 %v5172, 16
        %v5208 = vpop.permute.xlu0 %5207
        %5209 = vrot.lane.b32.xlu0 %v5175, 16
        %v5210 = vpop.permute.xlu0 %5209
        %5211 = vrot.lane.b32.xlu0 %v5178, 16
        %v5212 = vpop.permute.xlu0 %5211
        %5213 = vrot.lane.b32.xlu0 %v5181, 16
        %v5214 = vpop.permute.xlu0 %5213
        %5215 = vrot.lane.b32.xlu0 %v5184, 16
        %v5216 = vpop.permute.xlu0 %5215
        %v5233 = vunpack.c.l.b16 %v4225
        %v5234 = vunpack.c.l.b16 %v4226
        %v5235 = vunpack.c.l.b16 %v4227
        %v5236 = vunpack.c.l.b16 %v4228
        %v5237 = vunpack.c.l.b16 %v4229
        %v5238 = vunpack.c.l.b16 %v4230
        %v5239 = vunpack.c.l.b16 %v4231
        %v5240 = vunpack.c.l.b16 %v4232
        %v5241 = vunpack.c.l.b16 %v4233
        %v5242 = vunpack.c.l.b16 %v4234
        %v5243 = vunpack.c.l.b16 %v4235
        %v5244 = vunpack.c.l.b16 %v4236
        %v5245 = vunpack.c.l.b16 %v4237
        %v5246 = vunpack.c.l.b16 %v4238
        %v5247 = vunpack.c.l.b16 %v4239
        %v5248 = vunpack.c.l.b16 %v4240
        %v5249 = vpack.c.b16 %v5233, %v5233
        %v5250 = vpack.c.b16 %v5234, %v5234
        %v5251 = vpack.c.b16 %v5235, %v5235
        %v5252 = vpack.c.b16 %v5236, %v5236
        %v5253 = vpack.c.b16 %v5237, %v5237
        %v5254 = vpack.c.b16 %v5238, %v5238
        %v5255 = vpack.c.b16 %v5239, %v5239
        %v5256 = vpack.c.b16 %v5240, %v5240
        %v5257 = vpack.c.b16 %v5241, %v5241
        %v5258 = vpack.c.b16 %v5242, %v5242
        %v5259 = vpack.c.b16 %v5243, %v5243
        %v5260 = vpack.c.b16 %v5244, %v5244
        %v5261 = vpack.c.b16 %v5245, %v5245
        %v5262 = vpack.c.b16 %v5246, %v5246
        %v5263 = vpack.c.b16 %v5247, %v5247
        %v5264 = vpack.c.b16 %v5248, %v5248
        %v5266 = vshrl.u32 %v5121, 16
        %v5268 = vrot.slane %v5266, 2
        %v5269 = vshll.u32 %v5121, 16
        %v5271 = vrot.slane %v5269, 3
        %v5272 = vor.u32 %v5268, %v5271
        %v5274 = vshrl.u32 %v5249, 16
        %v5276 = vrot.slane %v5274, 2
        %v5277 = vshll.u32 %v5249, 16
        %v5279 = vrot.slane %v5277, 3
        %v5280 = vor.u32 %v5276, %v5279
        %v5281 = vsel %vm1310, %v5272, %v5280
        %v5283 = vshrl.u32 %v5122, 16
        %v5285 = vrot.slane %v5283, 2
        %v5286 = vshll.u32 %v5122, 16
        %v5288 = vrot.slane %v5286, 3
        %v5289 = vor.u32 %v5285, %v5288
        %v5291 = vshrl.u32 %v5250, 16
        %v5293 = vrot.slane %v5291, 2
        %v5294 = vshll.u32 %v5250, 16
        %v5296 = vrot.slane %v5294, 3
        %v5297 = vor.u32 %v5293, %v5296
        %v5298 = vsel %vm1310, %v5289, %v5297
        %v5300 = vshrl.u32 %v5123, 16
        %v5302 = vrot.slane %v5300, 2
        %v5303 = vshll.u32 %v5123, 16
        %v5305 = vrot.slane %v5303, 3
        %v5306 = vor.u32 %v5302, %v5305
        %v5308 = vshrl.u32 %v5251, 16
        %v5310 = vrot.slane %v5308, 2
        %v5311 = vshll.u32 %v5251, 16
        %v5313 = vrot.slane %v5311, 3
        %v5314 = vor.u32 %v5310, %v5313
        %v5315 = vsel %vm1310, %v5306, %v5314
        %v5317 = vshrl.u32 %v5124, 16
        %v5319 = vrot.slane %v5317, 2
        %v5320 = vshll.u32 %v5124, 16
        %v5322 = vrot.slane %v5320, 3
        %v5323 = vor.u32 %v5319, %v5322
        %v5325 = vshrl.u32 %v5252, 16
        %v5327 = vrot.slane %v5325, 2
        %v5328 = vshll.u32 %v5252, 16
        %v5330 = vrot.slane %v5328, 3
        %v5331 = vor.u32 %v5327, %v5330
        %v5332 = vsel %vm1310, %v5323, %v5331
        %v5334 = vshrl.u32 %v5125, 16
        %v5336 = vrot.slane %v5334, 2
        %v5337 = vshll.u32 %v5125, 16
        %v5339 = vrot.slane %v5337, 3
        %v5340 = vor.u32 %v5336, %v5339
        %v5342 = vshrl.u32 %v5253, 16
        %v5344 = vrot.slane %v5342, 2
        %v5345 = vshll.u32 %v5253, 16
        %v5347 = vrot.slane %v5345, 3
        %v5348 = vor.u32 %v5344, %v5347
        %v5349 = vsel %vm1310, %v5340, %v5348
        %v5351 = vshrl.u32 %v5126, 16
        %v5353 = vrot.slane %v5351, 2
        %v5354 = vshll.u32 %v5126, 16
        %v5356 = vrot.slane %v5354, 3
        %v5357 = vor.u32 %v5353, %v5356
        %v5359 = vshrl.u32 %v5254, 16
        %v5361 = vrot.slane %v5359, 2
        %v5362 = vshll.u32 %v5254, 16
        %v5364 = vrot.slane %v5362, 3
        %v5365 = vor.u32 %v5361, %v5364
        %v5366 = vsel %vm1310, %v5357, %v5365
        %v5368 = vshrl.u32 %v5127, 16
        %v5370 = vrot.slane %v5368, 2
        %v5371 = vshll.u32 %v5127, 16
        %v5373 = vrot.slane %v5371, 3
        %v5374 = vor.u32 %v5370, %v5373
        %v5376 = vshrl.u32 %v5255, 16
        %v5378 = vrot.slane %v5376, 2
        %v5379 = vshll.u32 %v5255, 16
        %v5381 = vrot.slane %v5379, 3
        %v5382 = vor.u32 %v5378, %v5381
        %v5383 = vsel %vm1310, %v5374, %v5382
        %v5385 = vshrl.u32 %v5128, 16
        %v5387 = vrot.slane %v5385, 2
        %v5388 = vshll.u32 %v5128, 16
        %v5390 = vrot.slane %v5388, 3
        %v5391 = vor.u32 %v5387, %v5390
        %v5393 = vshrl.u32 %v5256, 16
        %v5395 = vrot.slane %v5393, 2
        %v5396 = vshll.u32 %v5256, 16
        %v5398 = vrot.slane %v5396, 3
        %v5399 = vor.u32 %v5395, %v5398
        %v5400 = vsel %vm1310, %v5391, %v5399
        %v5402 = vshrl.u32 %v5129, 16
        %v5404 = vrot.slane %v5402, 2
        %v5405 = vshll.u32 %v5129, 16
        %v5407 = vrot.slane %v5405, 3
        %v5408 = vor.u32 %v5404, %v5407
        %v5410 = vshrl.u32 %v5257, 16
        %v5412 = vrot.slane %v5410, 2
        %v5413 = vshll.u32 %v5257, 16
        %v5415 = vrot.slane %v5413, 3
        %v5416 = vor.u32 %v5412, %v5415
        %v5417 = vsel %vm1310, %v5408, %v5416
        %v5419 = vshrl.u32 %v5130, 16
        %v5421 = vrot.slane %v5419, 2
        %v5422 = vshll.u32 %v5130, 16
        %v5424 = vrot.slane %v5422, 3
        %v5425 = vor.u32 %v5421, %v5424
        %v5427 = vshrl.u32 %v5258, 16
        %v5429 = vrot.slane %v5427, 2
        %v5430 = vshll.u32 %v5258, 16
        %v5432 = vrot.slane %v5430, 3
        %v5433 = vor.u32 %v5429, %v5432
        %v5434 = vsel %vm1310, %v5425, %v5433
        %v5436 = vshrl.u32 %v5131, 16
        %v5438 = vrot.slane %v5436, 2
        %v5439 = vshll.u32 %v5131, 16
        %v5441 = vrot.slane %v5439, 3
        %v5442 = vor.u32 %v5438, %v5441
        %v5444 = vshrl.u32 %v5259, 16
        %v5446 = vrot.slane %v5444, 2
        %v5447 = vshll.u32 %v5259, 16
        %v5449 = vrot.slane %v5447, 3
        %v5450 = vor.u32 %v5446, %v5449
        %v5451 = vsel %vm1310, %v5442, %v5450
        %v5453 = vshrl.u32 %v5132, 16
        %v5455 = vrot.slane %v5453, 2
        %v5456 = vshll.u32 %v5132, 16
        %v5458 = vrot.slane %v5456, 3
        %v5459 = vor.u32 %v5455, %v5458
        %v5461 = vshrl.u32 %v5260, 16
        %v5463 = vrot.slane %v5461, 2
        %v5464 = vshll.u32 %v5260, 16
        %v5466 = vrot.slane %v5464, 3
        %v5467 = vor.u32 %v5463, %v5466
        %v5468 = vsel %vm1310, %v5459, %v5467
        %v5470 = vshrl.u32 %v5133, 16
        %v5472 = vrot.slane %v5470, 2
        %v5473 = vshll.u32 %v5133, 16
        %v5475 = vrot.slane %v5473, 3
        %v5476 = vor.u32 %v5472, %v5475
        %v5478 = vshrl.u32 %v5261, 16
        %v5480 = vrot.slane %v5478, 2
        %v5481 = vshll.u32 %v5261, 16
        %v5483 = vrot.slane %v5481, 3
        %v5484 = vor.u32 %v5480, %v5483
        %v5485 = vsel %vm1310, %v5476, %v5484
        %v5487 = vshrl.u32 %v5134, 16
        %v5489 = vrot.slane %v5487, 2
        %v5490 = vshll.u32 %v5134, 16
        %v5492 = vrot.slane %v5490, 3
        %v5493 = vor.u32 %v5489, %v5492
        %v5495 = vshrl.u32 %v5262, 16
        %v5497 = vrot.slane %v5495, 2
        %v5498 = vshll.u32 %v5262, 16
        %v5500 = vrot.slane %v5498, 3
        %v5501 = vor.u32 %v5497, %v5500
        %v5502 = vsel %vm1310, %v5493, %v5501
        %v5504 = vshrl.u32 %v5135, 16
        %v5506 = vrot.slane %v5504, 2
        %v5507 = vshll.u32 %v5135, 16
        %v5509 = vrot.slane %v5507, 3
        %v5510 = vor.u32 %v5506, %v5509
        %v5512 = vshrl.u32 %v5263, 16
        %v5514 = vrot.slane %v5512, 2
        %v5515 = vshll.u32 %v5263, 16
        %v5517 = vrot.slane %v5515, 3
        %v5518 = vor.u32 %v5514, %v5517
        %v5519 = vsel %vm1310, %v5510, %v5518
        %v5521 = vshrl.u32 %v5136, 16
        %v5523 = vrot.slane %v5521, 2
        %v5524 = vshll.u32 %v5136, 16
        %v5526 = vrot.slane %v5524, 3
        %v5527 = vor.u32 %v5523, %v5526
        %v5529 = vshrl.u32 %v5264, 16
        %v5531 = vrot.slane %v5529, 2
        %v5532 = vshll.u32 %v5264, 16
        %v5534 = vrot.slane %v5532, 3
        %v5535 = vor.u32 %v5531, %v5534
        %v5536 = vsel %vm1310, %v5527, %v5535
        %5537 = vrot.lane.b32.xlu0 %v5281, 20
        %v5538 = vpop.permute.xlu0 %5537
        %5539 = vrot.lane.b32.xlu0 %v5298, 20
        %v5540 = vpop.permute.xlu0 %5539
        %5541 = vrot.lane.b32.xlu0 %v5315, 20
        %v5542 = vpop.permute.xlu0 %5541
        %5543 = vrot.lane.b32.xlu0 %v5332, 20
        %v5544 = vpop.permute.xlu0 %5543
        %5545 = vrot.lane.b32.xlu0 %v5349, 20
        %v5546 = vpop.permute.xlu0 %5545
        %5547 = vrot.lane.b32.xlu0 %v5366, 20
        %v5548 = vpop.permute.xlu0 %5547
        %5549 = vrot.lane.b32.xlu0 %v5383, 20
        %v5550 = vpop.permute.xlu0 %5549
        %5551 = vrot.lane.b32.xlu0 %v5400, 20
        %v5552 = vpop.permute.xlu0 %5551
        %5553 = vrot.lane.b32.xlu0 %v5417, 20
        %v5554 = vpop.permute.xlu0 %5553
        %5555 = vrot.lane.b32.xlu0 %v5434, 20
        %v5556 = vpop.permute.xlu0 %5555
        %5557 = vrot.lane.b32.xlu0 %v5451, 20
        %v5558 = vpop.permute.xlu0 %5557
        %5559 = vrot.lane.b32.xlu0 %v5468, 20
        %v5560 = vpop.permute.xlu0 %5559
        %5561 = vrot.lane.b32.xlu0 %v5485, 20
        %v5562 = vpop.permute.xlu0 %5561
        %5563 = vrot.lane.b32.xlu0 %v5502, 20
        %v5564 = vpop.permute.xlu0 %5563
        %5565 = vrot.lane.b32.xlu0 %v5519, 20
        %v5566 = vpop.permute.xlu0 %5565
        %5567 = vrot.lane.b32.xlu0 %v5536, 20
        %v5568 = vpop.permute.xlu0 %5567
        %v5585 = vunpack.c.l.b16 %v4241
        %v5586 = vunpack.c.l.b16 %v4242
        %v5587 = vunpack.c.l.b16 %v4243
        %v5588 = vunpack.c.l.b16 %v4244
        %v5589 = vunpack.c.l.b16 %v4245
        %v5590 = vunpack.c.l.b16 %v4246
        %v5591 = vunpack.c.l.b16 %v4247
        %v5592 = vunpack.c.l.b16 %v4248
        %v5593 = vunpack.c.l.b16 %v4249
        %v5594 = vunpack.c.l.b16 %v4250
        %v5595 = vunpack.c.l.b16 %v4251
        %v5596 = vunpack.c.l.b16 %v4252
        %v5597 = vunpack.c.l.b16 %v4253
        %v5598 = vunpack.c.l.b16 %v4254
        %v5599 = vunpack.c.l.b16 %v4255
        %v5600 = vunpack.c.l.b16 %v4256
        %v5601 = vpack.c.b16 %v4290, %v5585
        %v5602 = vpack.c.b16 %v4292, %v5586
        %v5603 = vpack.c.b16 %v4294, %v5587
        %v5604 = vpack.c.b16 %v4296, %v5588
        %v5605 = vpack.c.b16 %v4298, %v5589
        %v5606 = vpack.c.b16 %v4300, %v5590
        %v5607 = vpack.c.b16 %v4302, %v5591
        %v5608 = vpack.c.b16 %v4304, %v5592
        %v5609 = vpack.c.b16 %v4306, %v5593
        %v5610 = vpack.c.b16 %v4308, %v5594
        %v5611 = vpack.c.b16 %v4310, %v5595
        %v5612 = vpack.c.b16 %v4312, %v5596
        %v5613 = vpack.c.b16 %v4314, %v5597
        %v5614 = vpack.c.b16 %v4316, %v5598
        %v5615 = vpack.c.b16 %v4318, %v5599
        %v5616 = vpack.c.b16 %v4320, %v5600
        %v5617 = vrot.slane %v5601, 3
        %v5618 = vrot.slane %v5249, 3
        %v5619 = vsel %vm1663, %v5617, %v5618
        %v5620 = vrot.slane %v5602, 3
        %v5621 = vrot.slane %v5250, 3
        %v5622 = vsel %vm1663, %v5620, %v5621
        %v5623 = vrot.slane %v5603, 3
        %v5624 = vrot.slane %v5251, 3
        %v5625 = vsel %vm1663, %v5623, %v5624
        %v5626 = vrot.slane %v5604, 3
        %v5627 = vrot.slane %v5252, 3
        %v5628 = vsel %vm1663, %v5626, %v5627
        %v5629 = vrot.slane %v5605, 3
        %v5630 = vrot.slane %v5253, 3
        %v5631 = vsel %vm1663, %v5629, %v5630
        %v5632 = vrot.slane %v5606, 3
        %v5633 = vrot.slane %v5254, 3
        %v5634 = vsel %vm1663, %v5632, %v5633
        %v5635 = vrot.slane %v5607, 3
        %v5636 = vrot.slane %v5255, 3
        %v5637 = vsel %vm1663, %v5635, %v5636
        %v5638 = vrot.slane %v5608, 3
        %v5639 = vrot.slane %v5256, 3
        %v5640 = vsel %vm1663, %v5638, %v5639
        %v5641 = vrot.slane %v5609, 3
        %v5642 = vrot.slane %v5257, 3
        %v5643 = vsel %vm1663, %v5641, %v5642
        %v5644 = vrot.slane %v5610, 3
        %v5645 = vrot.slane %v5258, 3
        %v5646 = vsel %vm1663, %v5644, %v5645
        %v5647 = vrot.slane %v5611, 3
        %v5648 = vrot.slane %v5259, 3
        %v5649 = vsel %vm1663, %v5647, %v5648
        %v5650 = vrot.slane %v5612, 3
        %v5651 = vrot.slane %v5260, 3
        %v5652 = vsel %vm1663, %v5650, %v5651
        %v5653 = vrot.slane %v5613, 3
        %v5654 = vrot.slane %v5261, 3
        %v5655 = vsel %vm1663, %v5653, %v5654
        %v5656 = vrot.slane %v5614, 3
        %v5657 = vrot.slane %v5262, 3
        %v5658 = vsel %vm1663, %v5656, %v5657
        %v5659 = vrot.slane %v5615, 3
        %v5660 = vrot.slane %v5263, 3
        %v5661 = vsel %vm1663, %v5659, %v5660
        %v5662 = vrot.slane %v5616, 3
        %v5663 = vrot.slane %v5264, 3
        %v5664 = vsel %vm1663, %v5662, %v5663
        %5665 = vrot.lane.b32.xlu0 %v5619, 24
        %v5666 = vpop.permute.xlu0 %5665
        %5667 = vrot.lane.b32.xlu0 %v5622, 24
        %v5668 = vpop.permute.xlu0 %5667
        %5669 = vrot.lane.b32.xlu0 %v5625, 24
        %v5670 = vpop.permute.xlu0 %5669
        %5671 = vrot.lane.b32.xlu0 %v5628, 24
        %v5672 = vpop.permute.xlu0 %5671
        %5673 = vrot.lane.b32.xlu0 %v5631, 24
        %v5674 = vpop.permute.xlu0 %5673
        %5675 = vrot.lane.b32.xlu0 %v5634, 24
        %v5676 = vpop.permute.xlu0 %5675
        %5677 = vrot.lane.b32.xlu0 %v5637, 24
        %v5678 = vpop.permute.xlu0 %5677
        %5679 = vrot.lane.b32.xlu0 %v5640, 24
        %v5680 = vpop.permute.xlu0 %5679
        %5681 = vrot.lane.b32.xlu0 %v5643, 24
        %v5682 = vpop.permute.xlu0 %5681
        %5683 = vrot.lane.b32.xlu0 %v5646, 24
        %v5684 = vpop.permute.xlu0 %5683
        %5685 = vrot.lane.b32.xlu0 %v5649, 24
        %v5686 = vpop.permute.xlu0 %5685
        %5687 = vrot.lane.b32.xlu0 %v5652, 24
        %v5688 = vpop.permute.xlu0 %5687
        %5689 = vrot.lane.b32.xlu0 %v5655, 24
        %v5690 = vpop.permute.xlu0 %5689
        %5691 = vrot.lane.b32.xlu0 %v5658, 24
        %v5692 = vpop.permute.xlu0 %5691
        %5693 = vrot.lane.b32.xlu0 %v5661, 24
        %v5694 = vpop.permute.xlu0 %5693
        %5695 = vrot.lane.b32.xlu0 %v5664, 24
        %v5696 = vpop.permute.xlu0 %5695
        %v5698 = vsel %vm1744, %v4321, %v4578
        %v5700 = vsel %vm1744, %v4322, %v4580
        %v5702 = vsel %vm1744, %v4323, %v4582
        %v5704 = vsel %vm1744, %v4324, %v4584
        %v5706 = vsel %vm1744, %v4325, %v4586
        %v5708 = vsel %vm1744, %v4326, %v4588
        %v5710 = vsel %vm1744, %v4327, %v4590
        %v5712 = vsel %vm1744, %v4328, %v4592
        %v5714 = vsel %vm1744, %v4329, %v4594
        %v5716 = vsel %vm1744, %v4330, %v4596
        %v5718 = vsel %vm1744, %v4331, %v4598
        %v5720 = vsel %vm1744, %v4332, %v4600
        %v5722 = vsel %vm1744, %v4333, %v4602
        %v5724 = vsel %vm1744, %v4334, %v4604
        %v5726 = vsel %vm1744, %v4335, %v4606
        %v5728 = vsel %vm1744, %v4336, %v4608
        %v5730 = vsel %vm1777, %v5698, %v4706
        %v5732 = vsel %vm1777, %v5700, %v4708
        %v5734 = vsel %vm1777, %v5702, %v4710
        %v5736 = vsel %vm1777, %v5704, %v4712
        %v5738 = vsel %vm1777, %v5706, %v4714
        %v5740 = vsel %vm1777, %v5708, %v4716
        %v5742 = vsel %vm1777, %v5710, %v4718
        %v5744 = vsel %vm1777, %v5712, %v4720
        %v5746 = vsel %vm1777, %v5714, %v4722
        %v5748 = vsel %vm1777, %v5716, %v4724
        %v5750 = vsel %vm1777, %v5718, %v4726
        %v5752 = vsel %vm1777, %v5720, %v4728
        %v5754 = vsel %vm1777, %v5722, %v4730
        %v5756 = vsel %vm1777, %v5724, %v4732
        %v5758 = vsel %vm1777, %v5726, %v4734
        %v5760 = vsel %vm1777, %v5728, %v4736
        %v5762 = vsel %vm1810, %v5730, %v5058
        %v5764 = vsel %vm1810, %v5732, %v5060
        %v5766 = vsel %vm1810, %v5734, %v5062
        %v5768 = vsel %vm1810, %v5736, %v5064
        %v5770 = vsel %vm1810, %v5738, %v5066
        %v5772 = vsel %vm1810, %v5740, %v5068
        %v5774 = vsel %vm1810, %v5742, %v5070
        %v5776 = vsel %vm1810, %v5744, %v5072
        %v5778 = vsel %vm1810, %v5746, %v5074
        %v5780 = vsel %vm1810, %v5748, %v5076
        %v5782 = vsel %vm1810, %v5750, %v5078
        %v5784 = vsel %vm1810, %v5752, %v5080
        %v5786 = vsel %vm1810, %v5754, %v5082
        %v5788 = vsel %vm1810, %v5756, %v5084
        %v5790 = vsel %vm1810, %v5758, %v5086
        %v5792 = vsel %vm1810, %v5760, %v5088
        %v5794 = vsel %vm1843, %v5762, %v5186
        %v5796 = vsel %vm1843, %v5764, %v5188
        %v5798 = vsel %vm1843, %v5766, %v5190
        %v5800 = vsel %vm1843, %v5768, %v5192
        %v5802 = vsel %vm1843, %v5770, %v5194
        %v5804 = vsel %vm1843, %v5772, %v5196
        %v5806 = vsel %vm1843, %v5774, %v5198
        %v5808 = vsel %vm1843, %v5776, %v5200
        %v5810 = vsel %vm1843, %v5778, %v5202
        %v5812 = vsel %vm1843, %v5780, %v5204
        %v5814 = vsel %vm1843, %v5782, %v5206
        %v5816 = vsel %vm1843, %v5784, %v5208
        %v5818 = vsel %vm1843, %v5786, %v5210
        %v5820 = vsel %vm1843, %v5788, %v5212
        %v5822 = vsel %vm1843, %v5790, %v5214
        %v5824 = vsel %vm1843, %v5792, %v5216
        %v5826 = vsel %vm1876, %v5794, %v5538
        %v5828 = vsel %vm1876, %v5796, %v5540
        %v5830 = vsel %vm1876, %v5798, %v5542
        %v5832 = vsel %vm1876, %v5800, %v5544
        %v5834 = vsel %vm1876, %v5802, %v5546
        %v5836 = vsel %vm1876, %v5804, %v5548
        %v5838 = vsel %vm1876, %v5806, %v5550
        %v5840 = vsel %vm1876, %v5808, %v5552
        %v5842 = vsel %vm1876, %v5810, %v5554
        %v5844 = vsel %vm1876, %v5812, %v5556
        %v5846 = vsel %vm1876, %v5814, %v5558
        %v5848 = vsel %vm1876, %v5816, %v5560
        %v5850 = vsel %vm1876, %v5818, %v5562
        %v5852 = vsel %vm1876, %v5820, %v5564
        %v5854 = vsel %vm1876, %v5822, %v5566
        %v5856 = vsel %vm1876, %v5824, %v5568
        %v5858 = vsel %vm1909, %v5826, %v5666
        %v5860 = vsel %vm1909, %v5828, %v5668
        %v5862 = vsel %vm1909, %v5830, %v5670
        %v5864 = vsel %vm1909, %v5832, %v5672
        %v5866 = vsel %vm1909, %v5834, %v5674
        %v5868 = vsel %vm1909, %v5836, %v5676
        %v5870 = vsel %vm1909, %v5838, %v5678
        %v5872 = vsel %vm1909, %v5840, %v5680
        %v5874 = vsel %vm1909, %v5842, %v5682
        %v5876 = vsel %vm1909, %v5844, %v5684
        %v5878 = vsel %vm1909, %v5846, %v5686
        %v5880 = vsel %vm1909, %v5848, %v5688
        %v5882 = vsel %vm1909, %v5850, %v5690
        %v5884 = vsel %vm1909, %v5852, %v5692
        %v5886 = vsel %vm1909, %v5854, %v5694
        %v5888 = vsel %vm1909, %v5856, %v5696
        %s5889 = scalar_lea.vmem %s1, 32
        %v5890 = vld [vmem:[%s5889] sm:$0xf]
        %v5891 = vld [vmem:[%s5889 + $0x4] sm:$0xf]
        %v5892 = vld [vmem:[%s5889 + $0x8] sm:$0xf]
        %v5893 = vld [vmem:[%s5889 + $0xc] sm:$0x3]
        %v5898 = vunpack.c.l.b16 %v5890
        %v5899 = vunpack.c.l.b16 %v5891
        %v5900 = vunpack.c.l.b16 %v5892
        %v5901 = vunpack.c.l.b16 %v5893
        %v5902 = vpack.c.b16 %v5899, %v5898
        %v5903 = vpack.c.b16 %v5901, %v5900
        %v5905 = vsel %vm3723, %v5858, 0
        %v5907 = vsel %vm3723, %v5860, 0
        %v5909 = vsel %vm3723, %v5862, 0
        %v5911 = vsel %vm3723, %v5864, 0
        %v5913 = vsel %vm3723, %v5866, 0
        %v5915 = vsel %vm3723, %v5868, 0
        %v5917 = vsel %vm3723, %v5870, 0
        %v5919 = vsel %vm3723, %v5872, 0
        %v5921 = vsel %vm3723, %v5874, 0
        %v5923 = vsel %vm3723, %v5876, 0
        %v5925 = vsel %vm3723, %v5878, 0
        %v5927 = vsel %vm3723, %v5880, 0
        %v5929 = vsel %vm3723, %v5882, 0
        %v5931 = vsel %vm3723, %v5884, 0
        %v5933 = vsel %vm3723, %v5886, 0
        %v5935 = vsel %vm3723, %v5888, 0
        %v5938 = vsel %vm3756, %v5903, 0
        %5940 = vmatprep.subr.bf16.mxu0 0
        %5941 = vmatpush1.bf16.msra.mxu0 %v5902
        %5942 = vmatprep.subr.bf16.mxu0 0
        %5943 = vmatpush1.bf16.msra.mxu0 %v5938
        %5944 = vmatprep.subr.bf16.mxu0 0
        %5945 = vmatpush1.bf16.msra.mxu0 0
        %5946 = vmatprep.subr.bf16.mxu0 0
        %5947 = vmatpush1.bf16.msra.mxu0 0
        %5948 = vmatprep.subr.bf16.mxu0 0
        %5949 = vmatpush1.bf16.msra.mxu0 0
        %5950 = vmatprep.subr.bf16.mxu0 0
        %5951 = vmatpush1.bf16.msra.mxu0 0
        %5952 = vmatprep.subr.bf16.mxu0 0
        %5953 = vmatpush1.bf16.msra.mxu0 0
        %5954 = vmatprep.subr.bf16.mxu0 0
        %5955 = vmatpush1.bf16.msra.mxu0 0
        %5956 = vmatprep.subr.bf16.mxu0 0
        %5957 = vmatpush1.bf16.msra.mxu0 0
        %5958 = vmatprep.subr.bf16.mxu0 0
        %5959 = vmatpush1.bf16.msra.mxu0 0
        %5960 = vmatprep.subr.bf16.mxu0 0
        %5961 = vmatpush1.bf16.msra.mxu0 0
        %5962 = vmatprep.subr.bf16.mxu0 0
        %5963 = vmatpush1.bf16.msra.mxu0 0
        %5964 = vmatprep.subr.bf16.mxu0 0
        %5965 = vmatpush1.bf16.msra.mxu0 0
        %5966 = vmatprep.subr.bf16.mxu0 0
        %5967 = vmatpush1.bf16.msra.mxu0 0
        %5968 = vmatprep.subr.bf16.mxu0 0
        %5969 = vmatpush1.bf16.msra.mxu0 0
        %5970 = vmatprep.subr.bf16.mxu0 0
        %5971 = vmatpush1.bf16.msra.mxu0 0
        %5972 = vmatprep.mubr.bf16.mxu0 0
        %5973 = vmatmul.mubr.bf16.gmra.mrb[0].mxu0 %v5905
        %v5974 = vpop.f32.mrb[0].mxu0
        %v5975 = vadd.f32 0.0, %v5974
        %v5976 = vpop.f32.mrb[0].mxu0
        %v5977 = vpop.f32.mrb[0].mxu0
        %v5978 = vadd.f32 0.0, %v5977
        %v5979 = vpop.f32.mrb[0].mxu0
        %5980 = vmatprep.mubr.bf16.mxu0 0
        %5981 = vmatmul.mubr.bf16.gmra.mrb[0].mxu0 %v5907
        %v5982 = vpop.f32.mrb[0].mxu0
        %v5983 = vadd.f32 0.0, %v5982
        %v5984 = vpop.f32.mrb[0].mxu0
        %v5985 = vpop.f32.mrb[0].mxu0
        %v5986 = vadd.f32 0.0, %v5985
        %v5987 = vpop.f32.mrb[0].mxu0
        %5988 = vmatprep.mubr.bf16.mxu0 0
        %5989 = vmatmul.mubr.bf16.gmra.mrb[0].mxu0 %v5909
        %v5990 = vpop.f32.mrb[0].mxu0
        %v5991 = vadd.f32 0.0, %v5990
        %v5992 = vpop.f32.mrb[0].mxu0
        %v5993 = vpop.f32.mrb[0].mxu0
        %v5994 = vadd.f32 0.0, %v5993
        %v5995 = vpop.f32.mrb[0].mxu0
        %5996 = vmatprep.mubr.bf16.mxu0 0
        %5997 = vmatmul.mubr.bf16.gmra.mrb[0].mxu0 %v5911
        %v5998 = vpop.f32.mrb[0].mxu0
        %v5999 = vadd.f32 0.0, %v5998
        %v6000 = vpop.f32.mrb[0].mxu0
        %v6001 = vpop.f32.mrb[0].mxu0
        %v6002 = vadd.f32 0.0, %v6001
        %v6003 = vpop.f32.mrb[0].mxu0
        %6004 = vmatprep.mubr.bf16.mxu0 0
        %6005 = vmatmul.mubr.bf16.gmra.mrb[0].mxu0 %v5913
        %v6006 = vpop.f32.mrb[0].mxu0
        %v6007 = vadd.f32 0.0, %v6006
        %v6008 = vpop.f32.mrb[0].mxu0
        %v6009 = vpop.f32.mrb[0].mxu0
        %v6010 = vadd.f32 0.0, %v6009
        %v6011 = vpop.f32.mrb[0].mxu0
        %6012 = vmatprep.mubr.bf16.mxu0 0
        %6013 = vmatmul.mubr.bf16.gmra.mrb[0].mxu0 %v5915
        %v6014 = vpop.f32.mrb[0].mxu0
        %v6015 = vadd.f32 0.0, %v6014
        %v6016 = vpop.f32.mrb[0].mxu0
        %v6017 = vpop.f32.mrb[0].mxu0
        %v6018 = vadd.f32 0.0, %v6017
        %v6019 = vpop.f32.mrb[0].mxu0
        %6020 = vmatprep.mubr.bf16.mxu0 0
        %6021 = vmatmul.mubr.bf16.gmra.mrb[0].mxu0 %v5917
        %v6022 = vpop.f32.mrb[0].mxu0
        %v6023 = vadd.f32 0.0, %v6022
        %v6024 = vpop.f32.mrb[0].mxu0
        %v6025 = vpop.f32.mrb[0].mxu0
        %v6026 = vadd.f32 0.0, %v6025
        %v6027 = vpop.f32.mrb[0].mxu0
        %6028 = vmatprep.mubr.bf16.mxu0 0
        %6029 = vmatmul.mubr.bf16.gmra.mrb[0].mxu0 %v5919
        %v6030 = vpop.f32.mrb[0].mxu0
        %v6031 = vadd.f32 0.0, %v6030
        %v6032 = vpop.f32.mrb[0].mxu0
        %v6033 = vpop.f32.mrb[0].mxu0
        %v6034 = vadd.f32 0.0, %v6033
        %v6035 = vpop.f32.mrb[0].mxu0
        %6036 = vmatprep.mubr.bf16.mxu0 0
        %6037 = vmatmul.mubr.bf16.gmra.mrb[0].mxu0 %v5921
        %v6038 = vpop.f32.mrb[0].mxu0
        %v6039 = vadd.f32 0.0, %v6038
        %v6040 = vpop.f32.mrb[0].mxu0
        %v6041 = vpop.f32.mrb[0].mxu0
        %v6042 = vadd.f32 0.0, %v6041
        %v6043 = vpop.f32.mrb[0].mxu0
        %6044 = vmatprep.mubr.bf16.mxu0 0
        %6045 = vmatmul.mubr.bf16.gmra.mrb[0].mxu0 %v5923
        %v6046 = vpop.f32.mrb[0].mxu0
        %v6047 = vadd.f32 0.0, %v6046
        %v6048 = vpop.f32.mrb[0].mxu0
        %v6049 = vpop.f32.mrb[0].mxu0
        %v6050 = vadd.f32 0.0, %v6049
        %v6051 = vpop.f32.mrb[0].mxu0
        %6052 = vmatprep.mubr.bf16.mxu0 0
        %6053 = vmatmul.mubr.bf16.gmra.mrb[0].mxu0 %v5925
        %v6054 = vpop.f32.mrb[0].mxu0
        %v6055 = vadd.f32 0.0, %v6054
        %v6056 = vpop.f32.mrb[0].mxu0
        %v6057 = vpop.f32.mrb[0].mxu0
        %v6058 = vadd.f32 0.0, %v6057
        %v6059 = vpop.f32.mrb[0].mxu0
        %6060 = vmatprep.mubr.bf16.mxu0 0
        %6061 = vmatmul.mubr.bf16.gmra.mrb[0].mxu0 %v5927
        %v6062 = vpop.f32.mrb[0].mxu0
        %v6063 = vadd.f32 0.0, %v6062
        %v6064 = vpop.f32.mrb[0].mxu0
        %v6065 = vpop.f32.mrb[0].mxu0
        %v6066 = vadd.f32 0.0, %v6065
        %v6067 = vpop.f32.mrb[0].mxu0
        %6068 = vmatprep.mubr.bf16.mxu0 0
        %6069 = vmatmul.mubr.bf16.gmra.mrb[0].mxu0 %v5929
        %v6070 = vpop.f32.mrb[0].mxu0
        %v6071 = vadd.f32 0.0, %v6070
        %v6072 = vpop.f32.mrb[0].mxu0
        %v6073 = vpop.f32.mrb[0].mxu0
        %v6074 = vadd.f32 0.0, %v6073
        %v6075 = vpop.f32.mrb[0].mxu0
        %6076 = vmatprep.mubr.bf16.mxu0 0
        %6077 = vmatmul.mubr.bf16.gmra.mrb[0].mxu0 %v5931
        %v6078 = vpop.f32.mrb[0].mxu0
        %v6079 = vadd.f32 0.0, %v6078
        %v6080 = vpop.f32.mrb[0].mxu0
        %v6081 = vpop.f32.mrb[0].mxu0
        %v6082 = vadd.f32 0.0, %v6081
        %v6083 = vpop.f32.mrb[0].mxu0
        %6084 = vmatprep.mubr.bf16.mxu0 0
        %6085 = vmatmul.mubr.bf16.gmra.mrb[0].mxu0 %v5933
        %v6086 = vpop.f32.mrb[0].mxu0
        %v6087 = vadd.f32 0.0, %v6086
        %v6088 = vpop.f32.mrb[0].mxu0
        %v6089 = vpop.f32.mrb[0].mxu0
        %v6090 = vadd.f32 0.0, %v6089
        %v6091 = vpop.f32.mrb[0].mxu0
        %6092 = vmatprep.mubr.bf16.mxu0 0
        %6093 = vmatmul.mubr.bf16.gmra.mrb[0].mxu0 %v5935
        %v6094 = vpop.f32.mrb[0].mxu0
        %v6095 = vadd.f32 0.0, %v6094
        %v6096 = vpop.f32.mrb[0].mxu0
        %v6097 = vpop.f32.mrb[0].mxu0
        %v6098 = vadd.f32 0.0, %v6097
        %v6099 = vpop.f32.mrb[0].mxu0
        %6100 = vdwg.mxu0
        %v6101 = vadd.f32 %v4002, %v5975
        %v6102 = vadd.f32 %v4005, %v5978
        %v6103 = vadd.f32 %v4010, %v5983
        %v6104 = vadd.f32 %v4013, %v5986
        %v6105 = vadd.f32 %v4018, %v5991
        %v6106 = vadd.f32 %v4021, %v5994
        %v6107 = vadd.f32 %v4026, %v5999
        %v6108 = vadd.f32 %v4029, %v6002
        %v6109 = vadd.f32 %v4034, %v6007
        %v6110 = vadd.f32 %v4037, %v6010
        %v6111 = vadd.f32 %v4042, %v6015
        %v6112 = vadd.f32 %v4045, %v6018
        %v6113 = vadd.f32 %v4050, %v6023
        %v6114 = vadd.f32 %v4053, %v6026
        %v6115 = vadd.f32 %v4058, %v6031
        %v6116 = vadd.f32 %v4061, %v6034
        %v6117 = vadd.f32 %v4066, %v6039
        %v6118 = vadd.f32 %v4069, %v6042
        %v6119 = vadd.f32 %v4074, %v6047
        %v6120 = vadd.f32 %v4077, %v6050
        %v6121 = vadd.f32 %v4082, %v6055
        %v6122 = vadd.f32 %v4085, %v6058
        %v6123 = vadd.f32 %v4090, %v6063
        %v6124 = vadd.f32 %v4093, %v6066
        %v6125 = vadd.f32 %v4098, %v6071
        %v6126 = vadd.f32 %v4101, %v6074
        %v6127 = vadd.f32 %v4106, %v6079
        %v6128 = vadd.f32 %v4109, %v6082
        %v6129 = vadd.f32 %v4114, %v6087
        %v6130 = vadd.f32 %v4117, %v6090
        %v6131 = vadd.f32 %v4122, %v6095
        %v6132 = vadd.f32 %v4125, %v6098
        %s6133 = scalar_lea.vmem %s168, 36
        %v6134 = vld [vmem:[%s6133] sm:$0xf]
        %v6135 = vld [vmem:[%s6133 + $0x4] sm:$0xf]
        %v6136 = vld [vmem:[%s6133 + $0xc] sm:$0xf]
        %v6137 = vld [vmem:[%s6133 + $0x10] sm:$0xf]
        %v6138 = vld [vmem:[%s6133 + $0x18] sm:$0xf]
        %v6139 = vld [vmem:[%s6133 + $0x1c] sm:$0xf]
        %v6140 = vld [vmem:[%s6133 + $0x24] sm:$0xf]
        %v6141 = vld [vmem:[%s6133 + $0x28] sm:$0xf]
        %v6142 = vld [vmem:[%s6133 + $0x30] sm:$0xf]
        %v6143 = vld [vmem:[%s6133 + $0x34] sm:$0xf]
        %v6144 = vld [vmem:[%s6133 + $0x3c] sm:$0xf]
        %v6145 = vld [vmem:[%s6133 + $0x40] sm:$0xf]
        %v6146 = vld [vmem:[%s6133 + $0x48] sm:$0xf]
        %v6147 = vld [vmem:[%s6133 + $0x4c] sm:$0xf]
        %v6148 = vld [vmem:[%s6133 + $0x54] sm:$0xf]
        %v6149 = vld [vmem:[%s6133 + $0x58] sm:$0xf]
        %v6150 = vld [vmem:[%s6133 + $0x60] sm:$0xf]
        %v6151 = vld [vmem:[%s6133 + $0x64] sm:$0xf]
        %v6152 = vld [vmem:[%s6133 + $0x6c] sm:$0xf]
        %v6153 = vld [vmem:[%s6133 + $0x70] sm:$0xf]
        %v6154 = vld [vmem:[%s6133 + $0x78] sm:$0xf]
        %v6155 = vld [vmem:[%s6133 + $0x7c] sm:$0xf]
        %v6156 = vld [vmem:[%s6133 + $0x84] sm:$0xf]
        %v6157 = vld [vmem:[%s6133 + $0x88] sm:$0xf]
        %v6158 = vld [vmem:[%s6133 + $0x90] sm:$0xf]
        %v6159 = vld [vmem:[%s6133 + $0x94] sm:$0xf]
        %v6160 = vld [vmem:[%s6133 + $0x9c] sm:$0xf]
        %v6161 = vld [vmem:[%s6133 + $0xa0] sm:$0xf]
        %v6162 = vld [vmem:[%s6133 + $0xa8] sm:$0xf]
        %v6163 = vld [vmem:[%s6133 + $0xac] sm:$0xf]
        %v6164 = vld [vmem:[%s6133 + $0xb4] sm:$0xf]
        %v6165 = vld [vmem:[%s6133 + $0xb8] sm:$0xf]
        %v6166 = vld [vmem:[%s6133 + $0x8] sm:$0x1]
        %v6167 = vld [vmem:[%s6133 + $0x14] sm:$0x1]
        %v6168 = vld [vmem:[%s6133 + $0x20] sm:$0x1]
        %v6169 = vld [vmem:[%s6133 + $0x2c] sm:$0x1]
        %v6170 = vld [vmem:[%s6133 + $0x38] sm:$0x1]
        %v6171 = vld [vmem:[%s6133 + $0x44] sm:$0x1]
        %v6172 = vld [vmem:[%s6133 + $0x50] sm:$0x1]
        %v6173 = vld [vmem:[%s6133 + $0x5c] sm:$0x1]
        %v6174 = vld [vmem:[%s6133 + $0x68] sm:$0x1]
        %v6175 = vld [vmem:[%s6133 + $0x74] sm:$0x1]
        %v6176 = vld [vmem:[%s6133 + $0x80] sm:$0x1]
        %v6177 = vld [vmem:[%s6133 + $0x8c] sm:$0x1]
        %v6178 = vld [vmem:[%s6133 + $0x98] sm:$0x1]
        %v6179 = vld [vmem:[%s6133 + $0xa4] sm:$0x1]
        %v6180 = vld [vmem:[%s6133 + $0xb0] sm:$0x1]
        %v6181 = vld [vmem:[%s6133 + $0xbc] sm:$0x1]
        %v6182 = vld [vmem:[%s6133] sm:$0xe]
        %v6183 = vld [vmem:[%s6133 + $0xc] sm:$0xe]
        %v6184 = vld [vmem:[%s6133 + $0x18] sm:$0xe]
        %v6185 = vld [vmem:[%s6133 + $0x24] sm:$0xe]
        %v6186 = vld [vmem:[%s6133 + $0x30] sm:$0xe]
        %v6187 = vld [vmem:[%s6133 + $0x3c] sm:$0xe]
        %v6188 = vld [vmem:[%s6133 + $0x48] sm:$0xe]
        %v6189 = vld [vmem:[%s6133 + $0x54] sm:$0xe]
        %v6190 = vld [vmem:[%s6133 + $0x60] sm:$0xe]
        %v6191 = vld [vmem:[%s6133 + $0x6c] sm:$0xe]
        %v6192 = vld [vmem:[%s6133 + $0x78] sm:$0xe]
        %v6193 = vld [vmem:[%s6133 + $0x84] sm:$0xe]
        %v6194 = vld [vmem:[%s6133 + $0x90] sm:$0xe]
        %v6195 = vld [vmem:[%s6133 + $0x9c] sm:$0xe]
        %v6196 = vld [vmem:[%s6133 + $0xa8] sm:$0xe]
        %v6197 = vld [vmem:[%s6133 + $0xb4] sm:$0xe]
        %v6198 = vld [vmem:[%s6133 + $0x8] sm:$0x3]
        %v6199 = vld [vmem:[%s6133 + $0x14] sm:$0x3]
        %v6200 = vld [vmem:[%s6133 + $0x20] sm:$0x3]
        %v6201 = vld [vmem:[%s6133 + $0x2c] sm:$0x3]
        %v6202 = vld [vmem:[%s6133 + $0x38] sm:$0x3]
        %v6203 = vld [vmem:[%s6133 + $0x44] sm:$0x3]
        %v6204 = vld [vmem:[%s6133 + $0x50] sm:$0x3]
        %v6205 = vld [vmem:[%s6133 + $0x5c] sm:$0x3]
        %v6206 = vld [vmem:[%s6133 + $0x68] sm:$0x3]
        %v6207 = vld [vmem:[%s6133 + $0x74] sm:$0x3]
        %v6208 = vld [vmem:[%s6133 + $0x80] sm:$0x3]
        %v6209 = vld [vmem:[%s6133 + $0x8c] sm:$0x3]
        %v6210 = vld [vmem:[%s6133 + $0x98] sm:$0x3]
        %v6211 = vld [vmem:[%s6133 + $0xa4] sm:$0x3]
        %v6212 = vld [vmem:[%s6133 + $0xb0] sm:$0x3]
        %v6213 = vld [vmem:[%s6133 + $0xbc] sm:$0x3]
        %v6214 = vld [vmem:[%s6133] sm:$0xc]
        %v6215 = vld [vmem:[%s6133 + $0xc] sm:$0xc]
        %v6216 = vld [vmem:[%s6133 + $0x18] sm:$0xc]
        %v6217 = vld [vmem:[%s6133 + $0x24] sm:$0xc]
        %v6218 = vld [vmem:[%s6133 + $0x30] sm:$0xc]
        %v6219 = vld [vmem:[%s6133 + $0x3c] sm:$0xc]
        %v6220 = vld [vmem:[%s6133 + $0x48] sm:$0xc]
        %v6221 = vld [vmem:[%s6133 + $0x54] sm:$0xc]
        %v6222 = vld [vmem:[%s6133 + $0x60] sm:$0xc]
        %v6223 = vld [vmem:[%s6133 + $0x6c] sm:$0xc]
        %v6224 = vld [vmem:[%s6133 + $0x78] sm:$0xc]
        %v6225 = vld [vmem:[%s6133 + $0x84] sm:$0xc]
        %v6226 = vld [vmem:[%s6133 + $0x90] sm:$0xc]
        %v6227 = vld [vmem:[%s6133 + $0x9c] sm:$0xc]
        %v6228 = vld [vmem:[%s6133 + $0xa8] sm:$0xc]
        %v6229 = vld [vmem:[%s6133 + $0xb4] sm:$0xc]
        %v6230 = vld [vmem:[%s6133 + $0x8] sm:$0x7]
        %v6231 = vld [vmem:[%s6133 + $0x14] sm:$0x7]
        %v6232 = vld [vmem:[%s6133 + $0x20] sm:$0x7]
        %v6233 = vld [vmem:[%s6133 + $0x2c] sm:$0x7]
        %v6234 = vld [vmem:[%s6133 + $0x38] sm:$0x7]
        %v6235 = vld [vmem:[%s6133 + $0x44] sm:$0x7]
        %v6236 = vld [vmem:[%s6133 + $0x50] sm:$0x7]
        %v6237 = vld [vmem:[%s6133 + $0x5c] sm:$0x7]
        %v6238 = vld [vmem:[%s6133 + $0x68] sm:$0x7]
        %v6239 = vld [vmem:[%s6133 + $0x74] sm:$0x7]
        %v6240 = vld [vmem:[%s6133 + $0x80] sm:$0x7]
        %v6241 = vld [vmem:[%s6133 + $0x8c] sm:$0x7]
        %v6242 = vld [vmem:[%s6133 + $0x98] sm:$0x7]
        %v6243 = vld [vmem:[%s6133 + $0xa4] sm:$0x7]
        %v6244 = vld [vmem:[%s6133 + $0xb0] sm:$0x7]
        %v6245 = vld [vmem:[%s6133 + $0xbc] sm:$0x7]
        %v6246 = vld [vmem:[%s6133] sm:$0x8]
        %v6247 = vld [vmem:[%s6133 + $0xc] sm:$0x8]
        %v6248 = vld [vmem:[%s6133 + $0x18] sm:$0x8]
        %v6249 = vld [vmem:[%s6133 + $0x24] sm:$0x8]
        %v6250 = vld [vmem:[%s6133 + $0x30] sm:$0x8]
        %v6251 = vld [vmem:[%s6133 + $0x3c] sm:$0x8]
        %v6252 = vld [vmem:[%s6133 + $0x48] sm:$0x8]
        %v6253 = vld [vmem:[%s6133 + $0x54] sm:$0x8]
        %v6254 = vld [vmem:[%s6133 + $0x60] sm:$0x8]
        %v6255 = vld [vmem:[%s6133 + $0x6c] sm:$0x8]
        %v6256 = vld [vmem:[%s6133 + $0x78] sm:$0x8]
        %v6257 = vld [vmem:[%s6133 + $0x84] sm:$0x8]
        %v6258 = vld [vmem:[%s6133 + $0x90] sm:$0x8]
        %v6259 = vld [vmem:[%s6133 + $0x9c] sm:$0x8]
        %v6260 = vld [vmem:[%s6133 + $0xa8] sm:$0x8]
        %v6261 = vld [vmem:[%s6133 + $0xb4] sm:$0x8]
        %v6294 = vunpack.c.l.b16 %v6134
        %v6295 = vunpack.c.l.b16 %v6135
        %v6296 = vunpack.c.l.b16 %v6136
        %v6297 = vunpack.c.l.b16 %v6137
        %v6298 = vunpack.c.l.b16 %v6138
        %v6299 = vunpack.c.l.b16 %v6139
        %v6300 = vunpack.c.l.b16 %v6140
        %v6301 = vunpack.c.l.b16 %v6141
        %v6302 = vunpack.c.l.b16 %v6142
        %v6303 = vunpack.c.l.b16 %v6143
        %v6304 = vunpack.c.l.b16 %v6144
        %v6305 = vunpack.c.l.b16 %v6145
        %v6306 = vunpack.c.l.b16 %v6146
        %v6307 = vunpack.c.l.b16 %v6147
        %v6308 = vunpack.c.l.b16 %v6148
        %v6309 = vunpack.c.l.b16 %v6149
        %v6310 = vunpack.c.l.b16 %v6150
        %v6311 = vunpack.c.l.b16 %v6151
        %v6312 = vunpack.c.l.b16 %v6152
        %v6313 = vunpack.c.l.b16 %v6153
        %v6314 = vunpack.c.l.b16 %v6154
        %v6315 = vunpack.c.l.b16 %v6155
        %v6316 = vunpack.c.l.b16 %v6156
        %v6317 = vunpack.c.l.b16 %v6157
        %v6318 = vunpack.c.l.b16 %v6158
        %v6319 = vunpack.c.l.b16 %v6159
        %v6320 = vunpack.c.l.b16 %v6160
        %v6321 = vunpack.c.l.b16 %v6161
        %v6322 = vunpack.c.l.b16 %v6162
        %v6323 = vunpack.c.l.b16 %v6163
        %v6324 = vunpack.c.l.b16 %v6164
        %v6325 = vunpack.c.l.b16 %v6165
        %v6326 = vpack.c.b16 %v6295, %v6294
        %v6327 = vpack.c.b16 %v6297, %v6296
        %v6328 = vpack.c.b16 %v6299, %v6298
        %v6329 = vpack.c.b16 %v6301, %v6300
        %v6330 = vpack.c.b16 %v6303, %v6302
        %v6331 = vpack.c.b16 %v6305, %v6304
        %v6332 = vpack.c.b16 %v6307, %v6306
        %v6333 = vpack.c.b16 %v6309, %v6308
        %v6334 = vpack.c.b16 %v6311, %v6310
        %v6335 = vpack.c.b16 %v6313, %v6312
        %v6336 = vpack.c.b16 %v6315, %v6314
        %v6337 = vpack.c.b16 %v6317, %v6316
        %v6338 = vpack.c.b16 %v6319, %v6318
        %v6339 = vpack.c.b16 %v6321, %v6320
        %v6340 = vpack.c.b16 %v6323, %v6322
        %v6341 = vpack.c.b16 %v6325, %v6324
        %v6358 = vunpack.c.l.b16 %v6166
        %v6359 = vunpack.c.l.b16 %v6167
        %v6360 = vunpack.c.l.b16 %v6168
        %v6361 = vunpack.c.l.b16 %v6169
        %v6362 = vunpack.c.l.b16 %v6170
        %v6363 = vunpack.c.l.b16 %v6171
        %v6364 = vunpack.c.l.b16 %v6172
        %v6365 = vunpack.c.l.b16 %v6173
        %v6366 = vunpack.c.l.b16 %v6174
        %v6367 = vunpack.c.l.b16 %v6175
        %v6368 = vunpack.c.l.b16 %v6176
        %v6369 = vunpack.c.l.b16 %v6177
        %v6370 = vunpack.c.l.b16 %v6178
        %v6371 = vunpack.c.l.b16 %v6179
        %v6372 = vunpack.c.l.b16 %v6180
        %v6373 = vunpack.c.l.b16 %v6181
        %v6374 = vpack.c.b16 %v6358, %v6358
        %v6375 = vpack.c.b16 %v6359, %v6359
        %v6376 = vpack.c.b16 %v6360, %v6360
        %v6377 = vpack.c.b16 %v6361, %v6361
        %v6378 = vpack.c.b16 %v6362, %v6362
        %v6379 = vpack.c.b16 %v6363, %v6363
        %v6380 = vpack.c.b16 %v6364, %v6364
        %v6381 = vpack.c.b16 %v6365, %v6365
        %v6382 = vpack.c.b16 %v6366, %v6366
        %v6383 = vpack.c.b16 %v6367, %v6367
        %v6384 = vpack.c.b16 %v6368, %v6368
        %v6385 = vpack.c.b16 %v6369, %v6369
        %v6386 = vpack.c.b16 %v6370, %v6370
        %v6387 = vpack.c.b16 %v6371, %v6371
        %v6388 = vpack.c.b16 %v6372, %v6372
        %v6389 = vpack.c.b16 %v6373, %v6373
        %v6391 = vshrl.u32 %v6326, 16
        %v6393 = vshll.u32 %v6326, 16
        %v6395 = vrot.slane %v6393, 1
        %v6396 = vor.u32 %v6391, %v6395
        %v6398 = vshll.u32 %v6374, 16
        %v6400 = vrot.slane %v6398, 1
        %v6401 = vsel %vm426, %v6396, %v6400
        %v6403 = vshrl.u32 %v6327, 16
        %v6405 = vshll.u32 %v6327, 16
        %v6407 = vrot.slane %v6405, 1
        %v6408 = vor.u32 %v6403, %v6407
        %v6410 = vshll.u32 %v6375, 16
        %v6412 = vrot.slane %v6410, 1
        %v6413 = vsel %vm426, %v6408, %v6412
        %v6415 = vshrl.u32 %v6328, 16
        %v6417 = vshll.u32 %v6328, 16
        %v6419 = vrot.slane %v6417, 1
        %v6420 = vor.u32 %v6415, %v6419
        %v6422 = vshll.u32 %v6376, 16
        %v6424 = vrot.slane %v6422, 1
        %v6425 = vsel %vm426, %v6420, %v6424
        %v6427 = vshrl.u32 %v6329, 16
        %v6429 = vshll.u32 %v6329, 16
        %v6431 = vrot.slane %v6429, 1
        %v6432 = vor.u32 %v6427, %v6431
        %v6434 = vshll.u32 %v6377, 16
        %v6436 = vrot.slane %v6434, 1
        %v6437 = vsel %vm426, %v6432, %v6436
        %v6439 = vshrl.u32 %v6330, 16
        %v6441 = vshll.u32 %v6330, 16
        %v6443 = vrot.slane %v6441, 1
        %v6444 = vor.u32 %v6439, %v6443
        %v6446 = vshll.u32 %v6378, 16
        %v6448 = vrot.slane %v6446, 1
        %v6449 = vsel %vm426, %v6444, %v6448
        %v6451 = vshrl.u32 %v6331, 16
        %v6453 = vshll.u32 %v6331, 16
        %v6455 = vrot.slane %v6453, 1
        %v6456 = vor.u32 %v6451, %v6455
        %v6458 = vshll.u32 %v6379, 16
        %v6460 = vrot.slane %v6458, 1
        %v6461 = vsel %vm426, %v6456, %v6460
        %v6463 = vshrl.u32 %v6332, 16
        %v6465 = vshll.u32 %v6332, 16
        %v6467 = vrot.slane %v6465, 1
        %v6468 = vor.u32 %v6463, %v6467
        %v6470 = vshll.u32 %v6380, 16
        %v6472 = vrot.slane %v6470, 1
        %v6473 = vsel %vm426, %v6468, %v6472
        %v6475 = vshrl.u32 %v6333, 16
        %v6477 = vshll.u32 %v6333, 16
        %v6479 = vrot.slane %v6477, 1
        %v6480 = vor.u32 %v6475, %v6479
        %v6482 = vshll.u32 %v6381, 16
        %v6484 = vrot.slane %v6482, 1
        %v6485 = vsel %vm426, %v6480, %v6484
        %v6487 = vshrl.u32 %v6334, 16
        %v6489 = vshll.u32 %v6334, 16
        %v6491 = vrot.slane %v6489, 1
        %v6492 = vor.u32 %v6487, %v6491
        %v6494 = vshll.u32 %v6382, 16
        %v6496 = vrot.slane %v6494, 1
        %v6497 = vsel %vm426, %v6492, %v6496
        %v6499 = vshrl.u32 %v6335, 16
        %v6501 = vshll.u32 %v6335, 16
        %v6503 = vrot.slane %v6501, 1
        %v6504 = vor.u32 %v6499, %v6503
        %v6506 = vshll.u32 %v6383, 16
        %v6508 = vrot.slane %v6506, 1
        %v6509 = vsel %vm426, %v6504, %v6508
        %v6511 = vshrl.u32 %v6336, 16
        %v6513 = vshll.u32 %v6336, 16
        %v6515 = vrot.slane %v6513, 1
        %v6516 = vor.u32 %v6511, %v6515
        %v6518 = vshll.u32 %v6384, 16
        %v6520 = vrot.slane %v6518, 1
        %v6521 = vsel %vm426, %v6516, %v6520
        %v6523 = vshrl.u32 %v6337, 16
        %v6525 = vshll.u32 %v6337, 16
        %v6527 = vrot.slane %v6525, 1
        %v6528 = vor.u32 %v6523, %v6527
        %v6530 = vshll.u32 %v6385, 16
        %v6532 = vrot.slane %v6530, 1
        %v6533 = vsel %vm426, %v6528, %v6532
        %v6535 = vshrl.u32 %v6338, 16
        %v6537 = vshll.u32 %v6338, 16
        %v6539 = vrot.slane %v6537, 1
        %v6540 = vor.u32 %v6535, %v6539
        %v6542 = vshll.u32 %v6386, 16
        %v6544 = vrot.slane %v6542, 1
        %v6545 = vsel %vm426, %v6540, %v6544
        %v6547 = vshrl.u32 %v6339, 16
        %v6549 = vshll.u32 %v6339, 16
        %v6551 = vrot.slane %v6549, 1
        %v6552 = vor.u32 %v6547, %v6551
        %v6554 = vshll.u32 %v6387, 16
        %v6556 = vrot.slane %v6554, 1
        %v6557 = vsel %vm426, %v6552, %v6556
        %v6559 = vshrl.u32 %v6340, 16
        %v6561 = vshll.u32 %v6340, 16
        %v6563 = vrot.slane %v6561, 1
        %v6564 = vor.u32 %v6559, %v6563
        %v6566 = vshll.u32 %v6388, 16
        %v6568 = vrot.slane %v6566, 1
        %v6569 = vsel %vm426, %v6564, %v6568
        %v6571 = vshrl.u32 %v6341, 16
        %v6573 = vshll.u32 %v6341, 16
        %v6575 = vrot.slane %v6573, 1
        %v6576 = vor.u32 %v6571, %v6575
        %v6578 = vshll.u32 %v6389, 16
        %v6580 = vrot.slane %v6578, 1
        %v6581 = vsel %vm426, %v6576, %v6580
        %6582 = vrot.lane.b32.xlu0 %v6401, 4
        %v6583 = vpop.permute.xlu0 %6582
        %6584 = vrot.lane.b32.xlu0 %v6413, 4
        %v6585 = vpop.permute.xlu0 %6584
        %6586 = vrot.lane.b32.xlu0 %v6425, 4
        %v6587 = vpop.permute.xlu0 %6586
        %6588 = vrot.lane.b32.xlu0 %v6437, 4
        %v6589 = vpop.permute.xlu0 %6588
        %6590 = vrot.lane.b32.xlu0 %v6449, 4
        %v6591 = vpop.permute.xlu0 %6590
        %6592 = vrot.lane.b32.xlu0 %v6461, 4
        %v6593 = vpop.permute.xlu0 %6592
        %6594 = vrot.lane.b32.xlu0 %v6473, 4
        %v6595 = vpop.permute.xlu0 %6594
        %6596 = vrot.lane.b32.xlu0 %v6485, 4
        %v6597 = vpop.permute.xlu0 %6596
        %6598 = vrot.lane.b32.xlu0 %v6497, 4
        %v6599 = vpop.permute.xlu0 %6598
        %6600 = vrot.lane.b32.xlu0 %v6509, 4
        %v6601 = vpop.permute.xlu0 %6600
        %6602 = vrot.lane.b32.xlu0 %v6521, 4
        %v6603 = vpop.permute.xlu0 %6602
        %6604 = vrot.lane.b32.xlu0 %v6533, 4
        %v6605 = vpop.permute.xlu0 %6604
        %6606 = vrot.lane.b32.xlu0 %v6545, 4
        %v6607 = vpop.permute.xlu0 %6606
        %6608 = vrot.lane.b32.xlu0 %v6557, 4
        %v6609 = vpop.permute.xlu0 %6608
        %6610 = vrot.lane.b32.xlu0 %v6569, 4
        %v6611 = vpop.permute.xlu0 %6610
        %6612 = vrot.lane.b32.xlu0 %v6581, 4
        %v6613 = vpop.permute.xlu0 %6612
        %v6630 = vunpack.c.l.b16 %v6182
        %v6631 = vunpack.c.l.b16 %v6183
        %v6632 = vunpack.c.l.b16 %v6184
        %v6633 = vunpack.c.l.b16 %v6185
        %v6634 = vunpack.c.l.b16 %v6186
        %v6635 = vunpack.c.l.b16 %v6187
        %v6636 = vunpack.c.l.b16 %v6188
        %v6637 = vunpack.c.l.b16 %v6189
        %v6638 = vunpack.c.l.b16 %v6190
        %v6639 = vunpack.c.l.b16 %v6191
        %v6640 = vunpack.c.l.b16 %v6192
        %v6641 = vunpack.c.l.b16 %v6193
        %v6642 = vunpack.c.l.b16 %v6194
        %v6643 = vunpack.c.l.b16 %v6195
        %v6644 = vunpack.c.l.b16 %v6196
        %v6645 = vunpack.c.l.b16 %v6197
        %v6646 = vpack.c.b16 %v6295, %v6630
        %v6647 = vpack.c.b16 %v6297, %v6631
        %v6648 = vpack.c.b16 %v6299, %v6632
        %v6649 = vpack.c.b16 %v6301, %v6633
        %v6650 = vpack.c.b16 %v6303, %v6634
        %v6651 = vpack.c.b16 %v6305, %v6635
        %v6652 = vpack.c.b16 %v6307, %v6636
        %v6653 = vpack.c.b16 %v6309, %v6637
        %v6654 = vpack.c.b16 %v6311, %v6638
        %v6655 = vpack.c.b16 %v6313, %v6639
        %v6656 = vpack.c.b16 %v6315, %v6640
        %v6657 = vpack.c.b16 %v6317, %v6641
        %v6658 = vpack.c.b16 %v6319, %v6642
        %v6659 = vpack.c.b16 %v6321, %v6643
        %v6660 = vpack.c.b16 %v6323, %v6644
        %v6661 = vpack.c.b16 %v6325, %v6645
        %v6662 = vrot.slane %v6646, 1
        %v6663 = vrot.slane %v6374, 1
        %v6664 = vsel %vm699, %v6662, %v6663
        %v6665 = vrot.slane %v6647, 1
        %v6666 = vrot.slane %v6375, 1
        %v6667 = vsel %vm699, %v6665, %v6666
        %v6668 = vrot.slane %v6648, 1
        %v6669 = vrot.slane %v6376, 1
        %v6670 = vsel %vm699, %v6668, %v6669
        %v6671 = vrot.slane %v6649, 1
        %v6672 = vrot.slane %v6377, 1
        %v6673 = vsel %vm699, %v6671, %v6672
        %v6674 = vrot.slane %v6650, 1
        %v6675 = vrot.slane %v6378, 1
        %v6676 = vsel %vm699, %v6674, %v6675
        %v6677 = vrot.slane %v6651, 1
        %v6678 = vrot.slane %v6379, 1
        %v6679 = vsel %vm699, %v6677, %v6678
        %v6680 = vrot.slane %v6652, 1
        %v6681 = vrot.slane %v6380, 1
        %v6682 = vsel %vm699, %v6680, %v6681
        %v6683 = vrot.slane %v6653, 1
        %v6684 = vrot.slane %v6381, 1
        %v6685 = vsel %vm699, %v6683, %v6684
        %v6686 = vrot.slane %v6654, 1
        %v6687 = vrot.slane %v6382, 1
        %v6688 = vsel %vm699, %v6686, %v6687
        %v6689 = vrot.slane %v6655, 1
        %v6690 = vrot.slane %v6383, 1
        %v6691 = vsel %vm699, %v6689, %v6690
        %v6692 = vrot.slane %v6656, 1
        %v6693 = vrot.slane %v6384, 1
        %v6694 = vsel %vm699, %v6692, %v6693
        %v6695 = vrot.slane %v6657, 1
        %v6696 = vrot.slane %v6385, 1
        %v6697 = vsel %vm699, %v6695, %v6696
        %v6698 = vrot.slane %v6658, 1
        %v6699 = vrot.slane %v6386, 1
        %v6700 = vsel %vm699, %v6698, %v6699
        %v6701 = vrot.slane %v6659, 1
        %v6702 = vrot.slane %v6387, 1
        %v6703 = vsel %vm699, %v6701, %v6702
        %v6704 = vrot.slane %v6660, 1
        %v6705 = vrot.slane %v6388, 1
        %v6706 = vsel %vm699, %v6704, %v6705
        %v6707 = vrot.slane %v6661, 1
        %v6708 = vrot.slane %v6389, 1
        %v6709 = vsel %vm699, %v6707, %v6708
        %6710 = vrot.lane.b32.xlu0 %v6664, 8
        %v6711 = vpop.permute.xlu0 %6710
        %6712 = vrot.lane.b32.xlu0 %v6667, 8
        %v6713 = vpop.permute.xlu0 %6712
        %6714 = vrot.lane.b32.xlu0 %v6670, 8
        %v6715 = vpop.permute.xlu0 %6714
        %6716 = vrot.lane.b32.xlu0 %v6673, 8
        %v6717 = vpop.permute.xlu0 %6716
        %6718 = vrot.lane.b32.xlu0 %v6676, 8
        %v6719 = vpop.permute.xlu0 %6718
        %6720 = vrot.lane.b32.xlu0 %v6679, 8
        %v6721 = vpop.permute.xlu0 %6720
        %6722 = vrot.lane.b32.xlu0 %v6682, 8
        %v6723 = vpop.permute.xlu0 %6722
        %6724 = vrot.lane.b32.xlu0 %v6685, 8
        %v6725 = vpop.permute.xlu0 %6724
        %6726 = vrot.lane.b32.xlu0 %v6688, 8
        %v6727 = vpop.permute.xlu0 %6726
        %6728 = vrot.lane.b32.xlu0 %v6691, 8
        %v6729 = vpop.permute.xlu0 %6728
        %6730 = vrot.lane.b32.xlu0 %v6694, 8
        %v6731 = vpop.permute.xlu0 %6730
        %6732 = vrot.lane.b32.xlu0 %v6697, 8
        %v6733 = vpop.permute.xlu0 %6732
        %6734 = vrot.lane.b32.xlu0 %v6700, 8
        %v6735 = vpop.permute.xlu0 %6734
        %6736 = vrot.lane.b32.xlu0 %v6703, 8
        %v6737 = vpop.permute.xlu0 %6736
        %6738 = vrot.lane.b32.xlu0 %v6706, 8
        %v6739 = vpop.permute.xlu0 %6738
        %6740 = vrot.lane.b32.xlu0 %v6709, 8
        %v6741 = vpop.permute.xlu0 %6740
        %v6758 = vunpack.c.l.b16 %v6198
        %v6759 = vunpack.c.l.b16 %v6199
        %v6760 = vunpack.c.l.b16 %v6200
        %v6761 = vunpack.c.l.b16 %v6201
        %v6762 = vunpack.c.l.b16 %v6202
        %v6763 = vunpack.c.l.b16 %v6203
        %v6764 = vunpack.c.l.b16 %v6204
        %v6765 = vunpack.c.l.b16 %v6205
        %v6766 = vunpack.c.l.b16 %v6206
        %v6767 = vunpack.c.l.b16 %v6207
        %v6768 = vunpack.c.l.b16 %v6208
        %v6769 = vunpack.c.l.b16 %v6209
        %v6770 = vunpack.c.l.b16 %v6210
        %v6771 = vunpack.c.l.b16 %v6211
        %v6772 = vunpack.c.l.b16 %v6212
        %v6773 = vunpack.c.l.b16 %v6213
        %v6774 = vpack.c.b16 %v6758, %v6758
        %v6775 = vpack.c.b16 %v6759, %v6759
        %v6776 = vpack.c.b16 %v6760, %v6760
        %v6777 = vpack.c.b16 %v6761, %v6761
        %v6778 = vpack.c.b16 %v6762, %v6762
        %v6779 = vpack.c.b16 %v6763, %v6763
        %v6780 = vpack.c.b16 %v6764, %v6764
        %v6781 = vpack.c.b16 %v6765, %v6765
        %v6782 = vpack.c.b16 %v6766, %v6766
        %v6783 = vpack.c.b16 %v6767, %v6767
        %v6784 = vpack.c.b16 %v6768, %v6768
        %v6785 = vpack.c.b16 %v6769, %v6769
        %v6786 = vpack.c.b16 %v6770, %v6770
        %v6787 = vpack.c.b16 %v6771, %v6771
        %v6788 = vpack.c.b16 %v6772, %v6772
        %v6789 = vpack.c.b16 %v6773, %v6773
        %v6791 = vshrl.u32 %v6646, 16
        %v6793 = vrot.slane %v6791, 1
        %v6794 = vshll.u32 %v6646, 16
        %v6796 = vrot.slane %v6794, 2
        %v6797 = vor.u32 %v6793, %v6796
        %v6799 = vshrl.u32 %v6774, 16
        %v6801 = vrot.slane %v6799, 1
        %v6802 = vshll.u32 %v6774, 16
        %v6804 = vrot.slane %v6802, 2
        %v6805 = vor.u32 %v6801, %v6804
        %v6806 = vsel %vm828, %v6797, %v6805
        %v6808 = vshrl.u32 %v6647, 16
        %v6810 = vrot.slane %v6808, 1
        %v6811 = vshll.u32 %v6647, 16
        %v6813 = vrot.slane %v6811, 2
        %v6814 = vor.u32 %v6810, %v6813
        %v6816 = vshrl.u32 %v6775, 16
        %v6818 = vrot.slane %v6816, 1
        %v6819 = vshll.u32 %v6775, 16
        %v6821 = vrot.slane %v6819, 2
        %v6822 = vor.u32 %v6818, %v6821
        %v6823 = vsel %vm828, %v6814, %v6822
        %v6825 = vshrl.u32 %v6648, 16
        %v6827 = vrot.slane %v6825, 1
        %v6828 = vshll.u32 %v6648, 16
        %v6830 = vrot.slane %v6828, 2
        %v6831 = vor.u32 %v6827, %v6830
        %v6833 = vshrl.u32 %v6776, 16
        %v6835 = vrot.slane %v6833, 1
        %v6836 = vshll.u32 %v6776, 16
        %v6838 = vrot.slane %v6836, 2
        %v6839 = vor.u32 %v6835, %v6838
        %v6840 = vsel %vm828, %v6831, %v6839
        %v6842 = vshrl.u32 %v6649, 16
        %v6844 = vrot.slane %v6842, 1
        %v6845 = vshll.u32 %v6649, 16
        %v6847 = vrot.slane %v6845, 2
        %v6848 = vor.u32 %v6844, %v6847
        %v6850 = vshrl.u32 %v6777, 16
        %v6852 = vrot.slane %v6850, 1
        %v6853 = vshll.u32 %v6777, 16
        %v6855 = vrot.slane %v6853, 2
        %v6856 = vor.u32 %v6852, %v6855
        %v6857 = vsel %vm828, %v6848, %v6856
        %v6859 = vshrl.u32 %v6650, 16
        %v6861 = vrot.slane %v6859, 1
        %v6862 = vshll.u32 %v6650, 16
        %v6864 = vrot.slane %v6862, 2
        %v6865 = vor.u32 %v6861, %v6864
        %v6867 = vshrl.u32 %v6778, 16
        %v6869 = vrot.slane %v6867, 1
        %v6870 = vshll.u32 %v6778, 16
        %v6872 = vrot.slane %v6870, 2
        %v6873 = vor.u32 %v6869, %v6872
        %v6874 = vsel %vm828, %v6865, %v6873
        %v6876 = vshrl.u32 %v6651, 16
        %v6878 = vrot.slane %v6876, 1
        %v6879 = vshll.u32 %v6651, 16
        %v6881 = vrot.slane %v6879, 2
        %v6882 = vor.u32 %v6878, %v6881
        %v6884 = vshrl.u32 %v6779, 16
        %v6886 = vrot.slane %v6884, 1
        %v6887 = vshll.u32 %v6779, 16
        %v6889 = vrot.slane %v6887, 2
        %v6890 = vor.u32 %v6886, %v6889
        %v6891 = vsel %vm828, %v6882, %v6890
        %v6893 = vshrl.u32 %v6652, 16
        %v6895 = vrot.slane %v6893, 1
        %v6896 = vshll.u32 %v6652, 16
        %v6898 = vrot.slane %v6896, 2
        %v6899 = vor.u32 %v6895, %v6898
        %v6901 = vshrl.u32 %v6780, 16
        %v6903 = vrot.slane %v6901, 1
        %v6904 = vshll.u32 %v6780, 16
        %v6906 = vrot.slane %v6904, 2
        %v6907 = vor.u32 %v6903, %v6906
        %v6908 = vsel %vm828, %v6899, %v6907
        %v6910 = vshrl.u32 %v6653, 16
        %v6912 = vrot.slane %v6910, 1
        %v6913 = vshll.u32 %v6653, 16
        %v6915 = vrot.slane %v6913, 2
        %v6916 = vor.u32 %v6912, %v6915
        %v6918 = vshrl.u32 %v6781, 16
        %v6920 = vrot.slane %v6918, 1
        %v6921 = vshll.u32 %v6781, 16
        %v6923 = vrot.slane %v6921, 2
        %v6924 = vor.u32 %v6920, %v6923
        %v6925 = vsel %vm828, %v6916, %v6924
        %v6927 = vshrl.u32 %v6654, 16
        %v6929 = vrot.slane %v6927, 1
        %v6930 = vshll.u32 %v6654, 16
        %v6932 = vrot.slane %v6930, 2
        %v6933 = vor.u32 %v6929, %v6932
        %v6935 = vshrl.u32 %v6782, 16
        %v6937 = vrot.slane %v6935, 1
        %v6938 = vshll.u32 %v6782, 16
        %v6940 = vrot.slane %v6938, 2
        %v6941 = vor.u32 %v6937, %v6940
        %v6942 = vsel %vm828, %v6933, %v6941
        %v6944 = vshrl.u32 %v6655, 16
        %v6946 = vrot.slane %v6944, 1
        %v6947 = vshll.u32 %v6655, 16
        %v6949 = vrot.slane %v6947, 2
        %v6950 = vor.u32 %v6946, %v6949
        %v6952 = vshrl.u32 %v6783, 16
        %v6954 = vrot.slane %v6952, 1
        %v6955 = vshll.u32 %v6783, 16
        %v6957 = vrot.slane %v6955, 2
        %v6958 = vor.u32 %v6954, %v6957
        %v6959 = vsel %vm828, %v6950, %v6958
        %v6961 = vshrl.u32 %v6656, 16
        %v6963 = vrot.slane %v6961, 1
        %v6964 = vshll.u32 %v6656, 16
        %v6966 = vrot.slane %v6964, 2
        %v6967 = vor.u32 %v6963, %v6966
        %v6969 = vshrl.u32 %v6784, 16
        %v6971 = vrot.slane %v6969, 1
        %v6972 = vshll.u32 %v6784, 16
        %v6974 = vrot.slane %v6972, 2
        %v6975 = vor.u32 %v6971, %v6974
        %v6976 = vsel %vm828, %v6967, %v6975
        %v6978 = vshrl.u32 %v6657, 16
        %v6980 = vrot.slane %v6978, 1
        %v6981 = vshll.u32 %v6657, 16
        %v6983 = vrot.slane %v6981, 2
        %v6984 = vor.u32 %v6980, %v6983
        %v6986 = vshrl.u32 %v6785, 16
        %v6988 = vrot.slane %v6986, 1
        %v6989 = vshll.u32 %v6785, 16
        %v6991 = vrot.slane %v6989, 2
        %v6992 = vor.u32 %v6988, %v6991
        %v6993 = vsel %vm828, %v6984, %v6992
        %v6995 = vshrl.u32 %v6658, 16
        %v6997 = vrot.slane %v6995, 1
        %v6998 = vshll.u32 %v6658, 16
        %v7000 = vrot.slane %v6998, 2
        %v7001 = vor.u32 %v6997, %v7000
        %v7003 = vshrl.u32 %v6786, 16
        %v7005 = vrot.slane %v7003, 1
        %v7006 = vshll.u32 %v6786, 16
        %v7008 = vrot.slane %v7006, 2
        %v7009 = vor.u32 %v7005, %v7008
        %v7010 = vsel %vm828, %v7001, %v7009
        %v7012 = vshrl.u32 %v6659, 16
        %v7014 = vrot.slane %v7012, 1
        %v7015 = vshll.u32 %v6659, 16
        %v7017 = vrot.slane %v7015, 2
        %v7018 = vor.u32 %v7014, %v7017
        %v7020 = vshrl.u32 %v6787, 16
        %v7022 = vrot.slane %v7020, 1
        %v7023 = vshll.u32 %v6787, 16
        %v7025 = vrot.slane %v7023, 2
        %v7026 = vor.u32 %v7022, %v7025
        %v7027 = vsel %vm828, %v7018, %v7026
        %v7029 = vshrl.u32 %v6660, 16
        %v7031 = vrot.slane %v7029, 1
        %v7032 = vshll.u32 %v6660, 16
        %v7034 = vrot.slane %v7032, 2
        %v7035 = vor.u32 %v7031, %v7034
        %v7037 = vshrl.u32 %v6788, 16
        %v7039 = vrot.slane %v7037, 1
        %v7040 = vshll.u32 %v6788, 16
        %v7042 = vrot.slane %v7040, 2
        %v7043 = vor.u32 %v7039, %v7042
        %v7044 = vsel %vm828, %v7035, %v7043
        %v7046 = vshrl.u32 %v6661, 16
        %v7048 = vrot.slane %v7046, 1
        %v7049 = vshll.u32 %v6661, 16
        %v7051 = vrot.slane %v7049, 2
        %v7052 = vor.u32 %v7048, %v7051
        %v7054 = vshrl.u32 %v6789, 16
        %v7056 = vrot.slane %v7054, 1
        %v7057 = vshll.u32 %v6789, 16
        %v7059 = vrot.slane %v7057, 2
        %v7060 = vor.u32 %v7056, %v7059
        %v7061 = vsel %vm828, %v7052, %v7060
        %7062 = vrot.lane.b32.xlu0 %v6806, 12
        %v7063 = vpop.permute.xlu0 %7062
        %7064 = vrot.lane.b32.xlu0 %v6823, 12
        %v7065 = vpop.permute.xlu0 %7064
        %7066 = vrot.lane.b32.xlu0 %v6840, 12
        %v7067 = vpop.permute.xlu0 %7066
        %7068 = vrot.lane.b32.xlu0 %v6857, 12
        %v7069 = vpop.permute.xlu0 %7068
        %7070 = vrot.lane.b32.xlu0 %v6874, 12
        %v7071 = vpop.permute.xlu0 %7070
        %7072 = vrot.lane.b32.xlu0 %v6891, 12
        %v7073 = vpop.permute.xlu0 %7072
        %7074 = vrot.lane.b32.xlu0 %v6908, 12
        %v7075 = vpop.permute.xlu0 %7074
        %7076 = vrot.lane.b32.xlu0 %v6925, 12
        %v7077 = vpop.permute.xlu0 %7076
        %7078 = vrot.lane.b32.xlu0 %v6942, 12
        %v7079 = vpop.permute.xlu0 %7078
        %7080 = vrot.lane.b32.xlu0 %v6959, 12
        %v7081 = vpop.permute.xlu0 %7080
        %7082 = vrot.lane.b32.xlu0 %v6976, 12
        %v7083 = vpop.permute.xlu0 %7082
        %7084 = vrot.lane.b32.xlu0 %v6993, 12
        %v7085 = vpop.permute.xlu0 %7084
        %7086 = vrot.lane.b32.xlu0 %v7010, 12
        %v7087 = vpop.permute.xlu0 %7086
        %7088 = vrot.lane.b32.xlu0 %v7027, 12
        %v7089 = vpop.permute.xlu0 %7088
        %7090 = vrot.lane.b32.xlu0 %v7044, 12
        %v7091 = vpop.permute.xlu0 %7090
        %7092 = vrot.lane.b32.xlu0 %v7061, 12
        %v7093 = vpop.permute.xlu0 %7092
        %v7110 = vunpack.c.l.b16 %v6214
        %v7111 = vunpack.c.l.b16 %v6215
        %v7112 = vunpack.c.l.b16 %v6216
        %v7113 = vunpack.c.l.b16 %v6217
        %v7114 = vunpack.c.l.b16 %v6218
        %v7115 = vunpack.c.l.b16 %v6219
        %v7116 = vunpack.c.l.b16 %v6220
        %v7117 = vunpack.c.l.b16 %v6221
        %v7118 = vunpack.c.l.b16 %v6222
        %v7119 = vunpack.c.l.b16 %v6223
        %v7120 = vunpack.c.l.b16 %v6224
        %v7121 = vunpack.c.l.b16 %v6225
        %v7122 = vunpack.c.l.b16 %v6226
        %v7123 = vunpack.c.l.b16 %v6227
        %v7124 = vunpack.c.l.b16 %v6228
        %v7125 = vunpack.c.l.b16 %v6229
        %v7126 = vpack.c.b16 %v6295, %v7110
        %v7127 = vpack.c.b16 %v6297, %v7111
        %v7128 = vpack.c.b16 %v6299, %v7112
        %v7129 = vpack.c.b16 %v6301, %v7113
        %v7130 = vpack.c.b16 %v6303, %v7114
        %v7131 = vpack.c.b16 %v6305, %v7115
        %v7132 = vpack.c.b16 %v6307, %v7116
        %v7133 = vpack.c.b16 %v6309, %v7117
        %v7134 = vpack.c.b16 %v6311, %v7118
        %v7135 = vpack.c.b16 %v6313, %v7119
        %v7136 = vpack.c.b16 %v6315, %v7120
        %v7137 = vpack.c.b16 %v6317, %v7121
        %v7138 = vpack.c.b16 %v6319, %v7122
        %v7139 = vpack.c.b16 %v6321, %v7123
        %v7140 = vpack.c.b16 %v6323, %v7124
        %v7141 = vpack.c.b16 %v6325, %v7125
        %v7142 = vrot.slane %v7126, 2
        %v7143 = vrot.slane %v6774, 2
        %v7144 = vsel %vm1181, %v7142, %v7143
        %v7145 = vrot.slane %v7127, 2
        %v7146 = vrot.slane %v6775, 2
        %v7147 = vsel %vm1181, %v7145, %v7146
        %v7148 = vrot.slane %v7128, 2
        %v7149 = vrot.slane %v6776, 2
        %v7150 = vsel %vm1181, %v7148, %v7149
        %v7151 = vrot.slane %v7129, 2
        %v7152 = vrot.slane %v6777, 2
        %v7153 = vsel %vm1181, %v7151, %v7152
        %v7154 = vrot.slane %v7130, 2
        %v7155 = vrot.slane %v6778, 2
        %v7156 = vsel %vm1181, %v7154, %v7155
        %v7157 = vrot.slane %v7131, 2
        %v7158 = vrot.slane %v6779, 2
        %v7159 = vsel %vm1181, %v7157, %v7158
        %v7160 = vrot.slane %v7132, 2
        %v7161 = vrot.slane %v6780, 2
        %v7162 = vsel %vm1181, %v7160, %v7161
        %v7163 = vrot.slane %v7133, 2
        %v7164 = vrot.slane %v6781, 2
        %v7165 = vsel %vm1181, %v7163, %v7164
        %v7166 = vrot.slane %v7134, 2
        %v7167 = vrot.slane %v6782, 2
        %v7168 = vsel %vm1181, %v7166, %v7167
        %v7169 = vrot.slane %v7135, 2
        %v7170 = vrot.slane %v6783, 2
        %v7171 = vsel %vm1181, %v7169, %v7170
        %v7172 = vrot.slane %v7136, 2
        %v7173 = vrot.slane %v6784, 2
        %v7174 = vsel %vm1181, %v7172, %v7173
        %v7175 = vrot.slane %v7137, 2
        %v7176 = vrot.slane %v6785, 2
        %v7177 = vsel %vm1181, %v7175, %v7176
        %v7178 = vrot.slane %v7138, 2
        %v7179 = vrot.slane %v6786, 2
        %v7180 = vsel %vm1181, %v7178, %v7179
        %v7181 = vrot.slane %v7139, 2
        %v7182 = vrot.slane %v6787, 2
        %v7183 = vsel %vm1181, %v7181, %v7182
        %v7184 = vrot.slane %v7140, 2
        %v7185 = vrot.slane %v6788, 2
        %v7186 = vsel %vm1181, %v7184, %v7185
        %v7187 = vrot.slane %v7141, 2
        %v7188 = vrot.slane %v6789, 2
        %v7189 = vsel %vm1181, %v7187, %v7188
        %7190 = vrot.lane.b32.xlu0 %v7144, 16
        %v7191 = vpop.permute.xlu0 %7190
        %7192 = vrot.lane.b32.xlu0 %v7147, 16
        %v7193 = vpop.permute.xlu0 %7192
        %7194 = vrot.lane.b32.xlu0 %v7150, 16
        %v7195 = vpop.permute.xlu0 %7194
        %7196 = vrot.lane.b32.xlu0 %v7153, 16
        %v7197 = vpop.permute.xlu0 %7196
        %7198 = vrot.lane.b32.xlu0 %v7156, 16
        %v7199 = vpop.permute.xlu0 %7198
        %7200 = vrot.lane.b32.xlu0 %v7159, 16
        %v7201 = vpop.permute.xlu0 %7200
        %7202 = vrot.lane.b32.xlu0 %v7162, 16
        %v7203 = vpop.permute.xlu0 %7202
        %7204 = vrot.lane.b32.xlu0 %v7165, 16
        %v7205 = vpop.permute.xlu0 %7204
        %7206 = vrot.lane.b32.xlu0 %v7168, 16
        %v7207 = vpop.permute.xlu0 %7206
        %7208 = vrot.lane.b32.xlu0 %v7171, 16
        %v7209 = vpop.permute.xlu0 %7208
        %7210 = vrot.lane.b32.xlu0 %v7174, 16
        %v7211 = vpop.permute.xlu0 %7210
        %7212 = vrot.lane.b32.xlu0 %v7177, 16
        %v7213 = vpop.permute.xlu0 %7212
        %7214 = vrot.lane.b32.xlu0 %v7180, 16
        %v7215 = vpop.permute.xlu0 %7214
        %7216 = vrot.lane.b32.xlu0 %v7183, 16
        %v7217 = vpop.permute.xlu0 %7216
        %7218 = vrot.lane.b32.xlu0 %v7186, 16
        %v7219 = vpop.permute.xlu0 %7218
        %7220 = vrot.lane.b32.xlu0 %v7189, 16
        %v7221 = vpop.permute.xlu0 %7220
        %v7238 = vunpack.c.l.b16 %v6230
        %v7239 = vunpack.c.l.b16 %v6231
        %v7240 = vunpack.c.l.b16 %v6232
        %v7241 = vunpack.c.l.b16 %v6233
        %v7242 = vunpack.c.l.b16 %v6234
        %v7243 = vunpack.c.l.b16 %v6235
        %v7244 = vunpack.c.l.b16 %v6236
        %v7245 = vunpack.c.l.b16 %v6237
        %v7246 = vunpack.c.l.b16 %v6238
        %v7247 = vunpack.c.l.b16 %v6239
        %v7248 = vunpack.c.l.b16 %v6240
        %v7249 = vunpack.c.l.b16 %v6241
        %v7250 = vunpack.c.l.b16 %v6242
        %v7251 = vunpack.c.l.b16 %v6243
        %v7252 = vunpack.c.l.b16 %v6244
        %v7253 = vunpack.c.l.b16 %v6245
        %v7254 = vpack.c.b16 %v7238, %v7238
        %v7255 = vpack.c.b16 %v7239, %v7239
        %v7256 = vpack.c.b16 %v7240, %v7240
        %v7257 = vpack.c.b16 %v7241, %v7241
        %v7258 = vpack.c.b16 %v7242, %v7242
        %v7259 = vpack.c.b16 %v7243, %v7243
        %v7260 = vpack.c.b16 %v7244, %v7244
        %v7261 = vpack.c.b16 %v7245, %v7245
        %v7262 = vpack.c.b16 %v7246, %v7246
        %v7263 = vpack.c.b16 %v7247, %v7247
        %v7264 = vpack.c.b16 %v7248, %v7248
        %v7265 = vpack.c.b16 %v7249, %v7249
        %v7266 = vpack.c.b16 %v7250, %v7250
        %v7267 = vpack.c.b16 %v7251, %v7251
        %v7268 = vpack.c.b16 %v7252, %v7252
        %v7269 = vpack.c.b16 %v7253, %v7253
        %v7271 = vshrl.u32 %v7126, 16
        %v7273 = vrot.slane %v7271, 2
        %v7274 = vshll.u32 %v7126, 16
        %v7276 = vrot.slane %v7274, 3
        %v7277 = vor.u32 %v7273, %v7276
        %v7279 = vshrl.u32 %v7254, 16
        %v7281 = vrot.slane %v7279, 2
        %v7282 = vshll.u32 %v7254, 16
        %v7284 = vrot.slane %v7282, 3
        %v7285 = vor.u32 %v7281, %v7284
        %v7286 = vsel %vm1310, %v7277, %v7285
        %v7288 = vshrl.u32 %v7127, 16
        %v7290 = vrot.slane %v7288, 2
        %v7291 = vshll.u32 %v7127, 16
        %v7293 = vrot.slane %v7291, 3
        %v7294 = vor.u32 %v7290, %v7293
        %v7296 = vshrl.u32 %v7255, 16
        %v7298 = vrot.slane %v7296, 2
        %v7299 = vshll.u32 %v7255, 16
        %v7301 = vrot.slane %v7299, 3
        %v7302 = vor.u32 %v7298, %v7301
        %v7303 = vsel %vm1310, %v7294, %v7302
        %v7305 = vshrl.u32 %v7128, 16
        %v7307 = vrot.slane %v7305, 2
        %v7308 = vshll.u32 %v7128, 16
        %v7310 = vrot.slane %v7308, 3
        %v7311 = vor.u32 %v7307, %v7310
        %v7313 = vshrl.u32 %v7256, 16
        %v7315 = vrot.slane %v7313, 2
        %v7316 = vshll.u32 %v7256, 16
        %v7318 = vrot.slane %v7316, 3
        %v7319 = vor.u32 %v7315, %v7318
        %v7320 = vsel %vm1310, %v7311, %v7319
        %v7322 = vshrl.u32 %v7129, 16
        %v7324 = vrot.slane %v7322, 2
        %v7325 = vshll.u32 %v7129, 16
        %v7327 = vrot.slane %v7325, 3
        %v7328 = vor.u32 %v7324, %v7327
        %v7330 = vshrl.u32 %v7257, 16
        %v7332 = vrot.slane %v7330, 2
        %v7333 = vshll.u32 %v7257, 16
        %v7335 = vrot.slane %v7333, 3
        %v7336 = vor.u32 %v7332, %v7335
        %v7337 = vsel %vm1310, %v7328, %v7336
        %v7339 = vshrl.u32 %v7130, 16
        %v7341 = vrot.slane %v7339, 2
        %v7342 = vshll.u32 %v7130, 16
        %v7344 = vrot.slane %v7342, 3
        %v7345 = vor.u32 %v7341, %v7344
        %v7347 = vshrl.u32 %v7258, 16
        %v7349 = vrot.slane %v7347, 2
        %v7350 = vshll.u32 %v7258, 16
        %v7352 = vrot.slane %v7350, 3
        %v7353 = vor.u32 %v7349, %v7352
        %v7354 = vsel %vm1310, %v7345, %v7353
        %v7356 = vshrl.u32 %v7131, 16
        %v7358 = vrot.slane %v7356, 2
        %v7359 = vshll.u32 %v7131, 16
        %v7361 = vrot.slane %v7359, 3
        %v7362 = vor.u32 %v7358, %v7361
        %v7364 = vshrl.u32 %v7259, 16
        %v7366 = vrot.slane %v7364, 2
        %v7367 = vshll.u32 %v7259, 16
        %v7369 = vrot.slane %v7367, 3
        %v7370 = vor.u32 %v7366, %v7369
        %v7371 = vsel %vm1310, %v7362, %v7370
        %v7373 = vshrl.u32 %v7132, 16
        %v7375 = vrot.slane %v7373, 2
        %v7376 = vshll.u32 %v7132, 16
        %v7378 = vrot.slane %v7376, 3
        %v7379 = vor.u32 %v7375, %v7378
        %v7381 = vshrl.u32 %v7260, 16
        %v7383 = vrot.slane %v7381, 2
        %v7384 = vshll.u32 %v7260, 16
        %v7386 = vrot.slane %v7384, 3
        %v7387 = vor.u32 %v7383, %v7386
        %v7388 = vsel %vm1310, %v7379, %v7387
        %v7390 = vshrl.u32 %v7133, 16
        %v7392 = vrot.slane %v7390, 2
        %v7393 = vshll.u32 %v7133, 16
        %v7395 = vrot.slane %v7393, 3
        %v7396 = vor.u32 %v7392, %v7395
        %v7398 = vshrl.u32 %v7261, 16
        %v7400 = vrot.slane %v7398, 2
        %v7401 = vshll.u32 %v7261, 16
        %v7403 = vrot.slane %v7401, 3
        %v7404 = vor.u32 %v7400, %v7403
        %v7405 = vsel %vm1310, %v7396, %v7404
        %v7407 = vshrl.u32 %v7134, 16
        %v7409 = vrot.slane %v7407, 2
        %v7410 = vshll.u32 %v7134, 16
        %v7412 = vrot.slane %v7410, 3
        %v7413 = vor.u32 %v7409, %v7412
        %v7415 = vshrl.u32 %v7262, 16
        %v7417 = vrot.slane %v7415, 2
        %v7418 = vshll.u32 %v7262, 16
        %v7420 = vrot.slane %v7418, 3
        %v7421 = vor.u32 %v7417, %v7420
        %v7422 = vsel %vm1310, %v7413, %v7421
        %v7424 = vshrl.u32 %v7135, 16
        %v7426 = vrot.slane %v7424, 2
        %v7427 = vshll.u32 %v7135, 16
        %v7429 = vrot.slane %v7427, 3
        %v7430 = vor.u32 %v7426, %v7429
        %v7432 = vshrl.u32 %v7263, 16
        %v7434 = vrot.slane %v7432, 2
        %v7435 = vshll.u32 %v7263, 16
        %v7437 = vrot.slane %v7435, 3
        %v7438 = vor.u32 %v7434, %v7437
        %v7439 = vsel %vm1310, %v7430, %v7438
        %v7441 = vshrl.u32 %v7136, 16
        %v7443 = vrot.slane %v7441, 2
        %v7444 = vshll.u32 %v7136, 16
        %v7446 = vrot.slane %v7444, 3
        %v7447 = vor.u32 %v7443, %v7446
        %v7449 = vshrl.u32 %v7264, 16
        %v7451 = vrot.slane %v7449, 2
        %v7452 = vshll.u32 %v7264, 16
        %v7454 = vrot.slane %v7452, 3
        %v7455 = vor.u32 %v7451, %v7454
        %v7456 = vsel %vm1310, %v7447, %v7455
        %v7458 = vshrl.u32 %v7137, 16
        %v7460 = vrot.slane %v7458, 2
        %v7461 = vshll.u32 %v7137, 16
        %v7463 = vrot.slane %v7461, 3
        %v7464 = vor.u32 %v7460, %v7463
        %v7466 = vshrl.u32 %v7265, 16
        %v7468 = vrot.slane %v7466, 2
        %v7469 = vshll.u32 %v7265, 16
        %v7471 = vrot.slane %v7469, 3
        %v7472 = vor.u32 %v7468, %v7471
        %v7473 = vsel %vm1310, %v7464, %v7472
        %v7475 = vshrl.u32 %v7138, 16
        %v7477 = vrot.slane %v7475, 2
        %v7478 = vshll.u32 %v7138, 16
        %v7480 = vrot.slane %v7478, 3
        %v7481 = vor.u32 %v7477, %v7480
        %v7483 = vshrl.u32 %v7266, 16
        %v7485 = vrot.slane %v7483, 2
        %v7486 = vshll.u32 %v7266, 16
        %v7488 = vrot.slane %v7486, 3
        %v7489 = vor.u32 %v7485, %v7488
        %v7490 = vsel %vm1310, %v7481, %v7489
        %v7492 = vshrl.u32 %v7139, 16
        %v7494 = vrot.slane %v7492, 2
        %v7495 = vshll.u32 %v7139, 16
        %v7497 = vrot.slane %v7495, 3
        %v7498 = vor.u32 %v7494, %v7497
        %v7500 = vshrl.u32 %v7267, 16
        %v7502 = vrot.slane %v7500, 2
        %v7503 = vshll.u32 %v7267, 16
        %v7505 = vrot.slane %v7503, 3
        %v7506 = vor.u32 %v7502, %v7505
        %v7507 = vsel %vm1310, %v7498, %v7506
        %v7509 = vshrl.u32 %v7140, 16
        %v7511 = vrot.slane %v7509, 2
        %v7512 = vshll.u32 %v7140, 16
        %v7514 = vrot.slane %v7512, 3
        %v7515 = vor.u32 %v7511, %v7514
        %v7517 = vshrl.u32 %v7268, 16
        %v7519 = vrot.slane %v7517, 2
        %v7520 = vshll.u32 %v7268, 16
        %v7522 = vrot.slane %v7520, 3
        %v7523 = vor.u32 %v7519, %v7522
        %v7524 = vsel %vm1310, %v7515, %v7523
        %v7526 = vshrl.u32 %v7141, 16
        %v7528 = vrot.slane %v7526, 2
        %v7529 = vshll.u32 %v7141, 16
        %v7531 = vrot.slane %v7529, 3
        %v7532 = vor.u32 %v7528, %v7531
        %v7534 = vshrl.u32 %v7269, 16
        %v7536 = vrot.slane %v7534, 2
        %v7537 = vshll.u32 %v7269, 16
        %v7539 = vrot.slane %v7537, 3
        %v7540 = vor.u32 %v7536, %v7539
        %v7541 = vsel %vm1310, %v7532, %v7540
        %7542 = vrot.lane.b32.xlu0 %v7286, 20
        %v7543 = vpop.permute.xlu0 %7542
        %7544 = vrot.lane.b32.xlu0 %v7303, 20
        %v7545 = vpop.permute.xlu0 %7544
        %7546 = vrot.lane.b32.xlu0 %v7320, 20
        %v7547 = vpop.permute.xlu0 %7546
        %7548 = vrot.lane.b32.xlu0 %v7337, 20
        %v7549 = vpop.permute.xlu0 %7548
        %7550 = vrot.lane.b32.xlu0 %v7354, 20
        %v7551 = vpop.permute.xlu0 %7550
        %7552 = vrot.lane.b32.xlu0 %v7371, 20
        %v7553 = vpop.permute.xlu0 %7552
        %7554 = vrot.lane.b32.xlu0 %v7388, 20
        %v7555 = vpop.permute.xlu0 %7554
        %7556 = vrot.lane.b32.xlu0 %v7405, 20
        %v7557 = vpop.permute.xlu0 %7556
        %7558 = vrot.lane.b32.xlu0 %v7422, 20
        %v7559 = vpop.permute.xlu0 %7558
        %7560 = vrot.lane.b32.xlu0 %v7439, 20
        %v7561 = vpop.permute.xlu0 %7560
        %7562 = vrot.lane.b32.xlu0 %v7456, 20
        %v7563 = vpop.permute.xlu0 %7562
        %7564 = vrot.lane.b32.xlu0 %v7473, 20
        %v7565 = vpop.permute.xlu0 %7564
        %7566 = vrot.lane.b32.xlu0 %v7490, 20
        %v7567 = vpop.permute.xlu0 %7566
        %7568 = vrot.lane.b32.xlu0 %v7507, 20
        %v7569 = vpop.permute.xlu0 %7568
        %7570 = vrot.lane.b32.xlu0 %v7524, 20
        %v7571 = vpop.permute.xlu0 %7570
        %7572 = vrot.lane.b32.xlu0 %v7541, 20
        %v7573 = vpop.permute.xlu0 %7572
        %v7590 = vunpack.c.l.b16 %v6246
        %v7591 = vunpack.c.l.b16 %v6247
        %v7592 = vunpack.c.l.b16 %v6248
        %v7593 = vunpack.c.l.b16 %v6249
        %v7594 = vunpack.c.l.b16 %v6250
        %v7595 = vunpack.c.l.b16 %v6251
        %v7596 = vunpack.c.l.b16 %v6252
        %v7597 = vunpack.c.l.b16 %v6253
        %v7598 = vunpack.c.l.b16 %v6254
        %v7599 = vunpack.c.l.b16 %v6255
        %v7600 = vunpack.c.l.b16 %v6256
        %v7601 = vunpack.c.l.b16 %v6257
        %v7602 = vunpack.c.l.b16 %v6258
        %v7603 = vunpack.c.l.b16 %v6259
        %v7604 = vunpack.c.l.b16 %v6260
        %v7605 = vunpack.c.l.b16 %v6261
        %v7606 = vpack.c.b16 %v6295, %v7590
        %v7607 = vpack.c.b16 %v6297, %v7591
        %v7608 = vpack.c.b16 %v6299, %v7592
        %v7609 = vpack.c.b16 %v6301, %v7593
        %v7610 = vpack.c.b16 %v6303, %v7594
        %v7611 = vpack.c.b16 %v6305, %v7595
        %v7612 = vpack.c.b16 %v6307, %v7596
        %v7613 = vpack.c.b16 %v6309, %v7597
        %v7614 = vpack.c.b16 %v6311, %v7598
        %v7615 = vpack.c.b16 %v6313, %v7599
        %v7616 = vpack.c.b16 %v6315, %v7600
        %v7617 = vpack.c.b16 %v6317, %v7601
        %v7618 = vpack.c.b16 %v6319, %v7602
        %v7619 = vpack.c.b16 %v6321, %v7603
        %v7620 = vpack.c.b16 %v6323, %v7604
        %v7621 = vpack.c.b16 %v6325, %v7605
        %v7622 = vrot.slane %v7606, 3
        %v7623 = vrot.slane %v7254, 3
        %v7624 = vsel %vm1663, %v7622, %v7623
        %v7625 = vrot.slane %v7607, 3
        %v7626 = vrot.slane %v7255, 3
        %v7627 = vsel %vm1663, %v7625, %v7626
        %v7628 = vrot.slane %v7608, 3
        %v7629 = vrot.slane %v7256, 3
        %v7630 = vsel %vm1663, %v7628, %v7629
        %v7631 = vrot.slane %v7609, 3
        %v7632 = vrot.slane %v7257, 3
        %v7633 = vsel %vm1663, %v7631, %v7632
        %v7634 = vrot.slane %v7610, 3
        %v7635 = vrot.slane %v7258, 3
        %v7636 = vsel %vm1663, %v7634, %v7635
        %v7637 = vrot.slane %v7611, 3
        %v7638 = vrot.slane %v7259, 3
        %v7639 = vsel %vm1663, %v7637, %v7638
        %v7640 = vrot.slane %v7612, 3
        %v7641 = vrot.slane %v7260, 3
        %v7642 = vsel %vm1663, %v7640, %v7641
        %v7643 = vrot.slane %v7613, 3
        %v7644 = vrot.slane %v7261, 3
        %v7645 = vsel %vm1663, %v7643, %v7644
        %v7646 = vrot.slane %v7614, 3
        %v7647 = vrot.slane %v7262, 3
        %v7648 = vsel %vm1663, %v7646, %v7647
        %v7649 = vrot.slane %v7615, 3
        %v7650 = vrot.slane %v7263, 3
        %v7651 = vsel %vm1663, %v7649, %v7650
        %v7652 = vrot.slane %v7616, 3
        %v7653 = vrot.slane %v7264, 3
        %v7654 = vsel %vm1663, %v7652, %v7653
        %v7655 = vrot.slane %v7617, 3
        %v7656 = vrot.slane %v7265, 3
        %v7657 = vsel %vm1663, %v7655, %v7656
        %v7658 = vrot.slane %v7618, 3
        %v7659 = vrot.slane %v7266, 3
        %v7660 = vsel %vm1663, %v7658, %v7659
        %v7661 = vrot.slane %v7619, 3
        %v7662 = vrot.slane %v7267, 3
        %v7663 = vsel %vm1663, %v7661, %v7662
        %v7664 = vrot.slane %v7620, 3
        %v7665 = vrot.slane %v7268, 3
        %v7666 = vsel %vm1663, %v7664, %v7665
        %v7667 = vrot.slane %v7621, 3
        %v7668 = vrot.slane %v7269, 3
        %v7669 = vsel %vm1663, %v7667, %v7668
        %7670 = vrot.lane.b32.xlu0 %v7624, 24
        %v7671 = vpop.permute.xlu0 %7670
        %7672 = vrot.lane.b32.xlu0 %v7627, 24
        %v7673 = vpop.permute.xlu0 %7672
        %7674 = vrot.lane.b32.xlu0 %v7630, 24
        %v7675 = vpop.permute.xlu0 %7674
        %7676 = vrot.lane.b32.xlu0 %v7633, 24
        %v7677 = vpop.permute.xlu0 %7676
        %7678 = vrot.lane.b32.xlu0 %v7636, 24
        %v7679 = vpop.permute.xlu0 %7678
        %7680 = vrot.lane.b32.xlu0 %v7639, 24
        %v7681 = vpop.permute.xlu0 %7680
        %7682 = vrot.lane.b32.xlu0 %v7642, 24
        %v7683 = vpop.permute.xlu0 %7682
        %7684 = vrot.lane.b32.xlu0 %v7645, 24
        %v7685 = vpop.permute.xlu0 %7684
        %7686 = vrot.lane.b32.xlu0 %v7648, 24
        %v7687 = vpop.permute.xlu0 %7686
        %7688 = vrot.lane.b32.xlu0 %v7651, 24
        %v7689 = vpop.permute.xlu0 %7688
        %7690 = vrot.lane.b32.xlu0 %v7654, 24
        %v7691 = vpop.permute.xlu0 %7690
        %7692 = vrot.lane.b32.xlu0 %v7657, 24
        %v7693 = vpop.permute.xlu0 %7692
        %7694 = vrot.lane.b32.xlu0 %v7660, 24
        %v7695 = vpop.permute.xlu0 %7694
        %7696 = vrot.lane.b32.xlu0 %v7663, 24
        %v7697 = vpop.permute.xlu0 %7696
        %7698 = vrot.lane.b32.xlu0 %v7666, 24
        %v7699 = vpop.permute.xlu0 %7698
        %7700 = vrot.lane.b32.xlu0 %v7669, 24
        %v7701 = vpop.permute.xlu0 %7700
        %v7703 = vsel %vm1744, %v6326, %v6583
        %v7705 = vsel %vm1744, %v6327, %v6585
        %v7707 = vsel %vm1744, %v6328, %v6587
        %v7709 = vsel %vm1744, %v6329, %v6589
        %v7711 = vsel %vm1744, %v6330, %v6591
        %v7713 = vsel %vm1744, %v6331, %v6593
        %v7715 = vsel %vm1744, %v6332, %v6595
        %v7717 = vsel %vm1744, %v6333, %v6597
        %v7719 = vsel %vm1744, %v6334, %v6599
        %v7721 = vsel %vm1744, %v6335, %v6601
        %v7723 = vsel %vm1744, %v6336, %v6603
        %v7725 = vsel %vm1744, %v6337, %v6605
        %v7727 = vsel %vm1744, %v6338, %v6607
        %v7729 = vsel %vm1744, %v6339, %v6609
        %v7731 = vsel %vm1744, %v6340, %v6611
        %v7733 = vsel %vm1744, %v6341, %v6613
        %v7735 = vsel %vm1777, %v7703, %v6711
        %v7737 = vsel %vm1777, %v7705, %v6713
        %v7739 = vsel %vm1777, %v7707, %v6715
        %v7741 = vsel %vm1777, %v7709, %v6717
        %v7743 = vsel %vm1777, %v7711, %v6719
        %v7745 = vsel %vm1777, %v7713, %v6721
        %v7747 = vsel %vm1777, %v7715, %v6723
        %v7749 = vsel %vm1777, %v7717, %v6725
        %v7751 = vsel %vm1777, %v7719, %v6727
        %v7753 = vsel %vm1777, %v7721, %v6729
        %v7755 = vsel %vm1777, %v7723, %v6731
        %v7757 = vsel %vm1777, %v7725, %v6733
        %v7759 = vsel %vm1777, %v7727, %v6735
        %v7761 = vsel %vm1777, %v7729, %v6737
        %v7763 = vsel %vm1777, %v7731, %v6739
        %v7765 = vsel %vm1777, %v7733, %v6741
        %v7767 = vsel %vm1810, %v7735, %v7063
        %v7769 = vsel %vm1810, %v7737, %v7065
        %v7771 = vsel %vm1810, %v7739, %v7067
        %v7773 = vsel %vm1810, %v7741, %v7069
        %v7775 = vsel %vm1810, %v7743, %v7071
        %v7777 = vsel %vm1810, %v7745, %v7073
        %v7779 = vsel %vm1810, %v7747, %v7075
        %v7781 = vsel %vm1810, %v7749, %v7077
        %v7783 = vsel %vm1810, %v7751, %v7079
        %v7785 = vsel %vm1810, %v7753, %v7081
        %v7787 = vsel %vm1810, %v7755, %v7083
        %v7789 = vsel %vm1810, %v7757, %v7085
        %v7791 = vsel %vm1810, %v7759, %v7087
        %v7793 = vsel %vm1810, %v7761, %v7089
        %v7795 = vsel %vm1810, %v7763, %v7091
        %v7797 = vsel %vm1810, %v7765, %v7093
        %v7799 = vsel %vm1843, %v7767, %v7191
        %v7801 = vsel %vm1843, %v7769, %v7193
        %v7803 = vsel %vm1843, %v7771, %v7195
        %v7805 = vsel %vm1843, %v7773, %v7197
        %v7807 = vsel %vm1843, %v7775, %v7199
        %v7809 = vsel %vm1843, %v7777, %v7201
        %v7811 = vsel %vm1843, %v7779, %v7203
        %v7813 = vsel %vm1843, %v7781, %v7205
        %v7815 = vsel %vm1843, %v7783, %v7207
        %v7817 = vsel %vm1843, %v7785, %v7209
        %v7819 = vsel %vm1843, %v7787, %v7211
        %v7821 = vsel %vm1843, %v7789, %v7213
        %v7823 = vsel %vm1843, %v7791, %v7215
        %v7825 = vsel %vm1843, %v7793, %v7217
        %v7827 = vsel %vm1843, %v7795, %v7219
        %v7829 = vsel %vm1843, %v7797, %v7221
        %v7831 = vsel %vm1876, %v7799, %v7543
        %v7833 = vsel %vm1876, %v7801, %v7545
        %v7835 = vsel %vm1876, %v7803, %v7547
        %v7837 = vsel %vm1876, %v7805, %v7549
        %v7839 = vsel %vm1876, %v7807, %v7551
        %v7841 = vsel %vm1876, %v7809, %v7553
        %v7843 = vsel %vm1876, %v7811, %v7555
        %v7845 = vsel %vm1876, %v7813, %v7557
        %v7847 = vsel %vm1876, %v7815, %v7559
        %v7849 = vsel %vm1876, %v7817, %v7561
        %v7851 = vsel %vm1876, %v7819, %v7563
        %v7853 = vsel %vm1876, %v7821, %v7565
        %v7855 = vsel %vm1876, %v7823, %v7567
        %v7857 = vsel %vm1876, %v7825, %v7569
        %v7859 = vsel %vm1876, %v7827, %v7571
        %v7861 = vsel %vm1876, %v7829, %v7573
        %v7863 = vsel %vm1909, %v7831, %v7671
        %v7865 = vsel %vm1909, %v7833, %v7673
        %v7867 = vsel %vm1909, %v7835, %v7675
        %v7869 = vsel %vm1909, %v7837, %v7677
        %v7871 = vsel %vm1909, %v7839, %v7679
        %v7873 = vsel %vm1909, %v7841, %v7681
        %v7875 = vsel %vm1909, %v7843, %v7683
        %v7877 = vsel %vm1909, %v7845, %v7685
        %v7879 = vsel %vm1909, %v7847, %v7687
        %v7881 = vsel %vm1909, %v7849, %v7689
        %v7883 = vsel %vm1909, %v7851, %v7691
        %v7885 = vsel %vm1909, %v7853, %v7693
        %v7887 = vsel %vm1909, %v7855, %v7695
        %v7889 = vsel %vm1909, %v7857, %v7697
        %v7891 = vsel %vm1909, %v7859, %v7699
        %v7893 = vsel %vm1909, %v7861, %v7701
        %s7894 = scalar_lea.vmem %s1, 48
        %v7895 = vld [vmem:[%s7894] sm:$0xf]
        %v7896 = vld [vmem:[%s7894 + $0x4] sm:$0xf]
        %v7897 = vld [vmem:[%s7894 + $0x8] sm:$0xf]
        %v7898 = vld [vmem:[%s7894 + $0xc] sm:$0x3]
        %v7903 = vunpack.c.l.b16 %v7895
        %v7904 = vunpack.c.l.b16 %v7896
        %v7905 = vunpack.c.l.b16 %v7897
        %v7906 = vunpack.c.l.b16 %v7898
        %v7907 = vpack.c.b16 %v7904, %v7903
        %v7908 = vpack.c.b16 %v7906, %v7905
        %v7910 = vsel %vm3723, %v7863, 0
        %v7912 = vsel %vm3723, %v7865, 0
        %v7914 = vsel %vm3723, %v7867, 0
        %v7916 = vsel %vm3723, %v7869, 0
        %v7918 = vsel %vm3723, %v7871, 0
        %v7920 = vsel %vm3723, %v7873, 0
        %v7922 = vsel %vm3723, %v7875, 0
        %v7924 = vsel %vm3723, %v7877, 0
        %v7926 = vsel %vm3723, %v7879, 0
        %v7928 = vsel %vm3723, %v7881, 0
        %v7930 = vsel %vm3723, %v7883, 0
        %v7932 = vsel %vm3723, %v7885, 0
        %v7934 = vsel %vm3723, %v7887, 0
        %v7936 = vsel %vm3723, %v7889, 0
        %v7938 = vsel %vm3723, %v7891, 0
        %v7940 = vsel %vm3723, %v7893, 0
        %v7943 = vsel %vm3756, %v7908, 0
        %7945 = vmatprep.subr.bf16.mxu0 0
        %7946 = vmatpush1.bf16.msra.mxu0 %v7907
        %7947 = vmatprep.subr.bf16.mxu0 0
        %7948 = vmatpush1.bf16.msra.mxu0 %v7943
        %7949 = vmatprep.subr.bf16.mxu0 0
        %7950 = vmatpush1.bf16.msra.mxu0 0
        %7951 = vmatprep.subr.bf16.mxu0 0
        %7952 = vmatpush1.bf16.msra.mxu0 0
        %7953 = vmatprep.subr.bf16.mxu0 0
        %7954 = vmatpush1.bf16.msra.mxu0 0
        %7955 = vmatprep.subr.bf16.mxu0 0
        %7956 = vmatpush1.bf16.msra.mxu0 0
        %7957 = vmatprep.subr.bf16.mxu0 0
        %7958 = vmatpush1.bf16.msra.mxu0 0
        %7959 = vmatprep.subr.bf16.mxu0 0
        %7960 = vmatpush1.bf16.msra.mxu0 0
        %7961 = vmatprep.subr.bf16.mxu0 0
        %7962 = vmatpush1.bf16.msra.mxu0 0
        %7963 = vmatprep.subr.bf16.mxu0 0
        %7964 = vmatpush1.bf16.msra.mxu0 0
        %7965 = vmatprep.subr.bf16.mxu0 0
        %7966 = vmatpush1.bf16.msra.mxu0 0
        %7967 = vmatprep.subr.bf16.mxu0 0
        %7968 = vmatpush1.bf16.msra.mxu0 0
        %7969 = vmatprep.subr.bf16.mxu0 0
        %7970 = vmatpush1.bf16.msra.mxu0 0
        %7971 = vmatprep.subr.bf16.mxu0 0
        %7972 = vmatpush1.bf16.msra.mxu0 0
        %7973 = vmatprep.subr.bf16.mxu0 0
        %7974 = vmatpush1.bf16.msra.mxu0 0
        %7975 = vmatprep.subr.bf16.mxu0 0
        %7976 = vmatpush1.bf16.msra.mxu0 0
        %7977 = vmatprep.mubr.bf16.mxu0 0
        %7978 = vmatmul.mubr.bf16.gmra.mrb[0].mxu0 %v7910
        %v7979 = vpop.f32.mrb[0].mxu0
        %v7980 = vadd.f32 0.0, %v7979
        %v7981 = vpop.f32.mrb[0].mxu0
        %v7982 = vpop.f32.mrb[0].mxu0
        %v7983 = vadd.f32 0.0, %v7982
        %v7984 = vpop.f32.mrb[0].mxu0
        %7985 = vmatprep.mubr.bf16.mxu0 0
        %7986 = vmatmul.mubr.bf16.gmra.mrb[0].mxu0 %v7912
        %v7987 = vpop.f32.mrb[0].mxu0
        %v7988 = vadd.f32 0.0, %v7987
        %v7989 = vpop.f32.mrb[0].mxu0
        %v7990 = vpop.f32.mrb[0].mxu0
        %v7991 = vadd.f32 0.0, %v7990
        %v7992 = vpop.f32.mrb[0].mxu0
        %7993 = vmatprep.mubr.bf16.mxu0 0
        %7994 = vmatmul.mubr.bf16.gmra.mrb[0].mxu0 %v7914
        %v7995 = vpop.f32.mrb[0].mxu0
        %v7996 = vadd.f32 0.0, %v7995
        %v7997 = vpop.f32.mrb[0].mxu0
        %v7998 = vpop.f32.mrb[0].mxu0
        %v7999 = vadd.f32 0.0, %v7998
        %v8000 = vpop.f32.mrb[0].mxu0
        %8001 = vmatprep.mubr.bf16.mxu0 0
        %8002 = vmatmul.mubr.bf16.gmra.mrb[0].mxu0 %v7916
        %v8003 = vpop.f32.mrb[0].mxu0
        %v8004 = vadd.f32 0.0, %v8003
        %v8005 = vpop.f32.mrb[0].mxu0
        %v8006 = vpop.f32.mrb[0].mxu0
        %v8007 = vadd.f32 0.0, %v8006
        %v8008 = vpop.f32.mrb[0].mxu0
        %8009 = vmatprep.mubr.bf16.mxu0 0
        %8010 = vmatmul.mubr.bf16.gmra.mrb[0].mxu0 %v7918
        %v8011 = vpop.f32.mrb[0].mxu0
        %v8012 = vadd.f32 0.0, %v8011
        %v8013 = vpop.f32.mrb[0].mxu0
        %v8014 = vpop.f32.mrb[0].mxu0
        %v8015 = vadd.f32 0.0, %v8014
        %v8016 = vpop.f32.mrb[0].mxu0
        %8017 = vmatprep.mubr.bf16.mxu0 0
        %8018 = vmatmul.mubr.bf16.gmra.mrb[0].mxu0 %v7920
        %v8019 = vpop.f32.mrb[0].mxu0
        %v8020 = vadd.f32 0.0, %v8019
        %v8021 = vpop.f32.mrb[0].mxu0
        %v8022 = vpop.f32.mrb[0].mxu0
        %v8023 = vadd.f32 0.0, %v8022
        %v8024 = vpop.f32.mrb[0].mxu0
        %8025 = vmatprep.mubr.bf16.mxu0 0
        %8026 = vmatmul.mubr.bf16.gmra.mrb[0].mxu0 %v7922
        %v8027 = vpop.f32.mrb[0].mxu0
        %v8028 = vadd.f32 0.0, %v8027
        %v8029 = vpop.f32.mrb[0].mxu0
        %v8030 = vpop.f32.mrb[0].mxu0
        %v8031 = vadd.f32 0.0, %v8030
        %v8032 = vpop.f32.mrb[0].mxu0
        %8033 = vmatprep.mubr.bf16.mxu0 0
        %8034 = vmatmul.mubr.bf16.gmra.mrb[0].mxu0 %v7924
        %v8035 = vpop.f32.mrb[0].mxu0
        %v8036 = vadd.f32 0.0, %v8035
        %v8037 = vpop.f32.mrb[0].mxu0
        %v8038 = vpop.f32.mrb[0].mxu0
        %v8039 = vadd.f32 0.0, %v8038
        %v8040 = vpop.f32.mrb[0].mxu0
        %8041 = vmatprep.mubr.bf16.mxu0 0
        %8042 = vmatmul.mubr.bf16.gmra.mrb[0].mxu0 %v7926
        %v8043 = vpop.f32.mrb[0].mxu0
        %v8044 = vadd.f32 0.0, %v8043
        %v8045 = vpop.f32.mrb[0].mxu0
        %v8046 = vpop.f32.mrb[0].mxu0
        %v8047 = vadd.f32 0.0, %v8046
        %v8048 = vpop.f32.mrb[0].mxu0
        %8049 = vmatprep.mubr.bf16.mxu0 0
        %8050 = vmatmul.mubr.bf16.gmra.mrb[0].mxu0 %v7928
        %v8051 = vpop.f32.mrb[0].mxu0
        %v8052 = vadd.f32 0.0, %v8051
        %v8053 = vpop.f32.mrb[0].mxu0
        %v8054 = vpop.f32.mrb[0].mxu0
        %v8055 = vadd.f32 0.0, %v8054
        %v8056 = vpop.f32.mrb[0].mxu0
        %8057 = vmatprep.mubr.bf16.mxu0 0
        %8058 = vmatmul.mubr.bf16.gmra.mrb[0].mxu0 %v7930
        %v8059 = vpop.f32.mrb[0].mxu0
        %v8060 = vadd.f32 0.0, %v8059
        %v8061 = vpop.f32.mrb[0].mxu0
        %v8062 = vpop.f32.mrb[0].mxu0
        %v8063 = vadd.f32 0.0, %v8062
        %v8064 = vpop.f32.mrb[0].mxu0
        %8065 = vmatprep.mubr.bf16.mxu0 0
        %8066 = vmatmul.mubr.bf16.gmra.mrb[0].mxu0 %v7932
        %v8067 = vpop.f32.mrb[0].mxu0
        %v8068 = vadd.f32 0.0, %v8067
        %v8069 = vpop.f32.mrb[0].mxu0
        %v8070 = vpop.f32.mrb[0].mxu0
        %v8071 = vadd.f32 0.0, %v8070
        %v8072 = vpop.f32.mrb[0].mxu0
        %8073 = vmatprep.mubr.bf16.mxu0 0
        %8074 = vmatmul.mubr.bf16.gmra.mrb[0].mxu0 %v7934
        %v8075 = vpop.f32.mrb[0].mxu0
        %v8076 = vadd.f32 0.0, %v8075
        %v8077 = vpop.f32.mrb[0].mxu0
        %v8078 = vpop.f32.mrb[0].mxu0
        %v8079 = vadd.f32 0.0, %v8078
        %v8080 = vpop.f32.mrb[0].mxu0
        %8081 = vmatprep.mubr.bf16.mxu0 0
        %8082 = vmatmul.mubr.bf16.gmra.mrb[0].mxu0 %v7936
        %v8083 = vpop.f32.mrb[0].mxu0
        %v8084 = vadd.f32 0.0, %v8083
        %v8085 = vpop.f32.mrb[0].mxu0
        %v8086 = vpop.f32.mrb[0].mxu0
        %v8087 = vadd.f32 0.0, %v8086
        %v8088 = vpop.f32.mrb[0].mxu0
        %8089 = vmatprep.mubr.bf16.mxu0 0
        %8090 = vmatmul.mubr.bf16.gmra.mrb[0].mxu0 %v7938
        %v8091 = vpop.f32.mrb[0].mxu0
        %v8092 = vadd.f32 0.0, %v8091
        %v8093 = vpop.f32.mrb[0].mxu0
        %v8094 = vpop.f32.mrb[0].mxu0
        %v8095 = vadd.f32 0.0, %v8094
        %v8096 = vpop.f32.mrb[0].mxu0
        %8097 = vmatprep.mubr.bf16.mxu0 0
        %8098 = vmatmul.mubr.bf16.gmra.mrb[0].mxu0 %v7940
        %v8099 = vpop.f32.mrb[0].mxu0
        %v8100 = vadd.f32 0.0, %v8099
        %v8101 = vpop.f32.mrb[0].mxu0
        %v8102 = vpop.f32.mrb[0].mxu0
        %v8103 = vadd.f32 0.0, %v8102
        %v8104 = vpop.f32.mrb[0].mxu0
        %8105 = vdwg.mxu0
        %v8106 = vadd.f32 %v6101, %v7980
        %v8107 = vadd.f32 %v6102, %v7983
        %v8108 = vadd.f32 %v6103, %v7988
        %v8109 = vadd.f32 %v6104, %v7991
        %v8110 = vadd.f32 %v6105, %v7996
        %v8111 = vadd.f32 %v6106, %v7999
        %v8112 = vadd.f32 %v6107, %v8004
        %v8113 = vadd.f32 %v6108, %v8007
        %v8114 = vadd.f32 %v6109, %v8012
        %v8115 = vadd.f32 %v6110, %v8015
        %v8116 = vadd.f32 %v6111, %v8020
        %v8117 = vadd.f32 %v6112, %v8023
        %v8118 = vadd.f32 %v6113, %v8028
        %v8119 = vadd.f32 %v6114, %v8031
        %v8120 = vadd.f32 %v6115, %v8036
        %v8121 = vadd.f32 %v6116, %v8039
        %v8122 = vadd.f32 %v6117, %v8044
        %v8123 = vadd.f32 %v6118, %v8047
        %v8124 = vadd.f32 %v6119, %v8052
        %v8125 = vadd.f32 %v6120, %v8055
        %v8126 = vadd.f32 %v6121, %v8060
        %v8127 = vadd.f32 %v6122, %v8063
        %v8128 = vadd.f32 %v6123, %v8068
        %v8129 = vadd.f32 %v6124, %v8071
        %v8130 = vadd.f32 %v6125, %v8076
        %v8131 = vadd.f32 %v6126, %v8079
        %v8132 = vadd.f32 %v6127, %v8084
        %v8133 = vadd.f32 %v6128, %v8087
        %v8134 = vadd.f32 %v6129, %v8092
        %v8135 = vadd.f32 %v6130, %v8095
        %v8136 = vadd.f32 %v6131, %v8100
        %v8137 = vadd.f32 %v6132, %v8103
        %s8138 = scalar_lea.vmem %s168, 48
        %v8139 = vld [vmem:[%s8138] sm:$0xf]
        %v8140 = vld [vmem:[%s8138 + $0x4] sm:$0xf]
        %v8141 = vld [vmem:[%s8138 + $0xc] sm:$0xf]
        %v8142 = vld [vmem:[%s8138 + $0x10] sm:$0xf]
        %v8143 = vld [vmem:[%s8138 + $0x18] sm:$0xf]
        %v8144 = vld [vmem:[%s8138 + $0x1c] sm:$0xf]
        %v8145 = vld [vmem:[%s8138 + $0x24] sm:$0xf]
        %v8146 = vld [vmem:[%s8138 + $0x28] sm:$0xf]
        %v8147 = vld [vmem:[%s8138 + $0x30] sm:$0xf]
        %v8148 = vld [vmem:[%s8138 + $0x34] sm:$0xf]
        %v8149 = vld [vmem:[%s8138 + $0x3c] sm:$0xf]
        %v8150 = vld [vmem:[%s8138 + $0x40] sm:$0xf]
        %v8151 = vld [vmem:[%s8138 + $0x48] sm:$0xf]
        %v8152 = vld [vmem:[%s8138 + $0x4c] sm:$0xf]
        %v8153 = vld [vmem:[%s8138 + $0x54] sm:$0xf]
        %v8154 = vld [vmem:[%s8138 + $0x58] sm:$0xf]
        %v8155 = vld [vmem:[%s8138 + $0x60] sm:$0xf]
        %v8156 = vld [vmem:[%s8138 + $0x64] sm:$0xf]
        %v8157 = vld [vmem:[%s8138 + $0x6c] sm:$0xf]
        %v8158 = vld [vmem:[%s8138 + $0x70] sm:$0xf]
        %v8159 = vld [vmem:[%s8138 + $0x78] sm:$0xf]
        %v8160 = vld [vmem:[%s8138 + $0x7c] sm:$0xf]
        %v8161 = vld [vmem:[%s8138 + $0x84] sm:$0xf]
        %v8162 = vld [vmem:[%s8138 + $0x88] sm:$0xf]
        %v8163 = vld [vmem:[%s8138 + $0x90] sm:$0xf]
        %v8164 = vld [vmem:[%s8138 + $0x94] sm:$0xf]
        %v8165 = vld [vmem:[%s8138 + $0x9c] sm:$0xf]
        %v8166 = vld [vmem:[%s8138 + $0xa0] sm:$0xf]
        %v8167 = vld [vmem:[%s8138 + $0xa8] sm:$0xf]
        %v8168 = vld [vmem:[%s8138 + $0xac] sm:$0xf]
        %v8169 = vld [vmem:[%s8138 + $0xb4] sm:$0xf]
        %v8170 = vld [vmem:[%s8138 + $0xb8] sm:$0xf]
        %v8171 = vld [vmem:[%s8138 + $0x8] sm:$0x1]
        %v8172 = vld [vmem:[%s8138 + $0x14] sm:$0x1]
        %v8173 = vld [vmem:[%s8138 + $0x20] sm:$0x1]
        %v8174 = vld [vmem:[%s8138 + $0x2c] sm:$0x1]
        %v8175 = vld [vmem:[%s8138 + $0x38] sm:$0x1]
        %v8176 = vld [vmem:[%s8138 + $0x44] sm:$0x1]
        %v8177 = vld [vmem:[%s8138 + $0x50] sm:$0x1]
        %v8178 = vld [vmem:[%s8138 + $0x5c] sm:$0x1]
        %v8179 = vld [vmem:[%s8138 + $0x68] sm:$0x1]
        %v8180 = vld [vmem:[%s8138 + $0x74] sm:$0x1]
        %v8181 = vld [vmem:[%s8138 + $0x80] sm:$0x1]
        %v8182 = vld [vmem:[%s8138 + $0x8c] sm:$0x1]
        %v8183 = vld [vmem:[%s8138 + $0x98] sm:$0x1]
        %v8184 = vld [vmem:[%s8138 + $0xa4] sm:$0x1]
        %v8185 = vld [vmem:[%s8138 + $0xb0] sm:$0x1]
        %v8186 = vld [vmem:[%s8138 + $0xbc] sm:$0x1]
        %v8187 = vld [vmem:[%s8138] sm:$0xe]
        %v8188 = vld [vmem:[%s8138 + $0xc] sm:$0xe]
        %v8189 = vld [vmem:[%s8138 + $0x18] sm:$0xe]
        %v8190 = vld [vmem:[%s8138 + $0x24] sm:$0xe]
        %v8191 = vld [vmem:[%s8138 + $0x30] sm:$0xe]
        %v8192 = vld [vmem:[%s8138 + $0x3c] sm:$0xe]
        %v8193 = vld [vmem:[%s8138 + $0x48] sm:$0xe]
        %v8194 = vld [vmem:[%s8138 + $0x54] sm:$0xe]
        %v8195 = vld [vmem:[%s8138 + $0x60] sm:$0xe]
        %v8196 = vld [vmem:[%s8138 + $0x6c] sm:$0xe]
        %v8197 = vld [vmem:[%s8138 + $0x78] sm:$0xe]
        %v8198 = vld [vmem:[%s8138 + $0x84] sm:$0xe]
        %v8199 = vld [vmem:[%s8138 + $0x90] sm:$0xe]
        %v8200 = vld [vmem:[%s8138 + $0x9c] sm:$0xe]
        %v8201 = vld [vmem:[%s8138 + $0xa8] sm:$0xe]
        %v8202 = vld [vmem:[%s8138 + $0xb4] sm:$0xe]
        %v8203 = vld [vmem:[%s8138 + $0x8] sm:$0x3]
        %v8204 = vld [vmem:[%s8138 + $0x14] sm:$0x3]
        %v8205 = vld [vmem:[%s8138 + $0x20] sm:$0x3]
        %v8206 = vld [vmem:[%s8138 + $0x2c] sm:$0x3]
        %v8207 = vld [vmem:[%s8138 + $0x38] sm:$0x3]
        %v8208 = vld [vmem:[%s8138 + $0x44] sm:$0x3]
        %v8209 = vld [vmem:[%s8138 + $0x50] sm:$0x3]
        %v8210 = vld [vmem:[%s8138 + $0x5c] sm:$0x3]
        %v8211 = vld [vmem:[%s8138 + $0x68] sm:$0x3]
        %v8212 = vld [vmem:[%s8138 + $0x74] sm:$0x3]
        %v8213 = vld [vmem:[%s8138 + $0x80] sm:$0x3]
        %v8214 = vld [vmem:[%s8138 + $0x8c] sm:$0x3]
        %v8215 = vld [vmem:[%s8138 + $0x98] sm:$0x3]
        %v8216 = vld [vmem:[%s8138 + $0xa4] sm:$0x3]
        %v8217 = vld [vmem:[%s8138 + $0xb0] sm:$0x3]
        %v8218 = vld [vmem:[%s8138 + $0xbc] sm:$0x3]
        %v8219 = vld [vmem:[%s8138] sm:$0xc]
        %v8220 = vld [vmem:[%s8138 + $0xc] sm:$0xc]
        %v8221 = vld [vmem:[%s8138 + $0x18] sm:$0xc]
        %v8222 = vld [vmem:[%s8138 + $0x24] sm:$0xc]
        %v8223 = vld [vmem:[%s8138 + $0x30] sm:$0xc]
        %v8224 = vld [vmem:[%s8138 + $0x3c] sm:$0xc]
        %v8225 = vld [vmem:[%s8138 + $0x48] sm:$0xc]
        %v8226 = vld [vmem:[%s8138 + $0x54] sm:$0xc]
        %v8227 = vld [vmem:[%s8138 + $0x60] sm:$0xc]
        %v8228 = vld [vmem:[%s8138 + $0x6c] sm:$0xc]
        %v8229 = vld [vmem:[%s8138 + $0x78] sm:$0xc]
        %v8230 = vld [vmem:[%s8138 + $0x84] sm:$0xc]
        %v8231 = vld [vmem:[%s8138 + $0x90] sm:$0xc]
        %v8232 = vld [vmem:[%s8138 + $0x9c] sm:$0xc]
        %v8233 = vld [vmem:[%s8138 + $0xa8] sm:$0xc]
        %v8234 = vld [vmem:[%s8138 + $0xb4] sm:$0xc]
        %v8235 = vld [vmem:[%s8138 + $0x8] sm:$0x7]
        %v8236 = vld [vmem:[%s8138 + $0x14] sm:$0x7]
        %v8237 = vld [vmem:[%s8138 + $0x20] sm:$0x7]
        %v8238 = vld [vmem:[%s8138 + $0x2c] sm:$0x7]
        %v8239 = vld [vmem:[%s8138 + $0x38] sm:$0x7]
        %v8240 = vld [vmem:[%s8138 + $0x44] sm:$0x7]
        %v8241 = vld [vmem:[%s8138 + $0x50] sm:$0x7]
        %v8242 = vld [vmem:[%s8138 + $0x5c] sm:$0x7]
        %v8243 = vld [vmem:[%s8138 + $0x68] sm:$0x7]
        %v8244 = vld [vmem:[%s8138 + $0x74] sm:$0x7]
        %v8245 = vld [vmem:[%s8138 + $0x80] sm:$0x7]
        %v8246 = vld [vmem:[%s8138 + $0x8c] sm:$0x7]
        %v8247 = vld [vmem:[%s8138 + $0x98] sm:$0x7]
        %v8248 = vld [vmem:[%s8138 + $0xa4] sm:$0x7]
        %v8249 = vld [vmem:[%s8138 + $0xb0] sm:$0x7]
        %v8250 = vld [vmem:[%s8138 + $0xbc] sm:$0x7]
        %v8251 = vld [vmem:[%s8138] sm:$0x8]
        %v8252 = vld [vmem:[%s8138 + $0xc] sm:$0x8]
        %v8253 = vld [vmem:[%s8138 + $0x18] sm:$0x8]
        %v8254 = vld [vmem:[%s8138 + $0x24] sm:$0x8]
        %v8255 = vld [vmem:[%s8138 + $0x30] sm:$0x8]
        %v8256 = vld [vmem:[%s8138 + $0x3c] sm:$0x8]
        %v8257 = vld [vmem:[%s8138 + $0x48] sm:$0x8]
        %v8258 = vld [vmem:[%s8138 + $0x54] sm:$0x8]
        %v8259 = vld [vmem:[%s8138 + $0x60] sm:$0x8]
        %v8260 = vld [vmem:[%s8138 + $0x6c] sm:$0x8]
        %v8261 = vld [vmem:[%s8138 + $0x78] sm:$0x8]
        %v8262 = vld [vmem:[%s8138 + $0x84] sm:$0x8]
        %v8263 = vld [vmem:[%s8138 + $0x90] sm:$0x8]
        %v8264 = vld [vmem:[%s8138 + $0x9c] sm:$0x8]
        %v8265 = vld [vmem:[%s8138 + $0xa8] sm:$0x8]
        %v8266 = vld [vmem:[%s8138 + $0xb4] sm:$0x8]
        %v8299 = vunpack.c.l.b16 %v8139
        %v8300 = vunpack.c.l.b16 %v8140
        %v8301 = vunpack.c.l.b16 %v8141
        %v8302 = vunpack.c.l.b16 %v8142
        %v8303 = vunpack.c.l.b16 %v8143
        %v8304 = vunpack.c.l.b16 %v8144
        %v8305 = vunpack.c.l.b16 %v8145
        %v8306 = vunpack.c.l.b16 %v8146
        %v8307 = vunpack.c.l.b16 %v8147
        %v8308 = vunpack.c.l.b16 %v8148
        %v8309 = vunpack.c.l.b16 %v8149
        %v8310 = vunpack.c.l.b16 %v8150
        %v8311 = vunpack.c.l.b16 %v8151
        %v8312 = vunpack.c.l.b16 %v8152
        %v8313 = vunpack.c.l.b16 %v8153
        %v8314 = vunpack.c.l.b16 %v8154
        %v8315 = vunpack.c.l.b16 %v8155
        %v8316 = vunpack.c.l.b16 %v8156
        %v8317 = vunpack.c.l.b16 %v8157
        %v8318 = vunpack.c.l.b16 %v8158
        %v8319 = vunpack.c.l.b16 %v8159
        %v8320 = vunpack.c.l.b16 %v8160
        %v8321 = vunpack.c.l.b16 %v8161
        %v8322 = vunpack.c.l.b16 %v8162
        %v8323 = vunpack.c.l.b16 %v8163
        %v8324 = vunpack.c.l.b16 %v8164
        %v8325 = vunpack.c.l.b16 %v8165
        %v8326 = vunpack.c.l.b16 %v8166
        %v8327 = vunpack.c.l.b16 %v8167
        %v8328 = vunpack.c.l.b16 %v8168
        %v8329 = vunpack.c.l.b16 %v8169
        %v8330 = vunpack.c.l.b16 %v8170
        %v8331 = vpack.c.b16 %v8300, %v8299
        %v8332 = vpack.c.b16 %v8302, %v8301
        %v8333 = vpack.c.b16 %v8304, %v8303
        %v8334 = vpack.c.b16 %v8306, %v8305
        %v8335 = vpack.c.b16 %v8308, %v8307
        %v8336 = vpack.c.b16 %v8310, %v8309
        %v8337 = vpack.c.b16 %v8312, %v8311
        %v8338 = vpack.c.b16 %v8314, %v8313
        %v8339 = vpack.c.b16 %v8316, %v8315
        %v8340 = vpack.c.b16 %v8318, %v8317
        %v8341 = vpack.c.b16 %v8320, %v8319
        %v8342 = vpack.c.b16 %v8322, %v8321
        %v8343 = vpack.c.b16 %v8324, %v8323
        %v8344 = vpack.c.b16 %v8326, %v8325
        %v8345 = vpack.c.b16 %v8328, %v8327
        %v8346 = vpack.c.b16 %v8330, %v8329
        %v8363 = vunpack.c.l.b16 %v8171
        %v8364 = vunpack.c.l.b16 %v8172
        %v8365 = vunpack.c.l.b16 %v8173
        %v8366 = vunpack.c.l.b16 %v8174
        %v8367 = vunpack.c.l.b16 %v8175
        %v8368 = vunpack.c.l.b16 %v8176
        %v8369 = vunpack.c.l.b16 %v8177
        %v8370 = vunpack.c.l.b16 %v8178
        %v8371 = vunpack.c.l.b16 %v8179
        %v8372 = vunpack.c.l.b16 %v8180
        %v8373 = vunpack.c.l.b16 %v8181
        %v8374 = vunpack.c.l.b16 %v8182
        %v8375 = vunpack.c.l.b16 %v8183
        %v8376 = vunpack.c.l.b16 %v8184
        %v8377 = vunpack.c.l.b16 %v8185
        %v8378 = vunpack.c.l.b16 %v8186
        %v8379 = vpack.c.b16 %v8363, %v8363
        %v8380 = vpack.c.b16 %v8364, %v8364
        %v8381 = vpack.c.b16 %v8365, %v8365
        %v8382 = vpack.c.b16 %v8366, %v8366
        %v8383 = vpack.c.b16 %v8367, %v8367
        %v8384 = vpack.c.b16 %v8368, %v8368
        %v8385 = vpack.c.b16 %v8369, %v8369
        %v8386 = vpack.c.b16 %v8370, %v8370
        %v8387 = vpack.c.b16 %v8371, %v8371
        %v8388 = vpack.c.b16 %v8372, %v8372
        %v8389 = vpack.c.b16 %v8373, %v8373
        %v8390 = vpack.c.b16 %v8374, %v8374
        %v8391 = vpack.c.b16 %v8375, %v8375
        %v8392 = vpack.c.b16 %v8376, %v8376
        %v8393 = vpack.c.b16 %v8377, %v8377
        %v8394 = vpack.c.b16 %v8378, %v8378
        %v8396 = vshrl.u32 %v8331, 16
        %v8398 = vshll.u32 %v8331, 16
        %v8400 = vrot.slane %v8398, 1
        %v8401 = vor.u32 %v8396, %v8400
        %v8403 = vshll.u32 %v8379, 16
        %v8405 = vrot.slane %v8403, 1
        %v8406 = vsel %vm426, %v8401, %v8405
        %v8408 = vshrl.u32 %v8332, 16
        %v8410 = vshll.u32 %v8332, 16
        %v8412 = vrot.slane %v8410, 1
        %v8413 = vor.u32 %v8408, %v8412
        %v8415 = vshll.u32 %v8380, 16
        %v8417 = vrot.slane %v8415, 1
        %v8418 = vsel %vm426, %v8413, %v8417
        %v8420 = vshrl.u32 %v8333, 16
        %v8422 = vshll.u32 %v8333, 16
        %v8424 = vrot.slane %v8422, 1
        %v8425 = vor.u32 %v8420, %v8424
        %v8427 = vshll.u32 %v8381, 16
        %v8429 = vrot.slane %v8427, 1
        %v8430 = vsel %vm426, %v8425, %v8429
        %v8432 = vshrl.u32 %v8334, 16
        %v8434 = vshll.u32 %v8334, 16
        %v8436 = vrot.slane %v8434, 1
        %v8437 = vor.u32 %v8432, %v8436
        %v8439 = vshll.u32 %v8382, 16
        %v8441 = vrot.slane %v8439, 1
        %v8442 = vsel %vm426, %v8437, %v8441
        %v8444 = vshrl.u32 %v8335, 16
        %v8446 = vshll.u32 %v8335, 16
        %v8448 = vrot.slane %v8446, 1
        %v8449 = vor.u32 %v8444, %v8448
        %v8451 = vshll.u32 %v8383, 16
        %v8453 = vrot.slane %v8451, 1
        %v8454 = vsel %vm426, %v8449, %v8453
        %v8456 = vshrl.u32 %v8336, 16
        %v8458 = vshll.u32 %v8336, 16
        %v8460 = vrot.slane %v8458, 1
        %v8461 = vor.u32 %v8456, %v8460
        %v8463 = vshll.u32 %v8384, 16
        %v8465 = vrot.slane %v8463, 1
        %v8466 = vsel %vm426, %v8461, %v8465
        %v8468 = vshrl.u32 %v8337, 16
        %v8470 = vshll.u32 %v8337, 16
        %v8472 = vrot.slane %v8470, 1
        %v8473 = vor.u32 %v8468, %v8472
        %v8475 = vshll.u32 %v8385, 16
        %v8477 = vrot.slane %v8475, 1
        %v8478 = vsel %vm426, %v8473, %v8477
        %v8480 = vshrl.u32 %v8338, 16
        %v8482 = vshll.u32 %v8338, 16
        %v8484 = vrot.slane %v8482, 1
        %v8485 = vor.u32 %v8480, %v8484
        %v8487 = vshll.u32 %v8386, 16
        %v8489 = vrot.slane %v8487, 1
        %v8490 = vsel %vm426, %v8485, %v8489
        %v8492 = vshrl.u32 %v8339, 16
        %v8494 = vshll.u32 %v8339, 16
        %v8496 = vrot.slane %v8494, 1
        %v8497 = vor.u32 %v8492, %v8496
        %v8499 = vshll.u32 %v8387, 16
        %v8501 = vrot.slane %v8499, 1
        %v8502 = vsel %vm426, %v8497, %v8501
        %v8504 = vshrl.u32 %v8340, 16
        %v8506 = vshll.u32 %v8340, 16
        %v8508 = vrot.slane %v8506, 1
        %v8509 = vor.u32 %v8504, %v8508
        %v8511 = vshll.u32 %v8388, 16
        %v8513 = vrot.slane %v8511, 1
        %v8514 = vsel %vm426, %v8509, %v8513
        %v8516 = vshrl.u32 %v8341, 16
        %v8518 = vshll.u32 %v8341, 16
        %v8520 = vrot.slane %v8518, 1
        %v8521 = vor.u32 %v8516, %v8520
        %v8523 = vshll.u32 %v8389, 16
        %v8525 = vrot.slane %v8523, 1
        %v8526 = vsel %vm426, %v8521, %v8525
        %v8528 = vshrl.u32 %v8342, 16
        %v8530 = vshll.u32 %v8342, 16
        %v8532 = vrot.slane %v8530, 1
        %v8533 = vor.u32 %v8528, %v8532
        %v8535 = vshll.u32 %v8390, 16
        %v8537 = vrot.slane %v8535, 1
        %v8538 = vsel %vm426, %v8533, %v8537
        %v8540 = vshrl.u32 %v8343, 16
        %v8542 = vshll.u32 %v8343, 16
        %v8544 = vrot.slane %v8542, 1
        %v8545 = vor.u32 %v8540, %v8544
        %v8547 = vshll.u32 %v8391, 16
        %v8549 = vrot.slane %v8547, 1
        %v8550 = vsel %vm426, %v8545, %v8549
        %v8552 = vshrl.u32 %v8344, 16
        %v8554 = vshll.u32 %v8344, 16
        %v8556 = vrot.slane %v8554, 1
        %v8557 = vor.u32 %v8552, %v8556
        %v8559 = vshll.u32 %v8392, 16
        %v8561 = vrot.slane %v8559, 1
        %v8562 = vsel %vm426, %v8557, %v8561
        %v8564 = vshrl.u32 %v8345, 16
        %v8566 = vshll.u32 %v8345, 16
        %v8568 = vrot.slane %v8566, 1
        %v8569 = vor.u32 %v8564, %v8568
        %v8571 = vshll.u32 %v8393, 16
        %v8573 = vrot.slane %v8571, 1
        %v8574 = vsel %vm426, %v8569, %v8573
        %v8576 = vshrl.u32 %v8346, 16
        %v8578 = vshll.u32 %v8346, 16
        %v8580 = vrot.slane %v8578, 1
        %v8581 = vor.u32 %v8576, %v8580
        %v8583 = vshll.u32 %v8394, 16
        %v8585 = vrot.slane %v8583, 1
        %v8586 = vsel %vm426, %v8581, %v8585
        %8587 = vrot.lane.b32.xlu0 %v8406, 4
        %v8588 = vpop.permute.xlu0 %8587
        %8589 = vrot.lane.b32.xlu0 %v8418, 4
        %v8590 = vpop.permute.xlu0 %8589
        %8591 = vrot.lane.b32.xlu0 %v8430, 4
        %v8592 = vpop.permute.xlu0 %8591
        %8593 = vrot.lane.b32.xlu0 %v8442, 4
        %v8594 = vpop.permute.xlu0 %8593
        %8595 = vrot.lane.b32.xlu0 %v8454, 4
        %v8596 = vpop.permute.xlu0 %8595
        %8597 = vrot.lane.b32.xlu0 %v8466, 4
        %v8598 = vpop.permute.xlu0 %8597
        %8599 = vrot.lane.b32.xlu0 %v8478, 4
        %v8600 = vpop.permute.xlu0 %8599
        %8601 = vrot.lane.b32.xlu0 %v8490, 4
        %v8602 = vpop.permute.xlu0 %8601
        %8603 = vrot.lane.b32.xlu0 %v8502, 4
        %v8604 = vpop.permute.xlu0 %8603
        %8605 = vrot.lane.b32.xlu0 %v8514, 4
        %v8606 = vpop.permute.xlu0 %8605
        %8607 = vrot.lane.b32.xlu0 %v8526, 4
        %v8608 = vpop.permute.xlu0 %8607
        %8609 = vrot.lane.b32.xlu0 %v8538, 4
        %v8610 = vpop.permute.xlu0 %8609
        %8611 = vrot.lane.b32.xlu0 %v8550, 4
        %v8612 = vpop.permute.xlu0 %8611
        %8613 = vrot.lane.b32.xlu0 %v8562, 4
        %v8614 = vpop.permute.xlu0 %8613
        %8615 = vrot.lane.b32.xlu0 %v8574, 4
        %v8616 = vpop.permute.xlu0 %8615
        %8617 = vrot.lane.b32.xlu0 %v8586, 4
        %v8618 = vpop.permute.xlu0 %8617
        %v8635 = vunpack.c.l.b16 %v8187
        %v8636 = vunpack.c.l.b16 %v8188
        %v8637 = vunpack.c.l.b16 %v8189
        %v8638 = vunpack.c.l.b16 %v8190
        %v8639 = vunpack.c.l.b16 %v8191
        %v8640 = vunpack.c.l.b16 %v8192
        %v8641 = vunpack.c.l.b16 %v8193
        %v8642 = vunpack.c.l.b16 %v8194
        %v8643 = vunpack.c.l.b16 %v8195
        %v8644 = vunpack.c.l.b16 %v8196
        %v8645 = vunpack.c.l.b16 %v8197
        %v8646 = vunpack.c.l.b16 %v8198
        %v8647 = vunpack.c.l.b16 %v8199
        %v8648 = vunpack.c.l.b16 %v8200
        %v8649 = vunpack.c.l.b16 %v8201
        %v8650 = vunpack.c.l.b16 %v8202
        %v8651 = vpack.c.b16 %v8300, %v8635
        %v8652 = vpack.c.b16 %v8302, %v8636
        %v8653 = vpack.c.b16 %v8304, %v8637
        %v8654 = vpack.c.b16 %v8306, %v8638
        %v8655 = vpack.c.b16 %v8308, %v8639
        %v8656 = vpack.c.b16 %v8310, %v8640
        %v8657 = vpack.c.b16 %v8312, %v8641
        %v8658 = vpack.c.b16 %v8314, %v8642
        %v8659 = vpack.c.b16 %v8316, %v8643
        %v8660 = vpack.c.b16 %v8318, %v8644
        %v8661 = vpack.c.b16 %v8320, %v8645
        %v8662 = vpack.c.b16 %v8322, %v8646
        %v8663 = vpack.c.b16 %v8324, %v8647
        %v8664 = vpack.c.b16 %v8326, %v8648
        %v8665 = vpack.c.b16 %v8328, %v8649
        %v8666 = vpack.c.b16 %v8330, %v8650
        %v8667 = vrot.slane %v8651, 1
        %v8668 = vrot.slane %v8379, 1
        %v8669 = vsel %vm699, %v8667, %v8668
        %v8670 = vrot.slane %v8652, 1
        %v8671 = vrot.slane %v8380, 1
        %v8672 = vsel %vm699, %v8670, %v8671
        %v8673 = vrot.slane %v8653, 1
        %v8674 = vrot.slane %v8381, 1
        %v8675 = vsel %vm699, %v8673, %v8674
        %v8676 = vrot.slane %v8654, 1
        %v8677 = vrot.slane %v8382, 1
        %v8678 = vsel %vm699, %v8676, %v8677
        %v8679 = vrot.slane %v8655, 1
        %v8680 = vrot.slane %v8383, 1
        %v8681 = vsel %vm699, %v8679, %v8680
        %v8682 = vrot.slane %v8656, 1
        %v8683 = vrot.slane %v8384, 1
        %v8684 = vsel %vm699, %v8682, %v8683
        %v8685 = vrot.slane %v8657, 1
        %v8686 = vrot.slane %v8385, 1
        %v8687 = vsel %vm699, %v8685, %v8686
        %v8688 = vrot.slane %v8658, 1
        %v8689 = vrot.slane %v8386, 1
        %v8690 = vsel %vm699, %v8688, %v8689
        %v8691 = vrot.slane %v8659, 1
        %v8692 = vrot.slane %v8387, 1
        %v8693 = vsel %vm699, %v8691, %v8692
        %v8694 = vrot.slane %v8660, 1
        %v8695 = vrot.slane %v8388, 1
        %v8696 = vsel %vm699, %v8694, %v8695
        %v8697 = vrot.slane %v8661, 1
        %v8698 = vrot.slane %v8389, 1
        %v8699 = vsel %vm699, %v8697, %v8698
        %v8700 = vrot.slane %v8662, 1
        %v8701 = vrot.slane %v8390, 1
        %v8702 = vsel %vm699, %v8700, %v8701
        %v8703 = vrot.slane %v8663, 1
        %v8704 = vrot.slane %v8391, 1
        %v8705 = vsel %vm699, %v8703, %v8704
        %v8706 = vrot.slane %v8664, 1
        %v8707 = vrot.slane %v8392, 1
        %v8708 = vsel %vm699, %v8706, %v8707
        %v8709 = vrot.slane %v8665, 1
        %v8710 = vrot.slane %v8393, 1
        %v8711 = vsel %vm699, %v8709, %v8710
        %v8712 = vrot.slane %v8666, 1
        %v8713 = vrot.slane %v8394, 1
        %v8714 = vsel %vm699, %v8712, %v8713
        %8715 = vrot.lane.b32.xlu0 %v8669, 8
        %v8716 = vpop.permute.xlu0 %8715
        %8717 = vrot.lane.b32.xlu0 %v8672, 8
        %v8718 = vpop.permute.xlu0 %8717
        %8719 = vrot.lane.b32.xlu0 %v8675, 8
        %v8720 = vpop.permute.xlu0 %8719
        %8721 = vrot.lane.b32.xlu0 %v8678, 8
        %v8722 = vpop.permute.xlu0 %8721
        %8723 = vrot.lane.b32.xlu0 %v8681, 8
        %v8724 = vpop.permute.xlu0 %8723
        %8725 = vrot.lane.b32.xlu0 %v8684, 8
        %v8726 = vpop.permute.xlu0 %8725
        %8727 = vrot.lane.b32.xlu0 %v8687, 8
        %v8728 = vpop.permute.xlu0 %8727
        %8729 = vrot.lane.b32.xlu0 %v8690, 8
        %v8730 = vpop.permute.xlu0 %8729
        %8731 = vrot.lane.b32.xlu0 %v8693, 8
        %v8732 = vpop.permute.xlu0 %8731
        %8733 = vrot.lane.b32.xlu0 %v8696, 8
        %v8734 = vpop.permute.xlu0 %8733
        %8735 = vrot.lane.b32.xlu0 %v8699, 8
        %v8736 = vpop.permute.xlu0 %8735
        %8737 = vrot.lane.b32.xlu0 %v8702, 8
        %v8738 = vpop.permute.xlu0 %8737
        %8739 = vrot.lane.b32.xlu0 %v8705, 8
        %v8740 = vpop.permute.xlu0 %8739
        %8741 = vrot.lane.b32.xlu0 %v8708, 8
        %v8742 = vpop.permute.xlu0 %8741
        %8743 = vrot.lane.b32.xlu0 %v8711, 8
        %v8744 = vpop.permute.xlu0 %8743
        %8745 = vrot.lane.b32.xlu0 %v8714, 8
        %v8746 = vpop.permute.xlu0 %8745
        %v8763 = vunpack.c.l.b16 %v8203
        %v8764 = vunpack.c.l.b16 %v8204
        %v8765 = vunpack.c.l.b16 %v8205
        %v8766 = vunpack.c.l.b16 %v8206
        %v8767 = vunpack.c.l.b16 %v8207
        %v8768 = vunpack.c.l.b16 %v8208
        %v8769 = vunpack.c.l.b16 %v8209
        %v8770 = vunpack.c.l.b16 %v8210
        %v8771 = vunpack.c.l.b16 %v8211
        %v8772 = vunpack.c.l.b16 %v8212
        %v8773 = vunpack.c.l.b16 %v8213
        %v8774 = vunpack.c.l.b16 %v8214
        %v8775 = vunpack.c.l.b16 %v8215
        %v8776 = vunpack.c.l.b16 %v8216
        %v8777 = vunpack.c.l.b16 %v8217
        %v8778 = vunpack.c.l.b16 %v8218
        %v8779 = vpack.c.b16 %v8763, %v8763
        %v8780 = vpack.c.b16 %v8764, %v8764
        %v8781 = vpack.c.b16 %v8765, %v8765
        %v8782 = vpack.c.b16 %v8766, %v8766
        %v8783 = vpack.c.b16 %v8767, %v8767
        %v8784 = vpack.c.b16 %v8768, %v8768
        %v8785 = vpack.c.b16 %v8769, %v8769
        %v8786 = vpack.c.b16 %v8770, %v8770
        %v8787 = vpack.c.b16 %v8771, %v8771
        %v8788 = vpack.c.b16 %v8772, %v8772
        %v8789 = vpack.c.b16 %v8773, %v8773
        %v8790 = vpack.c.b16 %v8774, %v8774
        %v8791 = vpack.c.b16 %v8775, %v8775
        %v8792 = vpack.c.b16 %v8776, %v8776
        %v8793 = vpack.c.b16 %v8777, %v8777
        %v8794 = vpack.c.b16 %v8778, %v8778
        %v8796 = vshrl.u32 %v8651, 16
        %v8798 = vrot.slane %v8796, 1
        %v8799 = vshll.u32 %v8651, 16
        %v8801 = vrot.slane %v8799, 2
        %v8802 = vor.u32 %v8798, %v8801
        %v8804 = vshrl.u32 %v8779, 16
        %v8806 = vrot.slane %v8804, 1
        %v8807 = vshll.u32 %v8779, 16
        %v8809 = vrot.slane %v8807, 2
        %v8810 = vor.u32 %v8806, %v8809
        %v8811 = vsel %vm828, %v8802, %v8810
        %v8813 = vshrl.u32 %v8652, 16
        %v8815 = vrot.slane %v8813, 1
        %v8816 = vshll.u32 %v8652, 16
        %v8818 = vrot.slane %v8816, 2
        %v8819 = vor.u32 %v8815, %v8818
        %v8821 = vshrl.u32 %v8780, 16
        %v8823 = vrot.slane %v8821, 1
        %v8824 = vshll.u32 %v8780, 16
        %v8826 = vrot.slane %v8824, 2
        %v8827 = vor.u32 %v8823, %v8826
        %v8828 = vsel %vm828, %v8819, %v8827
        %v8830 = vshrl.u32 %v8653, 16
        %v8832 = vrot.slane %v8830, 1
        %v8833 = vshll.u32 %v8653, 16
        %v8835 = vrot.slane %v8833, 2
        %v8836 = vor.u32 %v8832, %v8835
        %v8838 = vshrl.u32 %v8781, 16
        %v8840 = vrot.slane %v8838, 1
        %v8841 = vshll.u32 %v8781, 16
        %v8843 = vrot.slane %v8841, 2
        %v8844 = vor.u32 %v8840, %v8843
        %v8845 = vsel %vm828, %v8836, %v8844
        %v8847 = vshrl.u32 %v8654, 16
        %v8849 = vrot.slane %v8847, 1
        %v8850 = vshll.u32 %v8654, 16
        %v8852 = vrot.slane %v8850, 2
        %v8853 = vor.u32 %v8849, %v8852
        %v8855 = vshrl.u32 %v8782, 16
        %v8857 = vrot.slane %v8855, 1
        %v8858 = vshll.u32 %v8782, 16
        %v8860 = vrot.slane %v8858, 2
        %v8861 = vor.u32 %v8857, %v8860
        %v8862 = vsel %vm828, %v8853, %v8861
        %v8864 = vshrl.u32 %v8655, 16
        %v8866 = vrot.slane %v8864, 1
        %v8867 = vshll.u32 %v8655, 16
        %v8869 = vrot.slane %v8867, 2
        %v8870 = vor.u32 %v8866, %v8869
        %v8872 = vshrl.u32 %v8783, 16
        %v8874 = vrot.slane %v8872, 1
        %v8875 = vshll.u32 %v8783, 16
        %v8877 = vrot.slane %v8875, 2
        %v8878 = vor.u32 %v8874, %v8877
        %v8879 = vsel %vm828, %v8870, %v8878
        %v8881 = vshrl.u32 %v8656, 16
        %v8883 = vrot.slane %v8881, 1
        %v8884 = vshll.u32 %v8656, 16
        %v8886 = vrot.slane %v8884, 2
        %v8887 = vor.u32 %v8883, %v8886
        %v8889 = vshrl.u32 %v8784, 16
        %v8891 = vrot.slane %v8889, 1
        %v8892 = vshll.u32 %v8784, 16
        %v8894 = vrot.slane %v8892, 2
        %v8895 = vor.u32 %v8891, %v8894
        %v8896 = vsel %vm828, %v8887, %v8895
        %v8898 = vshrl.u32 %v8657, 16
        %v8900 = vrot.slane %v8898, 1
        %v8901 = vshll.u32 %v8657, 16
        %v8903 = vrot.slane %v8901, 2
        %v8904 = vor.u32 %v8900, %v8903
        %v8906 = vshrl.u32 %v8785, 16
        %v8908 = vrot.slane %v8906, 1
        %v8909 = vshll.u32 %v8785, 16
        %v8911 = vrot.slane %v8909, 2
        %v8912 = vor.u32 %v8908, %v8911
        %v8913 = vsel %vm828, %v8904, %v8912
        %v8915 = vshrl.u32 %v8658, 16
        %v8917 = vrot.slane %v8915, 1
        %v8918 = vshll.u32 %v8658, 16
        %v8920 = vrot.slane %v8918, 2
        %v8921 = vor.u32 %v8917, %v8920
        %v8923 = vshrl.u32 %v8786, 16
        %v8925 = vrot.slane %v8923, 1
        %v8926 = vshll.u32 %v8786, 16
        %v8928 = vrot.slane %v8926, 2
        %v8929 = vor.u32 %v8925, %v8928
        %v8930 = vsel %vm828, %v8921, %v8929
        %v8932 = vshrl.u32 %v8659, 16
        %v8934 = vrot.slane %v8932, 1
        %v8935 = vshll.u32 %v8659, 16
        %v8937 = vrot.slane %v8935, 2
        %v8938 = vor.u32 %v8934, %v8937
        %v8940 = vshrl.u32 %v8787, 16
        %v8942 = vrot.slane %v8940, 1
        %v8943 = vshll.u32 %v8787, 16
        %v8945 = vrot.slane %v8943, 2
        %v8946 = vor.u32 %v8942, %v8945
        %v8947 = vsel %vm828, %v8938, %v8946
        %v8949 = vshrl.u32 %v8660, 16
        %v8951 = vrot.slane %v8949, 1
        %v8952 = vshll.u32 %v8660, 16
        %v8954 = vrot.slane %v8952, 2
        %v8955 = vor.u32 %v8951, %v8954
        %v8957 = vshrl.u32 %v8788, 16
        %v8959 = vrot.slane %v8957, 1
        %v8960 = vshll.u32 %v8788, 16
        %v8962 = vrot.slane %v8960, 2
        %v8963 = vor.u32 %v8959, %v8962
        %v8964 = vsel %vm828, %v8955, %v8963
        %v8966 = vshrl.u32 %v8661, 16
        %v8968 = vrot.slane %v8966, 1
        %v8969 = vshll.u32 %v8661, 16
        %v8971 = vrot.slane %v8969, 2
        %v8972 = vor.u32 %v8968, %v8971
        %v8974 = vshrl.u32 %v8789, 16
        %v8976 = vrot.slane %v8974, 1
        %v8977 = vshll.u32 %v8789, 16
        %v8979 = vrot.slane %v8977, 2
        %v8980 = vor.u32 %v8976, %v8979
        %v8981 = vsel %vm828, %v8972, %v8980
        %v8983 = vshrl.u32 %v8662, 16
        %v8985 = vrot.slane %v8983, 1
        %v8986 = vshll.u32 %v8662, 16
        %v8988 = vrot.slane %v8986, 2
        %v8989 = vor.u32 %v8985, %v8988
        %v8991 = vshrl.u32 %v8790, 16
        %v8993 = vrot.slane %v8991, 1
        %v8994 = vshll.u32 %v8790, 16
        %v8996 = vrot.slane %v8994, 2
        %v8997 = vor.u32 %v8993, %v8996
        %v8998 = vsel %vm828, %v8989, %v8997
        %v9000 = vshrl.u32 %v8663, 16
        %v9002 = vrot.slane %v9000, 1
        %v9003 = vshll.u32 %v8663, 16
        %v9005 = vrot.slane %v9003, 2
        %v9006 = vor.u32 %v9002, %v9005
        %v9008 = vshrl.u32 %v8791, 16
        %v9010 = vrot.slane %v9008, 1
        %v9011 = vshll.u32 %v8791, 16
        %v9013 = vrot.slane %v9011, 2
        %v9014 = vor.u32 %v9010, %v9013
        %v9015 = vsel %vm828, %v9006, %v9014
        %v9017 = vshrl.u32 %v8664, 16
        %v9019 = vrot.slane %v9017, 1
        %v9020 = vshll.u32 %v8664, 16
        %v9022 = vrot.slane %v9020, 2
        %v9023 = vor.u32 %v9019, %v9022
        %v9025 = vshrl.u32 %v8792, 16
        %v9027 = vrot.slane %v9025, 1
        %v9028 = vshll.u32 %v8792, 16
        %v9030 = vrot.slane %v9028, 2
        %v9031 = vor.u32 %v9027, %v9030
        %v9032 = vsel %vm828, %v9023, %v9031
        %v9034 = vshrl.u32 %v8665, 16
        %v9036 = vrot.slane %v9034, 1
        %v9037 = vshll.u32 %v8665, 16
        %v9039 = vrot.slane %v9037, 2
        %v9040 = vor.u32 %v9036, %v9039
        %v9042 = vshrl.u32 %v8793, 16
        %v9044 = vrot.slane %v9042, 1
        %v9045 = vshll.u32 %v8793, 16
        %v9047 = vrot.slane %v9045, 2
        %v9048 = vor.u32 %v9044, %v9047
        %v9049 = vsel %vm828, %v9040, %v9048
        %v9051 = vshrl.u32 %v8666, 16
        %v9053 = vrot.slane %v9051, 1
        %v9054 = vshll.u32 %v8666, 16
        %v9056 = vrot.slane %v9054, 2
        %v9057 = vor.u32 %v9053, %v9056
        %v9059 = vshrl.u32 %v8794, 16
        %v9061 = vrot.slane %v9059, 1
        %v9062 = vshll.u32 %v8794, 16
        %v9064 = vrot.slane %v9062, 2
        %v9065 = vor.u32 %v9061, %v9064
        %v9066 = vsel %vm828, %v9057, %v9065
        %9067 = vrot.lane.b32.xlu0 %v8811, 12
        %v9068 = vpop.permute.xlu0 %9067
        %9069 = vrot.lane.b32.xlu0 %v8828, 12
        %v9070 = vpop.permute.xlu0 %9069
        %9071 = vrot.lane.b32.xlu0 %v8845, 12
        %v9072 = vpop.permute.xlu0 %9071
        %9073 = vrot.lane.b32.xlu0 %v8862, 12
        %v9074 = vpop.permute.xlu0 %9073
        %9075 = vrot.lane.b32.xlu0 %v8879, 12
        %v9076 = vpop.permute.xlu0 %9075
        %9077 = vrot.lane.b32.xlu0 %v8896, 12
        %v9078 = vpop.permute.xlu0 %9077
        %9079 = vrot.lane.b32.xlu0 %v8913, 12
        %v9080 = vpop.permute.xlu0 %9079
        %9081 = vrot.lane.b32.xlu0 %v8930, 12
        %v9082 = vpop.permute.xlu0 %9081
        %9083 = vrot.lane.b32.xlu0 %v8947, 12
        %v9084 = vpop.permute.xlu0 %9083
        %9085 = vrot.lane.b32.xlu0 %v8964, 12
        %v9086 = vpop.permute.xlu0 %9085
        %9087 = vrot.lane.b32.xlu0 %v8981, 12
        %v9088 = vpop.permute.xlu0 %9087
        %9089 = vrot.lane.b32.xlu0 %v8998, 12
        %v9090 = vpop.permute.xlu0 %9089
        %9091 = vrot.lane.b32.xlu0 %v9015, 12
        %v9092 = vpop.permute.xlu0 %9091
        %9093 = vrot.lane.b32.xlu0 %v9032, 12
        %v9094 = vpop.permute.xlu0 %9093
        %9095 = vrot.lane.b32.xlu0 %v9049, 12
        %v9096 = vpop.permute.xlu0 %9095
        %9097 = vrot.lane.b32.xlu0 %v9066, 12
        %v9098 = vpop.permute.xlu0 %9097
        %v9115 = vunpack.c.l.b16 %v8219
        %v9116 = vunpack.c.l.b16 %v8220
        %v9117 = vunpack.c.l.b16 %v8221
        %v9118 = vunpack.c.l.b16 %v8222
        %v9119 = vunpack.c.l.b16 %v8223
        %v9120 = vunpack.c.l.b16 %v8224
        %v9121 = vunpack.c.l.b16 %v8225
        %v9122 = vunpack.c.l.b16 %v8226
        %v9123 = vunpack.c.l.b16 %v8227
        %v9124 = vunpack.c.l.b16 %v8228
        %v9125 = vunpack.c.l.b16 %v8229
        %v9126 = vunpack.c.l.b16 %v8230
        %v9127 = vunpack.c.l.b16 %v8231
        %v9128 = vunpack.c.l.b16 %v8232
        %v9129 = vunpack.c.l.b16 %v8233
        %v9130 = vunpack.c.l.b16 %v8234
        %v9131 = vpack.c.b16 %v8300, %v9115
        %v9132 = vpack.c.b16 %v8302, %v9116
        %v9133 = vpack.c.b16 %v8304, %v9117
        %v9134 = vpack.c.b16 %v8306, %v9118
        %v9135 = vpack.c.b16 %v8308, %v9119
        %v9136 = vpack.c.b16 %v8310, %v9120
        %v9137 = vpack.c.b16 %v8312, %v9121
        %v9138 = vpack.c.b16 %v8314, %v9122
        %v9139 = vpack.c.b16 %v8316, %v9123
        %v9140 = vpack.c.b16 %v8318, %v9124
        %v9141 = vpack.c.b16 %v8320, %v9125
        %v9142 = vpack.c.b16 %v8322, %v9126
        %v9143 = vpack.c.b16 %v8324, %v9127
        %v9144 = vpack.c.b16 %v8326, %v9128
        %v9145 = vpack.c.b16 %v8328, %v9129
        %v9146 = vpack.c.b16 %v8330, %v9130
        %v9147 = vrot.slane %v9131, 2
        %v9148 = vrot.slane %v8779, 2
        %v9149 = vsel %vm1181, %v9147, %v9148
        %v9150 = vrot.slane %v9132, 2
        %v9151 = vrot.slane %v8780, 2
        %v9152 = vsel %vm1181, %v9150, %v9151
        %v9153 = vrot.slane %v9133, 2
        %v9154 = vrot.slane %v8781, 2
        %v9155 = vsel %vm1181, %v9153, %v9154
        %v9156 = vrot.slane %v9134, 2
        %v9157 = vrot.slane %v8782, 2
        %v9158 = vsel %vm1181, %v9156, %v9157
        %v9159 = vrot.slane %v9135, 2
        %v9160 = vrot.slane %v8783, 2
        %v9161 = vsel %vm1181, %v9159, %v9160
        %v9162 = vrot.slane %v9136, 2
        %v9163 = vrot.slane %v8784, 2
        %v9164 = vsel %vm1181, %v9162, %v9163
        %v9165 = vrot.slane %v9137, 2
        %v9166 = vrot.slane %v8785, 2
        %v9167 = vsel %vm1181, %v9165, %v9166
        %v9168 = vrot.slane %v9138, 2
        %v9169 = vrot.slane %v8786, 2
        %v9170 = vsel %vm1181, %v9168, %v9169
        %v9171 = vrot.slane %v9139, 2
        %v9172 = vrot.slane %v8787, 2
        %v9173 = vsel %vm1181, %v9171, %v9172
        %v9174 = vrot.slane %v9140, 2
        %v9175 = vrot.slane %v8788, 2
        %v9176 = vsel %vm1181, %v9174, %v9175
        %v9177 = vrot.slane %v9141, 2
        %v9178 = vrot.slane %v8789, 2
        %v9179 = vsel %vm1181, %v9177, %v9178
        %v9180 = vrot.slane %v9142, 2
        %v9181 = vrot.slane %v8790, 2
        %v9182 = vsel %vm1181, %v9180, %v9181
        %v9183 = vrot.slane %v9143, 2
        %v9184 = vrot.slane %v8791, 2
        %v9185 = vsel %vm1181, %v9183, %v9184
        %v9186 = vrot.slane %v9144, 2
        %v9187 = vrot.slane %v8792, 2
        %v9188 = vsel %vm1181, %v9186, %v9187
        %v9189 = vrot.slane %v9145, 2
        %v9190 = vrot.slane %v8793, 2
        %v9191 = vsel %vm1181, %v9189, %v9190
        %v9192 = vrot.slane %v9146, 2
        %v9193 = vrot.slane %v8794, 2
        %v9194 = vsel %vm1181, %v9192, %v9193
        %9195 = vrot.lane.b32.xlu0 %v9149, 16
        %v9196 = vpop.permute.xlu0 %9195
        %9197 = vrot.lane.b32.xlu0 %v9152, 16
        %v9198 = vpop.permute.xlu0 %9197
        %9199 = vrot.lane.b32.xlu0 %v9155, 16
        %v9200 = vpop.permute.xlu0 %9199
        %9201 = vrot.lane.b32.xlu0 %v9158, 16
        %v9202 = vpop.permute.xlu0 %9201
        %9203 = vrot.lane.b32.xlu0 %v9161, 16
        %v9204 = vpop.permute.xlu0 %9203
        %9205 = vrot.lane.b32.xlu0 %v9164, 16
        %v9206 = vpop.permute.xlu0 %9205
        %9207 = vrot.lane.b32.xlu0 %v9167, 16
        %v9208 = vpop.permute.xlu0 %9207
        %9209 = vrot.lane.b32.xlu0 %v9170, 16
        %v9210 = vpop.permute.xlu0 %9209
        %9211 = vrot.lane.b32.xlu0 %v9173, 16
        %v9212 = vpop.permute.xlu0 %9211
        %9213 = vrot.lane.b32.xlu0 %v9176, 16
        %v9214 = vpop.permute.xlu0 %9213
        %9215 = vrot.lane.b32.xlu0 %v9179, 16
        %v9216 = vpop.permute.xlu0 %9215
        %9217 = vrot.lane.b32.xlu0 %v9182, 16
        %v9218 = vpop.permute.xlu0 %9217
        %9219 = vrot.lane.b32.xlu0 %v9185, 16
        %v9220 = vpop.permute.xlu0 %9219
        %9221 = vrot.lane.b32.xlu0 %v9188, 16
        %v9222 = vpop.permute.xlu0 %9221
        %9223 = vrot.lane.b32.xlu0 %v9191, 16
        %v9224 = vpop.permute.xlu0 %9223
        %9225 = vrot.lane.b32.xlu0 %v9194, 16
        %v9226 = vpop.permute.xlu0 %9225
        %v9243 = vunpack.c.l.b16 %v8235
        %v9244 = vunpack.c.l.b16 %v8236
        %v9245 = vunpack.c.l.b16 %v8237
        %v9246 = vunpack.c.l.b16 %v8238
        %v9247 = vunpack.c.l.b16 %v8239
        %v9248 = vunpack.c.l.b16 %v8240
        %v9249 = vunpack.c.l.b16 %v8241
        %v9250 = vunpack.c.l.b16 %v8242
        %v9251 = vunpack.c.l.b16 %v8243
        %v9252 = vunpack.c.l.b16 %v8244
        %v9253 = vunpack.c.l.b16 %v8245
        %v9254 = vunpack.c.l.b16 %v8246
        %v9255 = vunpack.c.l.b16 %v8247
        %v9256 = vunpack.c.l.b16 %v8248
        %v9257 = vunpack.c.l.b16 %v8249
        %v9258 = vunpack.c.l.b16 %v8250
        %v9259 = vpack.c.b16 %v9243, %v9243
        %v9260 = vpack.c.b16 %v9244, %v9244
        %v9261 = vpack.c.b16 %v9245, %v9245
        %v9262 = vpack.c.b16 %v9246, %v9246
        %v9263 = vpack.c.b16 %v9247, %v9247
        %v9264 = vpack.c.b16 %v9248, %v9248
        %v9265 = vpack.c.b16 %v9249, %v9249
        %v9266 = vpack.c.b16 %v9250, %v9250
        %v9267 = vpack.c.b16 %v9251, %v9251
        %v9268 = vpack.c.b16 %v9252, %v9252
        %v9269 = vpack.c.b16 %v9253, %v9253
        %v9270 = vpack.c.b16 %v9254, %v9254
        %v9271 = vpack.c.b16 %v9255, %v9255
        %v9272 = vpack.c.b16 %v9256, %v9256
        %v9273 = vpack.c.b16 %v9257, %v9257
        %v9274 = vpack.c.b16 %v9258, %v9258
        %v9276 = vshrl.u32 %v9131, 16
        %v9278 = vrot.slane %v9276, 2
        %v9279 = vshll.u32 %v9131, 16
        %v9281 = vrot.slane %v9279, 3
        %v9282 = vor.u32 %v9278, %v9281
        %v9284 = vshrl.u32 %v9259, 16
        %v9286 = vrot.slane %v9284, 2
        %v9287 = vshll.u32 %v9259, 16
        %v9289 = vrot.slane %v9287, 3
        %v9290 = vor.u32 %v9286, %v9289
        %v9291 = vsel %vm1310, %v9282, %v9290
        %v9293 = vshrl.u32 %v9132, 16
        %v9295 = vrot.slane %v9293, 2
        %v9296 = vshll.u32 %v9132, 16
        %v9298 = vrot.slane %v9296, 3
        %v9299 = vor.u32 %v9295, %v9298
        %v9301 = vshrl.u32 %v9260, 16
        %v9303 = vrot.slane %v9301, 2
        %v9304 = vshll.u32 %v9260, 16
        %v9306 = vrot.slane %v9304, 3
        %v9307 = vor.u32 %v9303, %v9306
        %v9308 = vsel %vm1310, %v9299, %v9307
        %v9310 = vshrl.u32 %v9133, 16
        %v9312 = vrot.slane %v9310, 2
        %v9313 = vshll.u32 %v9133, 16
        %v9315 = vrot.slane %v9313, 3
        %v9316 = vor.u32 %v9312, %v9315
        %v9318 = vshrl.u32 %v9261, 16
        %v9320 = vrot.slane %v9318, 2
        %v9321 = vshll.u32 %v9261, 16
        %v9323 = vrot.slane %v9321, 3
        %v9324 = vor.u32 %v9320, %v9323
        %v9325 = vsel %vm1310, %v9316, %v9324
        %v9327 = vshrl.u32 %v9134, 16
        %v9329 = vrot.slane %v9327, 2
        %v9330 = vshll.u32 %v9134, 16
        %v9332 = vrot.slane %v9330, 3
        %v9333 = vor.u32 %v9329, %v9332
        %v9335 = vshrl.u32 %v9262, 16
        %v9337 = vrot.slane %v9335, 2
        %v9338 = vshll.u32 %v9262, 16
        %v9340 = vrot.slane %v9338, 3
        %v9341 = vor.u32 %v9337, %v9340
        %v9342 = vsel %vm1310, %v9333, %v9341
        %v9344 = vshrl.u32 %v9135, 16
        %v9346 = vrot.slane %v9344, 2
        %v9347 = vshll.u32 %v9135, 16
        %v9349 = vrot.slane %v9347, 3
        %v9350 = vor.u32 %v9346, %v9349
        %v9352 = vshrl.u32 %v9263, 16
        %v9354 = vrot.slane %v9352, 2
        %v9355 = vshll.u32 %v9263, 16
        %v9357 = vrot.slane %v9355, 3
        %v9358 = vor.u32 %v9354, %v9357
        %v9359 = vsel %vm1310, %v9350, %v9358
        %v9361 = vshrl.u32 %v9136, 16
        %v9363 = vrot.slane %v9361, 2
        %v9364 = vshll.u32 %v9136, 16
        %v9366 = vrot.slane %v9364, 3
        %v9367 = vor.u32 %v9363, %v9366
        %v9369 = vshrl.u32 %v9264, 16
        %v9371 = vrot.slane %v9369, 2
        %v9372 = vshll.u32 %v9264, 16
        %v9374 = vrot.slane %v9372, 3
        %v9375 = vor.u32 %v9371, %v9374
        %v9376 = vsel %vm1310, %v9367, %v9375
        %v9378 = vshrl.u32 %v9137, 16
        %v9380 = vrot.slane %v9378, 2
        %v9381 = vshll.u32 %v9137, 16
        %v9383 = vrot.slane %v9381, 3
        %v9384 = vor.u32 %v9380, %v9383
        %v9386 = vshrl.u32 %v9265, 16
        %v9388 = vrot.slane %v9386, 2
        %v9389 = vshll.u32 %v9265, 16
        %v9391 = vrot.slane %v9389, 3
        %v9392 = vor.u32 %v9388, %v9391
        %v9393 = vsel %vm1310, %v9384, %v9392
        %v9395 = vshrl.u32 %v9138, 16
        %v9397 = vrot.slane %v9395, 2
        %v9398 = vshll.u32 %v9138, 16
        %v9400 = vrot.slane %v9398, 3
        %v9401 = vor.u32 %v9397, %v9400
        %v9403 = vshrl.u32 %v9266, 16
        %v9405 = vrot.slane %v9403, 2
        %v9406 = vshll.u32 %v9266, 16
        %v9408 = vrot.slane %v9406, 3
        %v9409 = vor.u32 %v9405, %v9408
        %v9410 = vsel %vm1310, %v9401, %v9409
        %v9412 = vshrl.u32 %v9139, 16
        %v9414 = vrot.slane %v9412, 2
        %v9415 = vshll.u32 %v9139, 16
        %v9417 = vrot.slane %v9415, 3
        %v9418 = vor.u32 %v9414, %v9417
        %v9420 = vshrl.u32 %v9267, 16
        %v9422 = vrot.slane %v9420, 2
        %v9423 = vshll.u32 %v9267, 16
        %v9425 = vrot.slane %v9423, 3
        %v9426 = vor.u32 %v9422, %v9425
        %v9427 = vsel %vm1310, %v9418, %v9426
        %v9429 = vshrl.u32 %v9140, 16
        %v9431 = vrot.slane %v9429, 2
        %v9432 = vshll.u32 %v9140, 16
        %v9434 = vrot.slane %v9432, 3
        %v9435 = vor.u32 %v9431, %v9434
        %v9437 = vshrl.u32 %v9268, 16
        %v9439 = vrot.slane %v9437, 2
        %v9440 = vshll.u32 %v9268, 16
        %v9442 = vrot.slane %v9440, 3
        %v9443 = vor.u32 %v9439, %v9442
        %v9444 = vsel %vm1310, %v9435, %v9443
        %v9446 = vshrl.u32 %v9141, 16
        %v9448 = vrot.slane %v9446, 2
        %v9449 = vshll.u32 %v9141, 16
        %v9451 = vrot.slane %v9449, 3
        %v9452 = vor.u32 %v9448, %v9451
        %v9454 = vshrl.u32 %v9269, 16
        %v9456 = vrot.slane %v9454, 2
        %v9457 = vshll.u32 %v9269, 16
        %v9459 = vrot.slane %v9457, 3
        %v9460 = vor.u32 %v9456, %v9459
        %v9461 = vsel %vm1310, %v9452, %v9460
        %v9463 = vshrl.u32 %v9142, 16
        %v9465 = vrot.slane %v9463, 2
        %v9466 = vshll.u32 %v9142, 16
        %v9468 = vrot.slane %v9466, 3
        %v9469 = vor.u32 %v9465, %v9468
        %v9471 = vshrl.u32 %v9270, 16
        %v9473 = vrot.slane %v9471, 2
        %v9474 = vshll.u32 %v9270, 16
        %v9476 = vrot.slane %v9474, 3
        %v9477 = vor.u32 %v9473, %v9476
        %v9478 = vsel %vm1310, %v9469, %v9477
        %v9480 = vshrl.u32 %v9143, 16
        %v9482 = vrot.slane %v9480, 2
        %v9483 = vshll.u32 %v9143, 16
        %v9485 = vrot.slane %v9483, 3
        %v9486 = vor.u32 %v9482, %v9485
        %v9488 = vshrl.u32 %v9271, 16
        %v9490 = vrot.slane %v9488, 2
        %v9491 = vshll.u32 %v9271, 16
        %v9493 = vrot.slane %v9491, 3
        %v9494 = vor.u32 %v9490, %v9493
        %v9495 = vsel %vm1310, %v9486, %v9494
        %v9497 = vshrl.u32 %v9144, 16
        %v9499 = vrot.slane %v9497, 2
        %v9500 = vshll.u32 %v9144, 16
        %v9502 = vrot.slane %v9500, 3
        %v9503 = vor.u32 %v9499, %v9502
        %v9505 = vshrl.u32 %v9272, 16
        %v9507 = vrot.slane %v9505, 2
        %v9508 = vshll.u32 %v9272, 16
        %v9510 = vrot.slane %v9508, 3
        %v9511 = vor.u32 %v9507, %v9510
        %v9512 = vsel %vm1310, %v9503, %v9511
        %v9514 = vshrl.u32 %v9145, 16
        %v9516 = vrot.slane %v9514, 2
        %v9517 = vshll.u32 %v9145, 16
        %v9519 = vrot.slane %v9517, 3
        %v9520 = vor.u32 %v9516, %v9519
        %v9522 = vshrl.u32 %v9273, 16
        %v9524 = vrot.slane %v9522, 2
        %v9525 = vshll.u32 %v9273, 16
        %v9527 = vrot.slane %v9525, 3
        %v9528 = vor.u32 %v9524, %v9527
        %v9529 = vsel %vm1310, %v9520, %v9528
        %v9531 = vshrl.u32 %v9146, 16
        %v9533 = vrot.slane %v9531, 2
        %v9534 = vshll.u32 %v9146, 16
        %v9536 = vrot.slane %v9534, 3
        %v9537 = vor.u32 %v9533, %v9536
        %v9539 = vshrl.u32 %v9274, 16
        %v9541 = vrot.slane %v9539, 2
        %v9542 = vshll.u32 %v9274, 16
        %v9544 = vrot.slane %v9542, 3
        %v9545 = vor.u32 %v9541, %v9544
        %v9546 = vsel %vm1310, %v9537, %v9545
        %9547 = vrot.lane.b32.xlu0 %v9291, 20
        %v9548 = vpop.permute.xlu0 %9547
        %9549 = vrot.lane.b32.xlu0 %v9308, 20
        %v9550 = vpop.permute.xlu0 %9549
        %9551 = vrot.lane.b32.xlu0 %v9325, 20
        %v9552 = vpop.permute.xlu0 %9551
        %9553 = vrot.lane.b32.xlu0 %v9342, 20
        %v9554 = vpop.permute.xlu0 %9553
        %9555 = vrot.lane.b32.xlu0 %v9359, 20
        %v9556 = vpop.permute.xlu0 %9555
        %9557 = vrot.lane.b32.xlu0 %v9376, 20
        %v9558 = vpop.permute.xlu0 %9557
        %9559 = vrot.lane.b32.xlu0 %v9393, 20
        %v9560 = vpop.permute.xlu0 %9559
        %9561 = vrot.lane.b32.xlu0 %v9410, 20
        %v9562 = vpop.permute.xlu0 %9561
        %9563 = vrot.lane.b32.xlu0 %v9427, 20
        %v9564 = vpop.permute.xlu0 %9563
        %9565 = vrot.lane.b32.xlu0 %v9444, 20
        %v9566 = vpop.permute.xlu0 %9565
        %9567 = vrot.lane.b32.xlu0 %v9461, 20
        %v9568 = vpop.permute.xlu0 %9567
        %9569 = vrot.lane.b32.xlu0 %v9478, 20
        %v9570 = vpop.permute.xlu0 %9569
        %9571 = vrot.lane.b32.xlu0 %v9495, 20
        %v9572 = vpop.permute.xlu0 %9571
        %9573 = vrot.lane.b32.xlu0 %v9512, 20
        %v9574 = vpop.permute.xlu0 %9573
        %9575 = vrot.lane.b32.xlu0 %v9529, 20
        %v9576 = vpop.permute.xlu0 %9575
        %9577 = vrot.lane.b32.xlu0 %v9546, 20
        %v9578 = vpop.permute.xlu0 %9577
        %v9595 = vunpack.c.l.b16 %v8251
        %v9596 = vunpack.c.l.b16 %v8252
        %v9597 = vunpack.c.l.b16 %v8253
        %v9598 = vunpack.c.l.b16 %v8254
        %v9599 = vunpack.c.l.b16 %v8255
        %v9600 = vunpack.c.l.b16 %v8256
        %v9601 = vunpack.c.l.b16 %v8257
        %v9602 = vunpack.c.l.b16 %v8258
        %v9603 = vunpack.c.l.b16 %v8259
        %v9604 = vunpack.c.l.b16 %v8260
        %v9605 = vunpack.c.l.b16 %v8261
        %v9606 = vunpack.c.l.b16 %v8262
        %v9607 = vunpack.c.l.b16 %v8263
        %v9608 = vunpack.c.l.b16 %v8264
        %v9609 = vunpack.c.l.b16 %v8265
        %v9610 = vunpack.c.l.b16 %v8266
        %v9611 = vpack.c.b16 %v8300, %v9595
        %v9612 = vpack.c.b16 %v8302, %v9596
        %v9613 = vpack.c.b16 %v8304, %v9597
        %v9614 = vpack.c.b16 %v8306, %v9598
        %v9615 = vpack.c.b16 %v8308, %v9599
        %v9616 = vpack.c.b16 %v8310, %v9600
        %v9617 = vpack.c.b16 %v8312, %v9601
        %v9618 = vpack.c.b16 %v8314, %v9602
        %v9619 = vpack.c.b16 %v8316, %v9603
        %v9620 = vpack.c.b16 %v8318, %v9604
        %v9621 = vpack.c.b16 %v8320, %v9605
        %v9622 = vpack.c.b16 %v8322, %v9606
        %v9623 = vpack.c.b16 %v8324, %v9607
        %v9624 = vpack.c.b16 %v8326, %v9608
        %v9625 = vpack.c.b16 %v8328, %v9609
        %v9626 = vpack.c.b16 %v8330, %v9610
        %v9627 = vrot.slane %v9611, 3
        %v9628 = vrot.slane %v9259, 3
        %v9629 = vsel %vm1663, %v9627, %v9628
        %v9630 = vrot.slane %v9612, 3
        %v9631 = vrot.slane %v9260, 3
        %v9632 = vsel %vm1663, %v9630, %v9631
        %v9633 = vrot.slane %v9613, 3
        %v9634 = vrot.slane %v9261, 3
        %v9635 = vsel %vm1663, %v9633, %v9634
        %v9636 = vrot.slane %v9614, 3
        %v9637 = vrot.slane %v9262, 3
        %v9638 = vsel %vm1663, %v9636, %v9637
        %v9639 = vrot.slane %v9615, 3
        %v9640 = vrot.slane %v9263, 3
        %v9641 = vsel %vm1663, %v9639, %v9640
        %v9642 = vrot.slane %v9616, 3
        %v9643 = vrot.slane %v9264, 3
        %v9644 = vsel %vm1663, %v9642, %v9643
        %v9645 = vrot.slane %v9617, 3
        %v9646 = vrot.slane %v9265, 3
        %v9647 = vsel %vm1663, %v9645, %v9646
        %v9648 = vrot.slane %v9618, 3
        %v9649 = vrot.slane %v9266, 3
        %v9650 = vsel %vm1663, %v9648, %v9649
        %v9651 = vrot.slane %v9619, 3
        %v9652 = vrot.slane %v9267, 3
        %v9653 = vsel %vm1663, %v9651, %v9652
        %v9654 = vrot.slane %v9620, 3
        %v9655 = vrot.slane %v9268, 3
        %v9656 = vsel %vm1663, %v9654, %v9655
        %v9657 = vrot.slane %v9621, 3
        %v9658 = vrot.slane %v9269, 3
        %v9659 = vsel %vm1663, %v9657, %v9658
        %v9660 = vrot.slane %v9622, 3
        %v9661 = vrot.slane %v9270, 3
        %v9662 = vsel %vm1663, %v9660, %v9661
        %v9663 = vrot.slane %v9623, 3
        %v9664 = vrot.slane %v9271, 3
        %v9665 = vsel %vm1663, %v9663, %v9664
        %v9666 = vrot.slane %v9624, 3
        %v9667 = vrot.slane %v9272, 3
        %v9668 = vsel %vm1663, %v9666, %v9667
        %v9669 = vrot.slane %v9625, 3
        %v9670 = vrot.slane %v9273, 3
        %v9671 = vsel %vm1663, %v9669, %v9670
        %v9672 = vrot.slane %v9626, 3
        %v9673 = vrot.slane %v9274, 3
        %v9674 = vsel %vm1663, %v9672, %v9673
        %9675 = vrot.lane.b32.xlu0 %v9629, 24
        %v9676 = vpop.permute.xlu0 %9675
        %9677 = vrot.lane.b32.xlu0 %v9632, 24
        %v9678 = vpop.permute.xlu0 %9677
        %9679 = vrot.lane.b32.xlu0 %v9635, 24
        %v9680 = vpop.permute.xlu0 %9679
        %9681 = vrot.lane.b32.xlu0 %v9638, 24
        %v9682 = vpop.permute.xlu0 %9681
        %9683 = vrot.lane.b32.xlu0 %v9641, 24
        %v9684 = vpop.permute.xlu0 %9683
        %9685 = vrot.lane.b32.xlu0 %v9644, 24
        %v9686 = vpop.permute.xlu0 %9685
        %9687 = vrot.lane.b32.xlu0 %v9647, 24
        %v9688 = vpop.permute.xlu0 %9687
        %9689 = vrot.lane.b32.xlu0 %v9650, 24
        %v9690 = vpop.permute.xlu0 %9689
        %9691 = vrot.lane.b32.xlu0 %v9653, 24
        %v9692 = vpop.permute.xlu0 %9691
        %9693 = vrot.lane.b32.xlu0 %v9656, 24
        %v9694 = vpop.permute.xlu0 %9693
        %9695 = vrot.lane.b32.xlu0 %v9659, 24
        %v9696 = vpop.permute.xlu0 %9695
        %9697 = vrot.lane.b32.xlu0 %v9662, 24
        %v9698 = vpop.permute.xlu0 %9697
        %9699 = vrot.lane.b32.xlu0 %v9665, 24
        %v9700 = vpop.permute.xlu0 %9699
        %9701 = vrot.lane.b32.xlu0 %v9668, 24
        %v9702 = vpop.permute.xlu0 %9701
        %9703 = vrot.lane.b32.xlu0 %v9671, 24
        %v9704 = vpop.permute.xlu0 %9703
        %9705 = vrot.lane.b32.xlu0 %v9674, 24
        %v9706 = vpop.permute.xlu0 %9705
        %v9708 = vsel %vm1744, %v8331, %v8588
        %v9710 = vsel %vm1744, %v8332, %v8590
        %v9712 = vsel %vm1744, %v8333, %v8592
        %v9714 = vsel %vm1744, %v8334, %v8594
        %v9716 = vsel %vm1744, %v8335, %v8596
        %v9718 = vsel %vm1744, %v8336, %v8598
        %v9720 = vsel %vm1744, %v8337, %v8600
        %v9722 = vsel %vm1744, %v8338, %v8602
        %v9724 = vsel %vm1744, %v8339, %v8604
        %v9726 = vsel %vm1744, %v8340, %v8606
        %v9728 = vsel %vm1744, %v8341, %v8608
        %v9730 = vsel %vm1744, %v8342, %v8610
        %v9732 = vsel %vm1744, %v8343, %v8612
        %v9734 = vsel %vm1744, %v8344, %v8614
        %v9736 = vsel %vm1744, %v8345, %v8616
        %v9738 = vsel %vm1744, %v8346, %v8618
        %v9740 = vsel %vm1777, %v9708, %v8716
        %v9742 = vsel %vm1777, %v9710, %v8718
        %v9744 = vsel %vm1777, %v9712, %v8720
        %v9746 = vsel %vm1777, %v9714, %v8722
        %v9748 = vsel %vm1777, %v9716, %v8724
        %v9750 = vsel %vm1777, %v9718, %v8726
        %v9752 = vsel %vm1777, %v9720, %v8728
        %v9754 = vsel %vm1777, %v9722, %v8730
        %v9756 = vsel %vm1777, %v9724, %v8732
        %v9758 = vsel %vm1777, %v9726, %v8734
        %v9760 = vsel %vm1777, %v9728, %v8736
        %v9762 = vsel %vm1777, %v9730, %v8738
        %v9764 = vsel %vm1777, %v9732, %v8740
        %v9766 = vsel %vm1777, %v9734, %v8742
        %v9768 = vsel %vm1777, %v9736, %v8744
        %v9770 = vsel %vm1777, %v9738, %v8746
        %v9772 = vsel %vm1810, %v9740, %v9068
        %v9774 = vsel %vm1810, %v9742, %v9070
        %v9776 = vsel %vm1810, %v9744, %v9072
        %v9778 = vsel %vm1810, %v9746, %v9074
        %v9780 = vsel %vm1810, %v9748, %v9076
        %v9782 = vsel %vm1810, %v9750, %v9078
        %v9784 = vsel %vm1810, %v9752, %v9080
        %v9786 = vsel %vm1810, %v9754, %v9082
        %v9788 = vsel %vm1810, %v9756, %v9084
        %v9790 = vsel %vm1810, %v9758, %v9086
        %v9792 = vsel %vm1810, %v9760, %v9088
        %v9794 = vsel %vm1810, %v9762, %v9090
        %v9796 = vsel %vm1810, %v9764, %v9092
        %v9798 = vsel %vm1810, %v9766, %v9094
        %v9800 = vsel %vm1810, %v9768, %v9096
        %v9802 = vsel %vm1810, %v9770, %v9098
        %v9804 = vsel %vm1843, %v9772, %v9196
        %v9806 = vsel %vm1843, %v9774, %v9198
        %v9808 = vsel %vm1843, %v9776, %v9200
        %v9810 = vsel %vm1843, %v9778, %v9202
        %v9812 = vsel %vm1843, %v9780, %v9204
        %v9814 = vsel %vm1843, %v9782, %v9206
        %v9816 = vsel %vm1843, %v9784, %v9208
        %v9818 = vsel %vm1843, %v9786, %v9210
        %v9820 = vsel %vm1843, %v9788, %v9212
        %v9822 = vsel %vm1843, %v9790, %v9214
        %v9824 = vsel %vm1843, %v9792, %v9216
        %v9826 = vsel %vm1843, %v9794, %v9218
        %v9828 = vsel %vm1843, %v9796, %v9220
        %v9830 = vsel %vm1843, %v9798, %v9222
        %v9832 = vsel %vm1843, %v9800, %v9224
        %v9834 = vsel %vm1843, %v9802, %v9226
        %v9836 = vsel %vm1876, %v9804, %v9548
        %v9838 = vsel %vm1876, %v9806, %v9550
        %v9840 = vsel %vm1876, %v9808, %v9552
        %v9842 = vsel %vm1876, %v9810, %v9554
        %v9844 = vsel %vm1876, %v9812, %v9556
        %v9846 = vsel %vm1876, %v9814, %v9558
        %v9848 = vsel %vm1876, %v9816, %v9560
        %v9850 = vsel %vm1876, %v9818, %v9562
        %v9852 = vsel %vm1876, %v9820, %v9564
        %v9854 = vsel %vm1876, %v9822, %v9566
        %v9856 = vsel %vm1876, %v9824, %v9568
        %v9858 = vsel %vm1876, %v9826, %v9570
        %v9860 = vsel %vm1876, %v9828, %v9572
        %v9862 = vsel %vm1876, %v9830, %v9574
        %v9864 = vsel %vm1876, %v9832, %v9576
        %v9866 = vsel %vm1876, %v9834, %v9578
        %v9868 = vsel %vm1909, %v9836, %v9676
        %v9870 = vsel %vm1909, %v9838, %v9678
        %v9872 = vsel %vm1909, %v9840, %v9680
        %v9874 = vsel %vm1909, %v9842, %v9682
        %v9876 = vsel %vm1909, %v9844, %v9684
        %v9878 = vsel %vm1909, %v9846, %v9686
        %v9880 = vsel %vm1909, %v9848, %v9688
        %v9882 = vsel %vm1909, %v9850, %v9690
        %v9884 = vsel %vm1909, %v9852, %v9692
        %v9886 = vsel %vm1909, %v9854, %v9694
        %v9888 = vsel %vm1909, %v9856, %v9696
        %v9890 = vsel %vm1909, %v9858, %v9698
        %v9892 = vsel %vm1909, %v9860, %v9700
        %v9894 = vsel %vm1909, %v9862, %v9702
        %v9896 = vsel %vm1909, %v9864, %v9704
        %v9898 = vsel %vm1909, %v9866, %v9706
        %s9899 = scalar_lea.vmem %s1, 64
        %v9900 = vld [vmem:[%s9899] sm:$0xf]
        %v9901 = vld [vmem:[%s9899 + $0x4] sm:$0xf]
        %v9902 = vld [vmem:[%s9899 + $0x8] sm:$0xf]
        %v9903 = vld [vmem:[%s9899 + $0xc] sm:$0x3]
        %v9908 = vunpack.c.l.b16 %v9900
        %v9909 = vunpack.c.l.b16 %v9901
        %v9910 = vunpack.c.l.b16 %v9902
        %v9911 = vunpack.c.l.b16 %v9903
        %v9912 = vpack.c.b16 %v9909, %v9908
        %v9913 = vpack.c.b16 %v9911, %v9910
        %v9915 = vsel %vm3723, %v9868, 0
        %v9917 = vsel %vm3723, %v9870, 0
        %v9919 = vsel %vm3723, %v9872, 0
        %v9921 = vsel %vm3723, %v9874, 0
        %v9923 = vsel %vm3723, %v9876, 0
        %v9925 = vsel %vm3723, %v9878, 0
        %v9927 = vsel %vm3723, %v9880, 0
        %v9929 = vsel %vm3723, %v9882, 0
        %v9931 = vsel %vm3723, %v9884, 0
        %v9933 = vsel %vm3723, %v9886, 0
        %v9935 = vsel %vm3723, %v9888, 0
        %v9937 = vsel %vm3723, %v9890, 0
        %v9939 = vsel %vm3723, %v9892, 0
        %v9941 = vsel %vm3723, %v9894, 0
        %v9943 = vsel %vm3723, %v9896, 0
        %v9945 = vsel %vm3723, %v9898, 0
        %v9948 = vsel %vm3756, %v9913, 0
        %9950 = vmatprep.subr.bf16.mxu0 0
        %9951 = vmatpush1.bf16.msra.mxu0 %v9912
        %9952 = vmatprep.subr.bf16.mxu0 0
        %9953 = vmatpush1.bf16.msra.mxu0 %v9948
        %9954 = vmatprep.subr.bf16.mxu0 0
        %9955 = vmatpush1.bf16.msra.mxu0 0
        %9956 = vmatprep.subr.bf16.mxu0 0
        %9957 = vmatpush1.bf16.msra.mxu0 0
        %9958 = vmatprep.subr.bf16.mxu0 0
        %9959 = vmatpush1.bf16.msra.mxu0 0
        %9960 = vmatprep.subr.bf16.mxu0 0
        %9961 = vmatpush1.bf16.msra.mxu0 0
        %9962 = vmatprep.subr.bf16.mxu0 0
        %9963 = vmatpush1.bf16.msra.mxu0 0
        %9964 = vmatprep.subr.bf16.mxu0 0
        %9965 = vmatpush1.bf16.msra.mxu0 0
        %9966 = vmatprep.subr.bf16.mxu0 0
        %9967 = vmatpush1.bf16.msra.mxu0 0
        %9968 = vmatprep.subr.bf16.mxu0 0
        %9969 = vmatpush1.bf16.msra.mxu0 0
        %9970 = vmatprep.subr.bf16.mxu0 0
        %9971 = vmatpush1.bf16.msra.mxu0 0
        %9972 = vmatprep.subr.bf16.mxu0 0
        %9973 = vmatpush1.bf16.msra.mxu0 0
        %9974 = vmatprep.subr.bf16.mxu0 0
        %9975 = vmatpush1.bf16.msra.mxu0 0
        %9976 = vmatprep.subr.bf16.mxu0 0
        %9977 = vmatpush1.bf16.msra.mxu0 0
        %9978 = vmatprep.subr.bf16.mxu0 0
        %9979 = vmatpush1.bf16.msra.mxu0 0
        %9980 = vmatprep.subr.bf16.mxu0 0
        %9981 = vmatpush1.bf16.msra.mxu0 0
        %9982 = vmatprep.mubr.bf16.mxu0 0
        %9983 = vmatmul.mubr.bf16.gmra.mrb[0].mxu0 %v9915
        %v9984 = vpop.f32.mrb[0].mxu0
        %v9985 = vadd.f32 0.0, %v9984
        %v9986 = vpop.f32.mrb[0].mxu0
        %v9987 = vpop.f32.mrb[0].mxu0
        %v9988 = vadd.f32 0.0, %v9987
        %v9989 = vpop.f32.mrb[0].mxu0
        %9990 = vmatprep.mubr.bf16.mxu0 0
        %9991 = vmatmul.mubr.bf16.gmra.mrb[0].mxu0 %v9917
        %v9992 = vpop.f32.mrb[0].mxu0
        %v9993 = vadd.f32 0.0, %v9992
        %v9994 = vpop.f32.mrb[0].mxu0
        %v9995 = vpop.f32.mrb[0].mxu0
        %v9996 = vadd.f32 0.0, %v9995
        %v9997 = vpop.f32.mrb[0].mxu0
        %9998 = vmatprep.mubr.bf16.mxu0 0
        %9999 = vmatmul.mubr.bf16.gmra.mrb[0].mxu0 %v9919
        %v10000 = vpop.f32.mrb[0].mxu0
        %v10001 = vadd.f32 0.0, %v10000
        %v10002 = vpop.f32.mrb[0].mxu0
        %v10003 = vpop.f32.mrb[0].mxu0
        %v10004 = vadd.f32 0.0, %v10003
        %v10005 = vpop.f32.mrb[0].mxu0
        %10006 = vmatprep.mubr.bf16.mxu0 0
        %10007 = vmatmul.mubr.bf16.gmra.mrb[0].mxu0 %v9921
        %v10008 = vpop.f32.mrb[0].mxu0
        %v10009 = vadd.f32 0.0, %v10008
        %v10010 = vpop.f32.mrb[0].mxu0
        %v10011 = vpop.f32.mrb[0].mxu0
        %v10012 = vadd.f32 0.0, %v10011
        %v10013 = vpop.f32.mrb[0].mxu0
        %10014 = vmatprep.mubr.bf16.mxu0 0
        %10015 = vmatmul.mubr.bf16.gmra.mrb[0].mxu0 %v9923
        %v10016 = vpop.f32.mrb[0].mxu0
        %v10017 = vadd.f32 0.0, %v10016
        %v10018 = vpop.f32.mrb[0].mxu0
        %v10019 = vpop.f32.mrb[0].mxu0
        %v10020 = vadd.f32 0.0, %v10019
        %v10021 = vpop.f32.mrb[0].mxu0
        %10022 = vmatprep.mubr.bf16.mxu0 0
        %10023 = vmatmul.mubr.bf16.gmra.mrb[0].mxu0 %v9925
        %v10024 = vpop.f32.mrb[0].mxu0
        %v10025 = vadd.f32 0.0, %v10024
        %v10026 = vpop.f32.mrb[0].mxu0
        %v10027 = vpop.f32.mrb[0].mxu0
        %v10028 = vadd.f32 0.0, %v10027
        %v10029 = vpop.f32.mrb[0].mxu0
        %10030 = vmatprep.mubr.bf16.mxu0 0
        %10031 = vmatmul.mubr.bf16.gmra.mrb[0].mxu0 %v9927
        %v10032 = vpop.f32.mrb[0].mxu0
        %v10033 = vadd.f32 0.0, %v10032
        %v10034 = vpop.f32.mrb[0].mxu0
        %v10035 = vpop.f32.mrb[0].mxu0
        %v10036 = vadd.f32 0.0, %v10035
        %v10037 = vpop.f32.mrb[0].mxu0
        %10038 = vmatprep.mubr.bf16.mxu0 0
        %10039 = vmatmul.mubr.bf16.gmra.mrb[0].mxu0 %v9929
        %v10040 = vpop.f32.mrb[0].mxu0
        %v10041 = vadd.f32 0.0, %v10040
        %v10042 = vpop.f32.mrb[0].mxu0
        %v10043 = vpop.f32.mrb[0].mxu0
        %v10044 = vadd.f32 0.0, %v10043
        %v10045 = vpop.f32.mrb[0].mxu0
        %10046 = vmatprep.mubr.bf16.mxu0 0
        %10047 = vmatmul.mubr.bf16.gmra.mrb[0].mxu0 %v9931
        %v10048 = vpop.f32.mrb[0].mxu0
        %v10049 = vadd.f32 0.0, %v10048
        %v10050 = vpop.f32.mrb[0].mxu0
        %v10051 = vpop.f32.mrb[0].mxu0
        %v10052 = vadd.f32 0.0, %v10051
        %v10053 = vpop.f32.mrb[0].mxu0
        %10054 = vmatprep.mubr.bf16.mxu0 0
        %10055 = vmatmul.mubr.bf16.gmra.mrb[0].mxu0 %v9933
        %v10056 = vpop.f32.mrb[0].mxu0
        %v10057 = vadd.f32 0.0, %v10056
        %v10058 = vpop.f32.mrb[0].mxu0
        %v10059 = vpop.f32.mrb[0].mxu0
        %v10060 = vadd.f32 0.0, %v10059
        %v10061 = vpop.f32.mrb[0].mxu0
        %10062 = vmatprep.mubr.bf16.mxu0 0
        %10063 = vmatmul.mubr.bf16.gmra.mrb[0].mxu0 %v9935
        %v10064 = vpop.f32.mrb[0].mxu0
        %v10065 = vadd.f32 0.0, %v10064
        %v10066 = vpop.f32.mrb[0].mxu0
        %v10067 = vpop.f32.mrb[0].mxu0
        %v10068 = vadd.f32 0.0, %v10067
        %v10069 = vpop.f32.mrb[0].mxu0
        %10070 = vmatprep.mubr.bf16.mxu0 0
        %10071 = vmatmul.mubr.bf16.gmra.mrb[0].mxu0 %v9937
        %v10072 = vpop.f32.mrb[0].mxu0
        %v10073 = vadd.f32 0.0, %v10072
        %v10074 = vpop.f32.mrb[0].mxu0
        %v10075 = vpop.f32.mrb[0].mxu0
        %v10076 = vadd.f32 0.0, %v10075
        %v10077 = vpop.f32.mrb[0].mxu0
        %10078 = vmatprep.mubr.bf16.mxu0 0
        %10079 = vmatmul.mubr.bf16.gmra.mrb[0].mxu0 %v9939
        %v10080 = vpop.f32.mrb[0].mxu0
        %v10081 = vadd.f32 0.0, %v10080
        %v10082 = vpop.f32.mrb[0].mxu0
        %v10083 = vpop.f32.mrb[0].mxu0
        %v10084 = vadd.f32 0.0, %v10083
        %v10085 = vpop.f32.mrb[0].mxu0
        %10086 = vmatprep.mubr.bf16.mxu0 0
        %10087 = vmatmul.mubr.bf16.gmra.mrb[0].mxu0 %v9941
        %v10088 = vpop.f32.mrb[0].mxu0
        %v10089 = vadd.f32 0.0, %v10088
        %v10090 = vpop.f32.mrb[0].mxu0
        %v10091 = vpop.f32.mrb[0].mxu0
        %v10092 = vadd.f32 0.0, %v10091
        %v10093 = vpop.f32.mrb[0].mxu0
        %10094 = vmatprep.mubr.bf16.mxu0 0
        %10095 = vmatmul.mubr.bf16.gmra.mrb[0].mxu0 %v9943
        %v10096 = vpop.f32.mrb[0].mxu0
        %v10097 = vadd.f32 0.0, %v10096
        %v10098 = vpop.f32.mrb[0].mxu0
        %v10099 = vpop.f32.mrb[0].mxu0
        %v10100 = vadd.f32 0.0, %v10099
        %v10101 = vpop.f32.mrb[0].mxu0
        %10102 = vmatprep.mubr.bf16.mxu0 0
        %10103 = vmatmul.mubr.bf16.gmra.mrb[0].mxu0 %v9945
        %v10104 = vpop.f32.mrb[0].mxu0
        %v10105 = vadd.f32 0.0, %v10104
        %v10106 = vpop.f32.mrb[0].mxu0
        %v10107 = vpop.f32.mrb[0].mxu0
        %v10108 = vadd.f32 0.0, %v10107
        %v10109 = vpop.f32.mrb[0].mxu0
        %10110 = vdwg.mxu0
        %v10111 = vadd.f32 %v8106, %v9985
        %v10112 = vadd.f32 %v8107, %v9988
        %v10113 = vadd.f32 %v8108, %v9993
        %v10114 = vadd.f32 %v8109, %v9996
        %v10115 = vadd.f32 %v8110, %v10001
        %v10116 = vadd.f32 %v8111, %v10004
        %v10117 = vadd.f32 %v8112, %v10009
        %v10118 = vadd.f32 %v8113, %v10012
        %v10119 = vadd.f32 %v8114, %v10017
        %v10120 = vadd.f32 %v8115, %v10020
        %v10121 = vadd.f32 %v8116, %v10025
        %v10122 = vadd.f32 %v8117, %v10028
        %v10123 = vadd.f32 %v8118, %v10033
        %v10124 = vadd.f32 %v8119, %v10036
        %v10125 = vadd.f32 %v8120, %v10041
        %v10126 = vadd.f32 %v8121, %v10044
        %v10127 = vadd.f32 %v8122, %v10049
        %v10128 = vadd.f32 %v8123, %v10052
        %v10129 = vadd.f32 %v8124, %v10057
        %v10130 = vadd.f32 %v8125, %v10060
        %v10131 = vadd.f32 %v8126, %v10065
        %v10132 = vadd.f32 %v8127, %v10068
        %v10133 = vadd.f32 %v8128, %v10073
        %v10134 = vadd.f32 %v8129, %v10076
        %v10135 = vadd.f32 %v8130, %v10081
        %v10136 = vadd.f32 %v8131, %v10084
        %v10137 = vadd.f32 %v8132, %v10089
        %v10138 = vadd.f32 %v8133, %v10092
        %v10139 = vadd.f32 %v8134, %v10097
        %v10140 = vadd.f32 %v8135, %v10100
        %v10141 = vadd.f32 %v8136, %v10105
        %v10142 = vadd.f32 %v8137, %v10108
        %s10143 = scalar_lea.vmem %s168, 60
        %v10144 = vld [vmem:[%s10143] sm:$0xf]
        %v10145 = vld [vmem:[%s10143 + $0x4] sm:$0xf]
        %v10146 = vld [vmem:[%s10143 + $0xc] sm:$0xf]
        %v10147 = vld [vmem:[%s10143 + $0x10] sm:$0xf]
        %v10148 = vld [vmem:[%s10143 + $0x18] sm:$0xf]
        %v10149 = vld [vmem:[%s10143 + $0x1c] sm:$0xf]
        %v10150 = vld [vmem:[%s10143 + $0x24] sm:$0xf]
        %v10151 = vld [vmem:[%s10143 + $0x28] sm:$0xf]
        %v10152 = vld [vmem:[%s10143 + $0x30] sm:$0xf]
        %v10153 = vld [vmem:[%s10143 + $0x34] sm:$0xf]
        %v10154 = vld [vmem:[%s10143 + $0x3c] sm:$0xf]
        %v10155 = vld [vmem:[%s10143 + $0x40] sm:$0xf]
        %v10156 = vld [vmem:[%s10143 + $0x48] sm:$0xf]
        %v10157 = vld [vmem:[%s10143 + $0x4c] sm:$0xf]
        %v10158 = vld [vmem:[%s10143 + $0x54] sm:$0xf]
        %v10159 = vld [vmem:[%s10143 + $0x58] sm:$0xf]
        %v10160 = vld [vmem:[%s10143 + $0x60] sm:$0xf]
        %v10161 = vld [vmem:[%s10143 + $0x64] sm:$0xf]
        %v10162 = vld [vmem:[%s10143 + $0x6c] sm:$0xf]
        %v10163 = vld [vmem:[%s10143 + $0x70] sm:$0xf]
        %v10164 = vld [vmem:[%s10143 + $0x78] sm:$0xf]
        %v10165 = vld [vmem:[%s10143 + $0x7c] sm:$0xf]
        %v10166 = vld [vmem:[%s10143 + $0x84] sm:$0xf]
        %v10167 = vld [vmem:[%s10143 + $0x88] sm:$0xf]
        %v10168 = vld [vmem:[%s10143 + $0x90] sm:$0xf]
        %v10169 = vld [vmem:[%s10143 + $0x94] sm:$0xf]
        %v10170 = vld [vmem:[%s10143 + $0x9c] sm:$0xf]
        %v10171 = vld [vmem:[%s10143 + $0xa0] sm:$0xf]
        %v10172 = vld [vmem:[%s10143 + $0xa8] sm:$0xf]
        %v10173 = vld [vmem:[%s10143 + $0xac] sm:$0xf]
        %v10174 = vld [vmem:[%s10143 + $0xb4] sm:$0xf]
        %v10175 = vld [vmem:[%s10143 + $0xb8] sm:$0xf]
        %v10176 = vld [vmem:[%s10143 + $0x8] sm:$0x1]
        %v10177 = vld [vmem:[%s10143 + $0x14] sm:$0x1]
        %v10178 = vld [vmem:[%s10143 + $0x20] sm:$0x1]
        %v10179 = vld [vmem:[%s10143 + $0x2c] sm:$0x1]
        %v10180 = vld [vmem:[%s10143 + $0x38] sm:$0x1]
        %v10181 = vld [vmem:[%s10143 + $0x44] sm:$0x1]
        %v10182 = vld [vmem:[%s10143 + $0x50] sm:$0x1]
        %v10183 = vld [vmem:[%s10143 + $0x5c] sm:$0x1]
        %v10184 = vld [vmem:[%s10143 + $0x68] sm:$0x1]
        %v10185 = vld [vmem:[%s10143 + $0x74] sm:$0x1]
        %v10186 = vld [vmem:[%s10143 + $0x80] sm:$0x1]
        %v10187 = vld [vmem:[%s10143 + $0x8c] sm:$0x1]
        %v10188 = vld [vmem:[%s10143 + $0x98] sm:$0x1]
        %v10189 = vld [vmem:[%s10143 + $0xa4] sm:$0x1]
        %v10190 = vld [vmem:[%s10143 + $0xb0] sm:$0x1]
        %v10191 = vld [vmem:[%s10143 + $0xbc] sm:$0x1]
        %v10192 = vld [vmem:[%s10143] sm:$0xe]
        %v10193 = vld [vmem:[%s10143 + $0xc] sm:$0xe]
        %v10194 = vld [vmem:[%s10143 + $0x18] sm:$0xe]
        %v10195 = vld [vmem:[%s10143 + $0x24] sm:$0xe]
        %v10196 = vld [vmem:[%s10143 + $0x30] sm:$0xe]
        %v10197 = vld [vmem:[%s10143 + $0x3c] sm:$0xe]
        %v10198 = vld [vmem:[%s10143 + $0x48] sm:$0xe]
        %v10199 = vld [vmem:[%s10143 + $0x54] sm:$0xe]
        %v10200 = vld [vmem:[%s10143 + $0x60] sm:$0xe]
        %v10201 = vld [vmem:[%s10143 + $0x6c] sm:$0xe]
        %v10202 = vld [vmem:[%s10143 + $0x78] sm:$0xe]
        %v10203 = vld [vmem:[%s10143 + $0x84] sm:$0xe]
        %v10204 = vld [vmem:[%s10143 + $0x90] sm:$0xe]
        %v10205 = vld [vmem:[%s10143 + $0x9c] sm:$0xe]
        %v10206 = vld [vmem:[%s10143 + $0xa8] sm:$0xe]
        %v10207 = vld [vmem:[%s10143 + $0xb4] sm:$0xe]
        %v10208 = vld [vmem:[%s10143 + $0x8] sm:$0x3]
        %v10209 = vld [vmem:[%s10143 + $0x14] sm:$0x3]
        %v10210 = vld [vmem:[%s10143 + $0x20] sm:$0x3]
        %v10211 = vld [vmem:[%s10143 + $0x2c] sm:$0x3]
        %v10212 = vld [vmem:[%s10143 + $0x38] sm:$0x3]
        %v10213 = vld [vmem:[%s10143 + $0x44] sm:$0x3]
        %v10214 = vld [vmem:[%s10143 + $0x50] sm:$0x3]
        %v10215 = vld [vmem:[%s10143 + $0x5c] sm:$0x3]
        %v10216 = vld [vmem:[%s10143 + $0x68] sm:$0x3]
        %v10217 = vld [vmem:[%s10143 + $0x74] sm:$0x3]
        %v10218 = vld [vmem:[%s10143 + $0x80] sm:$0x3]
        %v10219 = vld [vmem:[%s10143 + $0x8c] sm:$0x3]
        %v10220 = vld [vmem:[%s10143 + $0x98] sm:$0x3]
        %v10221 = vld [vmem:[%s10143 + $0xa4] sm:$0x3]
        %v10222 = vld [vmem:[%s10143 + $0xb0] sm:$0x3]
        %v10223 = vld [vmem:[%s10143 + $0xbc] sm:$0x3]
        %v10224 = vld [vmem:[%s10143] sm:$0xc]
        %v10225 = vld [vmem:[%s10143 + $0xc] sm:$0xc]
        %v10226 = vld [vmem:[%s10143 + $0x18] sm:$0xc]
        %v10227 = vld [vmem:[%s10143 + $0x24] sm:$0xc]
        %v10228 = vld [vmem:[%s10143 + $0x30] sm:$0xc]
        %v10229 = vld [vmem:[%s10143 + $0x3c] sm:$0xc]
        %v10230 = vld [vmem:[%s10143 + $0x48] sm:$0xc]
        %v10231 = vld [vmem:[%s10143 + $0x54] sm:$0xc]
        %v10232 = vld [vmem:[%s10143 + $0x60] sm:$0xc]
        %v10233 = vld [vmem:[%s10143 + $0x6c] sm:$0xc]
        %v10234 = vld [vmem:[%s10143 + $0x78] sm:$0xc]
        %v10235 = vld [vmem:[%s10143 + $0x84] sm:$0xc]
        %v10236 = vld [vmem:[%s10143 + $0x90] sm:$0xc]
        %v10237 = vld [vmem:[%s10143 + $0x9c] sm:$0xc]
        %v10238 = vld [vmem:[%s10143 + $0xa8] sm:$0xc]
        %v10239 = vld [vmem:[%s10143 + $0xb4] sm:$0xc]
        %v10240 = vld [vmem:[%s10143 + $0x8] sm:$0x7]
        %v10241 = vld [vmem:[%s10143 + $0x14] sm:$0x7]
        %v10242 = vld [vmem:[%s10143 + $0x20] sm:$0x7]
        %v10243 = vld [vmem:[%s10143 + $0x2c] sm:$0x7]
        %v10244 = vld [vmem:[%s10143 + $0x38] sm:$0x7]
        %v10245 = vld [vmem:[%s10143 + $0x44] sm:$0x7]
        %v10246 = vld [vmem:[%s10143 + $0x50] sm:$0x7]
        %v10247 = vld [vmem:[%s10143 + $0x5c] sm:$0x7]
        %v10248 = vld [vmem:[%s10143 + $0x68] sm:$0x7]
        %v10249 = vld [vmem:[%s10143 + $0x74] sm:$0x7]
        %v10250 = vld [vmem:[%s10143 + $0x80] sm:$0x7]
        %v10251 = vld [vmem:[%s10143 + $0x8c] sm:$0x7]
        %v10252 = vld [vmem:[%s10143 + $0x98] sm:$0x7]
        %v10253 = vld [vmem:[%s10143 + $0xa4] sm:$0x7]
        %v10254 = vld [vmem:[%s10143 + $0xb0] sm:$0x7]
        %v10255 = vld [vmem:[%s10143 + $0xbc] sm:$0x7]
        %v10256 = vld [vmem:[%s10143] sm:$0x8]
        %v10257 = vld [vmem:[%s10143 + $0xc] sm:$0x8]
        %v10258 = vld [vmem:[%s10143 + $0x18] sm:$0x8]
        %v10259 = vld [vmem:[%s10143 + $0x24] sm:$0x8]
        %v10260 = vld [vmem:[%s10143 + $0x30] sm:$0x8]
        %v10261 = vld [vmem:[%s10143 + $0x3c] sm:$0x8]
        %v10262 = vld [vmem:[%s10143 + $0x48] sm:$0x8]
        %v10263 = vld [vmem:[%s10143 + $0x54] sm:$0x8]
        %v10264 = vld [vmem:[%s10143 + $0x60] sm:$0x8]
        %v10265 = vld [vmem:[%s10143 + $0x6c] sm:$0x8]
        %v10266 = vld [vmem:[%s10143 + $0x78] sm:$0x8]
        %v10267 = vld [vmem:[%s10143 + $0x84] sm:$0x8]
        %v10268 = vld [vmem:[%s10143 + $0x90] sm:$0x8]
        %v10269 = vld [vmem:[%s10143 + $0x9c] sm:$0x8]
        %v10270 = vld [vmem:[%s10143 + $0xa8] sm:$0x8]
        %v10271 = vld [vmem:[%s10143 + $0xb4] sm:$0x8]
        %v10304 = vunpack.c.l.b16 %v10144
        %v10305 = vunpack.c.l.b16 %v10145
        %v10306 = vunpack.c.l.b16 %v10146
        %v10307 = vunpack.c.l.b16 %v10147
        %v10308 = vunpack.c.l.b16 %v10148
        %v10309 = vunpack.c.l.b16 %v10149
        %v10310 = vunpack.c.l.b16 %v10150
        %v10311 = vunpack.c.l.b16 %v10151
        %v10312 = vunpack.c.l.b16 %v10152
        %v10313 = vunpack.c.l.b16 %v10153
        %v10314 = vunpack.c.l.b16 %v10154
        %v10315 = vunpack.c.l.b16 %v10155
        %v10316 = vunpack.c.l.b16 %v10156
        %v10317 = vunpack.c.l.b16 %v10157
        %v10318 = vunpack.c.l.b16 %v10158
        %v10319 = vunpack.c.l.b16 %v10159
        %v10320 = vunpack.c.l.b16 %v10160
        %v10321 = vunpack.c.l.b16 %v10161
        %v10322 = vunpack.c.l.b16 %v10162
        %v10323 = vunpack.c.l.b16 %v10163
        %v10324 = vunpack.c.l.b16 %v10164
        %v10325 = vunpack.c.l.b16 %v10165
        %v10326 = vunpack.c.l.b16 %v10166
        %v10327 = vunpack.c.l.b16 %v10167
        %v10328 = vunpack.c.l.b16 %v10168
        %v10329 = vunpack.c.l.b16 %v10169
        %v10330 = vunpack.c.l.b16 %v10170
        %v10331 = vunpack.c.l.b16 %v10171
        %v10332 = vunpack.c.l.b16 %v10172
        %v10333 = vunpack.c.l.b16 %v10173
        %v10334 = vunpack.c.l.b16 %v10174
        %v10335 = vunpack.c.l.b16 %v10175
        %v10336 = vpack.c.b16 %v10305, %v10304
        %v10337 = vpack.c.b16 %v10307, %v10306
        %v10338 = vpack.c.b16 %v10309, %v10308
        %v10339 = vpack.c.b16 %v10311, %v10310
        %v10340 = vpack.c.b16 %v10313, %v10312
        %v10341 = vpack.c.b16 %v10315, %v10314
        %v10342 = vpack.c.b16 %v10317, %v10316
        %v10343 = vpack.c.b16 %v10319, %v10318
        %v10344 = vpack.c.b16 %v10321, %v10320
        %v10345 = vpack.c.b16 %v10323, %v10322
        %v10346 = vpack.c.b16 %v10325, %v10324
        %v10347 = vpack.c.b16 %v10327, %v10326
        %v10348 = vpack.c.b16 %v10329, %v10328
        %v10349 = vpack.c.b16 %v10331, %v10330
        %v10350 = vpack.c.b16 %v10333, %v10332
        %v10351 = vpack.c.b16 %v10335, %v10334
        %v10368 = vunpack.c.l.b16 %v10176
        %v10369 = vunpack.c.l.b16 %v10177
        %v10370 = vunpack.c.l.b16 %v10178
        %v10371 = vunpack.c.l.b16 %v10179
        %v10372 = vunpack.c.l.b16 %v10180
        %v10373 = vunpack.c.l.b16 %v10181
        %v10374 = vunpack.c.l.b16 %v10182
        %v10375 = vunpack.c.l.b16 %v10183
        %v10376 = vunpack.c.l.b16 %v10184
        %v10377 = vunpack.c.l.b16 %v10185
        %v10378 = vunpack.c.l.b16 %v10186
        %v10379 = vunpack.c.l.b16 %v10187
        %v10380 = vunpack.c.l.b16 %v10188
        %v10381 = vunpack.c.l.b16 %v10189
        %v10382 = vunpack.c.l.b16 %v10190
        %v10383 = vunpack.c.l.b16 %v10191
        %v10384 = vpack.c.b16 %v10368, %v10368
        %v10385 = vpack.c.b16 %v10369, %v10369
        %v10386 = vpack.c.b16 %v10370, %v10370
        %v10387 = vpack.c.b16 %v10371, %v10371
        %v10388 = vpack.c.b16 %v10372, %v10372
        %v10389 = vpack.c.b16 %v10373, %v10373
        %v10390 = vpack.c.b16 %v10374, %v10374
        %v10391 = vpack.c.b16 %v10375, %v10375
        %v10392 = vpack.c.b16 %v10376, %v10376
        %v10393 = vpack.c.b16 %v10377, %v10377
        %v10394 = vpack.c.b16 %v10378, %v10378
        %v10395 = vpack.c.b16 %v10379, %v10379
        %v10396 = vpack.c.b16 %v10380, %v10380
        %v10397 = vpack.c.b16 %v10381, %v10381
        %v10398 = vpack.c.b16 %v10382, %v10382
        %v10399 = vpack.c.b16 %v10383, %v10383
        %v10401 = vshrl.u32 %v10336, 16
        %v10403 = vshll.u32 %v10336, 16
        %v10405 = vrot.slane %v10403, 1
        %v10406 = vor.u32 %v10401, %v10405
        %v10408 = vshll.u32 %v10384, 16
        %v10410 = vrot.slane %v10408, 1
        %v10411 = vsel %vm426, %v10406, %v10410
        %v10413 = vshrl.u32 %v10337, 16
        %v10415 = vshll.u32 %v10337, 16
        %v10417 = vrot.slane %v10415, 1
        %v10418 = vor.u32 %v10413, %v10417
        %v10420 = vshll.u32 %v10385, 16
        %v10422 = vrot.slane %v10420, 1
        %v10423 = vsel %vm426, %v10418, %v10422
        %v10425 = vshrl.u32 %v10338, 16
        %v10427 = vshll.u32 %v10338, 16
        %v10429 = vrot.slane %v10427, 1
        %v10430 = vor.u32 %v10425, %v10429
        %v10432 = vshll.u32 %v10386, 16
        %v10434 = vrot.slane %v10432, 1
        %v10435 = vsel %vm426, %v10430, %v10434
        %v10437 = vshrl.u32 %v10339, 16
        %v10439 = vshll.u32 %v10339, 16
        %v10441 = vrot.slane %v10439, 1
        %v10442 = vor.u32 %v10437, %v10441
        %v10444 = vshll.u32 %v10387, 16
        %v10446 = vrot.slane %v10444, 1
        %v10447 = vsel %vm426, %v10442, %v10446
        %v10449 = vshrl.u32 %v10340, 16
        %v10451 = vshll.u32 %v10340, 16
        %v10453 = vrot.slane %v10451, 1
        %v10454 = vor.u32 %v10449, %v10453
        %v10456 = vshll.u32 %v10388, 16
        %v10458 = vrot.slane %v10456, 1
        %v10459 = vsel %vm426, %v10454, %v10458
        %v10461 = vshrl.u32 %v10341, 16
        %v10463 = vshll.u32 %v10341, 16
        %v10465 = vrot.slane %v10463, 1
        %v10466 = vor.u32 %v10461, %v10465
        %v10468 = vshll.u32 %v10389, 16
        %v10470 = vrot.slane %v10468, 1
        %v10471 = vsel %vm426, %v10466, %v10470
        %v10473 = vshrl.u32 %v10342, 16
        %v10475 = vshll.u32 %v10342, 16
        %v10477 = vrot.slane %v10475, 1
        %v10478 = vor.u32 %v10473, %v10477
        %v10480 = vshll.u32 %v10390, 16
        %v10482 = vrot.slane %v10480, 1
        %v10483 = vsel %vm426, %v10478, %v10482
        %v10485 = vshrl.u32 %v10343, 16
        %v10487 = vshll.u32 %v10343, 16
        %v10489 = vrot.slane %v10487, 1
        %v10490 = vor.u32 %v10485, %v10489
        %v10492 = vshll.u32 %v10391, 16
        %v10494 = vrot.slane %v10492, 1
        %v10495 = vsel %vm426, %v10490, %v10494
        %v10497 = vshrl.u32 %v10344, 16
        %v10499 = vshll.u32 %v10344, 16
        %v10501 = vrot.slane %v10499, 1
        %v10502 = vor.u32 %v10497, %v10501
        %v10504 = vshll.u32 %v10392, 16
        %v10506 = vrot.slane %v10504, 1
        %v10507 = vsel %vm426, %v10502, %v10506
        %v10509 = vshrl.u32 %v10345, 16
        %v10511 = vshll.u32 %v10345, 16
        %v10513 = vrot.slane %v10511, 1
        %v10514 = vor.u32 %v10509, %v10513
        %v10516 = vshll.u32 %v10393, 16
        %v10518 = vrot.slane %v10516, 1
        %v10519 = vsel %vm426, %v10514, %v10518
        %v10521 = vshrl.u32 %v10346, 16
        %v10523 = vshll.u32 %v10346, 16
        %v10525 = vrot.slane %v10523, 1
        %v10526 = vor.u32 %v10521, %v10525
        %v10528 = vshll.u32 %v10394, 16
        %v10530 = vrot.slane %v10528, 1
        %v10531 = vsel %vm426, %v10526, %v10530
        %v10533 = vshrl.u32 %v10347, 16
        %v10535 = vshll.u32 %v10347, 16
        %v10537 = vrot.slane %v10535, 1
        %v10538 = vor.u32 %v10533, %v10537
        %v10540 = vshll.u32 %v10395, 16
        %v10542 = vrot.slane %v10540, 1
        %v10543 = vsel %vm426, %v10538, %v10542
        %v10545 = vshrl.u32 %v10348, 16
        %v10547 = vshll.u32 %v10348, 16
        %v10549 = vrot.slane %v10547, 1
        %v10550 = vor.u32 %v10545, %v10549
        %v10552 = vshll.u32 %v10396, 16
        %v10554 = vrot.slane %v10552, 1
        %v10555 = vsel %vm426, %v10550, %v10554
        %v10557 = vshrl.u32 %v10349, 16
        %v10559 = vshll.u32 %v10349, 16
        %v10561 = vrot.slane %v10559, 1
        %v10562 = vor.u32 %v10557, %v10561
        %v10564 = vshll.u32 %v10397, 16
        %v10566 = vrot.slane %v10564, 1
        %v10567 = vsel %vm426, %v10562, %v10566
        %v10569 = vshrl.u32 %v10350, 16
        %v10571 = vshll.u32 %v10350, 16
        %v10573 = vrot.slane %v10571, 1
        %v10574 = vor.u32 %v10569, %v10573
        %v10576 = vshll.u32 %v10398, 16
        %v10578 = vrot.slane %v10576, 1
        %v10579 = vsel %vm426, %v10574, %v10578
        %v10581 = vshrl.u32 %v10351, 16
        %v10583 = vshll.u32 %v10351, 16
        %v10585 = vrot.slane %v10583, 1
        %v10586 = vor.u32 %v10581, %v10585
        %v10588 = vshll.u32 %v10399, 16
        %v10590 = vrot.slane %v10588, 1
        %v10591 = vsel %vm426, %v10586, %v10590
        %10592 = vrot.lane.b32.xlu0 %v10411, 4
        %v10593 = vpop.permute.xlu0 %10592
        %10594 = vrot.lane.b32.xlu0 %v10423, 4
        %v10595 = vpop.permute.xlu0 %10594
        %10596 = vrot.lane.b32.xlu0 %v10435, 4
        %v10597 = vpop.permute.xlu0 %10596
        %10598 = vrot.lane.b32.xlu0 %v10447, 4
        %v10599 = vpop.permute.xlu0 %10598
        %10600 = vrot.lane.b32.xlu0 %v10459, 4
        %v10601 = vpop.permute.xlu0 %10600
        %10602 = vrot.lane.b32.xlu0 %v10471, 4
        %v10603 = vpop.permute.xlu0 %10602
        %10604 = vrot.lane.b32.xlu0 %v10483, 4
        %v10605 = vpop.permute.xlu0 %10604
        %10606 = vrot.lane.b32.xlu0 %v10495, 4
        %v10607 = vpop.permute.xlu0 %10606
        %10608 = vrot.lane.b32.xlu0 %v10507, 4
        %v10609 = vpop.permute.xlu0 %10608
        %10610 = vrot.lane.b32.xlu0 %v10519, 4
        %v10611 = vpop.permute.xlu0 %10610
        %10612 = vrot.lane.b32.xlu0 %v10531, 4
        %v10613 = vpop.permute.xlu0 %10612
        %10614 = vrot.lane.b32.xlu0 %v10543, 4
        %v10615 = vpop.permute.xlu0 %10614
        %10616 = vrot.lane.b32.xlu0 %v10555, 4
        %v10617 = vpop.permute.xlu0 %10616
        %10618 = vrot.lane.b32.xlu0 %v10567, 4
        %v10619 = vpop.permute.xlu0 %10618
        %10620 = vrot.lane.b32.xlu0 %v10579, 4
        %v10621 = vpop.permute.xlu0 %10620
        %10622 = vrot.lane.b32.xlu0 %v10591, 4
        %v10623 = vpop.permute.xlu0 %10622
        %v10640 = vunpack.c.l.b16 %v10192
        %v10641 = vunpack.c.l.b16 %v10193
        %v10642 = vunpack.c.l.b16 %v10194
        %v10643 = vunpack.c.l.b16 %v10195
        %v10644 = vunpack.c.l.b16 %v10196
        %v10645 = vunpack.c.l.b16 %v10197
        %v10646 = vunpack.c.l.b16 %v10198
        %v10647 = vunpack.c.l.b16 %v10199
        %v10648 = vunpack.c.l.b16 %v10200
        %v10649 = vunpack.c.l.b16 %v10201
        %v10650 = vunpack.c.l.b16 %v10202
        %v10651 = vunpack.c.l.b16 %v10203
        %v10652 = vunpack.c.l.b16 %v10204
        %v10653 = vunpack.c.l.b16 %v10205
        %v10654 = vunpack.c.l.b16 %v10206
        %v10655 = vunpack.c.l.b16 %v10207
        %v10656 = vpack.c.b16 %v10305, %v10640
        %v10657 = vpack.c.b16 %v10307, %v10641
        %v10658 = vpack.c.b16 %v10309, %v10642
        %v10659 = vpack.c.b16 %v10311, %v10643
        %v10660 = vpack.c.b16 %v10313, %v10644
        %v10661 = vpack.c.b16 %v10315, %v10645
        %v10662 = vpack.c.b16 %v10317, %v10646
        %v10663 = vpack.c.b16 %v10319, %v10647
        %v10664 = vpack.c.b16 %v10321, %v10648
        %v10665 = vpack.c.b16 %v10323, %v10649
        %v10666 = vpack.c.b16 %v10325, %v10650
        %v10667 = vpack.c.b16 %v10327, %v10651
        %v10668 = vpack.c.b16 %v10329, %v10652
        %v10669 = vpack.c.b16 %v10331, %v10653
        %v10670 = vpack.c.b16 %v10333, %v10654
        %v10671 = vpack.c.b16 %v10335, %v10655
        %v10672 = vrot.slane %v10656, 1
        %v10673 = vrot.slane %v10384, 1
        %v10674 = vsel %vm699, %v10672, %v10673
        %v10675 = vrot.slane %v10657, 1
        %v10676 = vrot.slane %v10385, 1
        %v10677 = vsel %vm699, %v10675, %v10676
        %v10678 = vrot.slane %v10658, 1
        %v10679 = vrot.slane %v10386, 1
        %v10680 = vsel %vm699, %v10678, %v10679
        %v10681 = vrot.slane %v10659, 1
        %v10682 = vrot.slane %v10387, 1
        %v10683 = vsel %vm699, %v10681, %v10682
        %v10684 = vrot.slane %v10660, 1
        %v10685 = vrot.slane %v10388, 1
        %v10686 = vsel %vm699, %v10684, %v10685
        %v10687 = vrot.slane %v10661, 1
        %v10688 = vrot.slane %v10389, 1
        %v10689 = vsel %vm699, %v10687, %v10688
        %v10690 = vrot.slane %v10662, 1
        %v10691 = vrot.slane %v10390, 1
        %v10692 = vsel %vm699, %v10690, %v10691
        %v10693 = vrot.slane %v10663, 1
        %v10694 = vrot.slane %v10391, 1
        %v10695 = vsel %vm699, %v10693, %v10694
        %v10696 = vrot.slane %v10664, 1
        %v10697 = vrot.slane %v10392, 1
        %v10698 = vsel %vm699, %v10696, %v10697
        %v10699 = vrot.slane %v10665, 1
        %v10700 = vrot.slane %v10393, 1
        %v10701 = vsel %vm699, %v10699, %v10700
        %v10702 = vrot.slane %v10666, 1
        %v10703 = vrot.slane %v10394, 1
        %v10704 = vsel %vm699, %v10702, %v10703
        %v10705 = vrot.slane %v10667, 1
        %v10706 = vrot.slane %v10395, 1
        %v10707 = vsel %vm699, %v10705, %v10706
        %v10708 = vrot.slane %v10668, 1
        %v10709 = vrot.slane %v10396, 1
        %v10710 = vsel %vm699, %v10708, %v10709
        %v10711 = vrot.slane %v10669, 1
        %v10712 = vrot.slane %v10397, 1
        %v10713 = vsel %vm699, %v10711, %v10712
        %v10714 = vrot.slane %v10670, 1
        %v10715 = vrot.slane %v10398, 1
        %v10716 = vsel %vm699, %v10714, %v10715
        %v10717 = vrot.slane %v10671, 1
        %v10718 = vrot.slane %v10399, 1
        %v10719 = vsel %vm699, %v10717, %v10718
        %10720 = vrot.lane.b32.xlu0 %v10674, 8
        %v10721 = vpop.permute.xlu0 %10720
        %10722 = vrot.lane.b32.xlu0 %v10677, 8
        %v10723 = vpop.permute.xlu0 %10722
        %10724 = vrot.lane.b32.xlu0 %v10680, 8
        %v10725 = vpop.permute.xlu0 %10724
        %10726 = vrot.lane.b32.xlu0 %v10683, 8
        %v10727 = vpop.permute.xlu0 %10726
        %10728 = vrot.lane.b32.xlu0 %v10686, 8
        %v10729 = vpop.permute.xlu0 %10728
        %10730 = vrot.lane.b32.xlu0 %v10689, 8
        %v10731 = vpop.permute.xlu0 %10730
        %10732 = vrot.lane.b32.xlu0 %v10692, 8
        %v10733 = vpop.permute.xlu0 %10732
        %10734 = vrot.lane.b32.xlu0 %v10695, 8
        %v10735 = vpop.permute.xlu0 %10734
        %10736 = vrot.lane.b32.xlu0 %v10698, 8
        %v10737 = vpop.permute.xlu0 %10736
        %10738 = vrot.lane.b32.xlu0 %v10701, 8
        %v10739 = vpop.permute.xlu0 %10738
        %10740 = vrot.lane.b32.xlu0 %v10704, 8
        %v10741 = vpop.permute.xlu0 %10740
        %10742 = vrot.lane.b32.xlu0 %v10707, 8
        %v10743 = vpop.permute.xlu0 %10742
        %10744 = vrot.lane.b32.xlu0 %v10710, 8
        %v10745 = vpop.permute.xlu0 %10744
        %10746 = vrot.lane.b32.xlu0 %v10713, 8
        %v10747 = vpop.permute.xlu0 %10746
        %10748 = vrot.lane.b32.xlu0 %v10716, 8
        %v10749 = vpop.permute.xlu0 %10748
        %10750 = vrot.lane.b32.xlu0 %v10719, 8
        %v10751 = vpop.permute.xlu0 %10750
        %v10768 = vunpack.c.l.b16 %v10208
        %v10769 = vunpack.c.l.b16 %v10209
        %v10770 = vunpack.c.l.b16 %v10210
        %v10771 = vunpack.c.l.b16 %v10211
        %v10772 = vunpack.c.l.b16 %v10212
        %v10773 = vunpack.c.l.b16 %v10213
        %v10774 = vunpack.c.l.b16 %v10214
        %v10775 = vunpack.c.l.b16 %v10215
        %v10776 = vunpack.c.l.b16 %v10216
        %v10777 = vunpack.c.l.b16 %v10217
        %v10778 = vunpack.c.l.b16 %v10218
        %v10779 = vunpack.c.l.b16 %v10219
        %v10780 = vunpack.c.l.b16 %v10220
        %v10781 = vunpack.c.l.b16 %v10221
        %v10782 = vunpack.c.l.b16 %v10222
        %v10783 = vunpack.c.l.b16 %v10223
        %v10784 = vpack.c.b16 %v10768, %v10768
        %v10785 = vpack.c.b16 %v10769, %v10769
        %v10786 = vpack.c.b16 %v10770, %v10770
        %v10787 = vpack.c.b16 %v10771, %v10771
        %v10788 = vpack.c.b16 %v10772, %v10772
        %v10789 = vpack.c.b16 %v10773, %v10773
        %v10790 = vpack.c.b16 %v10774, %v10774
        %v10791 = vpack.c.b16 %v10775, %v10775
        %v10792 = vpack.c.b16 %v10776, %v10776
        %v10793 = vpack.c.b16 %v10777, %v10777
        %v10794 = vpack.c.b16 %v10778, %v10778
        %v10795 = vpack.c.b16 %v10779, %v10779
        %v10796 = vpack.c.b16 %v10780, %v10780
        %v10797 = vpack.c.b16 %v10781, %v10781
        %v10798 = vpack.c.b16 %v10782, %v10782
        %v10799 = vpack.c.b16 %v10783, %v10783
        %v10801 = vshrl.u32 %v10656, 16
        %v10803 = vrot.slane %v10801, 1
        %v10804 = vshll.u32 %v10656, 16
        %v10806 = vrot.slane %v10804, 2
        %v10807 = vor.u32 %v10803, %v10806
        %v10809 = vshrl.u32 %v10784, 16
        %v10811 = vrot.slane %v10809, 1
        %v10812 = vshll.u32 %v10784, 16
        %v10814 = vrot.slane %v10812, 2
        %v10815 = vor.u32 %v10811, %v10814
        %v10816 = vsel %vm828, %v10807, %v10815
        %v10818 = vshrl.u32 %v10657, 16
        %v10820 = vrot.slane %v10818, 1
        %v10821 = vshll.u32 %v10657, 16
        %v10823 = vrot.slane %v10821, 2
        %v10824 = vor.u32 %v10820, %v10823
        %v10826 = vshrl.u32 %v10785, 16
        %v10828 = vrot.slane %v10826, 1
        %v10829 = vshll.u32 %v10785, 16
        %v10831 = vrot.slane %v10829, 2
        %v10832 = vor.u32 %v10828, %v10831
        %v10833 = vsel %vm828, %v10824, %v10832
        %v10835 = vshrl.u32 %v10658, 16
        %v10837 = vrot.slane %v10835, 1
        %v10838 = vshll.u32 %v10658, 16
        %v10840 = vrot.slane %v10838, 2
        %v10841 = vor.u32 %v10837, %v10840
        %v10843 = vshrl.u32 %v10786, 16
        %v10845 = vrot.slane %v10843, 1
        %v10846 = vshll.u32 %v10786, 16
        %v10848 = vrot.slane %v10846, 2
        %v10849 = vor.u32 %v10845, %v10848
        %v10850 = vsel %vm828, %v10841, %v10849
        %v10852 = vshrl.u32 %v10659, 16
        %v10854 = vrot.slane %v10852, 1
        %v10855 = vshll.u32 %v10659, 16
        %v10857 = vrot.slane %v10855, 2
        %v10858 = vor.u32 %v10854, %v10857
        %v10860 = vshrl.u32 %v10787, 16
        %v10862 = vrot.slane %v10860, 1
        %v10863 = vshll.u32 %v10787, 16
        %v10865 = vrot.slane %v10863, 2
        %v10866 = vor.u32 %v10862, %v10865
        %v10867 = vsel %vm828, %v10858, %v10866
        %v10869 = vshrl.u32 %v10660, 16
        %v10871 = vrot.slane %v10869, 1
        %v10872 = vshll.u32 %v10660, 16
        %v10874 = vrot.slane %v10872, 2
        %v10875 = vor.u32 %v10871, %v10874
        %v10877 = vshrl.u32 %v10788, 16
        %v10879 = vrot.slane %v10877, 1
        %v10880 = vshll.u32 %v10788, 16
        %v10882 = vrot.slane %v10880, 2
        %v10883 = vor.u32 %v10879, %v10882
        %v10884 = vsel %vm828, %v10875, %v10883
        %v10886 = vshrl.u32 %v10661, 16
        %v10888 = vrot.slane %v10886, 1
        %v10889 = vshll.u32 %v10661, 16
        %v10891 = vrot.slane %v10889, 2
        %v10892 = vor.u32 %v10888, %v10891
        %v10894 = vshrl.u32 %v10789, 16
        %v10896 = vrot.slane %v10894, 1
        %v10897 = vshll.u32 %v10789, 16
        %v10899 = vrot.slane %v10897, 2
        %v10900 = vor.u32 %v10896, %v10899
        %v10901 = vsel %vm828, %v10892, %v10900
        %v10903 = vshrl.u32 %v10662, 16
        %v10905 = vrot.slane %v10903, 1
        %v10906 = vshll.u32 %v10662, 16
        %v10908 = vrot.slane %v10906, 2
        %v10909 = vor.u32 %v10905, %v10908
        %v10911 = vshrl.u32 %v10790, 16
        %v10913 = vrot.slane %v10911, 1
        %v10914 = vshll.u32 %v10790, 16
        %v10916 = vrot.slane %v10914, 2
        %v10917 = vor.u32 %v10913, %v10916
        %v10918 = vsel %vm828, %v10909, %v10917
        %v10920 = vshrl.u32 %v10663, 16
        %v10922 = vrot.slane %v10920, 1
        %v10923 = vshll.u32 %v10663, 16
        %v10925 = vrot.slane %v10923, 2
        %v10926 = vor.u32 %v10922, %v10925
        %v10928 = vshrl.u32 %v10791, 16
        %v10930 = vrot.slane %v10928, 1
        %v10931 = vshll.u32 %v10791, 16
        %v10933 = vrot.slane %v10931, 2
        %v10934 = vor.u32 %v10930, %v10933
        %v10935 = vsel %vm828, %v10926, %v10934
        %v10937 = vshrl.u32 %v10664, 16
        %v10939 = vrot.slane %v10937, 1
        %v10940 = vshll.u32 %v10664, 16
        %v10942 = vrot.slane %v10940, 2
        %v10943 = vor.u32 %v10939, %v10942
        %v10945 = vshrl.u32 %v10792, 16
        %v10947 = vrot.slane %v10945, 1
        %v10948 = vshll.u32 %v10792, 16
        %v10950 = vrot.slane %v10948, 2
        %v10951 = vor.u32 %v10947, %v10950
        %v10952 = vsel %vm828, %v10943, %v10951
        %v10954 = vshrl.u32 %v10665, 16
        %v10956 = vrot.slane %v10954, 1
        %v10957 = vshll.u32 %v10665, 16
        %v10959 = vrot.slane %v10957, 2
        %v10960 = vor.u32 %v10956, %v10959
        %v10962 = vshrl.u32 %v10793, 16
        %v10964 = vrot.slane %v10962, 1
        %v10965 = vshll.u32 %v10793, 16
        %v10967 = vrot.slane %v10965, 2
        %v10968 = vor.u32 %v10964, %v10967
        %v10969 = vsel %vm828, %v10960, %v10968
        %v10971 = vshrl.u32 %v10666, 16
        %v10973 = vrot.slane %v10971, 1
        %v10974 = vshll.u32 %v10666, 16
        %v10976 = vrot.slane %v10974, 2
        %v10977 = vor.u32 %v10973, %v10976
        %v10979 = vshrl.u32 %v10794, 16
        %v10981 = vrot.slane %v10979, 1
        %v10982 = vshll.u32 %v10794, 16
        %v10984 = vrot.slane %v10982, 2
        %v10985 = vor.u32 %v10981, %v10984
        %v10986 = vsel %vm828, %v10977, %v10985
        %v10988 = vshrl.u32 %v10667, 16
        %v10990 = vrot.slane %v10988, 1
        %v10991 = vshll.u32 %v10667, 16
        %v10993 = vrot.slane %v10991, 2
        %v10994 = vor.u32 %v10990, %v10993
        %v10996 = vshrl.u32 %v10795, 16
        %v10998 = vrot.slane %v10996, 1
        %v10999 = vshll.u32 %v10795, 16
        %v11001 = vrot.slane %v10999, 2
        %v11002 = vor.u32 %v10998, %v11001
        %v11003 = vsel %vm828, %v10994, %v11002
        %v11005 = vshrl.u32 %v10668, 16
        %v11007 = vrot.slane %v11005, 1
        %v11008 = vshll.u32 %v10668, 16
        %v11010 = vrot.slane %v11008, 2
        %v11011 = vor.u32 %v11007, %v11010
        %v11013 = vshrl.u32 %v10796, 16
        %v11015 = vrot.slane %v11013, 1
        %v11016 = vshll.u32 %v10796, 16
        %v11018 = vrot.slane %v11016, 2
        %v11019 = vor.u32 %v11015, %v11018
        %v11020 = vsel %vm828, %v11011, %v11019
        %v11022 = vshrl.u32 %v10669, 16
        %v11024 = vrot.slane %v11022, 1
        %v11025 = vshll.u32 %v10669, 16
        %v11027 = vrot.slane %v11025, 2
        %v11028 = vor.u32 %v11024, %v11027
        %v11030 = vshrl.u32 %v10797, 16
        %v11032 = vrot.slane %v11030, 1
        %v11033 = vshll.u32 %v10797, 16
        %v11035 = vrot.slane %v11033, 2
        %v11036 = vor.u32 %v11032, %v11035
        %v11037 = vsel %vm828, %v11028, %v11036
        %v11039 = vshrl.u32 %v10670, 16
        %v11041 = vrot.slane %v11039, 1
        %v11042 = vshll.u32 %v10670, 16
        %v11044 = vrot.slane %v11042, 2
        %v11045 = vor.u32 %v11041, %v11044
        %v11047 = vshrl.u32 %v10798, 16
        %v11049 = vrot.slane %v11047, 1
        %v11050 = vshll.u32 %v10798, 16
        %v11052 = vrot.slane %v11050, 2
        %v11053 = vor.u32 %v11049, %v11052
        %v11054 = vsel %vm828, %v11045, %v11053
        %v11056 = vshrl.u32 %v10671, 16
        %v11058 = vrot.slane %v11056, 1
        %v11059 = vshll.u32 %v10671, 16
        %v11061 = vrot.slane %v11059, 2
        %v11062 = vor.u32 %v11058, %v11061
        %v11064 = vshrl.u32 %v10799, 16
        %v11066 = vrot.slane %v11064, 1
        %v11067 = vshll.u32 %v10799, 16
        %v11069 = vrot.slane %v11067, 2
        %v11070 = vor.u32 %v11066, %v11069
        %v11071 = vsel %vm828, %v11062, %v11070
        %11072 = vrot.lane.b32.xlu0 %v10816, 12
        %v11073 = vpop.permute.xlu0 %11072
        %11074 = vrot.lane.b32.xlu0 %v10833, 12
        %v11075 = vpop.permute.xlu0 %11074
        %11076 = vrot.lane.b32.xlu0 %v10850, 12
        %v11077 = vpop.permute.xlu0 %11076
        %11078 = vrot.lane.b32.xlu0 %v10867, 12
        %v11079 = vpop.permute.xlu0 %11078
        %11080 = vrot.lane.b32.xlu0 %v10884, 12
        %v11081 = vpop.permute.xlu0 %11080
        %11082 = vrot.lane.b32.xlu0 %v10901, 12
        %v11083 = vpop.permute.xlu0 %11082
        %11084 = vrot.lane.b32.xlu0 %v10918, 12
        %v11085 = vpop.permute.xlu0 %11084
        %11086 = vrot.lane.b32.xlu0 %v10935, 12
        %v11087 = vpop.permute.xlu0 %11086
        %11088 = vrot.lane.b32.xlu0 %v10952, 12
        %v11089 = vpop.permute.xlu0 %11088
        %11090 = vrot.lane.b32.xlu0 %v10969, 12
        %v11091 = vpop.permute.xlu0 %11090
        %11092 = vrot.lane.b32.xlu0 %v10986, 12
        %v11093 = vpop.permute.xlu0 %11092
        %11094 = vrot.lane.b32.xlu0 %v11003, 12
        %v11095 = vpop.permute.xlu0 %11094
        %11096 = vrot.lane.b32.xlu0 %v11020, 12
        %v11097 = vpop.permute.xlu0 %11096
        %11098 = vrot.lane.b32.xlu0 %v11037, 12
        %v11099 = vpop.permute.xlu0 %11098
        %11100 = vrot.lane.b32.xlu0 %v11054, 12
        %v11101 = vpop.permute.xlu0 %11100
        %11102 = vrot.lane.b32.xlu0 %v11071, 12
        %v11103 = vpop.permute.xlu0 %11102
        %v11120 = vunpack.c.l.b16 %v10224
        %v11121 = vunpack.c.l.b16 %v10225
        %v11122 = vunpack.c.l.b16 %v10226
        %v11123 = vunpack.c.l.b16 %v10227
        %v11124 = vunpack.c.l.b16 %v10228
        %v11125 = vunpack.c.l.b16 %v10229
        %v11126 = vunpack.c.l.b16 %v10230
        %v11127 = vunpack.c.l.b16 %v10231
        %v11128 = vunpack.c.l.b16 %v10232
        %v11129 = vunpack.c.l.b16 %v10233
        %v11130 = vunpack.c.l.b16 %v10234
        %v11131 = vunpack.c.l.b16 %v10235
        %v11132 = vunpack.c.l.b16 %v10236
        %v11133 = vunpack.c.l.b16 %v10237
        %v11134 = vunpack.c.l.b16 %v10238
        %v11135 = vunpack.c.l.b16 %v10239
        %v11136 = vpack.c.b16 %v10305, %v11120
        %v11137 = vpack.c.b16 %v10307, %v11121
        %v11138 = vpack.c.b16 %v10309, %v11122
        %v11139 = vpack.c.b16 %v10311, %v11123
        %v11140 = vpack.c.b16 %v10313, %v11124
        %v11141 = vpack.c.b16 %v10315, %v11125
        %v11142 = vpack.c.b16 %v10317, %v11126
        %v11143 = vpack.c.b16 %v10319, %v11127
        %v11144 = vpack.c.b16 %v10321, %v11128
        %v11145 = vpack.c.b16 %v10323, %v11129
        %v11146 = vpack.c.b16 %v10325, %v11130
        %v11147 = vpack.c.b16 %v10327, %v11131
        %v11148 = vpack.c.b16 %v10329, %v11132
        %v11149 = vpack.c.b16 %v10331, %v11133
        %v11150 = vpack.c.b16 %v10333, %v11134
        %v11151 = vpack.c.b16 %v10335, %v11135
        %v11152 = vrot.slane %v11136, 2
        %v11153 = vrot.slane %v10784, 2
        %v11154 = vsel %vm1181, %v11152, %v11153
        %v11155 = vrot.slane %v11137, 2
        %v11156 = vrot.slane %v10785, 2
        %v11157 = vsel %vm1181, %v11155, %v11156
        %v11158 = vrot.slane %v11138, 2
        %v11159 = vrot.slane %v10786, 2
        %v11160 = vsel %vm1181, %v11158, %v11159
        %v11161 = vrot.slane %v11139, 2
        %v11162 = vrot.slane %v10787, 2
        %v11163 = vsel %vm1181, %v11161, %v11162
        %v11164 = vrot.slane %v11140, 2
        %v11165 = vrot.slane %v10788, 2
        %v11166 = vsel %vm1181, %v11164, %v11165
        %v11167 = vrot.slane %v11141, 2
        %v11168 = vrot.slane %v10789, 2
        %v11169 = vsel %vm1181, %v11167, %v11168
        %v11170 = vrot.slane %v11142, 2
        %v11171 = vrot.slane %v10790, 2
        %v11172 = vsel %vm1181, %v11170, %v11171
        %v11173 = vrot.slane %v11143, 2
        %v11174 = vrot.slane %v10791, 2
        %v11175 = vsel %vm1181, %v11173, %v11174
        %v11176 = vrot.slane %v11144, 2
        %v11177 = vrot.slane %v10792, 2
        %v11178 = vsel %vm1181, %v11176, %v11177
        %v11179 = vrot.slane %v11145, 2
        %v11180 = vrot.slane %v10793, 2
        %v11181 = vsel %vm1181, %v11179, %v11180
        %v11182 = vrot.slane %v11146, 2
        %v11183 = vrot.slane %v10794, 2
        %v11184 = vsel %vm1181, %v11182, %v11183
        %v11185 = vrot.slane %v11147, 2
        %v11186 = vrot.slane %v10795, 2
        %v11187 = vsel %vm1181, %v11185, %v11186
        %v11188 = vrot.slane %v11148, 2
        %v11189 = vrot.slane %v10796, 2
        %v11190 = vsel %vm1181, %v11188, %v11189
        %v11191 = vrot.slane %v11149, 2
        %v11192 = vrot.slane %v10797, 2
        %v11193 = vsel %vm1181, %v11191, %v11192
        %v11194 = vrot.slane %v11150, 2
        %v11195 = vrot.slane %v10798, 2
        %v11196 = vsel %vm1181, %v11194, %v11195
        %v11197 = vrot.slane %v11151, 2
        %v11198 = vrot.slane %v10799, 2
        %v11199 = vsel %vm1181, %v11197, %v11198
        %11200 = vrot.lane.b32.xlu0 %v11154, 16
        %v11201 = vpop.permute.xlu0 %11200
        %11202 = vrot.lane.b32.xlu0 %v11157, 16
        %v11203 = vpop.permute.xlu0 %11202
        %11204 = vrot.lane.b32.xlu0 %v11160, 16
        %v11205 = vpop.permute.xlu0 %11204
        %11206 = vrot.lane.b32.xlu0 %v11163, 16
        %v11207 = vpop.permute.xlu0 %11206
        %11208 = vrot.lane.b32.xlu0 %v11166, 16
        %v11209 = vpop.permute.xlu0 %11208
        %11210 = vrot.lane.b32.xlu0 %v11169, 16
        %v11211 = vpop.permute.xlu0 %11210
        %11212 = vrot.lane.b32.xlu0 %v11172, 16
        %v11213 = vpop.permute.xlu0 %11212
        %11214 = vrot.lane.b32.xlu0 %v11175, 16
        %v11215 = vpop.permute.xlu0 %11214
        %11216 = vrot.lane.b32.xlu0 %v11178, 16
        %v11217 = vpop.permute.xlu0 %11216
        %11218 = vrot.lane.b32.xlu0 %v11181, 16
        %v11219 = vpop.permute.xlu0 %11218
        %11220 = vrot.lane.b32.xlu0 %v11184, 16
        %v11221 = vpop.permute.xlu0 %11220
        %11222 = vrot.lane.b32.xlu0 %v11187, 16
        %v11223 = vpop.permute.xlu0 %11222
        %11224 = vrot.lane.b32.xlu0 %v11190, 16
        %v11225 = vpop.permute.xlu0 %11224
        %11226 = vrot.lane.b32.xlu0 %v11193, 16
        %v11227 = vpop.permute.xlu0 %11226
        %11228 = vrot.lane.b32.xlu0 %v11196, 16
        %v11229 = vpop.permute.xlu0 %11228
        %11230 = vrot.lane.b32.xlu0 %v11199, 16
        %v11231 = vpop.permute.xlu0 %11230
        %v11248 = vunpack.c.l.b16 %v10240
        %v11249 = vunpack.c.l.b16 %v10241
        %v11250 = vunpack.c.l.b16 %v10242
        %v11251 = vunpack.c.l.b16 %v10243
        %v11252 = vunpack.c.l.b16 %v10244
        %v11253 = vunpack.c.l.b16 %v10245
        %v11254 = vunpack.c.l.b16 %v10246
        %v11255 = vunpack.c.l.b16 %v10247
        %v11256 = vunpack.c.l.b16 %v10248
        %v11257 = vunpack.c.l.b16 %v10249
        %v11258 = vunpack.c.l.b16 %v10250
        %v11259 = vunpack.c.l.b16 %v10251
        %v11260 = vunpack.c.l.b16 %v10252
        %v11261 = vunpack.c.l.b16 %v10253
        %v11262 = vunpack.c.l.b16 %v10254
        %v11263 = vunpack.c.l.b16 %v10255
        %v11264 = vpack.c.b16 %v11248, %v11248
        %v11265 = vpack.c.b16 %v11249, %v11249
        %v11266 = vpack.c.b16 %v11250, %v11250
        %v11267 = vpack.c.b16 %v11251, %v11251
        %v11268 = vpack.c.b16 %v11252, %v11252
        %v11269 = vpack.c.b16 %v11253, %v11253
        %v11270 = vpack.c.b16 %v11254, %v11254
        %v11271 = vpack.c.b16 %v11255, %v11255
        %v11272 = vpack.c.b16 %v11256, %v11256
        %v11273 = vpack.c.b16 %v11257, %v11257
        %v11274 = vpack.c.b16 %v11258, %v11258
        %v11275 = vpack.c.b16 %v11259, %v11259
        %v11276 = vpack.c.b16 %v11260, %v11260
        %v11277 = vpack.c.b16 %v11261, %v11261
        %v11278 = vpack.c.b16 %v11262, %v11262
        %v11279 = vpack.c.b16 %v11263, %v11263
        %v11281 = vshrl.u32 %v11136, 16
        %v11283 = vrot.slane %v11281, 2
        %v11284 = vshll.u32 %v11136, 16
        %v11286 = vrot.slane %v11284, 3
        %v11287 = vor.u32 %v11283, %v11286
        %v11289 = vshrl.u32 %v11264, 16
        %v11291 = vrot.slane %v11289, 2
        %v11292 = vshll.u32 %v11264, 16
        %v11294 = vrot.slane %v11292, 3
        %v11295 = vor.u32 %v11291, %v11294
        %v11296 = vsel %vm1310, %v11287, %v11295
        %v11298 = vshrl.u32 %v11137, 16
        %v11300 = vrot.slane %v11298, 2
        %v11301 = vshll.u32 %v11137, 16
        %v11303 = vrot.slane %v11301, 3
        %v11304 = vor.u32 %v11300, %v11303
        %v11306 = vshrl.u32 %v11265, 16
        %v11308 = vrot.slane %v11306, 2
        %v11309 = vshll.u32 %v11265, 16
        %v11311 = vrot.slane %v11309, 3
        %v11312 = vor.u32 %v11308, %v11311
        %v11313 = vsel %vm1310, %v11304, %v11312
        %v11315 = vshrl.u32 %v11138, 16
        %v11317 = vrot.slane %v11315, 2
        %v11318 = vshll.u32 %v11138, 16
        %v11320 = vrot.slane %v11318, 3
        %v11321 = vor.u32 %v11317, %v11320
        %v11323 = vshrl.u32 %v11266, 16
        %v11325 = vrot.slane %v11323, 2
        %v11326 = vshll.u32 %v11266, 16
        %v11328 = vrot.slane %v11326, 3
        %v11329 = vor.u32 %v11325, %v11328
        %v11330 = vsel %vm1310, %v11321, %v11329
        %v11332 = vshrl.u32 %v11139, 16
        %v11334 = vrot.slane %v11332, 2
        %v11335 = vshll.u32 %v11139, 16
        %v11337 = vrot.slane %v11335, 3
        %v11338 = vor.u32 %v11334, %v11337
        %v11340 = vshrl.u32 %v11267, 16
        %v11342 = vrot.slane %v11340, 2
        %v11343 = vshll.u32 %v11267, 16
        %v11345 = vrot.slane %v11343, 3
        %v11346 = vor.u32 %v11342, %v11345
        %v11347 = vsel %vm1310, %v11338, %v11346
        %v11349 = vshrl.u32 %v11140, 16
        %v11351 = vrot.slane %v11349, 2
        %v11352 = vshll.u32 %v11140, 16
        %v11354 = vrot.slane %v11352, 3
        %v11355 = vor.u32 %v11351, %v11354
        %v11357 = vshrl.u32 %v11268, 16
        %v11359 = vrot.slane %v11357, 2
        %v11360 = vshll.u32 %v11268, 16
        %v11362 = vrot.slane %v11360, 3
        %v11363 = vor.u32 %v11359, %v11362
        %v11364 = vsel %vm1310, %v11355, %v11363
        %v11366 = vshrl.u32 %v11141, 16
        %v11368 = vrot.slane %v11366, 2
        %v11369 = vshll.u32 %v11141, 16
        %v11371 = vrot.slane %v11369, 3
        %v11372 = vor.u32 %v11368, %v11371
        %v11374 = vshrl.u32 %v11269, 16
        %v11376 = vrot.slane %v11374, 2
        %v11377 = vshll.u32 %v11269, 16
        %v11379 = vrot.slane %v11377, 3
        %v11380 = vor.u32 %v11376, %v11379
        %v11381 = vsel %vm1310, %v11372, %v11380
        %v11383 = vshrl.u32 %v11142, 16
        %v11385 = vrot.slane %v11383, 2
        %v11386 = vshll.u32 %v11142, 16
        %v11388 = vrot.slane %v11386, 3
        %v11389 = vor.u32 %v11385, %v11388
        %v11391 = vshrl.u32 %v11270, 16
        %v11393 = vrot.slane %v11391, 2
        %v11394 = vshll.u32 %v11270, 16
        %v11396 = vrot.slane %v11394, 3
        %v11397 = vor.u32 %v11393, %v11396
        %v11398 = vsel %vm1310, %v11389, %v11397
        %v11400 = vshrl.u32 %v11143, 16
        %v11402 = vrot.slane %v11400, 2
        %v11403 = vshll.u32 %v11143, 16
        %v11405 = vrot.slane %v11403, 3
        %v11406 = vor.u32 %v11402, %v11405
        %v11408 = vshrl.u32 %v11271, 16
        %v11410 = vrot.slane %v11408, 2
        %v11411 = vshll.u32 %v11271, 16
        %v11413 = vrot.slane %v11411, 3
        %v11414 = vor.u32 %v11410, %v11413
        %v11415 = vsel %vm1310, %v11406, %v11414
        %v11417 = vshrl.u32 %v11144, 16
        %v11419 = vrot.slane %v11417, 2
        %v11420 = vshll.u32 %v11144, 16
        %v11422 = vrot.slane %v11420, 3
        %v11423 = vor.u32 %v11419, %v11422
        %v11425 = vshrl.u32 %v11272, 16
        %v11427 = vrot.slane %v11425, 2
        %v11428 = vshll.u32 %v11272, 16
        %v11430 = vrot.slane %v11428, 3
        %v11431 = vor.u32 %v11427, %v11430
        %v11432 = vsel %vm1310, %v11423, %v11431
        %v11434 = vshrl.u32 %v11145, 16
        %v11436 = vrot.slane %v11434, 2
        %v11437 = vshll.u32 %v11145, 16
        %v11439 = vrot.slane %v11437, 3
        %v11440 = vor.u32 %v11436, %v11439
        %v11442 = vshrl.u32 %v11273, 16
        %v11444 = vrot.slane %v11442, 2
        %v11445 = vshll.u32 %v11273, 16
        %v11447 = vrot.slane %v11445, 3
        %v11448 = vor.u32 %v11444, %v11447
        %v11449 = vsel %vm1310, %v11440, %v11448
        %v11451 = vshrl.u32 %v11146, 16
        %v11453 = vrot.slane %v11451, 2
        %v11454 = vshll.u32 %v11146, 16
        %v11456 = vrot.slane %v11454, 3
        %v11457 = vor.u32 %v11453, %v11456
        %v11459 = vshrl.u32 %v11274, 16
        %v11461 = vrot.slane %v11459, 2
        %v11462 = vshll.u32 %v11274, 16
        %v11464 = vrot.slane %v11462, 3
        %v11465 = vor.u32 %v11461, %v11464
        %v11466 = vsel %vm1310, %v11457, %v11465
        %v11468 = vshrl.u32 %v11147, 16
        %v11470 = vrot.slane %v11468, 2
        %v11471 = vshll.u32 %v11147, 16
        %v11473 = vrot.slane %v11471, 3
        %v11474 = vor.u32 %v11470, %v11473
        %v11476 = vshrl.u32 %v11275, 16
        %v11478 = vrot.slane %v11476, 2
        %v11479 = vshll.u32 %v11275, 16
        %v11481 = vrot.slane %v11479, 3
        %v11482 = vor.u32 %v11478, %v11481
        %v11483 = vsel %vm1310, %v11474, %v11482
        %v11485 = vshrl.u32 %v11148, 16
        %v11487 = vrot.slane %v11485, 2
        %v11488 = vshll.u32 %v11148, 16
        %v11490 = vrot.slane %v11488, 3
        %v11491 = vor.u32 %v11487, %v11490
        %v11493 = vshrl.u32 %v11276, 16
        %v11495 = vrot.slane %v11493, 2
        %v11496 = vshll.u32 %v11276, 16
        %v11498 = vrot.slane %v11496, 3
        %v11499 = vor.u32 %v11495, %v11498
        %v11500 = vsel %vm1310, %v11491, %v11499
        %v11502 = vshrl.u32 %v11149, 16
        %v11504 = vrot.slane %v11502, 2
        %v11505 = vshll.u32 %v11149, 16
        %v11507 = vrot.slane %v11505, 3
        %v11508 = vor.u32 %v11504, %v11507
        %v11510 = vshrl.u32 %v11277, 16
        %v11512 = vrot.slane %v11510, 2
        %v11513 = vshll.u32 %v11277, 16
        %v11515 = vrot.slane %v11513, 3
        %v11516 = vor.u32 %v11512, %v11515
        %v11517 = vsel %vm1310, %v11508, %v11516
        %v11519 = vshrl.u32 %v11150, 16
        %v11521 = vrot.slane %v11519, 2
        %v11522 = vshll.u32 %v11150, 16
        %v11524 = vrot.slane %v11522, 3
        %v11525 = vor.u32 %v11521, %v11524
        %v11527 = vshrl.u32 %v11278, 16
        %v11529 = vrot.slane %v11527, 2
        %v11530 = vshll.u32 %v11278, 16
        %v11532 = vrot.slane %v11530, 3
        %v11533 = vor.u32 %v11529, %v11532
        %v11534 = vsel %vm1310, %v11525, %v11533
        %v11536 = vshrl.u32 %v11151, 16
        %v11538 = vrot.slane %v11536, 2
        %v11539 = vshll.u32 %v11151, 16
        %v11541 = vrot.slane %v11539, 3
        %v11542 = vor.u32 %v11538, %v11541
        %v11544 = vshrl.u32 %v11279, 16
        %v11546 = vrot.slane %v11544, 2
        %v11547 = vshll.u32 %v11279, 16
        %v11549 = vrot.slane %v11547, 3
        %v11550 = vor.u32 %v11546, %v11549
        %v11551 = vsel %vm1310, %v11542, %v11550
        %11552 = vrot.lane.b32.xlu0 %v11296, 20
        %v11553 = vpop.permute.xlu0 %11552
        %11554 = vrot.lane.b32.xlu0 %v11313, 20
        %v11555 = vpop.permute.xlu0 %11554
        %11556 = vrot.lane.b32.xlu0 %v11330, 20
        %v11557 = vpop.permute.xlu0 %11556
        %11558 = vrot.lane.b32.xlu0 %v11347, 20
        %v11559 = vpop.permute.xlu0 %11558
        %11560 = vrot.lane.b32.xlu0 %v11364, 20
        %v11561 = vpop.permute.xlu0 %11560
        %11562 = vrot.lane.b32.xlu0 %v11381, 20
        %v11563 = vpop.permute.xlu0 %11562
        %11564 = vrot.lane.b32.xlu0 %v11398, 20
        %v11565 = vpop.permute.xlu0 %11564
        %11566 = vrot.lane.b32.xlu0 %v11415, 20
        %v11567 = vpop.permute.xlu0 %11566
        %11568 = vrot.lane.b32.xlu0 %v11432, 20
        %v11569 = vpop.permute.xlu0 %11568
        %11570 = vrot.lane.b32.xlu0 %v11449, 20
        %v11571 = vpop.permute.xlu0 %11570
        %11572 = vrot.lane.b32.xlu0 %v11466, 20
        %v11573 = vpop.permute.xlu0 %11572
        %11574 = vrot.lane.b32.xlu0 %v11483, 20
        %v11575 = vpop.permute.xlu0 %11574
        %11576 = vrot.lane.b32.xlu0 %v11500, 20
        %v11577 = vpop.permute.xlu0 %11576
        %11578 = vrot.lane.b32.xlu0 %v11517, 20
        %v11579 = vpop.permute.xlu0 %11578
        %11580 = vrot.lane.b32.xlu0 %v11534, 20
        %v11581 = vpop.permute.xlu0 %11580
        %11582 = vrot.lane.b32.xlu0 %v11551, 20
        %v11583 = vpop.permute.xlu0 %11582
        %v11600 = vunpack.c.l.b16 %v10256
        %v11601 = vunpack.c.l.b16 %v10257
        %v11602 = vunpack.c.l.b16 %v10258
        %v11603 = vunpack.c.l.b16 %v10259
        %v11604 = vunpack.c.l.b16 %v10260
        %v11605 = vunpack.c.l.b16 %v10261
        %v11606 = vunpack.c.l.b16 %v10262
        %v11607 = vunpack.c.l.b16 %v10263
        %v11608 = vunpack.c.l.b16 %v10264
        %v11609 = vunpack.c.l.b16 %v10265
        %v11610 = vunpack.c.l.b16 %v10266
        %v11611 = vunpack.c.l.b16 %v10267
        %v11612 = vunpack.c.l.b16 %v10268
        %v11613 = vunpack.c.l.b16 %v10269
        %v11614 = vunpack.c.l.b16 %v10270
        %v11615 = vunpack.c.l.b16 %v10271
        %v11616 = vpack.c.b16 %v10305, %v11600
        %v11617 = vpack.c.b16 %v10307, %v11601
        %v11618 = vpack.c.b16 %v10309, %v11602
        %v11619 = vpack.c.b16 %v10311, %v11603
        %v11620 = vpack.c.b16 %v10313, %v11604
        %v11621 = vpack.c.b16 %v10315, %v11605
        %v11622 = vpack.c.b16 %v10317, %v11606
        %v11623 = vpack.c.b16 %v10319, %v11607
        %v11624 = vpack.c.b16 %v10321, %v11608
        %v11625 = vpack.c.b16 %v10323, %v11609
        %v11626 = vpack.c.b16 %v10325, %v11610
        %v11627 = vpack.c.b16 %v10327, %v11611
        %v11628 = vpack.c.b16 %v10329, %v11612
        %v11629 = vpack.c.b16 %v10331, %v11613
        %v11630 = vpack.c.b16 %v10333, %v11614
        %v11631 = vpack.c.b16 %v10335, %v11615
        %v11632 = vrot.slane %v11616, 3
        %v11633 = vrot.slane %v11264, 3
        %v11634 = vsel %vm1663, %v11632, %v11633
        %v11635 = vrot.slane %v11617, 3
        %v11636 = vrot.slane %v11265, 3
        %v11637 = vsel %vm1663, %v11635, %v11636
        %v11638 = vrot.slane %v11618, 3
        %v11639 = vrot.slane %v11266, 3
        %v11640 = vsel %vm1663, %v11638, %v11639
        %v11641 = vrot.slane %v11619, 3
        %v11642 = vrot.slane %v11267, 3
        %v11643 = vsel %vm1663, %v11641, %v11642
        %v11644 = vrot.slane %v11620, 3
        %v11645 = vrot.slane %v11268, 3
        %v11646 = vsel %vm1663, %v11644, %v11645
        %v11647 = vrot.slane %v11621, 3
        %v11648 = vrot.slane %v11269, 3
        %v11649 = vsel %vm1663, %v11647, %v11648
        %v11650 = vrot.slane %v11622, 3
        %v11651 = vrot.slane %v11270, 3
        %v11652 = vsel %vm1663, %v11650, %v11651
        %v11653 = vrot.slane %v11623, 3
        %v11654 = vrot.slane %v11271, 3
        %v11655 = vsel %vm1663, %v11653, %v11654
        %v11656 = vrot.slane %v11624, 3
        %v11657 = vrot.slane %v11272, 3
        %v11658 = vsel %vm1663, %v11656, %v11657
        %v11659 = vrot.slane %v11625, 3
        %v11660 = vrot.slane %v11273, 3
        %v11661 = vsel %vm1663, %v11659, %v11660
        %v11662 = vrot.slane %v11626, 3
        %v11663 = vrot.slane %v11274, 3
        %v11664 = vsel %vm1663, %v11662, %v11663
        %v11665 = vrot.slane %v11627, 3
        %v11666 = vrot.slane %v11275, 3
        %v11667 = vsel %vm1663, %v11665, %v11666
        %v11668 = vrot.slane %v11628, 3
        %v11669 = vrot.slane %v11276, 3
        %v11670 = vsel %vm1663, %v11668, %v11669
        %v11671 = vrot.slane %v11629, 3
        %v11672 = vrot.slane %v11277, 3
        %v11673 = vsel %vm1663, %v11671, %v11672
        %v11674 = vrot.slane %v11630, 3
        %v11675 = vrot.slane %v11278, 3
        %v11676 = vsel %vm1663, %v11674, %v11675
        %v11677 = vrot.slane %v11631, 3
        %v11678 = vrot.slane %v11279, 3
        %v11679 = vsel %vm1663, %v11677, %v11678
        %11680 = vrot.lane.b32.xlu0 %v11634, 24
        %v11681 = vpop.permute.xlu0 %11680
        %11682 = vrot.lane.b32.xlu0 %v11637, 24
        %v11683 = vpop.permute.xlu0 %11682
        %11684 = vrot.lane.b32.xlu0 %v11640, 24
        %v11685 = vpop.permute.xlu0 %11684
        %11686 = vrot.lane.b32.xlu0 %v11643, 24
        %v11687 = vpop.permute.xlu0 %11686
        %11688 = vrot.lane.b32.xlu0 %v11646, 24
        %v11689 = vpop.permute.xlu0 %11688
        %11690 = vrot.lane.b32.xlu0 %v11649, 24
        %v11691 = vpop.permute.xlu0 %11690
        %11692 = vrot.lane.b32.xlu0 %v11652, 24
        %v11693 = vpop.permute.xlu0 %11692
        %11694 = vrot.lane.b32.xlu0 %v11655, 24
        %v11695 = vpop.permute.xlu0 %11694
        %11696 = vrot.lane.b32.xlu0 %v11658, 24
        %v11697 = vpop.permute.xlu0 %11696
        %11698 = vrot.lane.b32.xlu0 %v11661, 24
        %v11699 = vpop.permute.xlu0 %11698
        %11700 = vrot.lane.b32.xlu0 %v11664, 24
        %v11701 = vpop.permute.xlu0 %11700
        %11702 = vrot.lane.b32.xlu0 %v11667, 24
        %v11703 = vpop.permute.xlu0 %11702
        %11704 = vrot.lane.b32.xlu0 %v11670, 24
        %v11705 = vpop.permute.xlu0 %11704
        %11706 = vrot.lane.b32.xlu0 %v11673, 24
        %v11707 = vpop.permute.xlu0 %11706
        %11708 = vrot.lane.b32.xlu0 %v11676, 24
        %v11709 = vpop.permute.xlu0 %11708
        %11710 = vrot.lane.b32.xlu0 %v11679, 24
        %v11711 = vpop.permute.xlu0 %11710
        %v11713 = vsel %vm1744, %v10336, %v10593
        %v11715 = vsel %vm1744, %v10337, %v10595
        %v11717 = vsel %vm1744, %v10338, %v10597
        %v11719 = vsel %vm1744, %v10339, %v10599
        %v11721 = vsel %vm1744, %v10340, %v10601
        %v11723 = vsel %vm1744, %v10341, %v10603
        %v11725 = vsel %vm1744, %v10342, %v10605
        %v11727 = vsel %vm1744, %v10343, %v10607
        %v11729 = vsel %vm1744, %v10344, %v10609
        %v11731 = vsel %vm1744, %v10345, %v10611
        %v11733 = vsel %vm1744, %v10346, %v10613
        %v11735 = vsel %vm1744, %v10347, %v10615
        %v11737 = vsel %vm1744, %v10348, %v10617
        %v11739 = vsel %vm1744, %v10349, %v10619
        %v11741 = vsel %vm1744, %v10350, %v10621
        %v11743 = vsel %vm1744, %v10351, %v10623
        %v11745 = vsel %vm1777, %v11713, %v10721
        %v11747 = vsel %vm1777, %v11715, %v10723
        %v11749 = vsel %vm1777, %v11717, %v10725
        %v11751 = vsel %vm1777, %v11719, %v10727
        %v11753 = vsel %vm1777, %v11721, %v10729
        %v11755 = vsel %vm1777, %v11723, %v10731
        %v11757 = vsel %vm1777, %v11725, %v10733
        %v11759 = vsel %vm1777, %v11727, %v10735
        %v11761 = vsel %vm1777, %v11729, %v10737
        %v11763 = vsel %vm1777, %v11731, %v10739
        %v11765 = vsel %vm1777, %v11733, %v10741
        %v11767 = vsel %vm1777, %v11735, %v10743
        %v11769 = vsel %vm1777, %v11737, %v10745
        %v11771 = vsel %vm1777, %v11739, %v10747
        %v11773 = vsel %vm1777, %v11741, %v10749
        %v11775 = vsel %vm1777, %v11743, %v10751
        %v11777 = vsel %vm1810, %v11745, %v11073
        %v11779 = vsel %vm1810, %v11747, %v11075
        %v11781 = vsel %vm1810, %v11749, %v11077
        %v11783 = vsel %vm1810, %v11751, %v11079
        %v11785 = vsel %vm1810, %v11753, %v11081
        %v11787 = vsel %vm1810, %v11755, %v11083
        %v11789 = vsel %vm1810, %v11757, %v11085
        %v11791 = vsel %vm1810, %v11759, %v11087
        %v11793 = vsel %vm1810, %v11761, %v11089
        %v11795 = vsel %vm1810, %v11763, %v11091
        %v11797 = vsel %vm1810, %v11765, %v11093
        %v11799 = vsel %vm1810, %v11767, %v11095
        %v11801 = vsel %vm1810, %v11769, %v11097
        %v11803 = vsel %vm1810, %v11771, %v11099
        %v11805 = vsel %vm1810, %v11773, %v11101
        %v11807 = vsel %vm1810, %v11775, %v11103
        %v11809 = vsel %vm1843, %v11777, %v11201
        %v11811 = vsel %vm1843, %v11779, %v11203
        %v11813 = vsel %vm1843, %v11781, %v11205
        %v11815 = vsel %vm1843, %v11783, %v11207
        %v11817 = vsel %vm1843, %v11785, %v11209
        %v11819 = vsel %vm1843, %v11787, %v11211
        %v11821 = vsel %vm1843, %v11789, %v11213
        %v11823 = vsel %vm1843, %v11791, %v11215
        %v11825 = vsel %vm1843, %v11793, %v11217
        %v11827 = vsel %vm1843, %v11795, %v11219
        %v11829 = vsel %vm1843, %v11797, %v11221
        %v11831 = vsel %vm1843, %v11799, %v11223
        %v11833 = vsel %vm1843, %v11801, %v11225
        %v11835 = vsel %vm1843, %v11803, %v11227
        %v11837 = vsel %vm1843, %v11805, %v11229
        %v11839 = vsel %vm1843, %v11807, %v11231
        %v11841 = vsel %vm1876, %v11809, %v11553
        %v11843 = vsel %vm1876, %v11811, %v11555
        %v11845 = vsel %vm1876, %v11813, %v11557
        %v11847 = vsel %vm1876, %v11815, %v11559
        %v11849 = vsel %vm1876, %v11817, %v11561
        %v11851 = vsel %vm1876, %v11819, %v11563
        %v11853 = vsel %vm1876, %v11821, %v11565
        %v11855 = vsel %vm1876, %v11823, %v11567
        %v11857 = vsel %vm1876, %v11825, %v11569
        %v11859 = vsel %vm1876, %v11827, %v11571
        %v11861 = vsel %vm1876, %v11829, %v11573
        %v11863 = vsel %vm1876, %v11831, %v11575
        %v11865 = vsel %vm1876, %v11833, %v11577
        %v11867 = vsel %vm1876, %v11835, %v11579
        %v11869 = vsel %vm1876, %v11837, %v11581
        %v11871 = vsel %vm1876, %v11839, %v11583
        %v11873 = vsel %vm1909, %v11841, %v11681
        %v11875 = vsel %vm1909, %v11843, %v11683
        %v11877 = vsel %vm1909, %v11845, %v11685
        %v11879 = vsel %vm1909, %v11847, %v11687
        %v11881 = vsel %vm1909, %v11849, %v11689
        %v11883 = vsel %vm1909, %v11851, %v11691
        %v11885 = vsel %vm1909, %v11853, %v11693
        %v11887 = vsel %vm1909, %v11855, %v11695
        %v11889 = vsel %vm1909, %v11857, %v11697
        %v11891 = vsel %vm1909, %v11859, %v11699
        %v11893 = vsel %vm1909, %v11861, %v11701
        %v11895 = vsel %vm1909, %v11863, %v11703
        %v11897 = vsel %vm1909, %v11865, %v11705
        %v11899 = vsel %vm1909, %v11867, %v11707
        %v11901 = vsel %vm1909, %v11869, %v11709
        %v11903 = vsel %vm1909, %v11871, %v11711
        %s11904 = scalar_lea.vmem %s1, 80
        %v11905 = vld [vmem:[%s11904] sm:$0xf]
        %v11906 = vld [vmem:[%s11904 + $0x4] sm:$0xf]
        %v11907 = vld [vmem:[%s11904 + $0x8] sm:$0xf]
        %v11908 = vld [vmem:[%s11904 + $0xc] sm:$0x3]
        %v11913 = vunpack.c.l.b16 %v11905
        %v11914 = vunpack.c.l.b16 %v11906
        %v11915 = vunpack.c.l.b16 %v11907
        %v11916 = vunpack.c.l.b16 %v11908
        %v11917 = vpack.c.b16 %v11914, %v11913
        %v11918 = vpack.c.b16 %v11916, %v11915
        %v11920 = vsel %vm3723, %v11873, 0
        %v11922 = vsel %vm3723, %v11875, 0
        %v11924 = vsel %vm3723, %v11877, 0
        %v11926 = vsel %vm3723, %v11879, 0
        %v11928 = vsel %vm3723, %v11881, 0
        %v11930 = vsel %vm3723, %v11883, 0
        %v11932 = vsel %vm3723, %v11885, 0
        %v11934 = vsel %vm3723, %v11887, 0
        %v11936 = vsel %vm3723, %v11889, 0
        %v11938 = vsel %vm3723, %v11891, 0
        %v11940 = vsel %vm3723, %v11893, 0
        %v11942 = vsel %vm3723, %v11895, 0
        %v11944 = vsel %vm3723, %v11897, 0
        %v11946 = vsel %vm3723, %v11899, 0
        %v11948 = vsel %vm3723, %v11901, 0
        %v11950 = vsel %vm3723, %v11903, 0
        %v11953 = vsel %vm3756, %v11918, 0
        %11955 = vmatprep.subr.bf16.mxu0 0
        %11956 = vmatpush1.bf16.msra.mxu0 %v11917
        %11957 = vmatprep.subr.bf16.mxu0 0
        %11958 = vmatpush1.bf16.msra.mxu0 %v11953
        %11959 = vmatprep.subr.bf16.mxu0 0
        %11960 = vmatpush1.bf16.msra.mxu0 0
        %11961 = vmatprep.subr.bf16.mxu0 0
        %11962 = vmatpush1.bf16.msra.mxu0 0
        %11963 = vmatprep.subr.bf16.mxu0 0
        %11964 = vmatpush1.bf16.msra.mxu0 0
        %11965 = vmatprep.subr.bf16.mxu0 0
        %11966 = vmatpush1.bf16.msra.mxu0 0
        %11967 = vmatprep.subr.bf16.mxu0 0
        %11968 = vmatpush1.bf16.msra.mxu0 0
        %11969 = vmatprep.subr.bf16.mxu0 0
        %11970 = vmatpush1.bf16.msra.mxu0 0
        %11971 = vmatprep.subr.bf16.mxu0 0
        %11972 = vmatpush1.bf16.msra.mxu0 0
        %11973 = vmatprep.subr.bf16.mxu0 0
        %11974 = vmatpush1.bf16.msra.mxu0 0
        %11975 = vmatprep.subr.bf16.mxu0 0
        %11976 = vmatpush1.bf16.msra.mxu0 0
        %11977 = vmatprep.subr.bf16.mxu0 0
        %11978 = vmatpush1.bf16.msra.mxu0 0
        %11979 = vmatprep.subr.bf16.mxu0 0
        %11980 = vmatpush1.bf16.msra.mxu0 0
        %11981 = vmatprep.subr.bf16.mxu0 0
        %11982 = vmatpush1.bf16.msra.mxu0 0
        %11983 = vmatprep.subr.bf16.mxu0 0
        %11984 = vmatpush1.bf16.msra.mxu0 0
        %11985 = vmatprep.subr.bf16.mxu0 0
        %11986 = vmatpush1.bf16.msra.mxu0 0
        %11987 = vmatprep.mubr.bf16.mxu0 0
        %11988 = vmatmul.mubr.bf16.gmra.mrb[0].mxu0 %v11920
        %v11989 = vpop.f32.mrb[0].mxu0
        %v11990 = vadd.f32 0.0, %v11989
        %v11991 = vpop.f32.mrb[0].mxu0
        %v11992 = vpop.f32.mrb[0].mxu0
        %v11993 = vadd.f32 0.0, %v11992
        %v11994 = vpop.f32.mrb[0].mxu0
        %11995 = vmatprep.mubr.bf16.mxu0 0
        %11996 = vmatmul.mubr.bf16.gmra.mrb[0].mxu0 %v11922
        %v11997 = vpop.f32.mrb[0].mxu0
        %v11998 = vadd.f32 0.0, %v11997
        %v11999 = vpop.f32.mrb[0].mxu0
        %v12000 = vpop.f32.mrb[0].mxu0
        %v12001 = vadd.f32 0.0, %v12000
        %v12002 = vpop.f32.mrb[0].mxu0
        %12003 = vmatprep.mubr.bf16.mxu0 0
        %12004 = vmatmul.mubr.bf16.gmra.mrb[0].mxu0 %v11924
        %v12005 = vpop.f32.mrb[0].mxu0
        %v12006 = vadd.f32 0.0, %v12005
        %v12007 = vpop.f32.mrb[0].mxu0
        %v12008 = vpop.f32.mrb[0].mxu0
        %v12009 = vadd.f32 0.0, %v12008
        %v12010 = vpop.f32.mrb[0].mxu0
        %12011 = vmatprep.mubr.bf16.mxu0 0
        %12012 = vmatmul.mubr.bf16.gmra.mrb[0].mxu0 %v11926
        %v12013 = vpop.f32.mrb[0].mxu0
        %v12014 = vadd.f32 0.0, %v12013
        %v12015 = vpop.f32.mrb[0].mxu0
        %v12016 = vpop.f32.mrb[0].mxu0
        %v12017 = vadd.f32 0.0, %v12016
        %v12018 = vpop.f32.mrb[0].mxu0
        %12019 = vmatprep.mubr.bf16.mxu0 0
        %12020 = vmatmul.mubr.bf16.gmra.mrb[0].mxu0 %v11928
        %v12021 = vpop.f32.mrb[0].mxu0
        %v12022 = vadd.f32 0.0, %v12021
        %v12023 = vpop.f32.mrb[0].mxu0
        %v12024 = vpop.f32.mrb[0].mxu0
        %v12025 = vadd.f32 0.0, %v12024
        %v12026 = vpop.f32.mrb[0].mxu0
        %12027 = vmatprep.mubr.bf16.mxu0 0
        %12028 = vmatmul.mubr.bf16.gmra.mrb[0].mxu0 %v11930
        %v12029 = vpop.f32.mrb[0].mxu0
        %v12030 = vadd.f32 0.0, %v12029
        %v12031 = vpop.f32.mrb[0].mxu0
        %v12032 = vpop.f32.mrb[0].mxu0
        %v12033 = vadd.f32 0.0, %v12032
        %v12034 = vpop.f32.mrb[0].mxu0
        %12035 = vmatprep.mubr.bf16.mxu0 0
        %12036 = vmatmul.mubr.bf16.gmra.mrb[0].mxu0 %v11932
        %v12037 = vpop.f32.mrb[0].mxu0
        %v12038 = vadd.f32 0.0, %v12037
        %v12039 = vpop.f32.mrb[0].mxu0
        %v12040 = vpop.f32.mrb[0].mxu0
        %v12041 = vadd.f32 0.0, %v12040
        %v12042 = vpop.f32.mrb[0].mxu0
        %12043 = vmatprep.mubr.bf16.mxu0 0
        %12044 = vmatmul.mubr.bf16.gmra.mrb[0].mxu0 %v11934
        %v12045 = vpop.f32.mrb[0].mxu0
        %v12046 = vadd.f32 0.0, %v12045
        %v12047 = vpop.f32.mrb[0].mxu0
        %v12048 = vpop.f32.mrb[0].mxu0
        %v12049 = vadd.f32 0.0, %v12048
        %v12050 = vpop.f32.mrb[0].mxu0
        %12051 = vmatprep.mubr.bf16.mxu0 0
        %12052 = vmatmul.mubr.bf16.gmra.mrb[0].mxu0 %v11936
        %v12053 = vpop.f32.mrb[0].mxu0
        %v12054 = vadd.f32 0.0, %v12053
        %v12055 = vpop.f32.mrb[0].mxu0
        %v12056 = vpop.f32.mrb[0].mxu0
        %v12057 = vadd.f32 0.0, %v12056
        %v12058 = vpop.f32.mrb[0].mxu0
        %12059 = vmatprep.mubr.bf16.mxu0 0
        %12060 = vmatmul.mubr.bf16.gmra.mrb[0].mxu0 %v11938
        %v12061 = vpop.f32.mrb[0].mxu0
        %v12062 = vadd.f32 0.0, %v12061
        %v12063 = vpop.f32.mrb[0].mxu0
        %v12064 = vpop.f32.mrb[0].mxu0
        %v12065 = vadd.f32 0.0, %v12064
        %v12066 = vpop.f32.mrb[0].mxu0
        %12067 = vmatprep.mubr.bf16.mxu0 0
        %12068 = vmatmul.mubr.bf16.gmra.mrb[0].mxu0 %v11940
        %v12069 = vpop.f32.mrb[0].mxu0
        %v12070 = vadd.f32 0.0, %v12069
        %v12071 = vpop.f32.mrb[0].mxu0
        %v12072 = vpop.f32.mrb[0].mxu0
        %v12073 = vadd.f32 0.0, %v12072
        %v12074 = vpop.f32.mrb[0].mxu0
        %12075 = vmatprep.mubr.bf16.mxu0 0
        %12076 = vmatmul.mubr.bf16.gmra.mrb[0].mxu0 %v11942
        %v12077 = vpop.f32.mrb[0].mxu0
        %v12078 = vadd.f32 0.0, %v12077
        %v12079 = vpop.f32.mrb[0].mxu0
        %v12080 = vpop.f32.mrb[0].mxu0
        %v12081 = vadd.f32 0.0, %v12080
        %v12082 = vpop.f32.mrb[0].mxu0
        %12083 = vmatprep.mubr.bf16.mxu0 0
        %12084 = vmatmul.mubr.bf16.gmra.mrb[0].mxu0 %v11944
        %v12085 = vpop.f32.mrb[0].mxu0
        %v12086 = vadd.f32 0.0, %v12085
        %v12087 = vpop.f32.mrb[0].mxu0
        %v12088 = vpop.f32.mrb[0].mxu0
        %v12089 = vadd.f32 0.0, %v12088
        %v12090 = vpop.f32.mrb[0].mxu0
        %12091 = vmatprep.mubr.bf16.mxu0 0
        %12092 = vmatmul.mubr.bf16.gmra.mrb[0].mxu0 %v11946
        %v12093 = vpop.f32.mrb[0].mxu0
        %v12094 = vadd.f32 0.0, %v12093
        %v12095 = vpop.f32.mrb[0].mxu0
        %v12096 = vpop.f32.mrb[0].mxu0
        %v12097 = vadd.f32 0.0, %v12096
        %v12098 = vpop.f32.mrb[0].mxu0
        %12099 = vmatprep.mubr.bf16.mxu0 0
        %12100 = vmatmul.mubr.bf16.gmra.mrb[0].mxu0 %v11948
        %v12101 = vpop.f32.mrb[0].mxu0
        %v12102 = vadd.f32 0.0, %v12101
        %v12103 = vpop.f32.mrb[0].mxu0
        %v12104 = vpop.f32.mrb[0].mxu0
        %v12105 = vadd.f32 0.0, %v12104
        %v12106 = vpop.f32.mrb[0].mxu0
        %12107 = vmatprep.mubr.bf16.mxu0 0
        %12108 = vmatmul.mubr.bf16.gmra.mrb[0].mxu0 %v11950
        %v12109 = vpop.f32.mrb[0].mxu0
        %v12110 = vadd.f32 0.0, %v12109
        %v12111 = vpop.f32.mrb[0].mxu0
        %v12112 = vpop.f32.mrb[0].mxu0
        %v12113 = vadd.f32 0.0, %v12112
        %v12114 = vpop.f32.mrb[0].mxu0
        %12115 = vdwg.mxu0
        %v12116 = vadd.f32 %v10111, %v11990
        %v12117 = vadd.f32 %v10112, %v11993
        %v12118 = vadd.f32 %v10113, %v11998
        %v12119 = vadd.f32 %v10114, %v12001
        %v12120 = vadd.f32 %v10115, %v12006
        %v12121 = vadd.f32 %v10116, %v12009
        %v12122 = vadd.f32 %v10117, %v12014
        %v12123 = vadd.f32 %v10118, %v12017
        %v12124 = vadd.f32 %v10119, %v12022
        %v12125 = vadd.f32 %v10120, %v12025
        %v12126 = vadd.f32 %v10121, %v12030
        %v12127 = vadd.f32 %v10122, %v12033
        %v12128 = vadd.f32 %v10123, %v12038
        %v12129 = vadd.f32 %v10124, %v12041
        %v12130 = vadd.f32 %v10125, %v12046
        %v12131 = vadd.f32 %v10126, %v12049
        %v12132 = vadd.f32 %v10127, %v12054
        %v12133 = vadd.f32 %v10128, %v12057
        %v12134 = vadd.f32 %v10129, %v12062
        %v12135 = vadd.f32 %v10130, %v12065
        %v12136 = vadd.f32 %v10131, %v12070
        %v12137 = vadd.f32 %v10132, %v12073
        %v12138 = vadd.f32 %v10133, %v12078
        %v12139 = vadd.f32 %v10134, %v12081
        %v12140 = vadd.f32 %v10135, %v12086
        %v12141 = vadd.f32 %v10136, %v12089
        %v12142 = vadd.f32 %v10137, %v12094
        %v12143 = vadd.f32 %v10138, %v12097
        %v12144 = vadd.f32 %v10139, %v12102
        %v12145 = vadd.f32 %v10140, %v12105
        %v12146 = vadd.f32 %v10141, %v12110
        %v12147 = vadd.f32 %v10142, %v12113
        %s12148 = scalar_lea.vmem %s168, 72
        %v12149 = vld [vmem:[%s12148] sm:$0xf]
        %v12150 = vld [vmem:[%s12148 + $0x4] sm:$0xf]
        %v12151 = vld [vmem:[%s12148 + $0xc] sm:$0xf]
        %v12152 = vld [vmem:[%s12148 + $0x10] sm:$0xf]
        %v12153 = vld [vmem:[%s12148 + $0x18] sm:$0xf]
        %v12154 = vld [vmem:[%s12148 + $0x1c] sm:$0xf]
        %v12155 = vld [vmem:[%s12148 + $0x24] sm:$0xf]
        %v12156 = vld [vmem:[%s12148 + $0x28] sm:$0xf]
        %v12157 = vld [vmem:[%s12148 + $0x30] sm:$0xf]
        %v12158 = vld [vmem:[%s12148 + $0x34] sm:$0xf]
        %v12159 = vld [vmem:[%s12148 + $0x3c] sm:$0xf]
        %v12160 = vld [vmem:[%s12148 + $0x40] sm:$0xf]
        %v12161 = vld [vmem:[%s12148 + $0x48] sm:$0xf]
        %v12162 = vld [vmem:[%s12148 + $0x4c] sm:$0xf]
        %v12163 = vld [vmem:[%s12148 + $0x54] sm:$0xf]
        %v12164 = vld [vmem:[%s12148 + $0x58] sm:$0xf]
        %v12165 = vld [vmem:[%s12148 + $0x60] sm:$0xf]
        %v12166 = vld [vmem:[%s12148 + $0x64] sm:$0xf]
        %v12167 = vld [vmem:[%s12148 + $0x6c] sm:$0xf]
        %v12168 = vld [vmem:[%s12148 + $0x70] sm:$0xf]
        %v12169 = vld [vmem:[%s12148 + $0x78] sm:$0xf]
        %v12170 = vld [vmem:[%s12148 + $0x7c] sm:$0xf]
        %v12171 = vld [vmem:[%s12148 + $0x84] sm:$0xf]
        %v12172 = vld [vmem:[%s12148 + $0x88] sm:$0xf]
        %v12173 = vld [vmem:[%s12148 + $0x90] sm:$0xf]
        %v12174 = vld [vmem:[%s12148 + $0x94] sm:$0xf]
        %v12175 = vld [vmem:[%s12148 + $0x9c] sm:$0xf]
        %v12176 = vld [vmem:[%s12148 + $0xa0] sm:$0xf]
        %v12177 = vld [vmem:[%s12148 + $0xa8] sm:$0xf]
        %v12178 = vld [vmem:[%s12148 + $0xac] sm:$0xf]
        %v12179 = vld [vmem:[%s12148 + $0xb4] sm:$0xf]
        %v12180 = vld [vmem:[%s12148 + $0xb8] sm:$0xf]
        %v12181 = vld [vmem:[%s12148 + $0x8] sm:$0x1]
        %v12182 = vld [vmem:[%s12148 + $0x14] sm:$0x1]
        %v12183 = vld [vmem:[%s12148 + $0x20] sm:$0x1]
        %v12184 = vld [vmem:[%s12148 + $0x2c] sm:$0x1]
        %v12185 = vld [vmem:[%s12148 + $0x38] sm:$0x1]
        %v12186 = vld [vmem:[%s12148 + $0x44] sm:$0x1]
        %v12187 = vld [vmem:[%s12148 + $0x50] sm:$0x1]
        %v12188 = vld [vmem:[%s12148 + $0x5c] sm:$0x1]
        %v12189 = vld [vmem:[%s12148 + $0x68] sm:$0x1]
        %v12190 = vld [vmem:[%s12148 + $0x74] sm:$0x1]
        %v12191 = vld [vmem:[%s12148 + $0x80] sm:$0x1]
        %v12192 = vld [vmem:[%s12148 + $0x8c] sm:$0x1]
        %v12193 = vld [vmem:[%s12148 + $0x98] sm:$0x1]
        %v12194 = vld [vmem:[%s12148 + $0xa4] sm:$0x1]
        %v12195 = vld [vmem:[%s12148 + $0xb0] sm:$0x1]
        %v12196 = vld [vmem:[%s12148 + $0xbc] sm:$0x1]
        %v12197 = vld [vmem:[%s12148] sm:$0xe]
        %v12198 = vld [vmem:[%s12148 + $0xc] sm:$0xe]
        %v12199 = vld [vmem:[%s12148 + $0x18] sm:$0xe]
        %v12200 = vld [vmem:[%s12148 + $0x24] sm:$0xe]
        %v12201 = vld [vmem:[%s12148 + $0x30] sm:$0xe]
        %v12202 = vld [vmem:[%s12148 + $0x3c] sm:$0xe]
        %v12203 = vld [vmem:[%s12148 + $0x48] sm:$0xe]
        %v12204 = vld [vmem:[%s12148 + $0x54] sm:$0xe]
        %v12205 = vld [vmem:[%s12148 + $0x60] sm:$0xe]
        %v12206 = vld [vmem:[%s12148 + $0x6c] sm:$0xe]
        %v12207 = vld [vmem:[%s12148 + $0x78] sm:$0xe]
        %v12208 = vld [vmem:[%s12148 + $0x84] sm:$0xe]
        %v12209 = vld [vmem:[%s12148 + $0x90] sm:$0xe]
        %v12210 = vld [vmem:[%s12148 + $0x9c] sm:$0xe]
        %v12211 = vld [vmem:[%s12148 + $0xa8] sm:$0xe]
        %v12212 = vld [vmem:[%s12148 + $0xb4] sm:$0xe]
        %v12213 = vld [vmem:[%s12148 + $0x8] sm:$0x3]
        %v12214 = vld [vmem:[%s12148 + $0x14] sm:$0x3]
        %v12215 = vld [vmem:[%s12148 + $0x20] sm:$0x3]
        %v12216 = vld [vmem:[%s12148 + $0x2c] sm:$0x3]
        %v12217 = vld [vmem:[%s12148 + $0x38] sm:$0x3]
        %v12218 = vld [vmem:[%s12148 + $0x44] sm:$0x3]
        %v12219 = vld [vmem:[%s12148 + $0x50] sm:$0x3]
        %v12220 = vld [vmem:[%s12148 + $0x5c] sm:$0x3]
        %v12221 = vld [vmem:[%s12148 + $0x68] sm:$0x3]
        %v12222 = vld [vmem:[%s12148 + $0x74] sm:$0x3]
        %v12223 = vld [vmem:[%s12148 + $0x80] sm:$0x3]
        %v12224 = vld [vmem:[%s12148 + $0x8c] sm:$0x3]
        %v12225 = vld [vmem:[%s12148 + $0x98] sm:$0x3]
        %v12226 = vld [vmem:[%s12148 + $0xa4] sm:$0x3]
        %v12227 = vld [vmem:[%s12148 + $0xb0] sm:$0x3]
        %v12228 = vld [vmem:[%s12148 + $0xbc] sm:$0x3]
        %v12229 = vld [vmem:[%s12148] sm:$0xc]
        %v12230 = vld [vmem:[%s12148 + $0xc] sm:$0xc]
        %v12231 = vld [vmem:[%s12148 + $0x18] sm:$0xc]
        %v12232 = vld [vmem:[%s12148 + $0x24] sm:$0xc]
        %v12233 = vld [vmem:[%s12148 + $0x30] sm:$0xc]
        %v12234 = vld [vmem:[%s12148 + $0x3c] sm:$0xc]
        %v12235 = vld [vmem:[%s12148 + $0x48] sm:$0xc]
        %v12236 = vld [vmem:[%s12148 + $0x54] sm:$0xc]
        %v12237 = vld [vmem:[%s12148 + $0x60] sm:$0xc]
        %v12238 = vld [vmem:[%s12148 + $0x6c] sm:$0xc]
        %v12239 = vld [vmem:[%s12148 + $0x78] sm:$0xc]
        %v12240 = vld [vmem:[%s12148 + $0x84] sm:$0xc]
        %v12241 = vld [vmem:[%s12148 + $0x90] sm:$0xc]
        %v12242 = vld [vmem:[%s12148 + $0x9c] sm:$0xc]
        %v12243 = vld [vmem:[%s12148 + $0xa8] sm:$0xc]
        %v12244 = vld [vmem:[%s12148 + $0xb4] sm:$0xc]
        %v12245 = vld [vmem:[%s12148 + $0x8] sm:$0x7]
        %v12246 = vld [vmem:[%s12148 + $0x14] sm:$0x7]
        %v12247 = vld [vmem:[%s12148 + $0x20] sm:$0x7]
        %v12248 = vld [vmem:[%s12148 + $0x2c] sm:$0x7]
        %v12249 = vld [vmem:[%s12148 + $0x38] sm:$0x7]
        %v12250 = vld [vmem:[%s12148 + $0x44] sm:$0x7]
        %v12251 = vld [vmem:[%s12148 + $0x50] sm:$0x7]
        %v12252 = vld [vmem:[%s12148 + $0x5c] sm:$0x7]
        %v12253 = vld [vmem:[%s12148 + $0x68] sm:$0x7]
        %v12254 = vld [vmem:[%s12148 + $0x74] sm:$0x7]
        %v12255 = vld [vmem:[%s12148 + $0x80] sm:$0x7]
        %v12256 = vld [vmem:[%s12148 + $0x8c] sm:$0x7]
        %v12257 = vld [vmem:[%s12148 + $0x98] sm:$0x7]
        %v12258 = vld [vmem:[%s12148 + $0xa4] sm:$0x7]
        %v12259 = vld [vmem:[%s12148 + $0xb0] sm:$0x7]
        %v12260 = vld [vmem:[%s12148 + $0xbc] sm:$0x7]
        %v12261 = vld [vmem:[%s12148] sm:$0x8]
        %v12262 = vld [vmem:[%s12148 + $0xc] sm:$0x8]
        %v12263 = vld [vmem:[%s12148 + $0x18] sm:$0x8]
        %v12264 = vld [vmem:[%s12148 + $0x24] sm:$0x8]
        %v12265 = vld [vmem:[%s12148 + $0x30] sm:$0x8]
        %v12266 = vld [vmem:[%s12148 + $0x3c] sm:$0x8]
        %v12267 = vld [vmem:[%s12148 + $0x48] sm:$0x8]
        %v12268 = vld [vmem:[%s12148 + $0x54] sm:$0x8]
        %v12269 = vld [vmem:[%s12148 + $0x60] sm:$0x8]
        %v12270 = vld [vmem:[%s12148 + $0x6c] sm:$0x8]
        %v12271 = vld [vmem:[%s12148 + $0x78] sm:$0x8]
        %v12272 = vld [vmem:[%s12148 + $0x84] sm:$0x8]
        %v12273 = vld [vmem:[%s12148 + $0x90] sm:$0x8]
        %v12274 = vld [vmem:[%s12148 + $0x9c] sm:$0x8]
        %v12275 = vld [vmem:[%s12148 + $0xa8] sm:$0x8]
        %v12276 = vld [vmem:[%s12148 + $0xb4] sm:$0x8]
        %v12309 = vunpack.c.l.b16 %v12149
        %v12310 = vunpack.c.l.b16 %v12150
        %v12311 = vunpack.c.l.b16 %v12151
        %v12312 = vunpack.c.l.b16 %v12152
        %v12313 = vunpack.c.l.b16 %v12153
        %v12314 = vunpack.c.l.b16 %v12154
        %v12315 = vunpack.c.l.b16 %v12155
        %v12316 = vunpack.c.l.b16 %v12156
        %v12317 = vunpack.c.l.b16 %v12157
        %v12318 = vunpack.c.l.b16 %v12158
        %v12319 = vunpack.c.l.b16 %v12159
        %v12320 = vunpack.c.l.b16 %v12160
        %v12321 = vunpack.c.l.b16 %v12161
        %v12322 = vunpack.c.l.b16 %v12162
        %v12323 = vunpack.c.l.b16 %v12163
        %v12324 = vunpack.c.l.b16 %v12164
        %v12325 = vunpack.c.l.b16 %v12165
        %v12326 = vunpack.c.l.b16 %v12166
        %v12327 = vunpack.c.l.b16 %v12167
        %v12328 = vunpack.c.l.b16 %v12168
        %v12329 = vunpack.c.l.b16 %v12169
        %v12330 = vunpack.c.l.b16 %v12170
        %v12331 = vunpack.c.l.b16 %v12171
        %v12332 = vunpack.c.l.b16 %v12172
        %v12333 = vunpack.c.l.b16 %v12173
        %v12334 = vunpack.c.l.b16 %v12174
        %v12335 = vunpack.c.l.b16 %v12175
        %v12336 = vunpack.c.l.b16 %v12176
        %v12337 = vunpack.c.l.b16 %v12177
        %v12338 = vunpack.c.l.b16 %v12178
        %v12339 = vunpack.c.l.b16 %v12179
        %v12340 = vunpack.c.l.b16 %v12180
        %v12341 = vpack.c.b16 %v12310, %v12309
        %v12342 = vpack.c.b16 %v12312, %v12311
        %v12343 = vpack.c.b16 %v12314, %v12313
        %v12344 = vpack.c.b16 %v12316, %v12315
        %v12345 = vpack.c.b16 %v12318, %v12317
        %v12346 = vpack.c.b16 %v12320, %v12319
        %v12347 = vpack.c.b16 %v12322, %v12321
        %v12348 = vpack.c.b16 %v12324, %v12323
        %v12349 = vpack.c.b16 %v12326, %v12325
        %v12350 = vpack.c.b16 %v12328, %v12327
        %v12351 = vpack.c.b16 %v12330, %v12329
        %v12352 = vpack.c.b16 %v12332, %v12331
        %v12353 = vpack.c.b16 %v12334, %v12333
        %v12354 = vpack.c.b16 %v12336, %v12335
        %v12355 = vpack.c.b16 %v12338, %v12337
        %v12356 = vpack.c.b16 %v12340, %v12339
        %v12373 = vunpack.c.l.b16 %v12181
        %v12374 = vunpack.c.l.b16 %v12182
        %v12375 = vunpack.c.l.b16 %v12183
        %v12376 = vunpack.c.l.b16 %v12184
        %v12377 = vunpack.c.l.b16 %v12185
        %v12378 = vunpack.c.l.b16 %v12186
        %v12379 = vunpack.c.l.b16 %v12187
        %v12380 = vunpack.c.l.b16 %v12188
        %v12381 = vunpack.c.l.b16 %v12189
        %v12382 = vunpack.c.l.b16 %v12190
        %v12383 = vunpack.c.l.b16 %v12191
        %v12384 = vunpack.c.l.b16 %v12192
        %v12385 = vunpack.c.l.b16 %v12193
        %v12386 = vunpack.c.l.b16 %v12194
        %v12387 = vunpack.c.l.b16 %v12195
        %v12388 = vunpack.c.l.b16 %v12196
        %v12389 = vpack.c.b16 %v12373, %v12373
        %v12390 = vpack.c.b16 %v12374, %v12374
        %v12391 = vpack.c.b16 %v12375, %v12375
        %v12392 = vpack.c.b16 %v12376, %v12376
        %v12393 = vpack.c.b16 %v12377, %v12377
        %v12394 = vpack.c.b16 %v12378, %v12378
        %v12395 = vpack.c.b16 %v12379, %v12379
        %v12396 = vpack.c.b16 %v12380, %v12380
        %v12397 = vpack.c.b16 %v12381, %v12381
        %v12398 = vpack.c.b16 %v12382, %v12382
        %v12399 = vpack.c.b16 %v12383, %v12383
        %v12400 = vpack.c.b16 %v12384, %v12384
        %v12401 = vpack.c.b16 %v12385, %v12385
        %v12402 = vpack.c.b16 %v12386, %v12386
        %v12403 = vpack.c.b16 %v12387, %v12387
        %v12404 = vpack.c.b16 %v12388, %v12388
        %v12406 = vshrl.u32 %v12341, 16
        %v12408 = vshll.u32 %v12341, 16
        %v12410 = vrot.slane %v12408, 1
        %v12411 = vor.u32 %v12406, %v12410
        %v12413 = vshll.u32 %v12389, 16
        %v12415 = vrot.slane %v12413, 1
        %v12416 = vsel %vm426, %v12411, %v12415
        %v12418 = vshrl.u32 %v12342, 16
        %v12420 = vshll.u32 %v12342, 16
        %v12422 = vrot.slane %v12420, 1
        %v12423 = vor.u32 %v12418, %v12422
        %v12425 = vshll.u32 %v12390, 16
        %v12427 = vrot.slane %v12425, 1
        %v12428 = vsel %vm426, %v12423, %v12427
        %v12430 = vshrl.u32 %v12343, 16
        %v12432 = vshll.u32 %v12343, 16
        %v12434 = vrot.slane %v12432, 1
        %v12435 = vor.u32 %v12430, %v12434
        %v12437 = vshll.u32 %v12391, 16
        %v12439 = vrot.slane %v12437, 1
        %v12440 = vsel %vm426, %v12435, %v12439
        %v12442 = vshrl.u32 %v12344, 16
        %v12444 = vshll.u32 %v12344, 16
        %v12446 = vrot.slane %v12444, 1
        %v12447 = vor.u32 %v12442, %v12446
        %v12449 = vshll.u32 %v12392, 16
        %v12451 = vrot.slane %v12449, 1
        %v12452 = vsel %vm426, %v12447, %v12451
        %v12454 = vshrl.u32 %v12345, 16
        %v12456 = vshll.u32 %v12345, 16
        %v12458 = vrot.slane %v12456, 1
        %v12459 = vor.u32 %v12454, %v12458
        %v12461 = vshll.u32 %v12393, 16
        %v12463 = vrot.slane %v12461, 1
        %v12464 = vsel %vm426, %v12459, %v12463
        %v12466 = vshrl.u32 %v12346, 16
        %v12468 = vshll.u32 %v12346, 16
        %v12470 = vrot.slane %v12468, 1
        %v12471 = vor.u32 %v12466, %v12470
        %v12473 = vshll.u32 %v12394, 16
        %v12475 = vrot.slane %v12473, 1
        %v12476 = vsel %vm426, %v12471, %v12475
        %v12478 = vshrl.u32 %v12347, 16
        %v12480 = vshll.u32 %v12347, 16
        %v12482 = vrot.slane %v12480, 1
        %v12483 = vor.u32 %v12478, %v12482
        %v12485 = vshll.u32 %v12395, 16
        %v12487 = vrot.slane %v12485, 1
        %v12488 = vsel %vm426, %v12483, %v12487
        %v12490 = vshrl.u32 %v12348, 16
        %v12492 = vshll.u32 %v12348, 16
        %v12494 = vrot.slane %v12492, 1
        %v12495 = vor.u32 %v12490, %v12494
        %v12497 = vshll.u32 %v12396, 16
        %v12499 = vrot.slane %v12497, 1
        %v12500 = vsel %vm426, %v12495, %v12499
        %v12502 = vshrl.u32 %v12349, 16
        %v12504 = vshll.u32 %v12349, 16
        %v12506 = vrot.slane %v12504, 1
        %v12507 = vor.u32 %v12502, %v12506
        %v12509 = vshll.u32 %v12397, 16
        %v12511 = vrot.slane %v12509, 1
        %v12512 = vsel %vm426, %v12507, %v12511
        %v12514 = vshrl.u32 %v12350, 16
        %v12516 = vshll.u32 %v12350, 16
        %v12518 = vrot.slane %v12516, 1
        %v12519 = vor.u32 %v12514, %v12518
        %v12521 = vshll.u32 %v12398, 16
        %v12523 = vrot.slane %v12521, 1
        %v12524 = vsel %vm426, %v12519, %v12523
        %v12526 = vshrl.u32 %v12351, 16
        %v12528 = vshll.u32 %v12351, 16
        %v12530 = vrot.slane %v12528, 1
        %v12531 = vor.u32 %v12526, %v12530
        %v12533 = vshll.u32 %v12399, 16
        %v12535 = vrot.slane %v12533, 1
        %v12536 = vsel %vm426, %v12531, %v12535
        %v12538 = vshrl.u32 %v12352, 16
        %v12540 = vshll.u32 %v12352, 16
        %v12542 = vrot.slane %v12540, 1
        %v12543 = vor.u32 %v12538, %v12542
        %v12545 = vshll.u32 %v12400, 16
        %v12547 = vrot.slane %v12545, 1
        %v12548 = vsel %vm426, %v12543, %v12547
        %v12550 = vshrl.u32 %v12353, 16
        %v12552 = vshll.u32 %v12353, 16
        %v12554 = vrot.slane %v12552, 1
        %v12555 = vor.u32 %v12550, %v12554
        %v12557 = vshll.u32 %v12401, 16
        %v12559 = vrot.slane %v12557, 1
        %v12560 = vsel %vm426, %v12555, %v12559
        %v12562 = vshrl.u32 %v12354, 16
        %v12564 = vshll.u32 %v12354, 16
        %v12566 = vrot.slane %v12564, 1
        %v12567 = vor.u32 %v12562, %v12566
        %v12569 = vshll.u32 %v12402, 16
        %v12571 = vrot.slane %v12569, 1
        %v12572 = vsel %vm426, %v12567, %v12571
        %v12574 = vshrl.u32 %v12355, 16
        %v12576 = vshll.u32 %v12355, 16
        %v12578 = vrot.slane %v12576, 1
        %v12579 = vor.u32 %v12574, %v12578
        %v12581 = vshll.u32 %v12403, 16
        %v12583 = vrot.slane %v12581, 1
        %v12584 = vsel %vm426, %v12579, %v12583
        %v12586 = vshrl.u32 %v12356, 16
        %v12588 = vshll.u32 %v12356, 16
        %v12590 = vrot.slane %v12588, 1
        %v12591 = vor.u32 %v12586, %v12590
        %v12593 = vshll.u32 %v12404, 16
        %v12595 = vrot.slane %v12593, 1
        %v12596 = vsel %vm426, %v12591, %v12595
        %12597 = vrot.lane.b32.xlu0 %v12416, 4
        %v12598 = vpop.permute.xlu0 %12597
        %12599 = vrot.lane.b32.xlu0 %v12428, 4
        %v12600 = vpop.permute.xlu0 %12599
        %12601 = vrot.lane.b32.xlu0 %v12440, 4
        %v12602 = vpop.permute.xlu0 %12601
        %12603 = vrot.lane.b32.xlu0 %v12452, 4
        %v12604 = vpop.permute.xlu0 %12603
        %12605 = vrot.lane.b32.xlu0 %v12464, 4
        %v12606 = vpop.permute.xlu0 %12605
        %12607 = vrot.lane.b32.xlu0 %v12476, 4
        %v12608 = vpop.permute.xlu0 %12607
        %12609 = vrot.lane.b32.xlu0 %v12488, 4
        %v12610 = vpop.permute.xlu0 %12609
        %12611 = vrot.lane.b32.xlu0 %v12500, 4
        %v12612 = vpop.permute.xlu0 %12611
        %12613 = vrot.lane.b32.xlu0 %v12512, 4
        %v12614 = vpop.permute.xlu0 %12613
        %12615 = vrot.lane.b32.xlu0 %v12524, 4
        %v12616 = vpop.permute.xlu0 %12615
        %12617 = vrot.lane.b32.xlu0 %v12536, 4
        %v12618 = vpop.permute.xlu0 %12617
        %12619 = vrot.lane.b32.xlu0 %v12548, 4
        %v12620 = vpop.permute.xlu0 %12619
        %12621 = vrot.lane.b32.xlu0 %v12560, 4
        %v12622 = vpop.permute.xlu0 %12621
        %12623 = vrot.lane.b32.xlu0 %v12572, 4
        %v12624 = vpop.permute.xlu0 %12623
        %12625 = vrot.lane.b32.xlu0 %v12584, 4
        %v12626 = vpop.permute.xlu0 %12625
        %12627 = vrot.lane.b32.xlu0 %v12596, 4
        %v12628 = vpop.permute.xlu0 %12627
        %v12645 = vunpack.c.l.b16 %v12197
        %v12646 = vunpack.c.l.b16 %v12198
        %v12647 = vunpack.c.l.b16 %v12199
        %v12648 = vunpack.c.l.b16 %v12200
        %v12649 = vunpack.c.l.b16 %v12201
        %v12650 = vunpack.c.l.b16 %v12202
        %v12651 = vunpack.c.l.b16 %v12203
        %v12652 = vunpack.c.l.b16 %v12204
        %v12653 = vunpack.c.l.b16 %v12205
        %v12654 = vunpack.c.l.b16 %v12206
        %v12655 = vunpack.c.l.b16 %v12207
        %v12656 = vunpack.c.l.b16 %v12208
        %v12657 = vunpack.c.l.b16 %v12209
        %v12658 = vunpack.c.l.b16 %v12210
        %v12659 = vunpack.c.l.b16 %v12211
        %v12660 = vunpack.c.l.b16 %v12212
        %v12661 = vpack.c.b16 %v12310, %v12645
        %v12662 = vpack.c.b16 %v12312, %v12646
        %v12663 = vpack.c.b16 %v12314, %v12647
        %v12664 = vpack.c.b16 %v12316, %v12648
        %v12665 = vpack.c.b16 %v12318, %v12649
        %v12666 = vpack.c.b16 %v12320, %v12650
        %v12667 = vpack.c.b16 %v12322, %v12651
        %v12668 = vpack.c.b16 %v12324, %v12652
        %v12669 = vpack.c.b16 %v12326, %v12653
        %v12670 = vpack.c.b16 %v12328, %v12654
        %v12671 = vpack.c.b16 %v12330, %v12655
        %v12672 = vpack.c.b16 %v12332, %v12656
        %v12673 = vpack.c.b16 %v12334, %v12657
        %v12674 = vpack.c.b16 %v12336, %v12658
        %v12675 = vpack.c.b16 %v12338, %v12659
        %v12676 = vpack.c.b16 %v12340, %v12660
        %v12677 = vrot.slane %v12661, 1
        %v12678 = vrot.slane %v12389, 1
        %v12679 = vsel %vm699, %v12677, %v12678
        %v12680 = vrot.slane %v12662, 1
        %v12681 = vrot.slane %v12390, 1
        %v12682 = vsel %vm699, %v12680, %v12681
        %v12683 = vrot.slane %v12663, 1
        %v12684 = vrot.slane %v12391, 1
        %v12685 = vsel %vm699, %v12683, %v12684
        %v12686 = vrot.slane %v12664, 1
        %v12687 = vrot.slane %v12392, 1
        %v12688 = vsel %vm699, %v12686, %v12687
        %v12689 = vrot.slane %v12665, 1
        %v12690 = vrot.slane %v12393, 1
        %v12691 = vsel %vm699, %v12689, %v12690
        %v12692 = vrot.slane %v12666, 1
        %v12693 = vrot.slane %v12394, 1
        %v12694 = vsel %vm699, %v12692, %v12693
        %v12695 = vrot.slane %v12667, 1
        %v12696 = vrot.slane %v12395, 1
        %v12697 = vsel %vm699, %v12695, %v12696
        %v12698 = vrot.slane %v12668, 1
        %v12699 = vrot.slane %v12396, 1
        %v12700 = vsel %vm699, %v12698, %v12699
        %v12701 = vrot.slane %v12669, 1
        %v12702 = vrot.slane %v12397, 1
        %v12703 = vsel %vm699, %v12701, %v12702
        %v12704 = vrot.slane %v12670, 1
        %v12705 = vrot.slane %v12398, 1
        %v12706 = vsel %vm699, %v12704, %v12705
        %v12707 = vrot.slane %v12671, 1
        %v12708 = vrot.slane %v12399, 1
        %v12709 = vsel %vm699, %v12707, %v12708
        %v12710 = vrot.slane %v12672, 1
        %v12711 = vrot.slane %v12400, 1
        %v12712 = vsel %vm699, %v12710, %v12711
        %v12713 = vrot.slane %v12673, 1
        %v12714 = vrot.slane %v12401, 1
        %v12715 = vsel %vm699, %v12713, %v12714
        %v12716 = vrot.slane %v12674, 1
        %v12717 = vrot.slane %v12402, 1
        %v12718 = vsel %vm699, %v12716, %v12717
        %v12719 = vrot.slane %v12675, 1
        %v12720 = vrot.slane %v12403, 1
        %v12721 = vsel %vm699, %v12719, %v12720
        %v12722 = vrot.slane %v12676, 1
        %v12723 = vrot.slane %v12404, 1
        %v12724 = vsel %vm699, %v12722, %v12723
        %12725 = vrot.lane.b32.xlu0 %v12679, 8
        %v12726 = vpop.permute.xlu0 %12725
        %12727 = vrot.lane.b32.xlu0 %v12682, 8
        %v12728 = vpop.permute.xlu0 %12727
        %12729 = vrot.lane.b32.xlu0 %v12685, 8
        %v12730 = vpop.permute.xlu0 %12729
        %12731 = vrot.lane.b32.xlu0 %v12688, 8
        %v12732 = vpop.permute.xlu0 %12731
        %12733 = vrot.lane.b32.xlu0 %v12691, 8
        %v12734 = vpop.permute.xlu0 %12733
        %12735 = vrot.lane.b32.xlu0 %v12694, 8
        %v12736 = vpop.permute.xlu0 %12735
        %12737 = vrot.lane.b32.xlu0 %v12697, 8
        %v12738 = vpop.permute.xlu0 %12737
        %12739 = vrot.lane.b32.xlu0 %v12700, 8
        %v12740 = vpop.permute.xlu0 %12739
        %12741 = vrot.lane.b32.xlu0 %v12703, 8
        %v12742 = vpop.permute.xlu0 %12741
        %12743 = vrot.lane.b32.xlu0 %v12706, 8
        %v12744 = vpop.permute.xlu0 %12743
        %12745 = vrot.lane.b32.xlu0 %v12709, 8
        %v12746 = vpop.permute.xlu0 %12745
        %12747 = vrot.lane.b32.xlu0 %v12712, 8
        %v12748 = vpop.permute.xlu0 %12747
        %12749 = vrot.lane.b32.xlu0 %v12715, 8
        %v12750 = vpop.permute.xlu0 %12749
        %12751 = vrot.lane.b32.xlu0 %v12718, 8
        %v12752 = vpop.permute.xlu0 %12751
        %12753 = vrot.lane.b32.xlu0 %v12721, 8
        %v12754 = vpop.permute.xlu0 %12753
        %12755 = vrot.lane.b32.xlu0 %v12724, 8
        %v12756 = vpop.permute.xlu0 %12755
        %v12773 = vunpack.c.l.b16 %v12213
        %v12774 = vunpack.c.l.b16 %v12214
        %v12775 = vunpack.c.l.b16 %v12215
        %v12776 = vunpack.c.l.b16 %v12216
        %v12777 = vunpack.c.l.b16 %v12217
        %v12778 = vunpack.c.l.b16 %v12218
        %v12779 = vunpack.c.l.b16 %v12219
        %v12780 = vunpack.c.l.b16 %v12220
        %v12781 = vunpack.c.l.b16 %v12221
        %v12782 = vunpack.c.l.b16 %v12222
        %v12783 = vunpack.c.l.b16 %v12223
        %v12784 = vunpack.c.l.b16 %v12224
        %v12785 = vunpack.c.l.b16 %v12225
        %v12786 = vunpack.c.l.b16 %v12226
        %v12787 = vunpack.c.l.b16 %v12227
        %v12788 = vunpack.c.l.b16 %v12228
        %v12789 = vpack.c.b16 %v12773, %v12773
        %v12790 = vpack.c.b16 %v12774, %v12774
        %v12791 = vpack.c.b16 %v12775, %v12775
        %v12792 = vpack.c.b16 %v12776, %v12776
        %v12793 = vpack.c.b16 %v12777, %v12777
        %v12794 = vpack.c.b16 %v12778, %v12778
        %v12795 = vpack.c.b16 %v12779, %v12779
        %v12796 = vpack.c.b16 %v12780, %v12780
        %v12797 = vpack.c.b16 %v12781, %v12781
        %v12798 = vpack.c.b16 %v12782, %v12782
        %v12799 = vpack.c.b16 %v12783, %v12783
        %v12800 = vpack.c.b16 %v12784, %v12784
        %v12801 = vpack.c.b16 %v12785, %v12785
        %v12802 = vpack.c.b16 %v12786, %v12786
        %v12803 = vpack.c.b16 %v12787, %v12787
        %v12804 = vpack.c.b16 %v12788, %v12788
        %v12806 = vshrl.u32 %v12661, 16
        %v12808 = vrot.slane %v12806, 1
        %v12809 = vshll.u32 %v12661, 16
        %v12811 = vrot.slane %v12809, 2
        %v12812 = vor.u32 %v12808, %v12811
        %v12814 = vshrl.u32 %v12789, 16
        %v12816 = vrot.slane %v12814, 1
        %v12817 = vshll.u32 %v12789, 16
        %v12819 = vrot.slane %v12817, 2
        %v12820 = vor.u32 %v12816, %v12819
        %v12821 = vsel %vm828, %v12812, %v12820
        %v12823 = vshrl.u32 %v12662, 16
        %v12825 = vrot.slane %v12823, 1
        %v12826 = vshll.u32 %v12662, 16
        %v12828 = vrot.slane %v12826, 2
        %v12829 = vor.u32 %v12825, %v12828
        %v12831 = vshrl.u32 %v12790, 16
        %v12833 = vrot.slane %v12831, 1
        %v12834 = vshll.u32 %v12790, 16
        %v12836 = vrot.slane %v12834, 2
        %v12837 = vor.u32 %v12833, %v12836
        %v12838 = vsel %vm828, %v12829, %v12837
        %v12840 = vshrl.u32 %v12663, 16
        %v12842 = vrot.slane %v12840, 1
        %v12843 = vshll.u32 %v12663, 16
        %v12845 = vrot.slane %v12843, 2
        %v12846 = vor.u32 %v12842, %v12845
        %v12848 = vshrl.u32 %v12791, 16
        %v12850 = vrot.slane %v12848, 1
        %v12851 = vshll.u32 %v12791, 16
        %v12853 = vrot.slane %v12851, 2
        %v12854 = vor.u32 %v12850, %v12853
        %v12855 = vsel %vm828, %v12846, %v12854
        %v12857 = vshrl.u32 %v12664, 16
        %v12859 = vrot.slane %v12857, 1
        %v12860 = vshll.u32 %v12664, 16
        %v12862 = vrot.slane %v12860, 2
        %v12863 = vor.u32 %v12859, %v12862
        %v12865 = vshrl.u32 %v12792, 16
        %v12867 = vrot.slane %v12865, 1
        %v12868 = vshll.u32 %v12792, 16
        %v12870 = vrot.slane %v12868, 2
        %v12871 = vor.u32 %v12867, %v12870
        %v12872 = vsel %vm828, %v12863, %v12871
        %v12874 = vshrl.u32 %v12665, 16
        %v12876 = vrot.slane %v12874, 1
        %v12877 = vshll.u32 %v12665, 16
        %v12879 = vrot.slane %v12877, 2
        %v12880 = vor.u32 %v12876, %v12879
        %v12882 = vshrl.u32 %v12793, 16
        %v12884 = vrot.slane %v12882, 1
        %v12885 = vshll.u32 %v12793, 16
        %v12887 = vrot.slane %v12885, 2
        %v12888 = vor.u32 %v12884, %v12887
        %v12889 = vsel %vm828, %v12880, %v12888
        %v12891 = vshrl.u32 %v12666, 16
        %v12893 = vrot.slane %v12891, 1
        %v12894 = vshll.u32 %v12666, 16
        %v12896 = vrot.slane %v12894, 2
        %v12897 = vor.u32 %v12893, %v12896
        %v12899 = vshrl.u32 %v12794, 16
        %v12901 = vrot.slane %v12899, 1
        %v12902 = vshll.u32 %v12794, 16
        %v12904 = vrot.slane %v12902, 2
        %v12905 = vor.u32 %v12901, %v12904
        %v12906 = vsel %vm828, %v12897, %v12905
        %v12908 = vshrl.u32 %v12667, 16
        %v12910 = vrot.slane %v12908, 1
        %v12911 = vshll.u32 %v12667, 16
        %v12913 = vrot.slane %v12911, 2
        %v12914 = vor.u32 %v12910, %v12913
        %v12916 = vshrl.u32 %v12795, 16
        %v12918 = vrot.slane %v12916, 1
        %v12919 = vshll.u32 %v12795, 16
        %v12921 = vrot.slane %v12919, 2
        %v12922 = vor.u32 %v12918, %v12921
        %v12923 = vsel %vm828, %v12914, %v12922
        %v12925 = vshrl.u32 %v12668, 16
        %v12927 = vrot.slane %v12925, 1
        %v12928 = vshll.u32 %v12668, 16
        %v12930 = vrot.slane %v12928, 2
        %v12931 = vor.u32 %v12927, %v12930
        %v12933 = vshrl.u32 %v12796, 16
        %v12935 = vrot.slane %v12933, 1
        %v12936 = vshll.u32 %v12796, 16
        %v12938 = vrot.slane %v12936, 2
        %v12939 = vor.u32 %v12935, %v12938
        %v12940 = vsel %vm828, %v12931, %v12939
        %v12942 = vshrl.u32 %v12669, 16
        %v12944 = vrot.slane %v12942, 1
        %v12945 = vshll.u32 %v12669, 16
        %v12947 = vrot.slane %v12945, 2
        %v12948 = vor.u32 %v12944, %v12947
        %v12950 = vshrl.u32 %v12797, 16
        %v12952 = vrot.slane %v12950, 1
        %v12953 = vshll.u32 %v12797, 16
        %v12955 = vrot.slane %v12953, 2
        %v12956 = vor.u32 %v12952, %v12955
        %v12957 = vsel %vm828, %v12948, %v12956
        %v12959 = vshrl.u32 %v12670, 16
        %v12961 = vrot.slane %v12959, 1
        %v12962 = vshll.u32 %v12670, 16
        %v12964 = vrot.slane %v12962, 2
        %v12965 = vor.u32 %v12961, %v12964
        %v12967 = vshrl.u32 %v12798, 16
        %v12969 = vrot.slane %v12967, 1
        %v12970 = vshll.u32 %v12798, 16
        %v12972 = vrot.slane %v12970, 2
        %v12973 = vor.u32 %v12969, %v12972
        %v12974 = vsel %vm828, %v12965, %v12973
        %v12976 = vshrl.u32 %v12671, 16
        %v12978 = vrot.slane %v12976, 1
        %v12979 = vshll.u32 %v12671, 16
        %v12981 = vrot.slane %v12979, 2
        %v12982 = vor.u32 %v12978, %v12981
        %v12984 = vshrl.u32 %v12799, 16
        %v12986 = vrot.slane %v12984, 1
        %v12987 = vshll.u32 %v12799, 16
        %v12989 = vrot.slane %v12987, 2
        %v12990 = vor.u32 %v12986, %v12989
        %v12991 = vsel %vm828, %v12982, %v12990
        %v12993 = vshrl.u32 %v12672, 16
        %v12995 = vrot.slane %v12993, 1
        %v12996 = vshll.u32 %v12672, 16
        %v12998 = vrot.slane %v12996, 2
        %v12999 = vor.u32 %v12995, %v12998
        %v13001 = vshrl.u32 %v12800, 16
        %v13003 = vrot.slane %v13001, 1
        %v13004 = vshll.u32 %v12800, 16
        %v13006 = vrot.slane %v13004, 2
        %v13007 = vor.u32 %v13003, %v13006
        %v13008 = vsel %vm828, %v12999, %v13007
        %v13010 = vshrl.u32 %v12673, 16
        %v13012 = vrot.slane %v13010, 1
        %v13013 = vshll.u32 %v12673, 16
        %v13015 = vrot.slane %v13013, 2
        %v13016 = vor.u32 %v13012, %v13015
        %v13018 = vshrl.u32 %v12801, 16
        %v13020 = vrot.slane %v13018, 1
        %v13021 = vshll.u32 %v12801, 16
        %v13023 = vrot.slane %v13021, 2
        %v13024 = vor.u32 %v13020, %v13023
        %v13025 = vsel %vm828, %v13016, %v13024
        %v13027 = vshrl.u32 %v12674, 16
        %v13029 = vrot.slane %v13027, 1
        %v13030 = vshll.u32 %v12674, 16
        %v13032 = vrot.slane %v13030, 2
        %v13033 = vor.u32 %v13029, %v13032
        %v13035 = vshrl.u32 %v12802, 16
        %v13037 = vrot.slane %v13035, 1
        %v13038 = vshll.u32 %v12802, 16
        %v13040 = vrot.slane %v13038, 2
        %v13041 = vor.u32 %v13037, %v13040
        %v13042 = vsel %vm828, %v13033, %v13041
        %v13044 = vshrl.u32 %v12675, 16
        %v13046 = vrot.slane %v13044, 1
        %v13047 = vshll.u32 %v12675, 16
        %v13049 = vrot.slane %v13047, 2
        %v13050 = vor.u32 %v13046, %v13049
        %v13052 = vshrl.u32 %v12803, 16
        %v13054 = vrot.slane %v13052, 1
        %v13055 = vshll.u32 %v12803, 16
        %v13057 = vrot.slane %v13055, 2
        %v13058 = vor.u32 %v13054, %v13057
        %v13059 = vsel %vm828, %v13050, %v13058
        %v13061 = vshrl.u32 %v12676, 16
        %v13063 = vrot.slane %v13061, 1
        %v13064 = vshll.u32 %v12676, 16
        %v13066 = vrot.slane %v13064, 2
        %v13067 = vor.u32 %v13063, %v13066
        %v13069 = vshrl.u32 %v12804, 16
        %v13071 = vrot.slane %v13069, 1
        %v13072 = vshll.u32 %v12804, 16
        %v13074 = vrot.slane %v13072, 2
        %v13075 = vor.u32 %v13071, %v13074
        %v13076 = vsel %vm828, %v13067, %v13075
        %13077 = vrot.lane.b32.xlu0 %v12821, 12
        %v13078 = vpop.permute.xlu0 %13077
        %13079 = vrot.lane.b32.xlu0 %v12838, 12
        %v13080 = vpop.permute.xlu0 %13079
        %13081 = vrot.lane.b32.xlu0 %v12855, 12
        %v13082 = vpop.permute.xlu0 %13081
        %13083 = vrot.lane.b32.xlu0 %v12872, 12
        %v13084 = vpop.permute.xlu0 %13083
        %13085 = vrot.lane.b32.xlu0 %v12889, 12
        %v13086 = vpop.permute.xlu0 %13085
        %13087 = vrot.lane.b32.xlu0 %v12906, 12
        %v13088 = vpop.permute.xlu0 %13087
        %13089 = vrot.lane.b32.xlu0 %v12923, 12
        %v13090 = vpop.permute.xlu0 %13089
        %13091 = vrot.lane.b32.xlu0 %v12940, 12
        %v13092 = vpop.permute.xlu0 %13091
        %13093 = vrot.lane.b32.xlu0 %v12957, 12
        %v13094 = vpop.permute.xlu0 %13093
        %13095 = vrot.lane.b32.xlu0 %v12974, 12
        %v13096 = vpop.permute.xlu0 %13095
        %13097 = vrot.lane.b32.xlu0 %v12991, 12
        %v13098 = vpop.permute.xlu0 %13097
        %13099 = vrot.lane.b32.xlu0 %v13008, 12
        %v13100 = vpop.permute.xlu0 %13099
        %13101 = vrot.lane.b32.xlu0 %v13025, 12
        %v13102 = vpop.permute.xlu0 %13101
        %13103 = vrot.lane.b32.xlu0 %v13042, 12
        %v13104 = vpop.permute.xlu0 %13103
        %13105 = vrot.lane.b32.xlu0 %v13059, 12
        %v13106 = vpop.permute.xlu0 %13105
        %13107 = vrot.lane.b32.xlu0 %v13076, 12
        %v13108 = vpop.permute.xlu0 %13107
        %v13125 = vunpack.c.l.b16 %v12229
        %v13126 = vunpack.c.l.b16 %v12230
        %v13127 = vunpack.c.l.b16 %v12231
        %v13128 = vunpack.c.l.b16 %v12232
        %v13129 = vunpack.c.l.b16 %v12233
        %v13130 = vunpack.c.l.b16 %v12234
        %v13131 = vunpack.c.l.b16 %v12235
        %v13132 = vunpack.c.l.b16 %v12236
        %v13133 = vunpack.c.l.b16 %v12237
        %v13134 = vunpack.c.l.b16 %v12238
        %v13135 = vunpack.c.l.b16 %v12239
        %v13136 = vunpack.c.l.b16 %v12240
        %v13137 = vunpack.c.l.b16 %v12241
        %v13138 = vunpack.c.l.b16 %v12242
        %v13139 = vunpack.c.l.b16 %v12243
        %v13140 = vunpack.c.l.b16 %v12244
        %v13141 = vpack.c.b16 %v12310, %v13125
        %v13142 = vpack.c.b16 %v12312, %v13126
        %v13143 = vpack.c.b16 %v12314, %v13127
        %v13144 = vpack.c.b16 %v12316, %v13128
        %v13145 = vpack.c.b16 %v12318, %v13129
        %v13146 = vpack.c.b16 %v12320, %v13130
        %v13147 = vpack.c.b16 %v12322, %v13131
        %v13148 = vpack.c.b16 %v12324, %v13132
        %v13149 = vpack.c.b16 %v12326, %v13133
        %v13150 = vpack.c.b16 %v12328, %v13134
        %v13151 = vpack.c.b16 %v12330, %v13135
        %v13152 = vpack.c.b16 %v12332, %v13136
        %v13153 = vpack.c.b16 %v12334, %v13137
        %v13154 = vpack.c.b16 %v12336, %v13138
        %v13155 = vpack.c.b16 %v12338, %v13139
        %v13156 = vpack.c.b16 %v12340, %v13140
        %v13157 = vrot.slane %v13141, 2
        %v13158 = vrot.slane %v12789, 2
        %v13159 = vsel %vm1181, %v13157, %v13158
        %v13160 = vrot.slane %v13142, 2
        %v13161 = vrot.slane %v12790, 2
        %v13162 = vsel %vm1181, %v13160, %v13161
        %v13163 = vrot.slane %v13143, 2
        %v13164 = vrot.slane %v12791, 2
        %v13165 = vsel %vm1181, %v13163, %v13164
        %v13166 = vrot.slane %v13144, 2
        %v13167 = vrot.slane %v12792, 2
        %v13168 = vsel %vm1181, %v13166, %v13167
        %v13169 = vrot.slane %v13145, 2
        %v13170 = vrot.slane %v12793, 2
        %v13171 = vsel %vm1181, %v13169, %v13170
        %v13172 = vrot.slane %v13146, 2
        %v13173 = vrot.slane %v12794, 2
        %v13174 = vsel %vm1181, %v13172, %v13173
        %v13175 = vrot.slane %v13147, 2
        %v13176 = vrot.slane %v12795, 2
        %v13177 = vsel %vm1181, %v13175, %v13176
        %v13178 = vrot.slane %v13148, 2
        %v13179 = vrot.slane %v12796, 2
        %v13180 = vsel %vm1181, %v13178, %v13179
        %v13181 = vrot.slane %v13149, 2
        %v13182 = vrot.slane %v12797, 2
        %v13183 = vsel %vm1181, %v13181, %v13182
        %v13184 = vrot.slane %v13150, 2
        %v13185 = vrot.slane %v12798, 2
        %v13186 = vsel %vm1181, %v13184, %v13185
        %v13187 = vrot.slane %v13151, 2
        %v13188 = vrot.slane %v12799, 2
        %v13189 = vsel %vm1181, %v13187, %v13188
        %v13190 = vrot.slane %v13152, 2
        %v13191 = vrot.slane %v12800, 2
        %v13192 = vsel %vm1181, %v13190, %v13191
        %v13193 = vrot.slane %v13153, 2
        %v13194 = vrot.slane %v12801, 2
        %v13195 = vsel %vm1181, %v13193, %v13194
        %v13196 = vrot.slane %v13154, 2
        %v13197 = vrot.slane %v12802, 2
        %v13198 = vsel %vm1181, %v13196, %v13197
        %v13199 = vrot.slane %v13155, 2
        %v13200 = vrot.slane %v12803, 2
        %v13201 = vsel %vm1181, %v13199, %v13200
        %v13202 = vrot.slane %v13156, 2
        %v13203 = vrot.slane %v12804, 2
        %v13204 = vsel %vm1181, %v13202, %v13203
        %13205 = vrot.lane.b32.xlu0 %v13159, 16
        %v13206 = vpop.permute.xlu0 %13205
        %13207 = vrot.lane.b32.xlu0 %v13162, 16
        %v13208 = vpop.permute.xlu0 %13207
        %13209 = vrot.lane.b32.xlu0 %v13165, 16
        %v13210 = vpop.permute.xlu0 %13209
        %13211 = vrot.lane.b32.xlu0 %v13168, 16
        %v13212 = vpop.permute.xlu0 %13211
        %13213 = vrot.lane.b32.xlu0 %v13171, 16
        %v13214 = vpop.permute.xlu0 %13213
        %13215 = vrot.lane.b32.xlu0 %v13174, 16
        %v13216 = vpop.permute.xlu0 %13215
        %13217 = vrot.lane.b32.xlu0 %v13177, 16
        %v13218 = vpop.permute.xlu0 %13217
        %13219 = vrot.lane.b32.xlu0 %v13180, 16
        %v13220 = vpop.permute.xlu0 %13219
        %13221 = vrot.lane.b32.xlu0 %v13183, 16
        %v13222 = vpop.permute.xlu0 %13221
        %13223 = vrot.lane.b32.xlu0 %v13186, 16
        %v13224 = vpop.permute.xlu0 %13223
        %13225 = vrot.lane.b32.xlu0 %v13189, 16
        %v13226 = vpop.permute.xlu0 %13225
        %13227 = vrot.lane.b32.xlu0 %v13192, 16
        %v13228 = vpop.permute.xlu0 %13227
        %13229 = vrot.lane.b32.xlu0 %v13195, 16
        %v13230 = vpop.permute.xlu0 %13229
        %13231 = vrot.lane.b32.xlu0 %v13198, 16
        %v13232 = vpop.permute.xlu0 %13231
        %13233 = vrot.lane.b32.xlu0 %v13201, 16
        %v13234 = vpop.permute.xlu0 %13233
        %13235 = vrot.lane.b32.xlu0 %v13204, 16
        %v13236 = vpop.permute.xlu0 %13235
        %v13253 = vunpack.c.l.b16 %v12245
        %v13254 = vunpack.c.l.b16 %v12246
        %v13255 = vunpack.c.l.b16 %v12247
        %v13256 = vunpack.c.l.b16 %v12248
        %v13257 = vunpack.c.l.b16 %v12249
        %v13258 = vunpack.c.l.b16 %v12250
        %v13259 = vunpack.c.l.b16 %v12251
        %v13260 = vunpack.c.l.b16 %v12252
        %v13261 = vunpack.c.l.b16 %v12253
        %v13262 = vunpack.c.l.b16 %v12254
        %v13263 = vunpack.c.l.b16 %v12255
        %v13264 = vunpack.c.l.b16 %v12256
        %v13265 = vunpack.c.l.b16 %v12257
        %v13266 = vunpack.c.l.b16 %v12258
        %v13267 = vunpack.c.l.b16 %v12259
        %v13268 = vunpack.c.l.b16 %v12260
        %v13269 = vpack.c.b16 %v13253, %v13253
        %v13270 = vpack.c.b16 %v13254, %v13254
        %v13271 = vpack.c.b16 %v13255, %v13255
        %v13272 = vpack.c.b16 %v13256, %v13256
        %v13273 = vpack.c.b16 %v13257, %v13257
        %v13274 = vpack.c.b16 %v13258, %v13258
        %v13275 = vpack.c.b16 %v13259, %v13259
        %v13276 = vpack.c.b16 %v13260, %v13260
        %v13277 = vpack.c.b16 %v13261, %v13261
        %v13278 = vpack.c.b16 %v13262, %v13262
        %v13279 = vpack.c.b16 %v13263, %v13263
        %v13280 = vpack.c.b16 %v13264, %v13264
        %v13281 = vpack.c.b16 %v13265, %v13265
        %v13282 = vpack.c.b16 %v13266, %v13266
        %v13283 = vpack.c.b16 %v13267, %v13267
        %v13284 = vpack.c.b16 %v13268, %v13268
        %v13286 = vshrl.u32 %v13141, 16
        %v13288 = vrot.slane %v13286, 2
        %v13289 = vshll.u32 %v13141, 16
        %v13291 = vrot.slane %v13289, 3
        %v13292 = vor.u32 %v13288, %v13291
        %v13294 = vshrl.u32 %v13269, 16
        %v13296 = vrot.slane %v13294, 2
        %v13297 = vshll.u32 %v13269, 16
        %v13299 = vrot.slane %v13297, 3
        %v13300 = vor.u32 %v13296, %v13299
        %v13301 = vsel %vm1310, %v13292, %v13300
        %v13303 = vshrl.u32 %v13142, 16
        %v13305 = vrot.slane %v13303, 2
        %v13306 = vshll.u32 %v13142, 16
        %v13308 = vrot.slane %v13306, 3
        %v13309 = vor.u32 %v13305, %v13308
        %v13311 = vshrl.u32 %v13270, 16
        %v13313 = vrot.slane %v13311, 2
        %v13314 = vshll.u32 %v13270, 16
        %v13316 = vrot.slane %v13314, 3
        %v13317 = vor.u32 %v13313, %v13316
        %v13318 = vsel %vm1310, %v13309, %v13317
        %v13320 = vshrl.u32 %v13143, 16
        %v13322 = vrot.slane %v13320, 2
        %v13323 = vshll.u32 %v13143, 16
        %v13325 = vrot.slane %v13323, 3
        %v13326 = vor.u32 %v13322, %v13325
        %v13328 = vshrl.u32 %v13271, 16
        %v13330 = vrot.slane %v13328, 2
        %v13331 = vshll.u32 %v13271, 16
        %v13333 = vrot.slane %v13331, 3
        %v13334 = vor.u32 %v13330, %v13333
        %v13335 = vsel %vm1310, %v13326, %v13334
        %v13337 = vshrl.u32 %v13144, 16
        %v13339 = vrot.slane %v13337, 2
        %v13340 = vshll.u32 %v13144, 16
        %v13342 = vrot.slane %v13340, 3
        %v13343 = vor.u32 %v13339, %v13342
        %v13345 = vshrl.u32 %v13272, 16
        %v13347 = vrot.slane %v13345, 2
        %v13348 = vshll.u32 %v13272, 16
        %v13350 = vrot.slane %v13348, 3
        %v13351 = vor.u32 %v13347, %v13350
        %v13352 = vsel %vm1310, %v13343, %v13351
        %v13354 = vshrl.u32 %v13145, 16
        %v13356 = vrot.slane %v13354, 2
        %v13357 = vshll.u32 %v13145, 16
        %v13359 = vrot.slane %v13357, 3
        %v13360 = vor.u32 %v13356, %v13359
        %v13362 = vshrl.u32 %v13273, 16
        %v13364 = vrot.slane %v13362, 2
        %v13365 = vshll.u32 %v13273, 16
        %v13367 = vrot.slane %v13365, 3
        %v13368 = vor.u32 %v13364, %v13367
        %v13369 = vsel %vm1310, %v13360, %v13368
        %v13371 = vshrl.u32 %v13146, 16
        %v13373 = vrot.slane %v13371, 2
        %v13374 = vshll.u32 %v13146, 16
        %v13376 = vrot.slane %v13374, 3
        %v13377 = vor.u32 %v13373, %v13376
        %v13379 = vshrl.u32 %v13274, 16
        %v13381 = vrot.slane %v13379, 2
        %v13382 = vshll.u32 %v13274, 16
        %v13384 = vrot.slane %v13382, 3
        %v13385 = vor.u32 %v13381, %v13384
        %v13386 = vsel %vm1310, %v13377, %v13385
        %v13388 = vshrl.u32 %v13147, 16
        %v13390 = vrot.slane %v13388, 2
        %v13391 = vshll.u32 %v13147, 16
        %v13393 = vrot.slane %v13391, 3
        %v13394 = vor.u32 %v13390, %v13393
        %v13396 = vshrl.u32 %v13275, 16
        %v13398 = vrot.slane %v13396, 2
        %v13399 = vshll.u32 %v13275, 16
        %v13401 = vrot.slane %v13399, 3
        %v13402 = vor.u32 %v13398, %v13401
        %v13403 = vsel %vm1310, %v13394, %v13402
        %v13405 = vshrl.u32 %v13148, 16
        %v13407 = vrot.slane %v13405, 2
        %v13408 = vshll.u32 %v13148, 16
        %v13410 = vrot.slane %v13408, 3
        %v13411 = vor.u32 %v13407, %v13410
        %v13413 = vshrl.u32 %v13276, 16
        %v13415 = vrot.slane %v13413, 2
        %v13416 = vshll.u32 %v13276, 16
        %v13418 = vrot.slane %v13416, 3
        %v13419 = vor.u32 %v13415, %v13418
        %v13420 = vsel %vm1310, %v13411, %v13419
        %v13422 = vshrl.u32 %v13149, 16
        %v13424 = vrot.slane %v13422, 2
        %v13425 = vshll.u32 %v13149, 16
        %v13427 = vrot.slane %v13425, 3
        %v13428 = vor.u32 %v13424, %v13427
        %v13430 = vshrl.u32 %v13277, 16
        %v13432 = vrot.slane %v13430, 2
        %v13433 = vshll.u32 %v13277, 16
        %v13435 = vrot.slane %v13433, 3
        %v13436 = vor.u32 %v13432, %v13435
        %v13437 = vsel %vm1310, %v13428, %v13436
        %v13439 = vshrl.u32 %v13150, 16
        %v13441 = vrot.slane %v13439, 2
        %v13442 = vshll.u32 %v13150, 16
        %v13444 = vrot.slane %v13442, 3
        %v13445 = vor.u32 %v13441, %v13444
        %v13447 = vshrl.u32 %v13278, 16
        %v13449 = vrot.slane %v13447, 2
        %v13450 = vshll.u32 %v13278, 16
        %v13452 = vrot.slane %v13450, 3
        %v13453 = vor.u32 %v13449, %v13452
        %v13454 = vsel %vm1310, %v13445, %v13453
        %v13456 = vshrl.u32 %v13151, 16
        %v13458 = vrot.slane %v13456, 2
        %v13459 = vshll.u32 %v13151, 16
        %v13461 = vrot.slane %v13459, 3
        %v13462 = vor.u32 %v13458, %v13461
        %v13464 = vshrl.u32 %v13279, 16
        %v13466 = vrot.slane %v13464, 2
        %v13467 = vshll.u32 %v13279, 16
        %v13469 = vrot.slane %v13467, 3
        %v13470 = vor.u32 %v13466, %v13469
        %v13471 = vsel %vm1310, %v13462, %v13470
        %v13473 = vshrl.u32 %v13152, 16
        %v13475 = vrot.slane %v13473, 2
        %v13476 = vshll.u32 %v13152, 16
        %v13478 = vrot.slane %v13476, 3
        %v13479 = vor.u32 %v13475, %v13478
        %v13481 = vshrl.u32 %v13280, 16
        %v13483 = vrot.slane %v13481, 2
        %v13484 = vshll.u32 %v13280, 16
        %v13486 = vrot.slane %v13484, 3
        %v13487 = vor.u32 %v13483, %v13486
        %v13488 = vsel %vm1310, %v13479, %v13487
        %v13490 = vshrl.u32 %v13153, 16
        %v13492 = vrot.slane %v13490, 2
        %v13493 = vshll.u32 %v13153, 16
        %v13495 = vrot.slane %v13493, 3
        %v13496 = vor.u32 %v13492, %v13495
        %v13498 = vshrl.u32 %v13281, 16
        %v13500 = vrot.slane %v13498, 2
        %v13501 = vshll.u32 %v13281, 16
        %v13503 = vrot.slane %v13501, 3
        %v13504 = vor.u32 %v13500, %v13503
        %v13505 = vsel %vm1310, %v13496, %v13504
        %v13507 = vshrl.u32 %v13154, 16
        %v13509 = vrot.slane %v13507, 2
        %v13510 = vshll.u32 %v13154, 16
        %v13512 = vrot.slane %v13510, 3
        %v13513 = vor.u32 %v13509, %v13512
        %v13515 = vshrl.u32 %v13282, 16
        %v13517 = vrot.slane %v13515, 2
        %v13518 = vshll.u32 %v13282, 16
        %v13520 = vrot.slane %v13518, 3
        %v13521 = vor.u32 %v13517, %v13520
        %v13522 = vsel %vm1310, %v13513, %v13521
        %v13524 = vshrl.u32 %v13155, 16
        %v13526 = vrot.slane %v13524, 2
        %v13527 = vshll.u32 %v13155, 16
        %v13529 = vrot.slane %v13527, 3
        %v13530 = vor.u32 %v13526, %v13529
        %v13532 = vshrl.u32 %v13283, 16
        %v13534 = vrot.slane %v13532, 2
        %v13535 = vshll.u32 %v13283, 16
        %v13537 = vrot.slane %v13535, 3
        %v13538 = vor.u32 %v13534, %v13537
        %v13539 = vsel %vm1310, %v13530, %v13538
        %v13541 = vshrl.u32 %v13156, 16
        %v13543 = vrot.slane %v13541, 2
        %v13544 = vshll.u32 %v13156, 16
        %v13546 = vrot.slane %v13544, 3
        %v13547 = vor.u32 %v13543, %v13546
        %v13549 = vshrl.u32 %v13284, 16
        %v13551 = vrot.slane %v13549, 2
        %v13552 = vshll.u32 %v13284, 16
        %v13554 = vrot.slane %v13552, 3
        %v13555 = vor.u32 %v13551, %v13554
        %v13556 = vsel %vm1310, %v13547, %v13555
        %13557 = vrot.lane.b32.xlu0 %v13301, 20
        %v13558 = vpop.permute.xlu0 %13557
        %13559 = vrot.lane.b32.xlu0 %v13318, 20
        %v13560 = vpop.permute.xlu0 %13559
        %13561 = vrot.lane.b32.xlu0 %v13335, 20
        %v13562 = vpop.permute.xlu0 %13561
        %13563 = vrot.lane.b32.xlu0 %v13352, 20
        %v13564 = vpop.permute.xlu0 %13563
        %13565 = vrot.lane.b32.xlu0 %v13369, 20
        %v13566 = vpop.permute.xlu0 %13565
        %13567 = vrot.lane.b32.xlu0 %v13386, 20
        %v13568 = vpop.permute.xlu0 %13567
        %13569 = vrot.lane.b32.xlu0 %v13403, 20
        %v13570 = vpop.permute.xlu0 %13569
        %13571 = vrot.lane.b32.xlu0 %v13420, 20
        %v13572 = vpop.permute.xlu0 %13571
        %13573 = vrot.lane.b32.xlu0 %v13437, 20
        %v13574 = vpop.permute.xlu0 %13573
        %13575 = vrot.lane.b32.xlu0 %v13454, 20
        %v13576 = vpop.permute.xlu0 %13575
        %13577 = vrot.lane.b32.xlu0 %v13471, 20
        %v13578 = vpop.permute.xlu0 %13577
        %13579 = vrot.lane.b32.xlu0 %v13488, 20
        %v13580 = vpop.permute.xlu0 %13579
        %13581 = vrot.lane.b32.xlu0 %v13505, 20
        %v13582 = vpop.permute.xlu0 %13581
        %13583 = vrot.lane.b32.xlu0 %v13522, 20
        %v13584 = vpop.permute.xlu0 %13583
        %13585 = vrot.lane.b32.xlu0 %v13539, 20
        %v13586 = vpop.permute.xlu0 %13585
        %13587 = vrot.lane.b32.xlu0 %v13556, 20
        %v13588 = vpop.permute.xlu0 %13587
        %v13605 = vunpack.c.l.b16 %v12261
        %v13606 = vunpack.c.l.b16 %v12262
        %v13607 = vunpack.c.l.b16 %v12263
        %v13608 = vunpack.c.l.b16 %v12264
        %v13609 = vunpack.c.l.b16 %v12265
        %v13610 = vunpack.c.l.b16 %v12266
        %v13611 = vunpack.c.l.b16 %v12267
        %v13612 = vunpack.c.l.b16 %v12268
        %v13613 = vunpack.c.l.b16 %v12269
        %v13614 = vunpack.c.l.b16 %v12270
        %v13615 = vunpack.c.l.b16 %v12271
        %v13616 = vunpack.c.l.b16 %v12272
        %v13617 = vunpack.c.l.b16 %v12273
        %v13618 = vunpack.c.l.b16 %v12274
        %v13619 = vunpack.c.l.b16 %v12275
        %v13620 = vunpack.c.l.b16 %v12276
        %v13621 = vpack.c.b16 %v12310, %v13605
        %v13622 = vpack.c.b16 %v12312, %v13606
        %v13623 = vpack.c.b16 %v12314, %v13607
        %v13624 = vpack.c.b16 %v12316, %v13608
        %v13625 = vpack.c.b16 %v12318, %v13609
        %v13626 = vpack.c.b16 %v12320, %v13610
        %v13627 = vpack.c.b16 %v12322, %v13611
        %v13628 = vpack.c.b16 %v12324, %v13612
        %v13629 = vpack.c.b16 %v12326, %v13613
        %v13630 = vpack.c.b16 %v12328, %v13614
        %v13631 = vpack.c.b16 %v12330, %v13615
        %v13632 = vpack.c.b16 %v12332, %v13616
        %v13633 = vpack.c.b16 %v12334, %v13617
        %v13634 = vpack.c.b16 %v12336, %v13618
        %v13635 = vpack.c.b16 %v12338, %v13619
        %v13636 = vpack.c.b16 %v12340, %v13620
        %v13637 = vrot.slane %v13621, 3
        %v13638 = vrot.slane %v13269, 3
        %v13639 = vsel %vm1663, %v13637, %v13638
        %v13640 = vrot.slane %v13622, 3
        %v13641 = vrot.slane %v13270, 3
        %v13642 = vsel %vm1663, %v13640, %v13641
        %v13643 = vrot.slane %v13623, 3
        %v13644 = vrot.slane %v13271, 3
        %v13645 = vsel %vm1663, %v13643, %v13644
        %v13646 = vrot.slane %v13624, 3
        %v13647 = vrot.slane %v13272, 3
        %v13648 = vsel %vm1663, %v13646, %v13647
        %v13649 = vrot.slane %v13625, 3
        %v13650 = vrot.slane %v13273, 3
        %v13651 = vsel %vm1663, %v13649, %v13650
        %v13652 = vrot.slane %v13626, 3
        %v13653 = vrot.slane %v13274, 3
        %v13654 = vsel %vm1663, %v13652, %v13653
        %v13655 = vrot.slane %v13627, 3
        %v13656 = vrot.slane %v13275, 3
        %v13657 = vsel %vm1663, %v13655, %v13656
        %v13658 = vrot.slane %v13628, 3
        %v13659 = vrot.slane %v13276, 3
        %v13660 = vsel %vm1663, %v13658, %v13659
        %v13661 = vrot.slane %v13629, 3
        %v13662 = vrot.slane %v13277, 3
        %v13663 = vsel %vm1663, %v13661, %v13662
        %v13664 = vrot.slane %v13630, 3
        %v13665 = vrot.slane %v13278, 3
        %v13666 = vsel %vm1663, %v13664, %v13665
        %v13667 = vrot.slane %v13631, 3
        %v13668 = vrot.slane %v13279, 3
        %v13669 = vsel %vm1663, %v13667, %v13668
        %v13670 = vrot.slane %v13632, 3
        %v13671 = vrot.slane %v13280, 3
        %v13672 = vsel %vm1663, %v13670, %v13671
        %v13673 = vrot.slane %v13633, 3
        %v13674 = vrot.slane %v13281, 3
        %v13675 = vsel %vm1663, %v13673, %v13674
        %v13676 = vrot.slane %v13634, 3
        %v13677 = vrot.slane %v13282, 3
        %v13678 = vsel %vm1663, %v13676, %v13677
        %v13679 = vrot.slane %v13635, 3
        %v13680 = vrot.slane %v13283, 3
        %v13681 = vsel %vm1663, %v13679, %v13680
        %v13682 = vrot.slane %v13636, 3
        %v13683 = vrot.slane %v13284, 3
        %v13684 = vsel %vm1663, %v13682, %v13683
        %13685 = vrot.lane.b32.xlu0 %v13639, 24
        %v13686 = vpop.permute.xlu0 %13685
        %13687 = vrot.lane.b32.xlu0 %v13642, 24
        %v13688 = vpop.permute.xlu0 %13687
        %13689 = vrot.lane.b32.xlu0 %v13645, 24
        %v13690 = vpop.permute.xlu0 %13689
        %13691 = vrot.lane.b32.xlu0 %v13648, 24
        %v13692 = vpop.permute.xlu0 %13691
        %13693 = vrot.lane.b32.xlu0 %v13651, 24
        %v13694 = vpop.permute.xlu0 %13693
        %13695 = vrot.lane.b32.xlu0 %v13654, 24
        %v13696 = vpop.permute.xlu0 %13695
        %13697 = vrot.lane.b32.xlu0 %v13657, 24
        %v13698 = vpop.permute.xlu0 %13697
        %13699 = vrot.lane.b32.xlu0 %v13660, 24
        %v13700 = vpop.permute.xlu0 %13699
        %13701 = vrot.lane.b32.xlu0 %v13663, 24
        %v13702 = vpop.permute.xlu0 %13701
        %13703 = vrot.lane.b32.xlu0 %v13666, 24
        %v13704 = vpop.permute.xlu0 %13703
        %13705 = vrot.lane.b32.xlu0 %v13669, 24
        %v13706 = vpop.permute.xlu0 %13705
        %13707 = vrot.lane.b32.xlu0 %v13672, 24
        %v13708 = vpop.permute.xlu0 %13707
        %13709 = vrot.lane.b32.xlu0 %v13675, 24
        %v13710 = vpop.permute.xlu0 %13709
        %13711 = vrot.lane.b32.xlu0 %v13678, 24
        %v13712 = vpop.permute.xlu0 %13711
        %13713 = vrot.lane.b32.xlu0 %v13681, 24
        %v13714 = vpop.permute.xlu0 %13713
        %13715 = vrot.lane.b32.xlu0 %v13684, 24
        %v13716 = vpop.permute.xlu0 %13715
        %v13718 = vsel %vm1744, %v12341, %v12598
        %v13720 = vsel %vm1744, %v12342, %v12600
        %v13722 = vsel %vm1744, %v12343, %v12602
        %v13724 = vsel %vm1744, %v12344, %v12604
        %v13726 = vsel %vm1744, %v12345, %v12606
        %v13728 = vsel %vm1744, %v12346, %v12608
        %v13730 = vsel %vm1744, %v12347, %v12610
        %v13732 = vsel %vm1744, %v12348, %v12612
        %v13734 = vsel %vm1744, %v12349, %v12614
        %v13736 = vsel %vm1744, %v12350, %v12616
        %v13738 = vsel %vm1744, %v12351, %v12618
        %v13740 = vsel %vm1744, %v12352, %v12620
        %v13742 = vsel %vm1744, %v12353, %v12622
        %v13744 = vsel %vm1744, %v12354, %v12624
        %v13746 = vsel %vm1744, %v12355, %v12626
        %v13748 = vsel %vm1744, %v12356, %v12628
        %v13750 = vsel %vm1777, %v13718, %v12726
        %v13752 = vsel %vm1777, %v13720, %v12728
        %v13754 = vsel %vm1777, %v13722, %v12730
        %v13756 = vsel %vm1777, %v13724, %v12732
        %v13758 = vsel %vm1777, %v13726, %v12734
        %v13760 = vsel %vm1777, %v13728, %v12736
        %v13762 = vsel %vm1777, %v13730, %v12738
        %v13764 = vsel %vm1777, %v13732, %v12740
        %v13766 = vsel %vm1777, %v13734, %v12742
        %v13768 = vsel %vm1777, %v13736, %v12744
        %v13770 = vsel %vm1777, %v13738, %v12746
        %v13772 = vsel %vm1777, %v13740, %v12748
        %v13774 = vsel %vm1777, %v13742, %v12750
        %v13776 = vsel %vm1777, %v13744, %v12752
        %v13778 = vsel %vm1777, %v13746, %v12754
        %v13780 = vsel %vm1777, %v13748, %v12756
        %v13782 = vsel %vm1810, %v13750, %v13078
        %v13784 = vsel %vm1810, %v13752, %v13080
        %v13786 = vsel %vm1810, %v13754, %v13082
        %v13788 = vsel %vm1810, %v13756, %v13084
        %v13790 = vsel %vm1810, %v13758, %v13086
        %v13792 = vsel %vm1810, %v13760, %v13088
        %v13794 = vsel %vm1810, %v13762, %v13090
        %v13796 = vsel %vm1810, %v13764, %v13092
        %v13798 = vsel %vm1810, %v13766, %v13094
        %v13800 = vsel %vm1810, %v13768, %v13096
        %v13802 = vsel %vm1810, %v13770, %v13098
        %v13804 = vsel %vm1810, %v13772, %v13100
        %v13806 = vsel %vm1810, %v13774, %v13102
        %v13808 = vsel %vm1810, %v13776, %v13104
        %v13810 = vsel %vm1810, %v13778, %v13106
        %v13812 = vsel %vm1810, %v13780, %v13108
        %v13814 = vsel %vm1843, %v13782, %v13206
        %v13816 = vsel %vm1843, %v13784, %v13208
        %v13818 = vsel %vm1843, %v13786, %v13210
        %v13820 = vsel %vm1843, %v13788, %v13212
        %v13822 = vsel %vm1843, %v13790, %v13214
        %v13824 = vsel %vm1843, %v13792, %v13216
        %v13826 = vsel %vm1843, %v13794, %v13218
        %v13828 = vsel %vm1843, %v13796, %v13220
        %v13830 = vsel %vm1843, %v13798, %v13222
        %v13832 = vsel %vm1843, %v13800, %v13224
        %v13834 = vsel %vm1843, %v13802, %v13226
        %v13836 = vsel %vm1843, %v13804, %v13228
        %v13838 = vsel %vm1843, %v13806, %v13230
        %v13840 = vsel %vm1843, %v13808, %v13232
        %v13842 = vsel %vm1843, %v13810, %v13234
        %v13844 = vsel %vm1843, %v13812, %v13236
        %v13846 = vsel %vm1876, %v13814, %v13558
        %v13848 = vsel %vm1876, %v13816, %v13560
        %v13850 = vsel %vm1876, %v13818, %v13562
        %v13852 = vsel %vm1876, %v13820, %v13564
        %v13854 = vsel %vm1876, %v13822, %v13566
        %v13856 = vsel %vm1876, %v13824, %v13568
        %v13858 = vsel %vm1876, %v13826, %v13570
        %v13860 = vsel %vm1876, %v13828, %v13572
        %v13862 = vsel %vm1876, %v13830, %v13574
        %v13864 = vsel %vm1876, %v13832, %v13576
        %v13866 = vsel %vm1876, %v13834, %v13578
        %v13868 = vsel %vm1876, %v13836, %v13580
        %v13870 = vsel %vm1876, %v13838, %v13582
        %v13872 = vsel %vm1876, %v13840, %v13584
        %v13874 = vsel %vm1876, %v13842, %v13586
        %v13876 = vsel %vm1876, %v13844, %v13588
        %v13878 = vsel %vm1909, %v13846, %v13686
        %v13880 = vsel %vm1909, %v13848, %v13688
        %v13882 = vsel %vm1909, %v13850, %v13690
        %v13884 = vsel %vm1909, %v13852, %v13692
        %v13886 = vsel %vm1909, %v13854, %v13694
        %v13888 = vsel %vm1909, %v13856, %v13696
        %v13890 = vsel %vm1909, %v13858, %v13698
        %v13892 = vsel %vm1909, %v13860, %v13700
        %v13894 = vsel %vm1909, %v13862, %v13702
        %v13896 = vsel %vm1909, %v13864, %v13704
        %v13898 = vsel %vm1909, %v13866, %v13706
        %v13900 = vsel %vm1909, %v13868, %v13708
        %v13902 = vsel %vm1909, %v13870, %v13710
        %v13904 = vsel %vm1909, %v13872, %v13712
        %v13906 = vsel %vm1909, %v13874, %v13714
        %v13908 = vsel %vm1909, %v13876, %v13716
        %s13909 = scalar_lea.vmem %s1, 96
        %v13910 = vld [vmem:[%s13909] sm:$0xf]
        %v13911 = vld [vmem:[%s13909 + $0x4] sm:$0xf]
        %v13912 = vld [vmem:[%s13909 + $0x8] sm:$0xf]
        %v13913 = vld [vmem:[%s13909 + $0xc] sm:$0x3]
        %v13918 = vunpack.c.l.b16 %v13910
        %v13919 = vunpack.c.l.b16 %v13911
        %v13920 = vunpack.c.l.b16 %v13912
        %v13921 = vunpack.c.l.b16 %v13913
        %v13922 = vpack.c.b16 %v13919, %v13918
        %v13923 = vpack.c.b16 %v13921, %v13920
        %v13925 = vsel %vm3723, %v13878, 0
        %v13927 = vsel %vm3723, %v13880, 0
        %v13929 = vsel %vm3723, %v13882, 0
        %v13931 = vsel %vm3723, %v13884, 0
        %v13933 = vsel %vm3723, %v13886, 0
        %v13935 = vsel %vm3723, %v13888, 0
        %v13937 = vsel %vm3723, %v13890, 0
        %v13939 = vsel %vm3723, %v13892, 0
        %v13941 = vsel %vm3723, %v13894, 0
        %v13943 = vsel %vm3723, %v13896, 0
        %v13945 = vsel %vm3723, %v13898, 0
        %v13947 = vsel %vm3723, %v13900, 0
        %v13949 = vsel %vm3723, %v13902, 0
        %v13951 = vsel %vm3723, %v13904, 0
        %v13953 = vsel %vm3723, %v13906, 0
        %v13955 = vsel %vm3723, %v13908, 0
        %v13958 = vsel %vm3756, %v13923, 0
        %13960 = vmatprep.subr.bf16.mxu0 0
        %13961 = vmatpush1.bf16.msra.mxu0 %v13922
        %13962 = vmatprep.subr.bf16.mxu0 0
        %13963 = vmatpush1.bf16.msra.mxu0 %v13958
        %13964 = vmatprep.subr.bf16.mxu0 0
        %13965 = vmatpush1.bf16.msra.mxu0 0
        %13966 = vmatprep.subr.bf16.mxu0 0
        %13967 = vmatpush1.bf16.msra.mxu0 0
        %13968 = vmatprep.subr.bf16.mxu0 0
        %13969 = vmatpush1.bf16.msra.mxu0 0
        %13970 = vmatprep.subr.bf16.mxu0 0
        %13971 = vmatpush1.bf16.msra.mxu0 0
        %13972 = vmatprep.subr.bf16.mxu0 0
        %13973 = vmatpush1.bf16.msra.mxu0 0
        %13974 = vmatprep.subr.bf16.mxu0 0
        %13975 = vmatpush1.bf16.msra.mxu0 0
        %13976 = vmatprep.subr.bf16.mxu0 0
        %13977 = vmatpush1.bf16.msra.mxu0 0
        %13978 = vmatprep.subr.bf16.mxu0 0
        %13979 = vmatpush1.bf16.msra.mxu0 0
        %13980 = vmatprep.subr.bf16.mxu0 0
        %13981 = vmatpush1.bf16.msra.mxu0 0
        %13982 = vmatprep.subr.bf16.mxu0 0
        %13983 = vmatpush1.bf16.msra.mxu0 0
        %13984 = vmatprep.subr.bf16.mxu0 0
        %13985 = vmatpush1.bf16.msra.mxu0 0
        %13986 = vmatprep.subr.bf16.mxu0 0
        %13987 = vmatpush1.bf16.msra.mxu0 0
        %13988 = vmatprep.subr.bf16.mxu0 0
        %13989 = vmatpush1.bf16.msra.mxu0 0
        %13990 = vmatprep.subr.bf16.mxu0 0
        %13991 = vmatpush1.bf16.msra.mxu0 0
        %13992 = vmatprep.mubr.bf16.mxu0 0
        %13993 = vmatmul.mubr.bf16.gmra.mrb[0].mxu0 %v13925
        %v13994 = vpop.f32.mrb[0].mxu0
        %v13995 = vadd.f32 0.0, %v13994
        %v13996 = vpop.f32.mrb[0].mxu0
        %v13997 = vpop.f32.mrb[0].mxu0
        %v13998 = vadd.f32 0.0, %v13997
        %v13999 = vpop.f32.mrb[0].mxu0
        %14000 = vmatprep.mubr.bf16.mxu0 0
        %14001 = vmatmul.mubr.bf16.gmra.mrb[0].mxu0 %v13927
        %v14002 = vpop.f32.mrb[0].mxu0
        %v14003 = vadd.f32 0.0, %v14002
        %v14004 = vpop.f32.mrb[0].mxu0
        %v14005 = vpop.f32.mrb[0].mxu0
        %v14006 = vadd.f32 0.0, %v14005
        %v14007 = vpop.f32.mrb[0].mxu0
        %14008 = vmatprep.mubr.bf16.mxu0 0
        %14009 = vmatmul.mubr.bf16.gmra.mrb[0].mxu0 %v13929
        %v14010 = vpop.f32.mrb[0].mxu0
        %v14011 = vadd.f32 0.0, %v14010
        %v14012 = vpop.f32.mrb[0].mxu0
        %v14013 = vpop.f32.mrb[0].mxu0
        %v14014 = vadd.f32 0.0, %v14013
        %v14015 = vpop.f32.mrb[0].mxu0
        %14016 = vmatprep.mubr.bf16.mxu0 0
        %14017 = vmatmul.mubr.bf16.gmra.mrb[0].mxu0 %v13931
        %v14018 = vpop.f32.mrb[0].mxu0
        %v14019 = vadd.f32 0.0, %v14018
        %v14020 = vpop.f32.mrb[0].mxu0
        %v14021 = vpop.f32.mrb[0].mxu0
        %v14022 = vadd.f32 0.0, %v14021
        %v14023 = vpop.f32.mrb[0].mxu0
        %14024 = vmatprep.mubr.bf16.mxu0 0
        %14025 = vmatmul.mubr.bf16.gmra.mrb[0].mxu0 %v13933
        %v14026 = vpop.f32.mrb[0].mxu0
        %v14027 = vadd.f32 0.0, %v14026
        %v14028 = vpop.f32.mrb[0].mxu0
        %v14029 = vpop.f32.mrb[0].mxu0
        %v14030 = vadd.f32 0.0, %v14029
        %v14031 = vpop.f32.mrb[0].mxu0
        %14032 = vmatprep.mubr.bf16.mxu0 0
        %14033 = vmatmul.mubr.bf16.gmra.mrb[0].mxu0 %v13935
        %v14034 = vpop.f32.mrb[0].mxu0
        %v14035 = vadd.f32 0.0, %v14034
        %v14036 = vpop.f32.mrb[0].mxu0
        %v14037 = vpop.f32.mrb[0].mxu0
        %v14038 = vadd.f32 0.0, %v14037
        %v14039 = vpop.f32.mrb[0].mxu0
        %14040 = vmatprep.mubr.bf16.mxu0 0
        %14041 = vmatmul.mubr.bf16.gmra.mrb[0].mxu0 %v13937
        %v14042 = vpop.f32.mrb[0].mxu0
        %v14043 = vadd.f32 0.0, %v14042
        %v14044 = vpop.f32.mrb[0].mxu0
        %v14045 = vpop.f32.mrb[0].mxu0
        %v14046 = vadd.f32 0.0, %v14045
        %v14047 = vpop.f32.mrb[0].mxu0
        %14048 = vmatprep.mubr.bf16.mxu0 0
        %14049 = vmatmul.mubr.bf16.gmra.mrb[0].mxu0 %v13939
        %v14050 = vpop.f32.mrb[0].mxu0
        %v14051 = vadd.f32 0.0, %v14050
        %v14052 = vpop.f32.mrb[0].mxu0
        %v14053 = vpop.f32.mrb[0].mxu0
        %v14054 = vadd.f32 0.0, %v14053
        %v14055 = vpop.f32.mrb[0].mxu0
        %14056 = vmatprep.mubr.bf16.mxu0 0
        %14057 = vmatmul.mubr.bf16.gmra.mrb[0].mxu0 %v13941
        %v14058 = vpop.f32.mrb[0].mxu0
        %v14059 = vadd.f32 0.0, %v14058
        %v14060 = vpop.f32.mrb[0].mxu0
        %v14061 = vpop.f32.mrb[0].mxu0
        %v14062 = vadd.f32 0.0, %v14061
        %v14063 = vpop.f32.mrb[0].mxu0
        %14064 = vmatprep.mubr.bf16.mxu0 0
        %14065 = vmatmul.mubr.bf16.gmra.mrb[0].mxu0 %v13943
        %v14066 = vpop.f32.mrb[0].mxu0
        %v14067 = vadd.f32 0.0, %v14066
        %v14068 = vpop.f32.mrb[0].mxu0
        %v14069 = vpop.f32.mrb[0].mxu0
        %v14070 = vadd.f32 0.0, %v14069
        %v14071 = vpop.f32.mrb[0].mxu0
        %14072 = vmatprep.mubr.bf16.mxu0 0
        %14073 = vmatmul.mubr.bf16.gmra.mrb[0].mxu0 %v13945
        %v14074 = vpop.f32.mrb[0].mxu0
        %v14075 = vadd.f32 0.0, %v14074
        %v14076 = vpop.f32.mrb[0].mxu0
        %v14077 = vpop.f32.mrb[0].mxu0
        %v14078 = vadd.f32 0.0, %v14077
        %v14079 = vpop.f32.mrb[0].mxu0
        %14080 = vmatprep.mubr.bf16.mxu0 0
        %14081 = vmatmul.mubr.bf16.gmra.mrb[0].mxu0 %v13947
        %v14082 = vpop.f32.mrb[0].mxu0
        %v14083 = vadd.f32 0.0, %v14082
        %v14084 = vpop.f32.mrb[0].mxu0
        %v14085 = vpop.f32.mrb[0].mxu0
        %v14086 = vadd.f32 0.0, %v14085
        %v14087 = vpop.f32.mrb[0].mxu0
        %14088 = vmatprep.mubr.bf16.mxu0 0
        %14089 = vmatmul.mubr.bf16.gmra.mrb[0].mxu0 %v13949
        %v14090 = vpop.f32.mrb[0].mxu0
        %v14091 = vadd.f32 0.0, %v14090
        %v14092 = vpop.f32.mrb[0].mxu0
        %v14093 = vpop.f32.mrb[0].mxu0
        %v14094 = vadd.f32 0.0, %v14093
        %v14095 = vpop.f32.mrb[0].mxu0
        %14096 = vmatprep.mubr.bf16.mxu0 0
        %14097 = vmatmul.mubr.bf16.gmra.mrb[0].mxu0 %v13951
        %v14098 = vpop.f32.mrb[0].mxu0
        %v14099 = vadd.f32 0.0, %v14098
        %v14100 = vpop.f32.mrb[0].mxu0
        %v14101 = vpop.f32.mrb[0].mxu0
        %v14102 = vadd.f32 0.0, %v14101
        %v14103 = vpop.f32.mrb[0].mxu0
        %14104 = vmatprep.mubr.bf16.mxu0 0
        %14105 = vmatmul.mubr.bf16.gmra.mrb[0].mxu0 %v13953
        %v14106 = vpop.f32.mrb[0].mxu0
        %v14107 = vadd.f32 0.0, %v14106
        %v14108 = vpop.f32.mrb[0].mxu0
        %v14109 = vpop.f32.mrb[0].mxu0
        %v14110 = vadd.f32 0.0, %v14109
        %v14111 = vpop.f32.mrb[0].mxu0
        %14112 = vmatprep.mubr.bf16.mxu0 0
        %14113 = vmatmul.mubr.bf16.gmra.mrb[0].mxu0 %v13955
        %v14114 = vpop.f32.mrb[0].mxu0
        %v14115 = vadd.f32 0.0, %v14114
        %v14116 = vpop.f32.mrb[0].mxu0
        %v14117 = vpop.f32.mrb[0].mxu0
        %v14118 = vadd.f32 0.0, %v14117
        %v14119 = vpop.f32.mrb[0].mxu0
        %14120 = vdwg.mxu0
        %v14121 = vadd.f32 %v12116, %v13995
        %v14122 = vadd.f32 %v12117, %v13998
        %v14123 = vadd.f32 %v12118, %v14003
        %v14124 = vadd.f32 %v12119, %v14006
        %v14125 = vadd.f32 %v12120, %v14011
        %v14126 = vadd.f32 %v12121, %v14014
        %v14127 = vadd.f32 %v12122, %v14019
        %v14128 = vadd.f32 %v12123, %v14022
        %v14129 = vadd.f32 %v12124, %v14027
        %v14130 = vadd.f32 %v12125, %v14030
        %v14131 = vadd.f32 %v12126, %v14035
        %v14132 = vadd.f32 %v12127, %v14038
        %v14133 = vadd.f32 %v12128, %v14043
        %v14134 = vadd.f32 %v12129, %v14046
        %v14135 = vadd.f32 %v12130, %v14051
        %v14136 = vadd.f32 %v12131, %v14054
        %v14137 = vadd.f32 %v12132, %v14059
        %v14138 = vadd.f32 %v12133, %v14062
        %v14139 = vadd.f32 %v12134, %v14067
        %v14140 = vadd.f32 %v12135, %v14070
        %v14141 = vadd.f32 %v12136, %v14075
        %v14142 = vadd.f32 %v12137, %v14078
        %v14143 = vadd.f32 %v12138, %v14083
        %v14144 = vadd.f32 %v12139, %v14086
        %v14145 = vadd.f32 %v12140, %v14091
        %v14146 = vadd.f32 %v12141, %v14094
        %v14147 = vadd.f32 %v12142, %v14099
        %v14148 = vadd.f32 %v12143, %v14102
        %v14149 = vadd.f32 %v12144, %v14107
        %v14150 = vadd.f32 %v12145, %v14110
        %v14151 = vadd.f32 %v12146, %v14115
        %v14152 = vadd.f32 %v12147, %v14118
        %v14153 = vld [vmem:[%s2] sm:$0x1]
        %v14155 = vlaneseq
        %v14156 = vshrl.u32 %v14155, 7
        %v14157 = vsub.s32 0, %v14156
        %v14158 = vrot.slane %v14153, %v14157
        %v14160 = vadd.f32 %v14121, %v14158
        %v14161 = vadd.f32 %v14122, %v14158
        %v14162 = vadd.f32 %v14123, %v14158
        %v14163 = vadd.f32 %v14124, %v14158
        %v14164 = vadd.f32 %v14125, %v14158
        %v14165 = vadd.f32 %v14126, %v14158
        %v14166 = vadd.f32 %v14127, %v14158
        %v14167 = vadd.f32 %v14128, %v14158
        %v14168 = vadd.f32 %v14129, %v14158
        %v14169 = vadd.f32 %v14130, %v14158
        %v14170 = vadd.f32 %v14131, %v14158
        %v14171 = vadd.f32 %v14132, %v14158
        %v14172 = vadd.f32 %v14133, %v14158
        %v14173 = vadd.f32 %v14134, %v14158
        %v14174 = vadd.f32 %v14135, %v14158
        %v14175 = vadd.f32 %v14136, %v14158
        %v14176 = vadd.f32 %v14137, %v14158
        %v14177 = vadd.f32 %v14138, %v14158
        %v14178 = vadd.f32 %v14139, %v14158
        %v14179 = vadd.f32 %v14140, %v14158
        %v14180 = vadd.f32 %v14141, %v14158
        %v14181 = vadd.f32 %v14142, %v14158
        %v14182 = vadd.f32 %v14143, %v14158
        %v14183 = vadd.f32 %v14144, %v14158
        %v14184 = vadd.f32 %v14145, %v14158
        %v14185 = vadd.f32 %v14146, %v14158
        %v14186 = vadd.f32 %v14147, %v14158
        %v14187 = vadd.f32 %v14148, %v14158
        %v14188 = vadd.f32 %v14149, %v14158
        %v14189 = vadd.f32 %v14150, %v14158
        %v14190 = vadd.f32 %v14151, %v14158
        %v14191 = vadd.f32 %v14152, %v14158
        %14192 = vst [vmem:[%s163] sm:$0xff] %v14160
        %14193 = vst [vmem:[%s163 + $0x8] sm:$0xff] %v14161
        %14194 = vst [vmem:[%s163 + $0x10] sm:$0xff] %v14162
        %14195 = vst [vmem:[%s163 + $0x18] sm:$0xff] %v14163
        %14196 = vst [vmem:[%s163 + $0x20] sm:$0xff] %v14164
        %14197 = vst [vmem:[%s163 + $0x28] sm:$0xff] %v14165
        %14198 = vst [vmem:[%s163 + $0x30] sm:$0xff] %v14166
        %14199 = vst [vmem:[%s163 + $0x38] sm:$0xff] %v14167
        %14200 = vst [vmem:[%s163 + $0x40] sm:$0xff] %v14168
        %14201 = vst [vmem:[%s163 + $0x48] sm:$0xff] %v14169
        %14202 = vst [vmem:[%s163 + $0x50] sm:$0xff] %v14170
        %14203 = vst [vmem:[%s163 + $0x58] sm:$0xff] %v14171
        %14204 = vst [vmem:[%s163 + $0x60] sm:$0xff] %v14172
        %14205 = vst [vmem:[%s163 + $0x68] sm:$0xff] %v14173
        %14206 = vst [vmem:[%s163 + $0x70] sm:$0xff] %v14174
        %14207 = vst [vmem:[%s163 + $0x78] sm:$0xff] %v14175
        %14208 = vst [vmem:[%s163 + $0x80] sm:$0xff] %v14176
        %14209 = vst [vmem:[%s163 + $0x88] sm:$0xff] %v14177
        %14210 = vst [vmem:[%s163 + $0x90] sm:$0xff] %v14178
        %14211 = vst [vmem:[%s163 + $0x98] sm:$0xff] %v14179
        %14212 = vst [vmem:[%s163 + $0xa0] sm:$0xff] %v14180
        %14213 = vst [vmem:[%s163 + $0xa8] sm:$0xff] %v14181
        %14214 = vst [vmem:[%s163 + $0xb0] sm:$0xff] %v14182
        %14215 = vst [vmem:[%s163 + $0xb8] sm:$0xff] %v14183
        %14216 = vst [vmem:[%s163 + $0xc0] sm:$0xff] %v14184
        %14217 = vst [vmem:[%s163 + $0xc8] sm:$0xff] %v14185
        %14218 = vst [vmem:[%s163 + $0xd0] sm:$0xff] %v14186
        %14219 = vst [vmem:[%s163 + $0xd8] sm:$0xff] %v14187
        %14220 = vst [vmem:[%s163 + $0xe0] sm:$0xff] %v14188
        %14221 = vst [vmem:[%s163 + $0xe8] sm:$0xff] %v14189
        %14222 = vst [vmem:[%s163 + $0xf0] sm:$0xff] %v14190
        %14223 = vst [vmem:[%s163 + $0xf8] sm:$0xff] %v14191
        %s14224 = sand.u32 %s93, 1
        %s14225 = scalar_lea.sflag [#allocation3], %s14224
        %s14226 = sand.u32 %s93, 1
        %s14227 = smul.addr %s14226, 256
        %s14228 = scalar_lea.vmem [#allocation2], %s14227
        // Predicated region
        $region33: #{tpu_custom_call.1} parent=31 // pred_check
          %p14229 = pneg %p103
        $region34: #{tpu_custom_call.1} parent=31 // pred_check_branch
          %14231 = sbr.rel (%p14229) target = $region36
        $region35: #{tpu_custom_call.1} parent=31 // pred_region
          %s14233 = ssub.s32 4096, 4096
          %14234 = vsyncadd %s14225, %s14233
          %s14235 = smul.addr %s17, 32
          %s14236 = smul.addr %s14235, 128
          %s14237 = scalar_lea.hbm %s3, %s14236
          %s14238 = sshll.u32 %s14228, 4
          %s14239 = int_to_ptr.vmem [resolvable:$true] %s14238
          %14244 = dma.vmem_to_hbm [thread:$0]  %s14239, 4096, %s14237, %s14225, 128, 128, 8
        $region36: #{tpu_custom_call.1} parent=31 // pred_fallthru
          _
      $region32: #{tpu_custom_call.1} parent=5 // pred_fallthru
        _
      %p14245 = scmp.le.s32.totalorder 2, %s12
      // Predicated region
      $region37: #{tpu_custom_call.1} parent=5 // pred_check
        %p14246 = pneg %p14245
      $region38: #{tpu_custom_call.1} parent=5 // pred_check_branch
        %14248 = sbr.rel (%p14246) target = $region40
      $region39: #{tpu_custom_call.1} parent=5 // pred_region
        %s14249 = ssub.s32 %s12, 2
        // Predicated region
        $region41: #{tpu_custom_call.1} parent=39 // pred_check
          %p14250 = pneg %p109
        $region42: #{tpu_custom_call.1} parent=39 // pred_check_branch
          %14252 = sbr.rel (%p14250) target = $region44
        $region43: #{tpu_custom_call.1} parent=39 // pred_region
          %s14253 = sand.u32 %s94, 1
          %s14254 = scalar_lea.sflag [#allocation3], %s14253
          %s14255 = sand.u32 %s94, 1
          %s14256 = smul.addr %s14255, 256
          %s14257 = scalar_lea.vmem [#allocation2], %s14256
          %14258 = dma.done %s14254, 4096
        $region44: #{tpu_custom_call.1} parent=39 // pred_fallthru
          _
      $region40: #{tpu_custom_call.1} parent=5 // pred_fallthru
        _
    $region6: #{tpu_custom_call.1} parent=1 // loop_footer
      %s16 = sadd.s32 1, %s12
    $region7: #{tpu_custom_call.1} parent=1 // loop_footer_branch
      %11 = sbr.rel target = $region3
    $region8: #{tpu_custom_call.1} parent=1 // loop_exit
      _
    %14259 = vsyncpa [#allocation3], 1
    %s14260 = scalar_lea.sflag [#allocation3], 1
    %14261 = vsyncpa %s14260, 1

</llo_original>
